<compile_context>
chip_gen: v7x
topology: tpu7x:2x2x1
jax: 0.10.0
libtpu: 0.0.40
codegen_flags: <defaults>
</compile_context>

<pallas_src>
import functools

import jax
import jax.numpy as jnp
from jax.experimental import pallas as pl
from jax.experimental.pallas import tpu as pltpu

F32 = jnp.float32
BF16 = jnp.bfloat16


# ----------------------------- small helpers (used inside kernels) -----------------------------

def _ln(x, gamma, beta, eps=1e-5):
    mean = jnp.mean(x, axis=-1, keepdims=True)
    xc = x - mean
    var = jnp.mean(xc * xc, axis=-1, keepdims=True)
    return xc * jax.lax.rsqrt(var + eps) * gamma + beta


def _sigmoid(x):
    return 1.0 / (1.0 + jnp.exp(-x))


def _silu(x):
    return x * _sigmoid(x)


def _pick_tile(n, target, align):
    """Largest multiple of `align` <= target dividing n, else n (full)."""
    if n <= target:
        return n
    t = (target // align) * align
    while t >= align:
        if n % t == 0:
            return t
        t -= align
    return n


def _row_tm(n, target=512):
    return n if n <= target else target


# ----------------------------- Pallas kernels -----------------------------

def _ln_linear_kernel(x_ref, lg_ref, lb_ref, w_ref, b_ref, o_ref, *, out_dtype):
    z = _ln(x_ref[...].astype(F32), lg_ref[...], lb_ref[...])
    y = jnp.dot(z.astype(BF16), w_ref[...], preferred_element_type=F32) + b_ref[...]
    o_ref[...] = y.astype(out_dtype)


def _transition_kernel(x_ref, lg_ref, lb_ref, w12_ref, b12_ref, w3_ref, b3_ref, o_ref, *, d_ff):
    # Fused: LN -> [W1|W2] wide matmul -> silu(a)*b -> W3 matmul.
    z = _ln(x_ref[...].astype(F32), lg_ref[...], lb_ref[...])
    h = jnp.dot(z.astype(BF16), w12_ref[...], preferred_element_type=F32) + b12_ref[...]
    hh = _silu(h[:, :d_ff]) * h[:, d_ff:]
    o_ref[...] = jnp.dot(hh.astype(BF16), w3_ref[...], preferred_element_type=F32) + b3_ref[...]


def _trimul_proj_kernel(x_ref, m_ref, lg_ref, lb_ref, w_ref, bw_ref,
                        oa_ref, ob_ref, og_ref, *, dh):
    # Fused: LN -> [ag|a|bg|b|g] wide matmul -> sigmoid-gating -> mask.
    z = _ln(x_ref[...].astype(F32), lg_ref[...], lb_ref[...])
    p = jnp.dot(z.astype(BF16), w_ref[...], preferred_element_type=F32) + bw_ref[...]
    m = m_ref[...]
    oa_ref[...] = (_sigmoid(p[:, 0:dh]) * p[:, dh:2 * dh] * m).astype(BF16)
    ob_ref[...] = (_sigmoid(p[:, 2 * dh:3 * dh]) * p[:, 3 * dh:4 * dh] * m).astype(BF16)
    og_ref[...] = p[:, 4 * dh:].astype(BF16)          # pre-sigmoid output gate


def _trimul_kernel(a_ref, b_ref, o_ref, acc_ref):
    # a_ref[0]: (dh, TI, TK), b_ref[0]: (dh, TJ, TK)  ->  acc: (dh, TI, TJ)
    k = pl.program_id(3)

    @pl.when(k == 0)
    def _():
        acc_ref[...] = jnp.zeros_like(acc_ref)

    acc_ref[...] += jnp.einsum(
        "dik,djk->dij", a_ref[0], b_ref[0], preferred_element_type=F32)

    @pl.when(k == pl.num_programs(3) - 1)
    def _():
        o_ref[0] = acc_ref[...].astype(o_ref.dtype)


def _trimul_out_kernel(x_ref, g_ref, lg_ref, lb_ref, wo_ref, bo_ref, o_ref):
    # Fused: LN2(x) -> output projection -> sigmoid(gate) * y
    z = _ln(x_ref[...].astype(F32), lg_ref[...], lb_ref[...])
    y = jnp.dot(z.astype(BF16), wo_ref[...], preferred_element_type=F32) + bo_ref[...]
    o_ref[...] = _sigmoid(g_ref[...].astype(F32)) * y


def _attn_proj_kernel(x_ref, lg_ref, lb_ref, w1_ref, b1_ref, w2_ref, b2_ref,
                      qkvg_ref, tb_ref):
    # Fused: LN -> [q|k|v|g] wide matmul (q pre-scaled) + triangle-bias matmul.
    z = _ln(x_ref[...].astype(F32), lg_ref[...], lb_ref[...])
    zb = z.astype(BF16)
    qkvg_ref[...] = (jnp.dot(zb, w1_ref[...], preferred_element_type=F32)
                     + b1_ref[...]).astype(BF16)
    tb_ref[...] = jnp.dot(zb, w2_ref[...], preferred_element_type=F32) + b2_ref[...]


def _attn_kernel(qkvg_ref, bias_ref, mb_ref, wo_ref, bo_ref, o_ref, *, n_head, d_head):
    # qkvg_ref: (1,1,L,4*H*c) bf16   (q already scaled by 1/sqrt(c) in the weights)
    # bias_ref: (1,H,Lq,Lk) f32  (triangle/pair bias; same block reused across the row grid axis)
    # mb_ref:   (1,1,1,Lk) f32   (key mask bias)
    # wo_ref:   (H*c, d_out) bf16 ; bo_ref: (1, d_out) f32
    blk = qkvg_ref[0, 0].astype(F32)
    bias = bias_ref[0]
    mb = mb_ref[0, 0]
    hc = n_head * d_head
    outs = []
    for h in range(n_head):
        s = h * d_head
        qh = blk[:, s:s + d_head].astype(BF16)
        kh = blk[:, hc + s:hc + s + d_head].astype(BF16)
        vh = blk[:, 2 * hc + s:2 * hc + s + d_head].astype(BF16)
        logits = jax.lax.dot_general(
            qh, kh, (((1,), (1,)), ((), ())), preferred_element_type=F32)
        logits = logits + bias[h] + mb
        mmax = jnp.max(logits, axis=-1, keepdims=True)
        e = jnp.exp(logits - mmax)
        p = e * pl.reciprocal(jnp.sum(e, axis=-1, keepdims=True), approx=True)
        outs.append(jnp.dot(p.astype(BF16), vh, preferred_element_type=F32))
    # Gate + output projection applied ONCE on the head-concatenated tensor:
    # one (L, H*c) x (H*c, d_out) MXU matmul instead of H tiny (L,c)x(c,d_out) ones.
    o_all = jnp.concatenate(outs, axis=-1)              # (L, H*c) f32
    g_all = blk[:, 3 * hc:]                             # (L, H*c) f32 (pre-sigmoid gates)
    gated = (_sigmoid(g_all) * o_all).astype(BF16)
    # TODO(synk): for very long sequences, switch to a key-blocked online-softmax loop here.
    o_ref[0, 0] = jnp.dot(gated, wo_ref[...], preferred_element_type=F32) + bo_ref[...]


# ----------------------------- Pallas wrappers -----------------------------

def _ln_linear(x2, ln, w, b, out_dtype=F32):
    n, d = x2.shape
    dout = w.shape[1]
    tm = _row_tm(n)
    kern = functools.partial(_ln_linear_kernel, out_dtype=out_dtype)
    return pl.pallas_call(
        kern,
        grid=(pl.cdiv(n, tm),),
        out_shape=jax.ShapeDtypeStruct((n, dout), out_dtype),
        in_specs=[
            pl.BlockSpec((tm, d), lambda i: (i, 0)),
            pl.BlockSpec((1, d), lambda i: (0, 0)),
            pl.BlockSpec((1, d), lambda i: (0, 0)),
            pl.BlockSpec((d, dout), lambda i: (0, 0)),
            pl.BlockSpec((1, dout), lambda i: (0, 0)),
        ],
        out_specs=pl.BlockSpec((tm, dout), lambda i: (i, 0)),
        compiler_params=pltpu.CompilerParams(dimension_semantics=("parallel",)),
    )(x2, ln[0].reshape(1, -1), ln[1].reshape(1, -1), w, b)


def transition(x, p):
    lead = x.shape[:-1]
    d = x.shape[-1]
    n = 1
    for s in lead:
        n *= s
    x2 = x.reshape(n, d)
    d_ff = p["w1"][0].shape[1]
    w12 = jnp.concatenate([p["w1"][0], p["w2"][0]], axis=1).astype(BF16)
    b12 = jnp.concatenate([p["w1"][1], p["w2"][1]], axis=0).reshape(1, -1)
    w3 = p["w3"][0].astype(BF16)
    b3 = p["w3"][1].reshape(1, -1)
    tm = _row_tm(n)
    kern = functools.partial(_transition_kernel, d_ff=d_ff)
    out = pl.pallas_call(
        kern,
        grid=(pl.cdiv(n, tm),),
        out_shape=jax.ShapeDtypeStruct((n, d), F32),
        in_specs=[
            pl.BlockSpec((tm, d), lambda i: (i, 0)),
            pl.BlockSpec((1, d), lambda i: (0, 0)),
            pl.BlockSpec((1, d), lambda i: (0, 0)),
            pl.BlockSpec((d, 2 * d_ff), lambda i: (0, 0)),
            pl.BlockSpec((1, 2 * d_ff), lambda i: (0, 0)),
            pl.BlockSpec((d_ff, d), lambda i: (0, 0)),
            pl.BlockSpec((1, d), lambda i: (0, 0)),
        ],
        out_specs=pl.BlockSpec((tm, d), lambda i: (i, 0)),
        compiler_params=pltpu.CompilerParams(dimension_semantics=("parallel",)),
    )(x2, p["ln"][0].reshape(1, -1), p["ln"][1].reshape(1, -1), w12, b12, w3, b3)
    return out.reshape(lead + (d,))


def _trimul_proj(x2, mask2, ln, w_cat, b_cat, dh):
    n, d = x2.shape
    wtot = w_cat.shape[1]
    tm = _row_tm(n)
    kern = functools.partial(_trimul_proj_kernel, dh=dh)
    return pl.pallas_call(
        kern,
        grid=(pl.cdiv(n, tm),),
        out_shape=(jax.ShapeDtypeStruct((n, dh), BF16),
                   jax.ShapeDtypeStruct((n, dh), BF16),
                   jax.ShapeDtypeStruct((n, d), BF16)),
        in_specs=[
            pl.BlockSpec((tm, d), lambda i: (i, 0)),
            pl.BlockSpec((tm, 1), lambda i: (i, 0)),
            pl.BlockSpec((1, d), lambda i: (0, 0)),
            pl.BlockSpec((1, d), lambda i: (0, 0)),
            pl.BlockSpec((d, wtot), lambda i: (0, 0)),
            pl.BlockSpec((1, wtot), lambda i: (0, 0)),
        ],
        out_specs=(pl.BlockSpec((tm, dh), lambda i: (i, 0)),
                   pl.BlockSpec((tm, dh), lambda i: (i, 0)),
                   pl.BlockSpec((tm, d), lambda i: (i, 0))),
        compiler_params=pltpu.CompilerParams(dimension_semantics=("parallel",)),
    )(x2, mask2, ln[0].reshape(1, -1), ln[1].reshape(1, -1), w_cat, b_cat)


def trimul_pallas(at, bt):
    """at, bt: (B, dh, L, L) bf16 -> (B, dh, L, L) bf16, out[b,d,i,j] = sum_k at[b,d,i,k]*bt[b,d,j,k]."""
    B, dh, L, _ = at.shape
    TI = _pick_tile(L, 128, 8)
    TJ = TI
    TK = _pick_tile(L, 256, 128)
    grid = (B, L // TI, L // TJ, L // TK)
    return pl.pallas_call(
        _trimul_kernel,
        grid=grid,
        out_shape=jax.ShapeDtypeStruct((B, dh, L, L), BF16),
        in_specs=[
            pl.BlockSpec((1, dh, TI, TK), lambda b, i, j, k: (b, 0, i, k)),
            pl.BlockSpec((1, dh, TJ, TK), lambda b, i, j, k: (b, 0, j, k)),
        ],
        out_specs=pl.BlockSpec((1, dh, TI, TJ), lambda b, i, j, k: (b, 0, i, j)),
        scratch_shapes=[pltpu.VMEM((dh, TI, TJ), F32)],
        compiler_params=pltpu.CompilerParams(
            dimension_semantics=("parallel", "parallel", "parallel", "arbitrary")),
    )(at, bt)


def _trimul_out(x2, g2, ln2, wo, bo):
    n, dh = x2.shape
    d_pair = wo.shape[1]
    tm = _row_tm(n)
    return pl.pallas_call(
        _trimul_out_kernel,
        grid=(pl.cdiv(n, tm),),
        out_shape=jax.ShapeDtypeStruct((n, d_pair), F32),
        in_specs=[
            pl.BlockSpec((tm, dh), lambda i: (i, 0)),
            pl.BlockSpec((tm, d_pair), lambda i: (i, 0)),
            pl.BlockSpec((1, dh), lambda i: (0, 0)),
            pl.BlockSpec((1, dh), lambda i: (0, 0)),
            pl.BlockSpec((dh, d_pair), lambda i: (0, 0)),
            pl.BlockSpec((1, d_pair), lambda i: (0, 0)),
        ],
        out_specs=pl.BlockSpec((tm, d_pair), lambda i: (i, 0)),
        compiler_params=pltpu.CompilerParams(dimension_semantics=("parallel",)),
    )(x2, g2, ln2[0].reshape(1, -1), ln2[1].reshape(1, -1), wo, bo)


def _attn_proj(x2, ln, w_qkvg, b_qkvg, w_tb, b_tb):
    n, d = x2.shape
    wtot = w_qkvg.shape[1]
    hH = w_tb.shape[1]
    tm = _row_tm(n)
    return pl.pallas_call(
        _attn_proj_kernel,
        grid=(pl.cdiv(n, tm),),
        out_shape=(jax.ShapeDtypeStruct((n, wtot), BF16),
                   jax.ShapeDtypeStruct((n, hH), F32)),
        in_specs=[
            pl.BlockSpec((tm, d), lambda i: (i, 0)),
            pl.BlockSpec((1, d), lambda i: (0, 0)),
            pl.BlockSpec((1, d), lambda i: (0, 0)),
            pl.BlockSpec((d, wtot), lambda i: (0, 0)),
            pl.BlockSpec((1, wtot), lambda i: (0, 0)),
            pl.BlockSpec((d, hH), lambda i: (0, 0)),
            pl.BlockSpec((1, hH), lambda i: (0, 0)),
        ],
        out_specs=(pl.BlockSpec((tm, wtot), lambda i: (i, 0)),
                   pl.BlockSpec((tm, hH), lambda i: (i, 0))),
        compiler_params=pltpu.CompilerParams(dimension_semantics=("parallel",)),
    )(x2, ln[0].reshape(1, -1), ln[1].reshape(1, -1), w_qkvg, b_qkvg, w_tb, b_tb)


def biased_attention(qkvg, bias_hjk, maskb, wo2, bo, n_head, d_head, d_out):
    """qkvg: (B, R, L, 4*H*c) bf16; bias_hjk: (B, H, L, L) f32 (reused across R);
       maskb: (B, R, 1, L) f32; wo2: (H*c, d_out) bf16; bo: (1, d_out) f32."""
    B, R, L, four_hc = qkvg.shape
    H = n_head
    hc = n_head * d_head
    kern = functools.partial(_attn_kernel, n_head=n_head, d_head=d_head)
    return pl.pallas_call(
        kern,
        grid=(B, R),
        out_shape=jax.ShapeDtypeStruct((B, R, L, d_out), F32),
        in_specs=[
            pl.BlockSpec((1, 1, L, four_hc), lambda b, r: (b, r, 0, 0)),
            pl.BlockSpec((1, H, L, L), lambda b, r: (b, 0, 0, 0)),
            pl.BlockSpec((1, 1, 1, L), lambda b, r: (b, r, 0, 0)),
            pl.BlockSpec((hc, d_out), lambda b, r: (0, 0)),
            pl.BlockSpec((1, d_out), lambda b, r: (0, 0)),
        ],
        out_specs=pl.BlockSpec((1, 1, L, d_out), lambda b, r: (b, r, 0, 0)),
        compiler_params=pltpu.CompilerParams(
            dimension_semantics=("parallel", "parallel")),
    )(qkvg, bias_hjk, maskb, wo2, bo)


# ----------------------------- Sub-modules -----------------------------

def triangle_multiplication(pair, pair_mask, p, outgoing):
    B, L, _, d_pair = pair.shape
    dh = p["a"][0].shape[1]
    n = B * L * L
    # fused projection weights [ag | a | bg | b | g]
    w_cat = jnp.concatenate(
        [p["ag"][0], p["a"][0], p["bg"][0], p["b"][0], p["g"][0]], axis=1).astype(BF16)
    b_cat = jnp.concatenate(
        [p["ag"][1], p["a"][1], p["bg"][1], p["b"][1], p["g"][1]], axis=0).reshape(1, -1)
    a2, b2, g2 = _trimul_proj(pair.reshape(n, d_pair),
                              pair_mask.reshape(n, 1).astype(F32),
                              p["ln"], w_cat, b_cat, dh)
    # TODO(synk): the channel-major transpose could be folded into the trimul BlockSpecs; it is a
    # single bf16 HBM pass here (the largest intermediate is kept bf16 throughout).
    perm = (0, 3, 1, 2) if outgoing else (0, 3, 2, 1)
    at = jnp.transpose(a2.reshape(B, L, L, dh), perm)
    bt = jnp.transpose(b2.reshape(B, L, L, dh), perm)
    xt = trimul_pallas(at, bt)                                   # (B, dh, L, L) bf16
    x2 = jnp.transpose(xt, (0, 2, 3, 1)).reshape(n, dh)
    out2 = _trimul_out(x2, g2, p["ln2"],
                       p["o"][0].astype(BF16), p["o"][1].reshape(1, -1))
    return out2.reshape(B, L, L, d_pair)


def triangle_attention(pair, pair_mask, p, starting, n_head, d_head):
    B, L, _, d_pair = pair.shape
    hc = n_head * d_head
    n = B * L * L
    scale = float(d_head) ** -0.5
    # fused [q|k|v|g] weights with the 1/sqrt(c) scale folded into q
    w_qkvg = jnp.concatenate(
        [p["q"][0] * scale, p["k"][0], p["v"][0], p["g"][0]], axis=1).astype(BF16)
    b_qkvg = jnp.concatenate(
        [p["q"][1] * scale, p["k"][1], p["v"][1], p["g"][1]], axis=0).reshape(1, -1)
    w_tb = p["tb"][0].astype(BF16)
    b_tb = p["tb"][1].reshape(1, -1)

    qkvg2, tb2 = _attn_proj(pair.reshape(n, d_pair), p["ln"], w_qkvg, b_qkvg, w_tb, b_tb)
    qkvg = qkvg2.reshape(B, L, L, 4 * hc)
    tb4 = tb2.reshape(B, L, L, n_head)

    if starting:
        tb_hjk = jnp.transpose(tb4, (0, 3, 1, 2))                 # (B, H, J, K)
        mask_t = pair_mask
    else:
        # ending-node attention == starting attention on the transposed pair representation
        # TODO(synk): the bf16 qkvg swapaxes could be folded into the attention BlockSpecs.
        qkvg = jnp.swapaxes(qkvg, 1, 2)
        tb_hjk = jnp.transpose(tb4, (0, 3, 2, 1))
        mask_t = jnp.swapaxes(pair_mask, 1, 2)

    maskb = ((1.0 - mask_t) * (-1e9)).reshape(B, L, 1, L)
    wo2 = p["o"][0].astype(BF16)                                  # (H*c, d_pair)
    bo = p["o"][1].reshape(1, -1)
    out = biased_attention(qkvg, tb_hjk, maskb, wo2, bo, n_head, d_head, d_pair)
    out = out.reshape(B, L, L, d_pair)
    if not starting:
        out = jnp.swapaxes(out, 1, 2)
    return out


def attention_pair_bias(single, pair, single_mask, p, n_head):
    B, L, ds = single.shape
    d_pair = pair.shape[-1]
    c = ds // n_head
    scale = float(c) ** -0.5
    w_qkvg = jnp.concatenate(
        [p["q"][0] * scale, p["k"][0], p["v"][0], p["g"][0]], axis=1).astype(BF16)
    b_qkvg = jnp.concatenate(
        [p["q"][1] * scale, p["k"][1], p["v"][1], p["g"][1]], axis=0).reshape(1, -1)

    qkvg2 = _ln_linear(single.reshape(B * L, ds), p["ln_s"], w_qkvg, b_qkvg, out_dtype=BF16)
    pb2 = _ln_linear(pair.reshape(B * L * L, d_pair), p["ln_p"],
                     p["pb"][0].astype(BF16), p["pb"][1].reshape(1, -1), out_dtype=F32)
    pb_hij = jnp.transpose(pb2.reshape(B, L, L, n_head), (0, 3, 1, 2))  # (B, H, I, J)

    maskb = ((1.0 - single_mask) * (-1e9)).reshape(B, 1, 1, L)
    qkvg = qkvg2.reshape(B, 1, L, 4 * ds)
    wo2 = p["o"][0].astype(BF16)                                  # (ds, ds)
    bo = p["o"][1].reshape(1, -1)
    out = biased_attention(qkvg, pb_hij, maskb, wo2, bo, n_head, c, ds)   # (B, 1, L, ds)
    return out.reshape(B, L, ds)


# ----------------------------- Pairformer block / stack -----------------------------

def pairformer_block(pair, single, single_mask, p, cfg):
    pair_mask = single_mask[:, :, None] * single_mask[:, None, :]
    # TODO(synk): drop_row / drop_col are stochastic structured dropout; identity at eval time.
    pair = pair + triangle_multiplication(pair, pair_mask, p["tm_out"], outgoing=True)
    pair = pair + triangle_multiplication(pair, pair_mask, p["tm_in"], outgoing=False)
    pair = pair + triangle_attention(
        pair, pair_mask, p["ta_start"], True,
        cfg["n_head_in_tri_attention"], cfg["d_hidden_tri_attention"])
    pair = pair + triangle_attention(
        pair, pair_mask, p["ta_end"], False,
        cfg["n_head_in_tri_attention"], cfg["d_hidden_tri_attention"])
    pair = pair + transition(pair, p["trans_pair"])
    single = single + attention_pair_bias(
        single, pair, single_mask, p["apb"], cfg["n_head_attention"])
    single = single + transition(single, p["trans_single"])
    return single, pair


def pairformer(pair, single, single_mask, params, cfg):
    for p in params:
        single, pair = pairformer_block(pair, single, single_mask, p, cfg)
    return single, pair


# ----------------------------- Deterministic parameter init -----------------------------

def _init_linear(key, din, dout):
    w = jax.random.normal(key, (din, dout), F32) * (float(din) ** -0.5)
    b = jnp.zeros((dout,), F32)
    return w, b


def init_block_params(key, cfg):
    d_pair = cfg["d_pair"]
    d_single = cfg["d_single"]
    dh_tm = cfg["d_hidden_tri_multi"]
    dh_ta = cfg["d_hidden_tri_attention"]
    H_ta = cfg["n_head_in_tri_attention"]
    H_a = cfg["n_head_attention"]
    keys = iter(jax.random.split(key, 64))

    def lin(din, dout):
        return _init_linear(next(keys), din, dout)

    def ln(d):
        return (jnp.ones((d,), F32), jnp.zeros((d,), F32))

    def tm_params():
        return {
            "ln": ln(d_pair), "ln2": ln(dh_tm),
            "ag": lin(d_pair, dh_tm), "a": lin(d_pair, dh_tm),
            "bg": lin(d_pair, dh_tm), "b": lin(d_pair, dh_tm),
            "g": lin(d_pair, d_pair), "o": lin(dh_tm, d_pair),
        }

    def ta_params():
        return {
            "ln": ln(d_pair),
            "q": lin(d_pair, H_ta * dh_ta), "k": lin(d_pair, H_ta * dh_ta),
            "v": lin(d_pair, H_ta * dh_ta), "tb": lin(d_pair, H_ta),
            "g": lin(d_pair, H_ta * dh_ta), "o": lin(H_ta * dh_ta, d_pair),
        }

    def trans_params(d):
        return {"ln": ln(d), "w1": lin(d, 4 * d), "w2": lin(d, 4 * d), "w3": lin(4 * d, d)}

    def apb_params():
        return {
            "ln_s": ln(d_single), "ln_p": ln(d_pair),
            "q": lin(d_single, d_single), "k": lin(d_single, d_single),
            "v": lin(d_single, d_single), "pb": lin(d_pair, H_a),
            "g": lin(d_single, d_single), "o": lin(d_single, d_single),
        }

    return {
        "tm_out": tm_params(),
        "tm_in": tm_params(),
        "ta_start": ta_params(),
        "ta_end": ta_params(),
        "trans_pair": trans_params(d_pair),
        "apb": apb_params(),
        "trans_single": trans_params(d_single),
    }


# ----------------------------- Main -----------------------------

if __name__ == "__main__":
    cfg = dict(
        d_single=32,
        d_pair=32,
        d_hidden_tri_multi=16,
        d_hidden_tri_attention=8,
        n_head_in_tri_attention=4,
        n_head_attention=4,
        n_block_pairformer=2,
    )
    B, L = 2, 8

    key = jax.random.PRNGKey(0)
    k_pair, k_single, *k_blocks = jax.random.split(key, 2 + cfg["n_block_pairformer"])
    pair = jax.random.normal(k_pair, (B, L, L, cfg["d_pair"]), F32)
    single = jax.random.normal(k_single, (B, L, cfg["d_single"]), F32)
    single_mask = jnp.ones((B, L), F32).at[1, L - 1].set(0.0)

    params = [init_block_params(kb, cfg) for kb in k_blocks]

    run = jax.jit(lambda pr, sg, m, ps: pairformer(pr, sg, m, ps, cfg))
    single_out, pair_out = run(pair, single, single_mask, params)
    jax.block_until_ready((single_out, pair_out))

    assert single_out.shape == (B, L, cfg["d_single"])
    assert pair_out.shape == (B, L, L, cfg["d_pair"])
    assert bool(jnp.all(jnp.isfinite(single_out))) and bool(jnp.all(jnp.isfinite(pair_out)))
    print("KERNEL_OK")
</pallas_src>

<mosaic_0001>
module attributes {stable_mosaic.version = 11 : i64} {
  func.func @_ln_linear_kernel(%arg0: i32, %arg1: memref<16x32xf32, #tpu.memory_space<vmem>>, %arg2: memref<1x32xf32, #tpu.memory_space<vmem>>, %arg3: memref<1x32xf32, #tpu.memory_space<vmem>>, %arg4: memref<32x128xbf16, #tpu.memory_space<vmem>>, %arg5: memref<1x128xf32, #tpu.memory_space<vmem>>, %arg6: memref<16x128xbf16, #tpu.memory_space<vmem>>) attributes {dimension_semantics = [#tpu.dimension_semantics<parallel>], iteration_bounds = array<i64: 1>, scalar_prefetch = 0 : i64, scratch_operands = 0 : i64, tpu.core_type = #tpu.core_type<tc>, window_params = [{transform_indices = @transform_0, window_bounds = array<i64: 16, 32>}, {pipeline_mode = #tpu.pipeline_mode<synchronous>, transform_indices = @transform_1, window_bounds = array<i64: 1, 32>}, {pipeline_mode = #tpu.pipeline_mode<synchronous>, transform_indices = @transform_2, window_bounds = array<i64: 1, 32>}, {pipeline_mode = #tpu.pipeline_mode<synchronous>, transform_indices = @transform_3, window_bounds = array<i64: 32, 128>}, {pipeline_mode = #tpu.pipeline_mode<synchronous>, transform_indices = @transform_4, window_bounds = array<i64: 1, 128>}, {transform_indices = @transform_5, window_bounds = array<i64: 16, 128>}]} {
    %c0 = arith.constant 0 : index
    %c0_0 = arith.constant 0 : index
    %0 = vector.load %arg1[%c0, %c0_0] : memref<16x32xf32, #tpu.memory_space<vmem>>, vector<16x32xf32>
    %c0_1 = arith.constant 0 : index
    %c0_2 = arith.constant 0 : index
    %1 = vector.load %arg2[%c0_1, %c0_2] : memref<1x32xf32, #tpu.memory_space<vmem>>, vector<1x32xf32>
    %c0_3 = arith.constant 0 : index
    %c0_4 = arith.constant 0 : index
    %2 = vector.load %arg3[%c0_3, %c0_4] : memref<1x32xf32, #tpu.memory_space<vmem>>, vector<1x32xf32>
    %cst = arith.constant dense<0.000000e+00> : vector<16xf32>
    %3 = vector.multi_reduction <add>, %0, %cst [1] : vector<16x32xf32> to vector<16xf32>
    %4 = vector.shape_cast %3 : vector<16xf32> to vector<16x1xf32>
    %cst_5 = arith.constant 3.200000e+01 : f32
    %5 = vector.broadcast %cst_5 : f32 to vector<16x1xf32>
    %6 = arith.divf %4, %5 : vector<16x1xf32>
    %7 = vector.broadcast %6 : vector<16x1xf32> to vector<16x32xf32>
    %8 = arith.subf %0, %7 : vector<16x32xf32>
    %9 = arith.mulf %8, %8 : vector<16x32xf32>
    %cst_6 = arith.constant dense<0.000000e+00> : vector<16xf32>
    %10 = vector.multi_reduction <add>, %9, %cst_6 [1] : vector<16x32xf32> to vector<16xf32>
    %11 = vector.shape_cast %10 : vector<16xf32> to vector<16x1xf32>
    %cst_7 = arith.constant 3.200000e+01 : f32
    %12 = vector.broadcast %cst_7 : f32 to vector<16x1xf32>
    %13 = arith.divf %11, %12 : vector<16x1xf32>
    %cst_8 = arith.constant 9.99999974E-6 : f32
    %14 = vector.broadcast %cst_8 : f32 to vector<16x1xf32>
    %15 = arith.addf %13, %14 : vector<16x1xf32>
    %16 = math.rsqrt %15 : vector<16x1xf32>
    %17 = vector.broadcast %16 : vector<16x1xf32> to vector<16x32xf32>
    %18 = arith.mulf %8, %17 : vector<16x32xf32>
    %19 = vector.broadcast %1 : vector<1x32xf32> to vector<16x32xf32>
    %20 = arith.mulf %18, %19 : vector<16x32xf32>
    %21 = vector.broadcast %2 : vector<1x32xf32> to vector<16x32xf32>
    %22 = arith.addf %20, %21 : vector<16x32xf32>
    %23 = arith.truncf %22 : vector<16x32xf32> to vector<16x32xbf16>
    %c0_9 = arith.constant 0 : index
    %c0_10 = arith.constant 0 : index
    %24 = vector.load %arg4[%c0_9, %c0_10] : memref<32x128xbf16, #tpu.memory_space<vmem>>, vector<32x128xbf16>
    %cst_11 = arith.constant dense<0.000000e+00> : vector<16x128xf32>
    %25 = tpu.matmul %23, %24, %cst_11 {dimension_numbers = #tpu.dot_dimension_numbers<[1], [0], [0], [1], [0, 0, 1, 1], [], []>} : vector<16x32xbf16>, vector<32x128xbf16>, vector<16x128xf32> -> vector<16x128xf32>
    %c0_12 = arith.constant 0 : index
    %c0_13 = arith.constant 0 : index
    %26 = vector.load %arg5[%c0_12, %c0_13] : memref<1x128xf32, #tpu.memory_space<vmem>>, vector<1x128xf32>
    %27 = vector.broadcast %26 : vector<1x128xf32> to vector<16x128xf32>
    %28 = arith.addf %25, %27 : vector<16x128xf32>
    %29 = arith.truncf %28 : vector<16x128xf32> to vector<16x128xbf16>
    %c0_14 = arith.constant 0 : index
    %c0_15 = arith.constant 0 : index
    %30 = vector.load %arg6[%c0_14, %c0_15] : memref<16x128xbf16, #tpu.memory_space<vmem>>, vector<16x128xbf16>
    tpu.vector_store %arg6[%c0_14, %c0_15], %29 {strides = array<i32>} : memref<16x128xbf16, #tpu.memory_space<vmem>>, vector<16x128xbf16>,
    return
  }
  func.func @transform_0(%arg0: i32) -> (i32, i32) {
    %c0_i32 = arith.constant 0 : i32
    %c0_i32_0 = arith.constant 0 : i32
    return %arg0, %c0_i32 : i32, i32
  }
  func.func @transform_1(%arg0: i32) -> (i32, i32) {
    %c0_i32 = arith.constant 0 : i32
    %c0_i32_0 = arith.constant 0 : i32
    %c0_i32_1 = arith.constant 0 : i32
    return %c0_i32, %c0_i32_0 : i32, i32
  }
  func.func @transform_2(%arg0: i32) -> (i32, i32) {
    %c0_i32 = arith.constant 0 : i32
    %c0_i32_0 = arith.constant 0 : i32
    %c0_i32_1 = arith.constant 0 : i32
    return %c0_i32, %c0_i32_0 : i32, i32
  }
  func.func @transform_3(%arg0: i32) -> (i32, i32) {
    %c0_i32 = arith.constant 0 : i32
    %c0_i32_0 = arith.constant 0 : i32
    %c0_i32_1 = arith.constant 0 : i32
    return %c0_i32, %c0_i32_0 : i32, i32
  }
  func.func @transform_4(%arg0: i32) -> (i32, i32) {
    %c0_i32 = arith.constant 0 : i32
    %c0_i32_0 = arith.constant 0 : i32
    %c0_i32_1 = arith.constant 0 : i32
    return %c0_i32, %c0_i32_0 : i32, i32
  }
  func.func @transform_5(%arg0: i32) -> (i32, i32) {
    %c0_i32 = arith.constant 0 : i32
    %c0_i32_0 = arith.constant 0 : i32
    return %arg0, %c0_i32 : i32, i32
  }
}

module attributes {stable_mosaic.version = 11 : i64} {
  func.func @_trimul_proj_kernel(%arg0: i32, %arg1: memref<128x32xf32, #tpu.memory_space<vmem>>, %arg2: memref<128x1xf32, #tpu.memory_space<vmem>>, %arg3: memref<1x32xf32, #tpu.memory_space<vmem>>, %arg4: memref<1x32xf32, #tpu.memory_space<vmem>>, %arg5: memref<32x96xbf16, #tpu.memory_space<vmem>>, %arg6: memref<1x96xf32, #tpu.memory_space<vmem>>, %arg7: memref<128x16xbf16, #tpu.memory_space<vmem>>, %arg8: memref<128x16xbf16, #tpu.memory_space<vmem>>, %arg9: memref<128x32xbf16, #tpu.memory_space<vmem>>) attributes {dimension_semantics = [#tpu.dimension_semantics<parallel>], iteration_bounds = array<i64: 1>, scalar_prefetch = 0 : i64, scratch_operands = 0 : i64, tpu.core_type = #tpu.core_type<tc>, window_params = [{transform_indices = @transform_0, window_bounds = array<i64: 128, 32>}, {transform_indices = @transform_1, window_bounds = array<i64: 128, 1>}, {pipeline_mode = #tpu.pipeline_mode<synchronous>, transform_indices = @transform_2, window_bounds = array<i64: 1, 32>}, {pipeline_mode = #tpu.pipeline_mode<synchronous>, transform_indices = @transform_3, window_bounds = array<i64: 1, 32>}, {pipeline_mode = #tpu.pipeline_mode<synchronous>, transform_indices = @transform_4, window_bounds = array<i64: 32, 96>}, {pipeline_mode = #tpu.pipeline_mode<synchronous>, transform_indices = @transform_5, window_bounds = array<i64: 1, 96>}, {transform_indices = @transform_6, window_bounds = array<i64: 128, 16>}, {transform_indices = @transform_7, window_bounds = array<i64: 128, 16>}, {transform_indices = @transform_8, window_bounds = array<i64: 128, 32>}]} {
    %c0 = arith.constant 0 : index
    %c0_0 = arith.constant 0 : index
    %0 = vector.load %arg1[%c0, %c0_0] : memref<128x32xf32, #tpu.memory_space<vmem>>, vector<128x32xf32>
    %c0_1 = arith.constant 0 : index
    %c0_2 = arith.constant 0 : index
    %1 = vector.load %arg3[%c0_1, %c0_2] : memref<1x32xf32, #tpu.memory_space<vmem>>, vector<1x32xf32>
    %c0_3 = arith.constant 0 : index
    %c0_4 = arith.constant 0 : index
    %2 = vector.load %arg4[%c0_3, %c0_4] : memref<1x32xf32, #tpu.memory_space<vmem>>, vector<1x32xf32>
    %cst = arith.constant dense<0.000000e+00> : vector<128xf32>
    %3 = vector.multi_reduction <add>, %0, %cst [1] : vector<128x32xf32> to vector<128xf32>
    %4 = vector.shape_cast %3 : vector<128xf32> to vector<128x1xf32>
    %cst_5 = arith.constant 3.200000e+01 : f32
    %5 = vector.broadcast %cst_5 : f32 to vector<128x1xf32>
    %6 = arith.divf %4, %5 : vector<128x1xf32>
    %7 = vector.broadcast %6 : vector<128x1xf32> to vector<128x32xf32>
    %8 = arith.subf %0, %7 : vector<128x32xf32>
    %9 = arith.mulf %8, %8 : vector<128x32xf32>
    %cst_6 = arith.constant dense<0.000000e+00> : vector<128xf32>
    %10 = vector.multi_reduction <add>, %9, %cst_6 [1] : vector<128x32xf32> to vector<128xf32>
    %11 = vector.shape_cast %10 : vector<128xf32> to vector<128x1xf32>
    %cst_7 = arith.constant 3.200000e+01 : f32
    %12 = vector.broadcast %cst_7 : f32 to vector<128x1xf32>
    %13 = arith.divf %11, %12 : vector<128x1xf32>
    %cst_8 = arith.constant 9.99999974E-6 : f32
    %14 = vector.broadcast %cst_8 : f32 to vector<128x1xf32>
    %15 = arith.addf %13, %14 : vector<128x1xf32>
    %16 = math.rsqrt %15 : vector<128x1xf32>
    %17 = vector.broadcast %16 : vector<128x1xf32> to vector<128x32xf32>
    %18 = arith.mulf %8, %17 : vector<128x32xf32>
    %19 = vector.broadcast %1 : vector<1x32xf32> to vector<128x32xf32>
    %20 = arith.mulf %18, %19 : vector<128x32xf32>
    %21 = vector.broadcast %2 : vector<1x32xf32> to vector<128x32xf32>
    %22 = arith.addf %20, %21 : vector<128x32xf32>
    %23 = arith.truncf %22 : vector<128x32xf32> to vector<128x32xbf16>
    %c0_9 = arith.constant 0 : index
    %c0_10 = arith.constant 0 : index
    %24 = vector.load %arg5[%c0_9, %c0_10] : memref<32x96xbf16, #tpu.memory_space<vmem>>, vector<32x96xbf16>
    %cst_11 = arith.constant dense<0.000000e+00> : vector<128x96xf32>
    %25 = tpu.matmul %23, %24, %cst_11 {dimension_numbers = #tpu.dot_dimension_numbers<[1], [0], [0], [1], [0, 0, 1, 1], [], []>} : vector<128x32xbf16>, vector<32x96xbf16>, vector<128x96xf32> -> vector<128x96xf32>
    %c0_12 = arith.constant 0 : index
    %c0_13 = arith.constant 0 : index
    %26 = vector.load %arg6[%c0_12, %c0_13] : memref<1x96xf32, #tpu.memory_space<vmem>>, vector<1x96xf32>
    %27 = vector.broadcast %26 : vector<1x96xf32> to vector<128x96xf32>
    %28 = arith.addf %25, %27 : vector<128x96xf32>
    %c0_14 = arith.constant 0 : index
    %c0_15 = arith.constant 0 : index
    %29 = vector.load %arg2[%c0_14, %c0_15] : memref<128x1xf32, #tpu.memory_space<vmem>>, vector<128x1xf32>
    %30 = vector.extract_strided_slice %28 {offsets = [0, 0], sizes = [128, 16], strides = [1, 1]} : vector<128x96xf32> to vector<128x16xf32>
    %cst_16 = arith.constant 0.000000e+00 : f32
    %31 = vector.broadcast %cst_16 : f32 to vector<128x16xf32>
    %32 = arith.subf %31, %30 : vector<128x16xf32>
    %33 = math.exp %32 : vector<128x16xf32>
    %cst_17 = arith.constant 1.000000e+00 : f32
    %34 = vector.broadcast %cst_17 : f32 to vector<128x16xf32>
    %35 = arith.addf %34, %33 : vector<128x16xf32>
    %cst_18 = arith.constant 1.000000e+00 : f32
    %36 = vector.broadcast %cst_18 : f32 to vector<128x16xf32>
    %37 = arith.divf %36, %35 : vector<128x16xf32>
    %38 = vector.extract_strided_slice %28 {offsets = [0, 16], sizes = [128, 16], strides = [1, 1]} : vector<128x96xf32> to vector<128x16xf32>
    %39 = arith.mulf %37, %38 : vector<128x16xf32>
    %40 = vector.broadcast %29 : vector<128x1xf32> to vector<128x16xf32>
    %41 = arith.mulf %39, %40 : vector<128x16xf32>
    %42 = arith.truncf %41 : vector<128x16xf32> to vector<128x16xbf16>
    %c0_19 = arith.constant 0 : index
    %c0_20 = arith.constant 0 : index
    %43 = vector.load %arg7[%c0_19, %c0_20] : memref<128x16xbf16, #tpu.memory_space<vmem>>, vector<128x16xbf16>
    tpu.vector_store %arg7[%c0_19, %c0_20], %42 {strides = array<i32>} : memref<128x16xbf16, #tpu.memory_space<vmem>>, vector<128x16xbf16>,
    %44 = vector.extract_strided_slice %28 {offsets = [0, 32], sizes = [128, 16], strides = [1, 1]} : vector<128x96xf32> to vector<128x16xf32>
    %cst_21 = arith.constant 0.000000e+00 : f32
    %45 = vector.broadcast %cst_21 : f32 to vector<128x16xf32>
    %46 = arith.subf %45, %44 : vector<128x16xf32>
    %47 = math.exp %46 : vector<128x16xf32>
    %cst_22 = arith.constant 1.000000e+00 : f32
    %48 = vector.broadcast %cst_22 : f32 to vector<128x16xf32>
    %49 = arith.addf %48, %47 : vector<128x16xf32>
    %cst_23 = arith.constant 1.000000e+00 : f32
    %50 = vector.broadcast %cst_23 : f32 to vector<128x16xf32>
    %51 = arith.divf %50, %49 : vector<128x16xf32>
    %52 = vector.extract_strided_slice %28 {offsets = [0, 48], sizes = [128, 16], strides = [1, 1]} : vector<128x96xf32> to vector<128x16xf32>
    %53 = arith.mulf %51, %52 : vector<128x16xf32>
    %54 = vector.broadcast %29 : vector<128x1xf32> to vector<128x16xf32>
    %55 = arith.mulf %53, %54 : vector<128x16xf32>
    %56 = arith.truncf %55 : vector<128x16xf32> to vector<128x16xbf16>
    %c0_24 = arith.constant 0 : index
    %c0_25 = arith.constant 0 : index
    %57 = vector.load %arg8[%c0_24, %c0_25] : memref<128x16xbf16, #tpu.memory_space<vmem>>, vector<128x16xbf16>
    tpu.vector_store %arg8[%c0_24, %c0_25], %56 {strides = array<i32>} : memref<128x16xbf16, #tpu.memory_space<vmem>>, vector<128x16xbf16>,
    %58 = vector.extract_strided_slice %28 {offsets = [0, 64], sizes = [128, 32], strides = [1, 1]} : vector<128x96xf32> to vector<128x32xf32>
    %59 = arith.truncf %58 : vector<128x32xf32> to vector<128x32xbf16>
    %c0_26 = arith.constant 0 : index
    %c0_27 = arith.constant 0 : index
    %60 = vector.load %arg9[%c0_26, %c0_27] : memref<128x32xbf16, #tpu.memory_space<vmem>>, vector<128x32xbf16>
    tpu.vector_store %arg9[%c0_26, %c0_27], %59 {strides = array<i32>} : memref<128x32xbf16, #tpu.memory_space<vmem>>, vector<128x32xbf16>,
    return
  }
  func.func @transform_0(%arg0: i32) -> (i32, i32) {
    %c0_i32 = arith.constant 0 : i32
    %c0_i32_0 = arith.constant 0 : i32
    return %arg0, %c0_i32 : i32, i32
  }
  func.func @transform_1(%arg0: i32) -> (i32, i32) {
    %c0_i32 = arith.constant 0 : i32
    %c0_i32_0 = arith.constant 0 : i32
    return %arg0, %c0_i32 : i32, i32
  }
  func.func @transform_2(%arg0: i32) -> (i32, i32) {
    %c0_i32 = arith.constant 0 : i32
    %c0_i32_0 = arith.constant 0 : i32
    %c0_i32_1 = arith.constant 0 : i32
    return %c0_i32, %c0_i32_0 : i32, i32
  }
  func.func @transform_3(%arg0: i32) -> (i32, i32) {
    %c0_i32 = arith.constant 0 : i32
    %c0_i32_0 = arith.constant 0 : i32
    %c0_i32_1 = arith.constant 0 : i32
    return %c0_i32, %c0_i32_0 : i32, i32
  }
  func.func @transform_4(%arg0: i32) -> (i32, i32) {
    %c0_i32 = arith.constant 0 : i32
    %c0_i32_0 = arith.constant 0 : i32
    %c0_i32_1 = arith.constant 0 : i32
    return %c0_i32, %c0_i32_0 : i32, i32
  }
  func.func @transform_5(%arg0: i32) -> (i32, i32) {
    %c0_i32 = arith.constant 0 : i32
    %c0_i32_0 = arith.constant 0 : i32
    %c0_i32_1 = arith.constant 0 : i32
    return %c0_i32, %c0_i32_0 : i32, i32
  }
  func.func @transform_6(%arg0: i32) -> (i32, i32) {
    %c0_i32 = arith.constant 0 : i32
    %c0_i32_0 = arith.constant 0 : i32
    return %arg0, %c0_i32 : i32, i32
  }
  func.func @transform_7(%arg0: i32) -> (i32, i32) {
    %c0_i32 = arith.constant 0 : i32
    %c0_i32_0 = arith.constant 0 : i32
    return %arg0, %c0_i32 : i32, i32
  }
  func.func @transform_8(%arg0: i32) -> (i32, i32) {
    %c0_i32 = arith.constant 0 : i32
    %c0_i32_0 = arith.constant 0 : i32
    return %arg0, %c0_i32 : i32, i32
  }
}

module attributes {stable_mosaic.version = 11 : i64} {
  func.func @_trimul_kernel(%arg0: i32, %arg1: i32, %arg2: i32, %arg3: i32, %arg4: memref<1x16x8x8xbf16, #tpu.memory_space<vmem>>, %arg5: memref<1x16x8x8xbf16, #tpu.memory_space<vmem>>, %arg6: memref<1x16x8x8xbf16, #tpu.memory_space<vmem>>, %arg7: memref<16x8x8xf32, #tpu.memory_space<vmem>>) attributes {dimension_semantics = [#tpu.dimension_semantics<parallel>, #tpu.dimension_semantics<parallel>, #tpu.dimension_semantics<parallel>, #tpu.dimension_semantics<arbitrary>], iteration_bounds = array<i64: 2, 1, 1, 1>, scalar_prefetch = 0 : i64, scratch_operands = 1 : i64, tpu.core_type = #tpu.core_type<tc>, window_params = [{transform_indices = @transform_0, window_bounds = array<i64: 1, 16, 8, 8>}, {transform_indices = @transform_1, window_bounds = array<i64: 1, 16, 8, 8>}, {transform_indices = @transform_2, window_bounds = array<i64: 1, 16, 8, 8>}]} {
    %c0_i32 = arith.constant 0 : i32
    %0 = arith.cmpi eq, %arg3, %c0_i32 : i32
    %1 = arith.extui %0 : i1 to i32
    %c0_i32_0 = arith.constant 0 : i32
    %2 = arith.cmpi ne, %1, %c0_i32_0 : i32
    scf.if %2 {
      %cst_16 = arith.constant 0.000000e+00 : f32
      %14 = vector.broadcast %cst_16 : f32 to vector<16x8x8xf32>
      %c0_17 = arith.constant 0 : index
      %c0_18 = arith.constant 0 : index
      %c0_19 = arith.constant 0 : index
      %15 = vector.load %arg7[%c0_17, %c0_18, %c0_19] : memref<16x8x8xf32, #tpu.memory_space<vmem>>, vector<16x8x8xf32>
      tpu.vector_store %arg7[%c0_17, %c0_18, %c0_19], %14 {strides = array<i32>} : memref<16x8x8xf32, #tpu.memory_space<vmem>>, vector<16x8x8xf32>,
    } else {
    }
    %c0 = arith.constant 0 : index
    %c0_1 = arith.constant 0 : index
    %c0_2 = arith.constant 0 : index
    %3 = vector.load %arg7[%c0, %c0_1, %c0_2] : memref<16x8x8xf32, #tpu.memory_space<vmem>>, vector<16x8x8xf32>
    %c0_3 = arith.constant 0 : index
    %c0_4 = arith.constant 0 : index
    %c0_5 = arith.constant 0 : index
    %c0_6 = arith.constant 0 : index
    %4 = vector.load %arg4[%c0_3, %c0_4, %c0_5, %c0_6] : memref<1x16x8x8xbf16, #tpu.memory_space<vmem>>, vector<1x16x8x8xbf16>
    %5 = vector.shape_cast %4 : vector<1x16x8x8xbf16> to vector<16x8x8xbf16>
    %c0_7 = arith.constant 0 : index
    %c0_8 = arith.constant 0 : index
    %c0_9 = arith.constant 0 : index
    %c0_10 = arith.constant 0 : index
    %6 = vector.load %arg5[%c0_7, %c0_8, %c0_9, %c0_10] : memref<1x16x8x8xbf16, #tpu.memory_space<vmem>>, vector<1x16x8x8xbf16>
    %7 = vector.shape_cast %6 : vector<1x16x8x8xbf16> to vector<16x8x8xbf16>
    "tpu.trace_start"() <{level = 10 : i32, message = "dik,djk->dij"}> : () -> ()
    %cst = arith.constant dense<0.000000e+00> : vector<16x8x8xf32>
    %8 = tpu.matmul %5, %7, %cst {dimension_numbers = #tpu.dot_dimension_numbers<[2], [2], [1], [1], [0, 0, 0, 1, 1, 1], [0], [0]>} : vector<16x8x8xbf16>, vector<16x8x8xbf16>, vector<16x8x8xf32> -> vector<16x8x8xf32>
    "tpu.trace_stop"() : () -> ()
    %9 = arith.addf %3, %8 : vector<16x8x8xf32>
    %c0_11 = arith.constant 0 : index
    %c0_12 = arith.constant 0 : index
    %c0_13 = arith.constant 0 : index
    %10 = vector.load %arg7[%c0_11, %c0_12, %c0_13] : memref<16x8x8xf32, #tpu.memory_space<vmem>>, vector<16x8x8xf32>
    tpu.vector_store %arg7[%c0_11, %c0_12, %c0_13], %9 {strides = array<i32>} : memref<16x8x8xf32, #tpu.memory_space<vmem>>, vector<16x8x8xf32>,
    %c0_i32_14 = arith.constant 0 : i32
    %11 = arith.cmpi eq, %arg3, %c0_i32_14 : i32
    %12 = arith.extui %11 : i1 to i32
    %c0_i32_15 = arith.constant 0 : i32
    %13 = arith.cmpi ne, %12, %c0_i32_15 : i32
    scf.if %13 {
      %c0_16 = arith.constant 0 : index
      %c0_17 = arith.constant 0 : index
      %c0_18 = arith.constant 0 : index
      %14 = vector.load %arg7[%c0_16, %c0_17, %c0_18] : memref<16x8x8xf32, #tpu.memory_space<vmem>>, vector<16x8x8xf32>
      %15 = arith.truncf %14 : vector<16x8x8xf32> to vector<16x8x8xbf16>
      %c0_19 = arith.constant 0 : index
      %c0_20 = arith.constant 0 : index
      %c0_21 = arith.constant 0 : index
      %c0_22 = arith.constant 0 : index
      %16 = vector.load %arg6[%c0_19, %c0_20, %c0_21, %c0_22] : memref<1x16x8x8xbf16, #tpu.memory_space<vmem>>, vector<1x16x8x8xbf16>
      %17 = vector.shape_cast %16 : vector<1x16x8x8xbf16> to vector<16x8x8xbf16>
      %18 = vector.shape_cast %15 : vector<16x8x8xbf16> to vector<1x16x8x8xbf16>
      tpu.vector_store %arg6[%c0_19, %c0_20, %c0_21, %c0_22], %18 {strides = array<i32>} : memref<1x16x8x8xbf16, #tpu.memory_space<vmem>>, vector<1x16x8x8xbf16>,
    } else {
    }
    return
  }
  func.func @transform_0(%arg0: i32, %arg1: i32, %arg2: i32, %arg3: i32) -> (i32, i32, i32, i32) {
    %c0_i32 = arith.constant 0 : i32
    %c0_i32_0 = arith.constant 0 : i32
    return %arg0, %c0_i32, %arg1, %arg3 : i32, i32, i32, i32
  }
  func.func @transform_1(%arg0: i32, %arg1: i32, %arg2: i32, %arg3: i32) -> (i32, i32, i32, i32) {
    %c0_i32 = arith.constant 0 : i32
    %c0_i32_0 = arith.constant 0 : i32
    return %arg0, %c0_i32, %arg2, %arg3 : i32, i32, i32, i32
  }
  func.func @transform_2(%arg0: i32, %arg1: i32, %arg2: i32, %arg3: i32) -> (i32, i32, i32, i32) {
    %c0_i32 = arith.constant 0 : i32
    %c0_i32_0 = arith.constant 0 : i32
    return %arg0, %c0_i32, %arg1, %arg2 : i32, i32, i32, i32
  }
}

module attributes {stable_mosaic.version = 11 : i64} {
  func.func @_trimul_out_kernel(%arg0: i32, %arg1: memref<128x16xbf16, #tpu.memory_space<vmem>>, %arg2: memref<128x32xbf16, #tpu.memory_space<vmem>>, %arg3: memref<1x16xf32, #tpu.memory_space<vmem>>, %arg4: memref<1x16xf32, #tpu.memory_space<vmem>>, %arg5: memref<16x32xbf16, #tpu.memory_space<vmem>>, %arg6: memref<1x32xf32, #tpu.memory_space<vmem>>, %arg7: memref<128x32xf32, #tpu.memory_space<vmem>>) attributes {dimension_semantics = [#tpu.dimension_semantics<parallel>], iteration_bounds = array<i64: 1>, scalar_prefetch = 0 : i64, scratch_operands = 0 : i64, tpu.core_type = #tpu.core_type<tc>, window_params = [{transform_indices = @transform_0, window_bounds = array<i64: 128, 16>}, {transform_indices = @transform_1, window_bounds = array<i64: 128, 32>}, {pipeline_mode = #tpu.pipeline_mode<synchronous>, transform_indices = @transform_2, window_bounds = array<i64: 1, 16>}, {pipeline_mode = #tpu.pipeline_mode<synchronous>, transform_indices = @transform_3, window_bounds = array<i64: 1, 16>}, {pipeline_mode = #tpu.pipeline_mode<synchronous>, transform_indices = @transform_4, window_bounds = array<i64: 16, 32>}, {pipeline_mode = #tpu.pipeline_mode<synchronous>, transform_indices = @transform_5, window_bounds = array<i64: 1, 32>}, {transform_indices = @transform_6, window_bounds = array<i64: 128, 32>}]} {
    %c0 = arith.constant 0 : index
    %c0_0 = arith.constant 0 : index
    %0 = vector.load %arg1[%c0, %c0_0] : memref<128x16xbf16, #tpu.memory_space<vmem>>, vector<128x16xbf16>
    %1 = arith.extf %0 : vector<128x16xbf16> to vector<128x16xf32>
    %c0_1 = arith.constant 0 : index
    %c0_2 = arith.constant 0 : index
    %2 = vector.load %arg3[%c0_1, %c0_2] : memref<1x16xf32, #tpu.memory_space<vmem>>, vector<1x16xf32>
    %c0_3 = arith.constant 0 : index
    %c0_4 = arith.constant 0 : index
    %3 = vector.load %arg4[%c0_3, %c0_4] : memref<1x16xf32, #tpu.memory_space<vmem>>, vector<1x16xf32>
    %cst = arith.constant dense<0.000000e+00> : vector<128xf32>
    %4 = vector.multi_reduction <add>, %1, %cst [1] : vector<128x16xf32> to vector<128xf32>
    %5 = vector.shape_cast %4 : vector<128xf32> to vector<128x1xf32>
    %cst_5 = arith.constant 1.600000e+01 : f32
    %6 = vector.broadcast %cst_5 : f32 to vector<128x1xf32>
    %7 = arith.divf %5, %6 : vector<128x1xf32>
    %8 = vector.broadcast %7 : vector<128x1xf32> to vector<128x16xf32>
    %9 = arith.subf %1, %8 : vector<128x16xf32>
    %10 = arith.mulf %9, %9 : vector<128x16xf32>
    %cst_6 = arith.constant dense<0.000000e+00> : vector<128xf32>
    %11 = vector.multi_reduction <add>, %10, %cst_6 [1] : vector<128x16xf32> to vector<128xf32>
    %12 = vector.shape_cast %11 : vector<128xf32> to vector<128x1xf32>
    %cst_7 = arith.constant 1.600000e+01 : f32
    %13 = vector.broadcast %cst_7 : f32 to vector<128x1xf32>
    %14 = arith.divf %12, %13 : vector<128x1xf32>
    %cst_8 = arith.constant 9.99999974E-6 : f32
    %15 = vector.broadcast %cst_8 : f32 to vector<128x1xf32>
    %16 = arith.addf %14, %15 : vector<128x1xf32>
    %17 = math.rsqrt %16 : vector<128x1xf32>
    %18 = vector.broadcast %17 : vector<128x1xf32> to vector<128x16xf32>
    %19 = arith.mulf %9, %18 : vector<128x16xf32>
    %20 = vector.broadcast %2 : vector<1x16xf32> to vector<128x16xf32>
    %21 = arith.mulf %19, %20 : vector<128x16xf32>
    %22 = vector.broadcast %3 : vector<1x16xf32> to vector<128x16xf32>
    %23 = arith.addf %21, %22 : vector<128x16xf32>
    %24 = arith.truncf %23 : vector<128x16xf32> to vector<128x16xbf16>
    %c0_9 = arith.constant 0 : index
    %c0_10 = arith.constant 0 : index
    %25 = vector.load %arg5[%c0_9, %c0_10] : memref<16x32xbf16, #tpu.memory_space<vmem>>, vector<16x32xbf16>
    %cst_11 = arith.constant dense<0.000000e+00> : vector<128x32xf32>
    %26 = tpu.matmul %24, %25, %cst_11 {dimension_numbers = #tpu.dot_dimension_numbers<[1], [0], [0], [1], [0, 0, 1, 1], [], []>} : vector<128x16xbf16>, vector<16x32xbf16>, vector<128x32xf32> -> vector<128x32xf32>
    %c0_12 = arith.constant 0 : index
    %c0_13 = arith.constant 0 : index
    %27 = vector.load %arg6[%c0_12, %c0_13] : memref<1x32xf32, #tpu.memory_space<vmem>>, vector<1x32xf32>
    %28 = vector.broadcast %27 : vector<1x32xf32> to vector<128x32xf32>
    %29 = arith.addf %26, %28 : vector<128x32xf32>
    %c0_14 = arith.constant 0 : index
    %c0_15 = arith.constant 0 : index
    %30 = vector.load %arg2[%c0_14, %c0_15] : memref<128x32xbf16, #tpu.memory_space<vmem>>, vector<128x32xbf16>
    %31 = arith.extf %30 : vector<128x32xbf16> to vector<128x32xf32>
    %cst_16 = arith.constant 0.000000e+00 : f32
    %32 = vector.broadcast %cst_16 : f32 to vector<128x32xf32>
    %33 = arith.subf %32, %31 : vector<128x32xf32>
    %34 = math.exp %33 : vector<128x32xf32>
    %cst_17 = arith.constant 1.000000e+00 : f32
    %35 = vector.broadcast %cst_17 : f32 to vector<128x32xf32>
    %36 = arith.addf %35, %34 : vector<128x32xf32>
    %cst_18 = arith.constant 1.000000e+00 : f32
    %37 = vector.broadcast %cst_18 : f32 to vector<128x32xf32>
    %38 = arith.divf %37, %36 : vector<128x32xf32>
    %39 = arith.mulf %38, %29 : vector<128x32xf32>
    %c0_19 = arith.constant 0 : index
    %c0_20 = arith.constant 0 : index
    %40 = vector.load %arg7[%c0_19, %c0_20] : memref<128x32xf32, #tpu.memory_space<vmem>>, vector<128x32xf32>
    tpu.vector_store %arg7[%c0_19, %c0_20], %39 {strides = array<i32>} : memref<128x32xf32, #tpu.memory_space<vmem>>, vector<128x32xf32>,
    return
  }
  func.func @transform_0(%arg0: i32) -> (i32, i32) {
    %c0_i32 = arith.constant 0 : i32
    %c0_i32_0 = arith.constant 0 : i32
    return %arg0, %c0_i32 : i32, i32
  }
  func.func @transform_1(%arg0: i32) -> (i32, i32) {
    %c0_i32 = arith.constant 0 : i32
    %c0_i32_0 = arith.constant 0 : i32
    return %arg0, %c0_i32 : i32, i32
  }
  func.func @transform_2(%arg0: i32) -> (i32, i32) {
    %c0_i32 = arith.constant 0 : i32
    %c0_i32_0 = arith.constant 0 : i32
    %c0_i32_1 = arith.constant 0 : i32
    return %c0_i32, %c0_i32_0 : i32, i32
  }
  func.func @transform_3(%arg0: i32) -> (i32, i32) {
    %c0_i32 = arith.constant 0 : i32
    %c0_i32_0 = arith.constant 0 : i32
    %c0_i32_1 = arith.constant 0 : i32
    return %c0_i32, %c0_i32_0 : i32, i32
  }
  func.func @transform_4(%arg0: i32) -> (i32, i32) {
    %c0_i32 = arith.constant 0 : i32
    %c0_i32_0 = arith.constant 0 : i32
    %c0_i32_1 = arith.constant 0 : i32
    return %c0_i32, %c0_i32_0 : i32, i32
  }
  func.func @transform_5(%arg0: i32) -> (i32, i32) {
    %c0_i32 = arith.constant 0 : i32
    %c0_i32_0 = arith.constant 0 : i32
    %c0_i32_1 = arith.constant 0 : i32
    return %c0_i32, %c0_i32_0 : i32, i32
  }
  func.func @transform_6(%arg0: i32) -> (i32, i32) {
    %c0_i32 = arith.constant 0 : i32
    %c0_i32_0 = arith.constant 0 : i32
    return %arg0, %c0_i32 : i32, i32
  }
}

module attributes {stable_mosaic.version = 11 : i64} {
  func.func @_attn_proj_kernel(%arg0: i32, %arg1: memref<128x32xf32, #tpu.memory_space<vmem>>, %arg2: memref<1x32xf32, #tpu.memory_space<vmem>>, %arg3: memref<1x32xf32, #tpu.memory_space<vmem>>, %arg4: memref<32x128xbf16, #tpu.memory_space<vmem>>, %arg5: memref<1x128xf32, #tpu.memory_space<vmem>>, %arg6: memref<32x4xbf16, #tpu.memory_space<vmem>>, %arg7: memref<1x4xf32, #tpu.memory_space<vmem>>, %arg8: memref<128x128xbf16, #tpu.memory_space<vmem>>, %arg9: memref<128x4xf32, #tpu.memory_space<vmem>>) attributes {dimension_semantics = [#tpu.dimension_semantics<parallel>], iteration_bounds = array<i64: 1>, scalar_prefetch = 0 : i64, scratch_operands = 0 : i64, tpu.core_type = #tpu.core_type<tc>, window_params = [{transform_indices = @transform_0, window_bounds = array<i64: 128, 32>}, {pipeline_mode = #tpu.pipeline_mode<synchronous>, transform_indices = @transform_1, window_bounds = array<i64: 1, 32>}, {pipeline_mode = #tpu.pipeline_mode<synchronous>, transform_indices = @transform_2, window_bounds = array<i64: 1, 32>}, {pipeline_mode = #tpu.pipeline_mode<synchronous>, transform_indices = @transform_3, window_bounds = array<i64: 32, 128>}, {pipeline_mode = #tpu.pipeline_mode<synchronous>, transform_indices = @transform_4, window_bounds = array<i64: 1, 128>}, {pipeline_mode = #tpu.pipeline_mode<synchronous>, transform_indices = @transform_5, window_bounds = array<i64: 32, 4>}, {pipeline_mode = #tpu.pipeline_mode<synchronous>, transform_indices = @transform_6, window_bounds = array<i64: 1, 4>}, {transform_indices = @transform_7, window_bounds = array<i64: 128, 128>}, {transform_indices = @transform_8, window_bounds = array<i64: 128, 4>}]} {
    %c0 = arith.constant 0 : index
    %c0_0 = arith.constant 0 : index
    %0 = vector.load %arg1[%c0, %c0_0] : memref<128x32xf32, #tpu.memory_space<vmem>>, vector<128x32xf32>
    %c0_1 = arith.constant 0 : index
    %c0_2 = arith.constant 0 : index
    %1 = vector.load %arg2[%c0_1, %c0_2] : memref<1x32xf32, #tpu.memory_space<vmem>>, vector<1x32xf32>
    %c0_3 = arith.constant 0 : index
    %c0_4 = arith.constant 0 : index
    %2 = vector.load %arg3[%c0_3, %c0_4] : memref<1x32xf32, #tpu.memory_space<vmem>>, vector<1x32xf32>
    %cst = arith.constant dense<0.000000e+00> : vector<128xf32>
    %3 = vector.multi_reduction <add>, %0, %cst [1] : vector<128x32xf32> to vector<128xf32>
    %4 = vector.shape_cast %3 : vector<128xf32> to vector<128x1xf32>
    %cst_5 = arith.constant 3.200000e+01 : f32
    %5 = vector.broadcast %cst_5 : f32 to vector<128x1xf32>
    %6 = arith.divf %4, %5 : vector<128x1xf32>
    %7 = vector.broadcast %6 : vector<128x1xf32> to vector<128x32xf32>
    %8 = arith.subf %0, %7 : vector<128x32xf32>
    %9 = arith.mulf %8, %8 : vector<128x32xf32>
    %cst_6 = arith.constant dense<0.000000e+00> : vector<128xf32>
    %10 = vector.multi_reduction <add>, %9, %cst_6 [1] : vector<128x32xf32> to vector<128xf32>
    %11 = vector.shape_cast %10 : vector<128xf32> to vector<128x1xf32>
    %cst_7 = arith.constant 3.200000e+01 : f32
    %12 = vector.broadcast %cst_7 : f32 to vector<128x1xf32>
    %13 = arith.divf %11, %12 : vector<128x1xf32>
    %cst_8 = arith.constant 9.99999974E-6 : f32
    %14 = vector.broadcast %cst_8 : f32 to vector<128x1xf32>
    %15 = arith.addf %13, %14 : vector<128x1xf32>
    %16 = math.rsqrt %15 : vector<128x1xf32>
    %17 = vector.broadcast %16 : vector<128x1xf32> to vector<128x32xf32>
    %18 = arith.mulf %8, %17 : vector<128x32xf32>
    %19 = vector.broadcast %1 : vector<1x32xf32> to vector<128x32xf32>
    %20 = arith.mulf %18, %19 : vector<128x32xf32>
    %21 = vector.broadcast %2 : vector<1x32xf32> to vector<128x32xf32>
    %22 = arith.addf %20, %21 : vector<128x32xf32>
    %23 = arith.truncf %22 : vector<128x32xf32> to vector<128x32xbf16>
    %c0_9 = arith.constant 0 : index
    %c0_10 = arith.constant 0 : index
    %24 = vector.load %arg4[%c0_9, %c0_10] : memref<32x128xbf16, #tpu.memory_space<vmem>>, vector<32x128xbf16>
    %cst_11 = arith.constant dense<0.000000e+00> : vector<128x128xf32>
    %25 = tpu.matmul %23, %24, %cst_11 {dimension_numbers = #tpu.dot_dimension_numbers<[1], [0], [0], [1], [0, 0, 1, 1], [], []>} : vector<128x32xbf16>, vector<32x128xbf16>, vector<128x128xf32> -> vector<128x128xf32>
    %c0_12 = arith.constant 0 : index
    %c0_13 = arith.constant 0 : index
    %26 = vector.load %arg5[%c0_12, %c0_13] : memref<1x128xf32, #tpu.memory_space<vmem>>, vector<1x128xf32>
    %27 = vector.broadcast %26 : vector<1x128xf32> to vector<128x128xf32>
    %28 = arith.addf %25, %27 : vector<128x128xf32>
    %29 = arith.truncf %28 : vector<128x128xf32> to vector<128x128xbf16>
    %c0_14 = arith.constant 0 : index
    %c0_15 = arith.constant 0 : index
    %30 = vector.load %arg8[%c0_14, %c0_15] : memref<128x128xbf16, #tpu.memory_space<vmem>>, vector<128x128xbf16>
    tpu.vector_store %arg8[%c0_14, %c0_15], %29 {strides = array<i32>} : memref<128x128xbf16, #tpu.memory_space<vmem>>, vector<128x128xbf16>,
    %c0_16 = arith.constant 0 : index
    %c0_17 = arith.constant 0 : index
    %31 = vector.load %arg6[%c0_16, %c0_17] : memref<32x4xbf16, #tpu.memory_space<vmem>>, vector<32x4xbf16>
    %cst_18 = arith.constant dense<0.000000e+00> : vector<128x4xf32>
    %32 = tpu.matmul %23, %31, %cst_18 {dimension_numbers = #tpu.dot_dimension_numbers<[1], [0], [0], [1], [0, 0, 1, 1], [], []>} : vector<128x32xbf16>, vector<32x4xbf16>, vector<128x4xf32> -> vector<128x4xf32>
    %c0_19 = arith.constant 0 : index
    %c0_20 = arith.constant 0 : index
    %33 = vector.load %arg7[%c0_19, %c0_20] : memref<1x4xf32, #tpu.memory_space<vmem>>, vector<1x4xf32>
    %34 = vector.broadcast %33 : vector<1x4xf32> to vector<128x4xf32>
    %35 = arith.addf %32, %34 : vector<128x4xf32>
    %c0_21 = arith.constant 0 : index
    %c0_22 = arith.constant 0 : index
    %36 = vector.load %arg9[%c0_21, %c0_22] : memref<128x4xf32, #tpu.memory_space<vmem>>, vector<128x4xf32>
    tpu.vector_store %arg9[%c0_21, %c0_22], %35 {strides = array<i32>} : memref<128x4xf32, #tpu.memory_space<vmem>>, vector<128x4xf32>,
    return
  }
  func.func @transform_0(%arg0: i32) -> (i32, i32) {
    %c0_i32 = arith.constant 0 : i32
    %c0_i32_0 = arith.constant 0 : i32
    return %arg0, %c0_i32 : i32, i32
  }
  func.func @transform_1(%arg0: i32) -> (i32, i32) {
    %c0_i32 = arith.constant 0 : i32
    %c0_i32_0 = arith.constant 0 : i32
    %c0_i32_1 = arith.constant 0 : i32
    return %c0_i32, %c0_i32_0 : i32, i32
  }
  func.func @transform_2(%arg0: i32) -> (i32, i32) {
    %c0_i32 = arith.constant 0 : i32
    %c0_i32_0 = arith.constant 0 : i32
    %c0_i32_1 = arith.constant 0 : i32
    return %c0_i32, %c0_i32_0 : i32, i32
  }
  func.func @transform_3(%arg0: i32) -> (i32, i32) {
    %c0_i32 = arith.constant 0 : i32
    %c0_i32_0 = arith.constant 0 : i32
    %c0_i32_1 = arith.constant 0 : i32
    return %c0_i32, %c0_i32_0 : i32, i32
  }
  func.func @transform_4(%arg0: i32) -> (i32, i32) {
    %c0_i32 = arith.constant 0 : i32
    %c0_i32_0 = arith.constant 0 : i32
    %c0_i32_1 = arith.constant 0 : i32
    return %c0_i32, %c0_i32_0 : i32, i32
  }
  func.func @transform_5(%arg0: i32) -> (i32, i32) {
    %c0_i32 = arith.constant 0 : i32
    %c0_i32_0 = arith.constant 0 : i32
    %c0_i32_1 = arith.constant 0 : i32
    return %c0_i32, %c0_i32_0 : i32, i32
  }
  func.func @transform_6(%arg0: i32) -> (i32, i32) {
    %c0_i32 = arith.constant 0 : i32
    %c0_i32_0 = arith.constant 0 : i32
    %c0_i32_1 = arith.constant 0 : i32
    return %c0_i32, %c0_i32_0 : i32, i32
  }
  func.func @transform_7(%arg0: i32) -> (i32, i32) {
    %c0_i32 = arith.constant 0 : i32
    %c0_i32_0 = arith.constant 0 : i32
    return %arg0, %c0_i32 : i32, i32
  }
  func.func @transform_8(%arg0: i32) -> (i32, i32) {
    %c0_i32 = arith.constant 0 : i32
    %c0_i32_0 = arith.constant 0 : i32
    return %arg0, %c0_i32 : i32, i32
  }
}

module attributes {stable_mosaic.version = 11 : i64} {
  func.func @_transition_kernel(%arg0: i32, %arg1: memref<128x32xf32, #tpu.memory_space<vmem>>, %arg2: memref<1x32xf32, #tpu.memory_space<vmem>>, %arg3: memref<1x32xf32, #tpu.memory_space<vmem>>, %arg4: memref<32x256xbf16, #tpu.memory_space<vmem>>, %arg5: memref<1x256xf32, #tpu.memory_space<vmem>>, %arg6: memref<128x32xbf16, #tpu.memory_space<vmem>>, %arg7: memref<1x32xf32, #tpu.memory_space<vmem>>, %arg8: memref<128x32xf32, #tpu.memory_space<vmem>>) attributes {dimension_semantics = [#tpu.dimension_semantics<parallel>], iteration_bounds = array<i64: 1>, scalar_prefetch = 0 : i64, scratch_operands = 0 : i64, tpu.core_type = #tpu.core_type<tc>, window_params = [{transform_indices = @transform_0, window_bounds = array<i64: 128, 32>}, {pipeline_mode = #tpu.pipeline_mode<synchronous>, transform_indices = @transform_1, window_bounds = array<i64: 1, 32>}, {pipeline_mode = #tpu.pipeline_mode<synchronous>, transform_indices = @transform_2, window_bounds = array<i64: 1, 32>}, {pipeline_mode = #tpu.pipeline_mode<synchronous>, transform_indices = @transform_3, window_bounds = array<i64: 32, 256>}, {pipeline_mode = #tpu.pipeline_mode<synchronous>, transform_indices = @transform_4, window_bounds = array<i64: 1, 256>}, {pipeline_mode = #tpu.pipeline_mode<synchronous>, transform_indices = @transform_5, window_bounds = array<i64: 128, 32>}, {pipeline_mode = #tpu.pipeline_mode<synchronous>, transform_indices = @transform_6, window_bounds = array<i64: 1, 32>}, {transform_indices = @transform_7, window_bounds = array<i64: 128, 32>}]} {
    %c0 = arith.constant 0 : index
    %c0_0 = arith.constant 0 : index
    %0 = vector.load %arg1[%c0, %c0_0] : memref<128x32xf32, #tpu.memory_space<vmem>>, vector<128x32xf32>
    %c0_1 = arith.constant 0 : index
    %c0_2 = arith.constant 0 : index
    %1 = vector.load %arg2[%c0_1, %c0_2] : memref<1x32xf32, #tpu.memory_space<vmem>>, vector<1x32xf32>
    %c0_3 = arith.constant 0 : index
    %c0_4 = arith.constant 0 : index
    %2 = vector.load %arg3[%c0_3, %c0_4] : memref<1x32xf32, #tpu.memory_space<vmem>>, vector<1x32xf32>
    %cst = arith.constant dense<0.000000e+00> : vector<128xf32>
    %3 = vector.multi_reduction <add>, %0, %cst [1] : vector<128x32xf32> to vector<128xf32>
    %4 = vector.shape_cast %3 : vector<128xf32> to vector<128x1xf32>
    %cst_5 = arith.constant 3.200000e+01 : f32
    %5 = vector.broadcast %cst_5 : f32 to vector<128x1xf32>
    %6 = arith.divf %4, %5 : vector<128x1xf32>
    %7 = vector.broadcast %6 : vector<128x1xf32> to vector<128x32xf32>
    %8 = arith.subf %0, %7 : vector<128x32xf32>
    %9 = arith.mulf %8, %8 : vector<128x32xf32>
    %cst_6 = arith.constant dense<0.000000e+00> : vector<128xf32>
    %10 = vector.multi_reduction <add>, %9, %cst_6 [1] : vector<128x32xf32> to vector<128xf32>
    %11 = vector.shape_cast %10 : vector<128xf32> to vector<128x1xf32>
    %cst_7 = arith.constant 3.200000e+01 : f32
    %12 = vector.broadcast %cst_7 : f32 to vector<128x1xf32>
    %13 = arith.divf %11, %12 : vector<128x1xf32>
    %cst_8 = arith.constant 9.99999974E-6 : f32
    %14 = vector.broadcast %cst_8 : f32 to vector<128x1xf32>
    %15 = arith.addf %13, %14 : vector<128x1xf32>
    %16 = math.rsqrt %15 : vector<128x1xf32>
    %17 = vector.broadcast %16 : vector<128x1xf32> to vector<128x32xf32>
    %18 = arith.mulf %8, %17 : vector<128x32xf32>
    %19 = vector.broadcast %1 : vector<1x32xf32> to vector<128x32xf32>
    %20 = arith.mulf %18, %19 : vector<128x32xf32>
    %21 = vector.broadcast %2 : vector<1x32xf32> to vector<128x32xf32>
    %22 = arith.addf %20, %21 : vector<128x32xf32>
    %23 = arith.truncf %22 : vector<128x32xf32> to vector<128x32xbf16>
    %c0_9 = arith.constant 0 : index
    %c0_10 = arith.constant 0 : index
    %24 = vector.load %arg4[%c0_9, %c0_10] : memref<32x256xbf16, #tpu.memory_space<vmem>>, vector<32x256xbf16>
    %cst_11 = arith.constant dense<0.000000e+00> : vector<128x256xf32>
    %25 = tpu.matmul %23, %24, %cst_11 {dimension_numbers = #tpu.dot_dimension_numbers<[1], [0], [0], [1], [0, 0, 1, 1], [], []>} : vector<128x32xbf16>, vector<32x256xbf16>, vector<128x256xf32> -> vector<128x256xf32>
    %c0_12 = arith.constant 0 : index
    %c0_13 = arith.constant 0 : index
    %26 = vector.load %arg5[%c0_12, %c0_13] : memref<1x256xf32, #tpu.memory_space<vmem>>, vector<1x256xf32>
    %27 = vector.broadcast %26 : vector<1x256xf32> to vector<128x256xf32>
    %28 = arith.addf %25, %27 : vector<128x256xf32>
    %29 = vector.extract_strided_slice %28 {offsets = [0, 0], sizes = [128, 128], strides = [1, 1]} : vector<128x256xf32> to vector<128x128xf32>
    %cst_14 = arith.constant 0.000000e+00 : f32
    %30 = vector.broadcast %cst_14 : f32 to vector<128x128xf32>
    %31 = arith.subf %30, %29 : vector<128x128xf32>
    %32 = math.exp %31 : vector<128x128xf32>
    %cst_15 = arith.constant 1.000000e+00 : f32
    %33 = vector.broadcast %cst_15 : f32 to vector<128x128xf32>
    %34 = arith.addf %33, %32 : vector<128x128xf32>
    %cst_16 = arith.constant 1.000000e+00 : f32
    %35 = vector.broadcast %cst_16 : f32 to vector<128x128xf32>
    %36 = arith.divf %35, %34 : vector<128x128xf32>
    %37 = arith.mulf %29, %36 : vector<128x128xf32>
    %38 = vector.extract_strided_slice %28 {offsets = [0, 128], sizes = [128, 128], strides = [1, 1]} : vector<128x256xf32> to vector<128x128xf32>
    %39 = arith.mulf %37, %38 : vector<128x128xf32>
    %40 = arith.truncf %39 : vector<128x128xf32> to vector<128x128xbf16>
    %c0_17 = arith.constant 0 : index
    %c0_18 = arith.constant 0 : index
    %41 = vector.load %arg6[%c0_17, %c0_18] : memref<128x32xbf16, #tpu.memory_space<vmem>>, vector<128x32xbf16>
    %cst_19 = arith.constant dense<0.000000e+00> : vector<128x32xf32>
    %42 = tpu.matmul %40, %41, %cst_19 {dimension_numbers = #tpu.dot_dimension_numbers<[1], [0], [0], [1], [0, 0, 1, 1], [], []>} : vector<128x128xbf16>, vector<128x32xbf16>, vector<128x32xf32> -> vector<128x32xf32>
    %c0_20 = arith.constant 0 : index
    %c0_21 = arith.constant 0 : index
    %43 = vector.load %arg7[%c0_20, %c0_21] : memref<1x32xf32, #tpu.memory_space<vmem>>, vector<1x32xf32>
    %44 = vector.broadcast %43 : vector<1x32xf32> to vector<128x32xf32>
    %45 = arith.addf %42, %44 : vector<128x32xf32>
    %c0_22 = arith.constant 0 : index
    %c0_23 = arith.constant 0 : index
    %46 = vector.load %arg8[%c0_22, %c0_23] : memref<128x32xf32, #tpu.memory_space<vmem>>, vector<128x32xf32>
    tpu.vector_store %arg8[%c0_22, %c0_23], %45 {strides = array<i32>} : memref<128x32xf32, #tpu.memory_space<vmem>>, vector<128x32xf32>,
    return
  }
  func.func @transform_0(%arg0: i32) -> (i32, i32) {
    %c0_i32 = arith.constant 0 : i32
    %c0_i32_0 = arith.constant 0 : i32
    return %arg0, %c0_i32 : i32, i32
  }
  func.func @transform_1(%arg0: i32) -> (i32, i32) {
    %c0_i32 = arith.constant 0 : i32
    %c0_i32_0 = arith.constant 0 : i32
    %c0_i32_1 = arith.constant 0 : i32
    return %c0_i32, %c0_i32_0 : i32, i32
  }
  func.func @transform_2(%arg0: i32) -> (i32, i32) {
    %c0_i32 = arith.constant 0 : i32
    %c0_i32_0 = arith.constant 0 : i32
    %c0_i32_1 = arith.constant 0 : i32
    return %c0_i32, %c0_i32_0 : i32, i32
  }
  func.func @transform_3(%arg0: i32) -> (i32, i32) {
    %c0_i32 = arith.constant 0 : i32
    %c0_i32_0 = arith.constant 0 : i32
    %c0_i32_1 = arith.constant 0 : i32
    return %c0_i32, %c0_i32_0 : i32, i32
  }
  func.func @transform_4(%arg0: i32) -> (i32, i32) {
    %c0_i32 = arith.constant 0 : i32
    %c0_i32_0 = arith.constant 0 : i32
    %c0_i32_1 = arith.constant 0 : i32
    return %c0_i32, %c0_i32_0 : i32, i32
  }
  func.func @transform_5(%arg0: i32) -> (i32, i32) {
    %c0_i32 = arith.constant 0 : i32
    %c0_i32_0 = arith.constant 0 : i32
    %c0_i32_1 = arith.constant 0 : i32
    return %c0_i32, %c0_i32_0 : i32, i32
  }
  func.func @transform_6(%arg0: i32) -> (i32, i32) {
    %c0_i32 = arith.constant 0 : i32
    %c0_i32_0 = arith.constant 0 : i32
    %c0_i32_1 = arith.constant 0 : i32
    return %c0_i32, %c0_i32_0 : i32, i32
  }
  func.func @transform_7(%arg0: i32) -> (i32, i32) {
    %c0_i32 = arith.constant 0 : i32
    %c0_i32_0 = arith.constant 0 : i32
    return %arg0, %c0_i32 : i32, i32
  }
}

module attributes {stable_mosaic.version = 11 : i64} {
  func.func @_attn_kernel(%arg0: i32, %arg1: i32, %arg2: memref<1x1x8x128xbf16, #tpu.memory_space<vmem>>, %arg3: memref<1x4x8x8xf32, #tpu.memory_space<vmem>>, %arg4: memref<1x1x1x8xf32, #tpu.memory_space<vmem>>, %arg5: memref<32x32xbf16, #tpu.memory_space<vmem>>, %arg6: memref<1x32xf32, #tpu.memory_space<vmem>>, %arg7: memref<1x1x8x32xf32, #tpu.memory_space<vmem>>) attributes {dimension_semantics = [#tpu.dimension_semantics<parallel>, #tpu.dimension_semantics<parallel>], iteration_bounds = array<i64: 2, 8>, scalar_prefetch = 0 : i64, scratch_operands = 0 : i64, tpu.core_type = #tpu.core_type<tc>, window_params = [{transform_indices = @transform_0, window_bounds = array<i64: 1, 1, 8, 128>}, {transform_indices = @transform_1, window_bounds = array<i64: 1, 4, 8, 8>}, {transform_indices = @transform_2, window_bounds = array<i64: 1, 1, 1, 8>}, {pipeline_mode = #tpu.pipeline_mode<synchronous>, transform_indices = @transform_3, window_bounds = array<i64: 32, 32>}, {pipeline_mode = #tpu.pipeline_mode<synchronous>, transform_indices = @transform_4, window_bounds = array<i64: 1, 32>}, {transform_indices = @transform_5, window_bounds = array<i64: 1, 1, 8, 32>}]} {
    %c0 = arith.constant 0 : index
    %c0_0 = arith.constant 0 : index
    %c0_1 = arith.constant 0 : index
    %c0_2 = arith.constant 0 : index
    %0 = vector.load %arg2[%c0, %c0_0, %c0_1, %c0_2] : memref<1x1x8x128xbf16, #tpu.memory_space<vmem>>, vector<1x1x8x128xbf16>
    %1 = vector.shape_cast %0 : vector<1x1x8x128xbf16> to vector<8x128xbf16>
    %2 = arith.extf %1 : vector<8x128xbf16> to vector<8x128xf32>
    %c0_3 = arith.constant 0 : index
    %c0_4 = arith.constant 0 : index
    %c0_5 = arith.constant 0 : index
    %c0_6 = arith.constant 0 : index
    %3 = vector.load %arg3[%c0_3, %c0_4, %c0_5, %c0_6] : memref<1x4x8x8xf32, #tpu.memory_space<vmem>>, vector<1x4x8x8xf32>
    %4 = vector.shape_cast %3 : vector<1x4x8x8xf32> to vector<4x8x8xf32>
    %c0_7 = arith.constant 0 : index
    %c0_8 = arith.constant 0 : index
    %c0_9 = arith.constant 0 : index
    %c0_10 = arith.constant 0 : index
    %5 = vector.load %arg4[%c0_7, %c0_8, %c0_9, %c0_10] : memref<1x1x1x8xf32, #tpu.memory_space<vmem>>, vector<1x1x1x8xf32>
    %6 = vector.shape_cast %5 : vector<1x1x1x8xf32> to vector<1x8xf32>
    %7 = vector.extract_strided_slice %2 {offsets = [0, 0], sizes = [8, 8], strides = [1, 1]} : vector<8x128xf32> to vector<8x8xf32>
    %8 = arith.truncf %7 : vector<8x8xf32> to vector<8x8xbf16>
    %9 = vector.extract_strided_slice %2 {offsets = [0, 32], sizes = [8, 8], strides = [1, 1]} : vector<8x128xf32> to vector<8x8xf32>
    %10 = arith.truncf %9 : vector<8x8xf32> to vector<8x8xbf16>
    %11 = vector.extract_strided_slice %2 {offsets = [0, 64], sizes = [8, 8], strides = [1, 1]} : vector<8x128xf32> to vector<8x8xf32>
    %12 = arith.truncf %11 : vector<8x8xf32> to vector<8x8xbf16>
    %cst = arith.constant dense<0.000000e+00> : vector<8x8xf32>
    %13 = tpu.matmul %8, %10, %cst {dimension_numbers = #tpu.dot_dimension_numbers<[1], [1], [0], [0], [0, 0, 1, 0], [], []>} : vector<8x8xbf16>, vector<8x8xbf16>, vector<8x8xf32> -> vector<8x8xf32>
    %14 = vector.extract_strided_slice %4 {offsets = [0, 0, 0], sizes = [1, 8, 8], strides = [1, 1, 1]} : vector<4x8x8xf32> to vector<1x8x8xf32>
    %15 = vector.shape_cast %14 : vector<1x8x8xf32> to vector<8x8xf32>
    %16 = arith.addf %13, %15 : vector<8x8xf32>
    %17 = vector.broadcast %6 : vector<1x8xf32> to vector<8x8xf32>
    %18 = arith.addf %16, %17 : vector<8x8xf32>
    %cst_11 = arith.constant dense<0xFF800000> : vector<8xf32>
    %19 = vector.multi_reduction <maximumf>, %18, %cst_11 [1] : vector<8x8xf32> to vector<8xf32>
    %20 = vector.shape_cast %19 : vector<8xf32> to vector<8x1xf32>
    %21 = vector.broadcast %20 : vector<8x1xf32> to vector<8x8xf32>
    %22 = arith.subf %18, %21 : vector<8x8xf32>
    %23 = math.exp %22 : vector<8x8xf32>
    %cst_12 = arith.constant dense<0.000000e+00> : vector<8xf32>
    %24 = vector.multi_reduction <add>, %23, %cst_12 [1] : vector<8x8xf32> to vector<8xf32>
    %25 = vector.shape_cast %24 : vector<8xf32> to vector<8x1xf32>
    %26 = tpu.reciprocal %25 {approx = true} : vector<8x1xf32> -> vector<8x1xf32>
    %27 = vector.broadcast %26 : vector<8x1xf32> to vector<8x8xf32>
    %28 = arith.mulf %23, %27 : vector<8x8xf32>
    %29 = arith.truncf %28 : vector<8x8xf32> to vector<8x8xbf16>
    %cst_13 = arith.constant dense<0.000000e+00> : vector<8x8xf32>
    %30 = tpu.matmul %29, %12, %cst_13 {dimension_numbers = #tpu.dot_dimension_numbers<[1], [0], [0], [1], [0, 0, 1, 1], [], []>} : vector<8x8xbf16>, vector<8x8xbf16>, vector<8x8xf32> -> vector<8x8xf32>
    %31 = vector.extract_strided_slice %2 {offsets = [0, 8], sizes = [8, 8], strides = [1, 1]} : vector<8x128xf32> to vector<8x8xf32>
    %32 = arith.truncf %31 : vector<8x8xf32> to vector<8x8xbf16>
    %33 = vector.extract_strided_slice %2 {offsets = [0, 40], sizes = [8, 8], strides = [1, 1]} : vector<8x128xf32> to vector<8x8xf32>
    %34 = arith.truncf %33 : vector<8x8xf32> to vector<8x8xbf16>
    %35 = vector.extract_strided_slice %2 {offsets = [0, 72], sizes = [8, 8], strides = [1, 1]} : vector<8x128xf32> to vector<8x8xf32>
    %36 = arith.truncf %35 : vector<8x8xf32> to vector<8x8xbf16>
    %cst_14 = arith.constant dense<0.000000e+00> : vector<8x8xf32>
    %37 = tpu.matmul %32, %34, %cst_14 {dimension_numbers = #tpu.dot_dimension_numbers<[1], [1], [0], [0], [0, 0, 1, 0], [], []>} : vector<8x8xbf16>, vector<8x8xbf16>, vector<8x8xf32> -> vector<8x8xf32>
    %38 = vector.extract_strided_slice %4 {offsets = [1, 0, 0], sizes = [1, 8, 8], strides = [1, 1, 1]} : vector<4x8x8xf32> to vector<1x8x8xf32>
    %39 = vector.shape_cast %38 : vector<1x8x8xf32> to vector<8x8xf32>
    %40 = arith.addf %37, %39 : vector<8x8xf32>
    %41 = vector.broadcast %6 : vector<1x8xf32> to vector<8x8xf32>
    %42 = arith.addf %40, %41 : vector<8x8xf32>
    %cst_15 = arith.constant dense<0xFF800000> : vector<8xf32>
    %43 = vector.multi_reduction <maximumf>, %42, %cst_15 [1] : vector<8x8xf32> to vector<8xf32>
    %44 = vector.shape_cast %43 : vector<8xf32> to vector<8x1xf32>
    %45 = vector.broadcast %44 : vector<8x1xf32> to vector<8x8xf32>
    %46 = arith.subf %42, %45 : vector<8x8xf32>
    %47 = math.exp %46 : vector<8x8xf32>
    %cst_16 = arith.constant dense<0.000000e+00> : vector<8xf32>
    %48 = vector.multi_reduction <add>, %47, %cst_16 [1] : vector<8x8xf32> to vector<8xf32>
    %49 = vector.shape_cast %48 : vector<8xf32> to vector<8x1xf32>
    %50 = tpu.reciprocal %49 {approx = true} : vector<8x1xf32> -> vector<8x1xf32>
    %51 = vector.broadcast %50 : vector<8x1xf32> to vector<8x8xf32>
    %52 = arith.mulf %47, %51 : vector<8x8xf32>
    %53 = arith.truncf %52 : vector<8x8xf32> to vector<8x8xbf16>
    %cst_17 = arith.constant dense<0.000000e+00> : vector<8x8xf32>
    %54 = tpu.matmul %53, %36, %cst_17 {dimension_numbers = #tpu.dot_dimension_numbers<[1], [0], [0], [1], [0, 0, 1, 1], [], []>} : vector<8x8xbf16>, vector<8x8xbf16>, vector<8x8xf32> -> vector<8x8xf32>
    %55 = vector.extract_strided_slice %2 {offsets = [0, 16], sizes = [8, 8], strides = [1, 1]} : vector<8x128xf32> to vector<8x8xf32>
    %56 = arith.truncf %55 : vector<8x8xf32> to vector<8x8xbf16>
    %57 = vector.extract_strided_slice %2 {offsets = [0, 48], sizes = [8, 8], strides = [1, 1]} : vector<8x128xf32> to vector<8x8xf32>
    %58 = arith.truncf %57 : vector<8x8xf32> to vector<8x8xbf16>
    %59 = vector.extract_strided_slice %2 {offsets = [0, 80], sizes = [8, 8], strides = [1, 1]} : vector<8x128xf32> to vector<8x8xf32>
    %60 = arith.truncf %59 : vector<8x8xf32> to vector<8x8xbf16>
    %cst_18 = arith.constant dense<0.000000e+00> : vector<8x8xf32>
    %61 = tpu.matmul %56, %58, %cst_18 {dimension_numbers = #tpu.dot_dimension_numbers<[1], [1], [0], [0], [0, 0, 1, 0], [], []>} : vector<8x8xbf16>, vector<8x8xbf16>, vector<8x8xf32> -> vector<8x8xf32>
    %62 = vector.extract_strided_slice %4 {offsets = [2, 0, 0], sizes = [1, 8, 8], strides = [1, 1, 1]} : vector<4x8x8xf32> to vector<1x8x8xf32>
    %63 = vector.shape_cast %62 : vector<1x8x8xf32> to vector<8x8xf32>
    %64 = arith.addf %61, %63 : vector<8x8xf32>
    %65 = vector.broadcast %6 : vector<1x8xf32> to vector<8x8xf32>
    %66 = arith.addf %64, %65 : vector<8x8xf32>
    %cst_19 = arith.constant dense<0xFF800000> : vector<8xf32>
    %67 = vector.multi_reduction <maximumf>, %66, %cst_19 [1] : vector<8x8xf32> to vector<8xf32>
    %68 = vector.shape_cast %67 : vector<8xf32> to vector<8x1xf32>
    %69 = vector.broadcast %68 : vector<8x1xf32> to vector<8x8xf32>
    %70 = arith.subf %66, %69 : vector<8x8xf32>
    %71 = math.exp %70 : vector<8x8xf32>
    %cst_20 = arith.constant dense<0.000000e+00> : vector<8xf32>
    %72 = vector.multi_reduction <add>, %71, %cst_20 [1] : vector<8x8xf32> to vector<8xf32>
    %73 = vector.shape_cast %72 : vector<8xf32> to vector<8x1xf32>
    %74 = tpu.reciprocal %73 {approx = true} : vector<8x1xf32> -> vector<8x1xf32>
    %75 = vector.broadcast %74 : vector<8x1xf32> to vector<8x8xf32>
    %76 = arith.mulf %71, %75 : vector<8x8xf32>
    %77 = arith.truncf %76 : vector<8x8xf32> to vector<8x8xbf16>
    %cst_21 = arith.constant dense<0.000000e+00> : vector<8x8xf32>
    %78 = tpu.matmul %77, %60, %cst_21 {dimension_numbers = #tpu.dot_dimension_numbers<[1], [0], [0], [1], [0, 0, 1, 1], [], []>} : vector<8x8xbf16>, vector<8x8xbf16>, vector<8x8xf32> -> vector<8x8xf32>
    %79 = vector.extract_strided_slice %2 {offsets = [0, 24], sizes = [8, 8], strides = [1, 1]} : vector<8x128xf32> to vector<8x8xf32>
    %80 = arith.truncf %79 : vector<8x8xf32> to vector<8x8xbf16>
    %81 = vector.extract_strided_slice %2 {offsets = [0, 56], sizes = [8, 8], strides = [1, 1]} : vector<8x128xf32> to vector<8x8xf32>
    %82 = arith.truncf %81 : vector<8x8xf32> to vector<8x8xbf16>
    %83 = vector.extract_strided_slice %2 {offsets = [0, 88], sizes = [8, 8], strides = [1, 1]} : vector<8x128xf32> to vector<8x8xf32>
    %84 = arith.truncf %83 : vector<8x8xf32> to vector<8x8xbf16>
    %cst_22 = arith.constant dense<0.000000e+00> : vector<8x8xf32>
    %85 = tpu.matmul %80, %82, %cst_22 {dimension_numbers = #tpu.dot_dimension_numbers<[1], [1], [0], [0], [0, 0, 1, 0], [], []>} : vector<8x8xbf16>, vector<8x8xbf16>, vector<8x8xf32> -> vector<8x8xf32>
    %86 = vector.extract_strided_slice %4 {offsets = [3, 0, 0], sizes = [1, 8, 8], strides = [1, 1, 1]} : vector<4x8x8xf32> to vector<1x8x8xf32>
    %87 = vector.shape_cast %86 : vector<1x8x8xf32> to vector<8x8xf32>
    %88 = arith.addf %85, %87 : vector<8x8xf32>
    %89 = vector.broadcast %6 : vector<1x8xf32> to vector<8x8xf32>
    %90 = arith.addf %88, %89 : vector<8x8xf32>
    %cst_23 = arith.constant dense<0xFF800000> : vector<8xf32>
    %91 = vector.multi_reduction <maximumf>, %90, %cst_23 [1] : vector<8x8xf32> to vector<8xf32>
    %92 = vector.shape_cast %91 : vector<8xf32> to vector<8x1xf32>
    %93 = vector.broadcast %92 : vector<8x1xf32> to vector<8x8xf32>
    %94 = arith.subf %90, %93 : vector<8x8xf32>
    %95 = math.exp %94 : vector<8x8xf32>
    %cst_24 = arith.constant dense<0.000000e+00> : vector<8xf32>
    %96 = vector.multi_reduction <add>, %95, %cst_24 [1] : vector<8x8xf32> to vector<8xf32>
    %97 = vector.shape_cast %96 : vector<8xf32> to vector<8x1xf32>
    %98 = tpu.reciprocal %97 {approx = true} : vector<8x1xf32> -> vector<8x1xf32>
    %99 = vector.broadcast %98 : vector<8x1xf32> to vector<8x8xf32>
    %100 = arith.mulf %95, %99 : vector<8x8xf32>
    %101 = arith.truncf %100 : vector<8x8xf32> to vector<8x8xbf16>
    %cst_25 = arith.constant dense<0.000000e+00> : vector<8x8xf32>
    %102 = tpu.matmul %101, %84, %cst_25 {dimension_numbers = #tpu.dot_dimension_numbers<[1], [0], [0], [1], [0, 0, 1, 1], [], []>} : vector<8x8xbf16>, vector<8x8xbf16>, vector<8x8xf32> -> vector<8x8xf32>
    %103 = tpu.concatenate %30, %54, %78, %102 in 1 : vector<8x8xf32>, vector<8x8xf32>, vector<8x8xf32>, vector<8x8xf32> -> vector<8x32xf32>
    %104 = vector.extract_strided_slice %2 {offsets = [0, 96], sizes = [8, 32], strides = [1, 1]} : vector<8x128xf32> to vector<8x32xf32>
    %cst_26 = arith.constant 0.000000e+00 : f32
    %105 = vector.broadcast %cst_26 : f32 to vector<8x32xf32>
    %106 = arith.subf %105, %104 : vector<8x32xf32>
    %107 = math.exp %106 : vector<8x32xf32>
    %cst_27 = arith.constant 1.000000e+00 : f32
    %108 = vector.broadcast %cst_27 : f32 to vector<8x32xf32>
    %109 = arith.addf %108, %107 : vector<8x32xf32>
    %cst_28 = arith.constant 1.000000e+00 : f32
    %110 = vector.broadcast %cst_28 : f32 to vector<8x32xf32>
    %111 = arith.divf %110, %109 : vector<8x32xf32>
    %112 = arith.mulf %111, %103 : vector<8x32xf32>
    %113 = arith.truncf %112 : vector<8x32xf32> to vector<8x32xbf16>
    %c0_29 = arith.constant 0 : index
    %c0_30 = arith.constant 0 : index
    %114 = vector.load %arg5[%c0_29, %c0_30] : memref<32x32xbf16, #tpu.memory_space<vmem>>, vector<32x32xbf16>
    %cst_31 = arith.constant dense<0.000000e+00> : vector<8x32xf32>
    %115 = tpu.matmul %113, %114, %cst_31 {dimension_numbers = #tpu.dot_dimension_numbers<[1], [0], [0], [1], [0, 0, 1, 1], [], []>} : vector<8x32xbf16>, vector<32x32xbf16>, vector<8x32xf32> -> vector<8x32xf32>
    %c0_32 = arith.constant 0 : index
    %c0_33 = arith.constant 0 : index
    %116 = vector.load %arg6[%c0_32, %c0_33] : memref<1x32xf32, #tpu.memory_space<vmem>>, vector<1x32xf32>
    %117 = vector.broadcast %116 : vector<1x32xf32> to vector<8x32xf32>
    %118 = arith.addf %115, %117 : vector<8x32xf32>
    %c0_34 = arith.constant 0 : index
    %c0_35 = arith.constant 0 : index
    %c0_36 = arith.constant 0 : index
    %c0_37 = arith.constant 0 : index
    %119 = vector.load %arg7[%c0_34, %c0_35, %c0_36, %c0_37] : memref<1x1x8x32xf32, #tpu.memory_space<vmem>>, vector<1x1x8x32xf32>
    %120 = vector.shape_cast %119 : vector<1x1x8x32xf32> to vector<8x32xf32>
    %121 = vector.shape_cast %118 : vector<8x32xf32> to vector<1x1x8x32xf32>
    tpu.vector_store %arg7[%c0_34, %c0_35, %c0_36, %c0_37], %121 {strides = array<i32>} : memref<1x1x8x32xf32, #tpu.memory_space<vmem>>, vector<1x1x8x32xf32>,
    return
  }
  func.func @transform_0(%arg0: i32, %arg1: i32) -> (i32, i32, i32, i32) {
    %c0_i32 = arith.constant 0 : i32
    %c0_i32_0 = arith.constant 0 : i32
    %c0_i32_1 = arith.constant 0 : i32
    return %arg0, %arg1, %c0_i32, %c0_i32_0 : i32, i32, i32, i32
  }
  func.func @transform_1(%arg0: i32, %arg1: i32) -> (i32, i32, i32, i32) {
    %c0_i32 = arith.constant 0 : i32
    %c0_i32_0 = arith.constant 0 : i32
    %c0_i32_1 = arith.constant 0 : i32
    %c0_i32_2 = arith.constant 0 : i32
    return %arg0, %c0_i32, %c0_i32_0, %c0_i32_1 : i32, i32, i32, i32
  }
  func.func @transform_2(%arg0: i32, %arg1: i32) -> (i32, i32, i32, i32) {
    %c0_i32 = arith.constant 0 : i32
    %c0_i32_0 = arith.constant 0 : i32
    %c0_i32_1 = arith.constant 0 : i32
    return %arg0, %arg1, %c0_i32, %c0_i32_0 : i32, i32, i32, i32
  }
  func.func @transform_3(%arg0: i32, %arg1: i32) -> (i32, i32) {
    %c0_i32 = arith.constant 0 : i32
    %c0_i32_0 = arith.constant 0 : i32
    %c0_i32_1 = arith.constant 0 : i32
    return %c0_i32, %c0_i32_0 : i32, i32
  }
  func.func @transform_4(%arg0: i32, %arg1: i32) -> (i32, i32) {
    %c0_i32 = arith.constant 0 : i32
    %c0_i32_0 = arith.constant 0 : i32
    %c0_i32_1 = arith.constant 0 : i32
    return %c0_i32, %c0_i32_0 : i32, i32
  }
  func.func @transform_5(%arg0: i32, %arg1: i32) -> (i32, i32, i32, i32) {
    %c0_i32 = arith.constant 0 : i32
    %c0_i32_0 = arith.constant 0 : i32
    %c0_i32_1 = arith.constant 0 : i32
    return %arg0, %arg1, %c0_i32, %c0_i32_0 : i32, i32, i32, i32
  }
}

module attributes {stable_mosaic.version = 11 : i64} {
  func.func @_ln_linear_kernel(%arg0: i32, %arg1: memref<128x32xf32, #tpu.memory_space<vmem>>, %arg2: memref<1x32xf32, #tpu.memory_space<vmem>>, %arg3: memref<1x32xf32, #tpu.memory_space<vmem>>, %arg4: memref<32x4xbf16, #tpu.memory_space<vmem>>, %arg5: memref<1x4xf32, #tpu.memory_space<vmem>>, %arg6: memref<128x4xf32, #tpu.memory_space<vmem>>) attributes {dimension_semantics = [#tpu.dimension_semantics<parallel>], iteration_bounds = array<i64: 1>, scalar_prefetch = 0 : i64, scratch_operands = 0 : i64, tpu.core_type = #tpu.core_type<tc>, window_params = [{transform_indices = @transform_0, window_bounds = array<i64: 128, 32>}, {pipeline_mode = #tpu.pipeline_mode<synchronous>, transform_indices = @transform_1, window_bounds = array<i64: 1, 32>}, {pipeline_mode = #tpu.pipeline_mode<synchronous>, transform_indices = @transform_2, window_bounds = array<i64: 1, 32>}, {pipeline_mode = #tpu.pipeline_mode<synchronous>, transform_indices = @transform_3, window_bounds = array<i64: 32, 4>}, {pipeline_mode = #tpu.pipeline_mode<synchronous>, transform_indices = @transform_4, window_bounds = array<i64: 1, 4>}, {transform_indices = @transform_5, window_bounds = array<i64: 128, 4>}]} {
    %c0 = arith.constant 0 : index
    %c0_0 = arith.constant 0 : index
    %0 = vector.load %arg1[%c0, %c0_0] : memref<128x32xf32, #tpu.memory_space<vmem>>, vector<128x32xf32>
    %c0_1 = arith.constant 0 : index
    %c0_2 = arith.constant 0 : index
    %1 = vector.load %arg2[%c0_1, %c0_2] : memref<1x32xf32, #tpu.memory_space<vmem>>, vector<1x32xf32>
    %c0_3 = arith.constant 0 : index
    %c0_4 = arith.constant 0 : index
    %2 = vector.load %arg3[%c0_3, %c0_4] : memref<1x32xf32, #tpu.memory_space<vmem>>, vector<1x32xf32>
    %cst = arith.constant dense<0.000000e+00> : vector<128xf32>
    %3 = vector.multi_reduction <add>, %0, %cst [1] : vector<128x32xf32> to vector<128xf32>
    %4 = vector.shape_cast %3 : vector<128xf32> to vector<128x1xf32>
    %cst_5 = arith.constant 3.200000e+01 : f32
    %5 = vector.broadcast %cst_5 : f32 to vector<128x1xf32>
    %6 = arith.divf %4, %5 : vector<128x1xf32>
    %7 = vector.broadcast %6 : vector<128x1xf32> to vector<128x32xf32>
    %8 = arith.subf %0, %7 : vector<128x32xf32>
    %9 = arith.mulf %8, %8 : vector<128x32xf32>
    %cst_6 = arith.constant dense<0.000000e+00> : vector<128xf32>
    %10 = vector.multi_reduction <add>, %9, %cst_6 [1] : vector<128x32xf32> to vector<128xf32>
    %11 = vector.shape_cast %10 : vector<128xf32> to vector<128x1xf32>
    %cst_7 = arith.constant 3.200000e+01 : f32
    %12 = vector.broadcast %cst_7 : f32 to vector<128x1xf32>
    %13 = arith.divf %11, %12 : vector<128x1xf32>
    %cst_8 = arith.constant 9.99999974E-6 : f32
    %14 = vector.broadcast %cst_8 : f32 to vector<128x1xf32>
    %15 = arith.addf %13, %14 : vector<128x1xf32>
    %16 = math.rsqrt %15 : vector<128x1xf32>
    %17 = vector.broadcast %16 : vector<128x1xf32> to vector<128x32xf32>
    %18 = arith.mulf %8, %17 : vector<128x32xf32>
    %19 = vector.broadcast %1 : vector<1x32xf32> to vector<128x32xf32>
    %20 = arith.mulf %18, %19 : vector<128x32xf32>
    %21 = vector.broadcast %2 : vector<1x32xf32> to vector<128x32xf32>
    %22 = arith.addf %20, %21 : vector<128x32xf32>
    %23 = arith.truncf %22 : vector<128x32xf32> to vector<128x32xbf16>
    %c0_9 = arith.constant 0 : index
    %c0_10 = arith.constant 0 : index
    %24 = vector.load %arg4[%c0_9, %c0_10] : memref<32x4xbf16, #tpu.memory_space<vmem>>, vector<32x4xbf16>
    %cst_11 = arith.constant dense<0.000000e+00> : vector<128x4xf32>
    %25 = tpu.matmul %23, %24, %cst_11 {dimension_numbers = #tpu.dot_dimension_numbers<[1], [0], [0], [1], [0, 0, 1, 1], [], []>} : vector<128x32xbf16>, vector<32x4xbf16>, vector<128x4xf32> -> vector<128x4xf32>
    %c0_12 = arith.constant 0 : index
    %c0_13 = arith.constant 0 : index
    %26 = vector.load %arg5[%c0_12, %c0_13] : memref<1x4xf32, #tpu.memory_space<vmem>>, vector<1x4xf32>
    %27 = vector.broadcast %26 : vector<1x4xf32> to vector<128x4xf32>
    %28 = arith.addf %25, %27 : vector<128x4xf32>
    %c0_14 = arith.constant 0 : index
    %c0_15 = arith.constant 0 : index
    %29 = vector.load %arg6[%c0_14, %c0_15] : memref<128x4xf32, #tpu.memory_space<vmem>>, vector<128x4xf32>
    tpu.vector_store %arg6[%c0_14, %c0_15], %28 {strides = array<i32>} : memref<128x4xf32, #tpu.memory_space<vmem>>, vector<128x4xf32>,
    return
  }
  func.func @transform_0(%arg0: i32) -> (i32, i32) {
    %c0_i32 = arith.constant 0 : i32
    %c0_i32_0 = arith.constant 0 : i32
    return %arg0, %c0_i32 : i32, i32
  }
  func.func @transform_1(%arg0: i32) -> (i32, i32) {
    %c0_i32 = arith.constant 0 : i32
    %c0_i32_0 = arith.constant 0 : i32
    %c0_i32_1 = arith.constant 0 : i32
    return %c0_i32, %c0_i32_0 : i32, i32
  }
  func.func @transform_2(%arg0: i32) -> (i32, i32) {
    %c0_i32 = arith.constant 0 : i32
    %c0_i32_0 = arith.constant 0 : i32
    %c0_i32_1 = arith.constant 0 : i32
    return %c0_i32, %c0_i32_0 : i32, i32
  }
  func.func @transform_3(%arg0: i32) -> (i32, i32) {
    %c0_i32 = arith.constant 0 : i32
    %c0_i32_0 = arith.constant 0 : i32
    %c0_i32_1 = arith.constant 0 : i32
    return %c0_i32, %c0_i32_0 : i32, i32
  }
  func.func @transform_4(%arg0: i32) -> (i32, i32) {
    %c0_i32 = arith.constant 0 : i32
    %c0_i32_0 = arith.constant 0 : i32
    %c0_i32_1 = arith.constant 0 : i32
    return %c0_i32, %c0_i32_0 : i32, i32
  }
  func.func @transform_5(%arg0: i32) -> (i32, i32) {
    %c0_i32 = arith.constant 0 : i32
    %c0_i32_0 = arith.constant 0 : i32
    return %arg0, %c0_i32 : i32, i32
  }
}

module attributes {stable_mosaic.version = 11 : i64} {
  func.func @_attn_kernel(%arg0: i32, %arg1: i32, %arg2: memref<1x1x8x128xbf16, #tpu.memory_space<vmem>>, %arg3: memref<1x4x8x8xf32, #tpu.memory_space<vmem>>, %arg4: memref<1x1x1x8xf32, #tpu.memory_space<vmem>>, %arg5: memref<32x32xbf16, #tpu.memory_space<vmem>>, %arg6: memref<1x32xf32, #tpu.memory_space<vmem>>, %arg7: memref<1x1x8x32xf32, #tpu.memory_space<vmem>>) attributes {dimension_semantics = [#tpu.dimension_semantics<parallel>, #tpu.dimension_semantics<parallel>], iteration_bounds = array<i64: 2, 1>, scalar_prefetch = 0 : i64, scratch_operands = 0 : i64, tpu.core_type = #tpu.core_type<tc>, window_params = [{transform_indices = @transform_0, window_bounds = array<i64: 1, 1, 8, 128>}, {transform_indices = @transform_1, window_bounds = array<i64: 1, 4, 8, 8>}, {transform_indices = @transform_2, window_bounds = array<i64: 1, 1, 1, 8>}, {pipeline_mode = #tpu.pipeline_mode<synchronous>, transform_indices = @transform_3, window_bounds = array<i64: 32, 32>}, {pipeline_mode = #tpu.pipeline_mode<synchronous>, transform_indices = @transform_4, window_bounds = array<i64: 1, 32>}, {transform_indices = @transform_5, window_bounds = array<i64: 1, 1, 8, 32>}]} {
    %c0 = arith.constant 0 : index
    %c0_0 = arith.constant 0 : index
    %c0_1 = arith.constant 0 : index
    %c0_2 = arith.constant 0 : index
    %0 = vector.load %arg2[%c0, %c0_0, %c0_1, %c0_2] : memref<1x1x8x128xbf16, #tpu.memory_space<vmem>>, vector<1x1x8x128xbf16>
    %1 = vector.shape_cast %0 : vector<1x1x8x128xbf16> to vector<8x128xbf16>
    %2 = arith.extf %1 : vector<8x128xbf16> to vector<8x128xf32>
    %c0_3 = arith.constant 0 : index
    %c0_4 = arith.constant 0 : index
    %c0_5 = arith.constant 0 : index
    %c0_6 = arith.constant 0 : index
    %3 = vector.load %arg3[%c0_3, %c0_4, %c0_5, %c0_6] : memref<1x4x8x8xf32, #tpu.memory_space<vmem>>, vector<1x4x8x8xf32>
    %4 = vector.shape_cast %3 : vector<1x4x8x8xf32> to vector<4x8x8xf32>
    %c0_7 = arith.constant 0 : index
    %c0_8 = arith.constant 0 : index
    %c0_9 = arith.constant 0 : index
    %c0_10 = arith.constant 0 : index
    %5 = vector.load %arg4[%c0_7, %c0_8, %c0_9, %c0_10] : memref<1x1x1x8xf32, #tpu.memory_space<vmem>>, vector<1x1x1x8xf32>
    %6 = vector.shape_cast %5 : vector<1x1x1x8xf32> to vector<1x8xf32>
    %7 = vector.extract_strided_slice %2 {offsets = [0, 0], sizes = [8, 8], strides = [1, 1]} : vector<8x128xf32> to vector<8x8xf32>
    %8 = arith.truncf %7 : vector<8x8xf32> to vector<8x8xbf16>
    %9 = vector.extract_strided_slice %2 {offsets = [0, 32], sizes = [8, 8], strides = [1, 1]} : vector<8x128xf32> to vector<8x8xf32>
    %10 = arith.truncf %9 : vector<8x8xf32> to vector<8x8xbf16>
    %11 = vector.extract_strided_slice %2 {offsets = [0, 64], sizes = [8, 8], strides = [1, 1]} : vector<8x128xf32> to vector<8x8xf32>
    %12 = arith.truncf %11 : vector<8x8xf32> to vector<8x8xbf16>
    %cst = arith.constant dense<0.000000e+00> : vector<8x8xf32>
    %13 = tpu.matmul %8, %10, %cst {dimension_numbers = #tpu.dot_dimension_numbers<[1], [1], [0], [0], [0, 0, 1, 0], [], []>} : vector<8x8xbf16>, vector<8x8xbf16>, vector<8x8xf32> -> vector<8x8xf32>
    %14 = vector.extract_strided_slice %4 {offsets = [0, 0, 0], sizes = [1, 8, 8], strides = [1, 1, 1]} : vector<4x8x8xf32> to vector<1x8x8xf32>
    %15 = vector.shape_cast %14 : vector<1x8x8xf32> to vector<8x8xf32>
    %16 = arith.addf %13, %15 : vector<8x8xf32>
    %17 = vector.broadcast %6 : vector<1x8xf32> to vector<8x8xf32>
    %18 = arith.addf %16, %17 : vector<8x8xf32>
    %cst_11 = arith.constant dense<0xFF800000> : vector<8xf32>
    %19 = vector.multi_reduction <maximumf>, %18, %cst_11 [1] : vector<8x8xf32> to vector<8xf32>
    %20 = vector.shape_cast %19 : vector<8xf32> to vector<8x1xf32>
    %21 = vector.broadcast %20 : vector<8x1xf32> to vector<8x8xf32>
    %22 = arith.subf %18, %21 : vector<8x8xf32>
    %23 = math.exp %22 : vector<8x8xf32>
    %cst_12 = arith.constant dense<0.000000e+00> : vector<8xf32>
    %24 = vector.multi_reduction <add>, %23, %cst_12 [1] : vector<8x8xf32> to vector<8xf32>
    %25 = vector.shape_cast %24 : vector<8xf32> to vector<8x1xf32>
    %26 = tpu.reciprocal %25 {approx = true} : vector<8x1xf32> -> vector<8x1xf32>
    %27 = vector.broadcast %26 : vector<8x1xf32> to vector<8x8xf32>
    %28 = arith.mulf %23, %27 : vector<8x8xf32>
    %29 = arith.truncf %28 : vector<8x8xf32> to vector<8x8xbf16>
    %cst_13 = arith.constant dense<0.000000e+00> : vector<8x8xf32>
    %30 = tpu.matmul %29, %12, %cst_13 {dimension_numbers = #tpu.dot_dimension_numbers<[1], [0], [0], [1], [0, 0, 1, 1], [], []>} : vector<8x8xbf16>, vector<8x8xbf16>, vector<8x8xf32> -> vector<8x8xf32>
    %31 = vector.extract_strided_slice %2 {offsets = [0, 8], sizes = [8, 8], strides = [1, 1]} : vector<8x128xf32> to vector<8x8xf32>
    %32 = arith.truncf %31 : vector<8x8xf32> to vector<8x8xbf16>
    %33 = vector.extract_strided_slice %2 {offsets = [0, 40], sizes = [8, 8], strides = [1, 1]} : vector<8x128xf32> to vector<8x8xf32>
    %34 = arith.truncf %33 : vector<8x8xf32> to vector<8x8xbf16>
    %35 = vector.extract_strided_slice %2 {offsets = [0, 72], sizes = [8, 8], strides = [1, 1]} : vector<8x128xf32> to vector<8x8xf32>
    %36 = arith.truncf %35 : vector<8x8xf32> to vector<8x8xbf16>
    %cst_14 = arith.constant dense<0.000000e+00> : vector<8x8xf32>
    %37 = tpu.matmul %32, %34, %cst_14 {dimension_numbers = #tpu.dot_dimension_numbers<[1], [1], [0], [0], [0, 0, 1, 0], [], []>} : vector<8x8xbf16>, vector<8x8xbf16>, vector<8x8xf32> -> vector<8x8xf32>
    %38 = vector.extract_strided_slice %4 {offsets = [1, 0, 0], sizes = [1, 8, 8], strides = [1, 1, 1]} : vector<4x8x8xf32> to vector<1x8x8xf32>
    %39 = vector.shape_cast %38 : vector<1x8x8xf32> to vector<8x8xf32>
    %40 = arith.addf %37, %39 : vector<8x8xf32>
    %41 = vector.broadcast %6 : vector<1x8xf32> to vector<8x8xf32>
    %42 = arith.addf %40, %41 : vector<8x8xf32>
    %cst_15 = arith.constant dense<0xFF800000> : vector<8xf32>
    %43 = vector.multi_reduction <maximumf>, %42, %cst_15 [1] : vector<8x8xf32> to vector<8xf32>
    %44 = vector.shape_cast %43 : vector<8xf32> to vector<8x1xf32>
    %45 = vector.broadcast %44 : vector<8x1xf32> to vector<8x8xf32>
    %46 = arith.subf %42, %45 : vector<8x8xf32>
    %47 = math.exp %46 : vector<8x8xf32>
    %cst_16 = arith.constant dense<0.000000e+00> : vector<8xf32>
    %48 = vector.multi_reduction <add>, %47, %cst_16 [1] : vector<8x8xf32> to vector<8xf32>
    %49 = vector.shape_cast %48 : vector<8xf32> to vector<8x1xf32>
    %50 = tpu.reciprocal %49 {approx = true} : vector<8x1xf32> -> vector<8x1xf32>
    %51 = vector.broadcast %50 : vector<8x1xf32> to vector<8x8xf32>
    %52 = arith.mulf %47, %51 : vector<8x8xf32>
    %53 = arith.truncf %52 : vector<8x8xf32> to vector<8x8xbf16>
    %cst_17 = arith.constant dense<0.000000e+00> : vector<8x8xf32>
    %54 = tpu.matmul %53, %36, %cst_17 {dimension_numbers = #tpu.dot_dimension_numbers<[1], [0], [0], [1], [0, 0, 1, 1], [], []>} : vector<8x8xbf16>, vector<8x8xbf16>, vector<8x8xf32> -> vector<8x8xf32>
    %55 = vector.extract_strided_slice %2 {offsets = [0, 16], sizes = [8, 8], strides = [1, 1]} : vector<8x128xf32> to vector<8x8xf32>
    %56 = arith.truncf %55 : vector<8x8xf32> to vector<8x8xbf16>
    %57 = vector.extract_strided_slice %2 {offsets = [0, 48], sizes = [8, 8], strides = [1, 1]} : vector<8x128xf32> to vector<8x8xf32>
    %58 = arith.truncf %57 : vector<8x8xf32> to vector<8x8xbf16>
    %59 = vector.extract_strided_slice %2 {offsets = [0, 80], sizes = [8, 8], strides = [1, 1]} : vector<8x128xf32> to vector<8x8xf32>
    %60 = arith.truncf %59 : vector<8x8xf32> to vector<8x8xbf16>
    %cst_18 = arith.constant dense<0.000000e+00> : vector<8x8xf32>
    %61 = tpu.matmul %56, %58, %cst_18 {dimension_numbers = #tpu.dot_dimension_numbers<[1], [1], [0], [0], [0, 0, 1, 0], [], []>} : vector<8x8xbf16>, vector<8x8xbf16>, vector<8x8xf32> -> vector<8x8xf32>
    %62 = vector.extract_strided_slice %4 {offsets = [2, 0, 0], sizes = [1, 8, 8], strides = [1, 1, 1]} : vector<4x8x8xf32> to vector<1x8x8xf32>
    %63 = vector.shape_cast %62 : vector<1x8x8xf32> to vector<8x8xf32>
    %64 = arith.addf %61, %63 : vector<8x8xf32>
    %65 = vector.broadcast %6 : vector<1x8xf32> to vector<8x8xf32>
    %66 = arith.addf %64, %65 : vector<8x8xf32>
    %cst_19 = arith.constant dense<0xFF800000> : vector<8xf32>
    %67 = vector.multi_reduction <maximumf>, %66, %cst_19 [1] : vector<8x8xf32> to vector<8xf32>
    %68 = vector.shape_cast %67 : vector<8xf32> to vector<8x1xf32>
    %69 = vector.broadcast %68 : vector<8x1xf32> to vector<8x8xf32>
    %70 = arith.subf %66, %69 : vector<8x8xf32>
    %71 = math.exp %70 : vector<8x8xf32>
    %cst_20 = arith.constant dense<0.000000e+00> : vector<8xf32>
    %72 = vector.multi_reduction <add>, %71, %cst_20 [1] : vector<8x8xf32> to vector<8xf32>
    %73 = vector.shape_cast %72 : vector<8xf32> to vector<8x1xf32>
    %74 = tpu.reciprocal %73 {approx = true} : vector<8x1xf32> -> vector<8x1xf32>
    %75 = vector.broadcast %74 : vector<8x1xf32> to vector<8x8xf32>
    %76 = arith.mulf %71, %75 : vector<8x8xf32>
    %77 = arith.truncf %76 : vector<8x8xf32> to vector<8x8xbf16>
    %cst_21 = arith.constant dense<0.000000e+00> : vector<8x8xf32>
    %78 = tpu.matmul %77, %60, %cst_21 {dimension_numbers = #tpu.dot_dimension_numbers<[1], [0], [0], [1], [0, 0, 1, 1], [], []>} : vector<8x8xbf16>, vector<8x8xbf16>, vector<8x8xf32> -> vector<8x8xf32>
    %79 = vector.extract_strided_slice %2 {offsets = [0, 24], sizes = [8, 8], strides = [1, 1]} : vector<8x128xf32> to vector<8x8xf32>
    %80 = arith.truncf %79 : vector<8x8xf32> to vector<8x8xbf16>
    %81 = vector.extract_strided_slice %2 {offsets = [0, 56], sizes = [8, 8], strides = [1, 1]} : vector<8x128xf32> to vector<8x8xf32>
    %82 = arith.truncf %81 : vector<8x8xf32> to vector<8x8xbf16>
    %83 = vector.extract_strided_slice %2 {offsets = [0, 88], sizes = [8, 8], strides = [1, 1]} : vector<8x128xf32> to vector<8x8xf32>
    %84 = arith.truncf %83 : vector<8x8xf32> to vector<8x8xbf16>
    %cst_22 = arith.constant dense<0.000000e+00> : vector<8x8xf32>
    %85 = tpu.matmul %80, %82, %cst_22 {dimension_numbers = #tpu.dot_dimension_numbers<[1], [1], [0], [0], [0, 0, 1, 0], [], []>} : vector<8x8xbf16>, vector<8x8xbf16>, vector<8x8xf32> -> vector<8x8xf32>
    %86 = vector.extract_strided_slice %4 {offsets = [3, 0, 0], sizes = [1, 8, 8], strides = [1, 1, 1]} : vector<4x8x8xf32> to vector<1x8x8xf32>
    %87 = vector.shape_cast %86 : vector<1x8x8xf32> to vector<8x8xf32>
    %88 = arith.addf %85, %87 : vector<8x8xf32>
    %89 = vector.broadcast %6 : vector<1x8xf32> to vector<8x8xf32>
    %90 = arith.addf %88, %89 : vector<8x8xf32>
    %cst_23 = arith.constant dense<0xFF800000> : vector<8xf32>
    %91 = vector.multi_reduction <maximumf>, %90, %cst_23 [1] : vector<8x8xf32> to vector<8xf32>
    %92 = vector.shape_cast %91 : vector<8xf32> to vector<8x1xf32>
    %93 = vector.broadcast %92 : vector<8x1xf32> to vector<8x8xf32>
    %94 = arith.subf %90, %93 : vector<8x8xf32>
    %95 = math.exp %94 : vector<8x8xf32>
    %cst_24 = arith.constant dense<0.000000e+00> : vector<8xf32>
    %96 = vector.multi_reduction <add>, %95, %cst_24 [1] : vector<8x8xf32> to vector<8xf32>
    %97 = vector.shape_cast %96 : vector<8xf32> to vector<8x1xf32>
    %98 = tpu.reciprocal %97 {approx = true} : vector<8x1xf32> -> vector<8x1xf32>
    %99 = vector.broadcast %98 : vector<8x1xf32> to vector<8x8xf32>
    %100 = arith.mulf %95, %99 : vector<8x8xf32>
    %101 = arith.truncf %100 : vector<8x8xf32> to vector<8x8xbf16>
    %cst_25 = arith.constant dense<0.000000e+00> : vector<8x8xf32>
    %102 = tpu.matmul %101, %84, %cst_25 {dimension_numbers = #tpu.dot_dimension_numbers<[1], [0], [0], [1], [0, 0, 1, 1], [], []>} : vector<8x8xbf16>, vector<8x8xbf16>, vector<8x8xf32> -> vector<8x8xf32>
    %103 = tpu.concatenate %30, %54, %78, %102 in 1 : vector<8x8xf32>, vector<8x8xf32>, vector<8x8xf32>, vector<8x8xf32> -> vector<8x32xf32>
    %104 = vector.extract_strided_slice %2 {offsets = [0, 96], sizes = [8, 32], strides = [1, 1]} : vector<8x128xf32> to vector<8x32xf32>
    %cst_26 = arith.constant 0.000000e+00 : f32
    %105 = vector.broadcast %cst_26 : f32 to vector<8x32xf32>
    %106 = arith.subf %105, %104 : vector<8x32xf32>
    %107 = math.exp %106 : vector<8x32xf32>
    %cst_27 = arith.constant 1.000000e+00 : f32
    %108 = vector.broadcast %cst_27 : f32 to vector<8x32xf32>
    %109 = arith.addf %108, %107 : vector<8x32xf32>
    %cst_28 = arith.constant 1.000000e+00 : f32
    %110 = vector.broadcast %cst_28 : f32 to vector<8x32xf32>
    %111 = arith.divf %110, %109 : vector<8x32xf32>
    %112 = arith.mulf %111, %103 : vector<8x32xf32>
    %113 = arith.truncf %112 : vector<8x32xf32> to vector<8x32xbf16>
    %c0_29 = arith.constant 0 : index
    %c0_30 = arith.constant 0 : index
    %114 = vector.load %arg5[%c0_29, %c0_30] : memref<32x32xbf16, #tpu.memory_space<vmem>>, vector<32x32xbf16>
    %cst_31 = arith.constant dense<0.000000e+00> : vector<8x32xf32>
    %115 = tpu.matmul %113, %114, %cst_31 {dimension_numbers = #tpu.dot_dimension_numbers<[1], [0], [0], [1], [0, 0, 1, 1], [], []>} : vector<8x32xbf16>, vector<32x32xbf16>, vector<8x32xf32> -> vector<8x32xf32>
    %c0_32 = arith.constant 0 : index
    %c0_33 = arith.constant 0 : index
    %116 = vector.load %arg6[%c0_32, %c0_33] : memref<1x32xf32, #tpu.memory_space<vmem>>, vector<1x32xf32>
    %117 = vector.broadcast %116 : vector<1x32xf32> to vector<8x32xf32>
    %118 = arith.addf %115, %117 : vector<8x32xf32>
    %c0_34 = arith.constant 0 : index
    %c0_35 = arith.constant 0 : index
    %c0_36 = arith.constant 0 : index
    %c0_37 = arith.constant 0 : index
    %119 = vector.load %arg7[%c0_34, %c0_35, %c0_36, %c0_37] : memref<1x1x8x32xf32, #tpu.memory_space<vmem>>, vector<1x1x8x32xf32>
    %120 = vector.shape_cast %119 : vector<1x1x8x32xf32> to vector<8x32xf32>
    %121 = vector.shape_cast %118 : vector<8x32xf32> to vector<1x1x8x32xf32>
    tpu.vector_store %arg7[%c0_34, %c0_35, %c0_36, %c0_37], %121 {strides = array<i32>} : memref<1x1x8x32xf32, #tpu.memory_space<vmem>>, vector<1x1x8x32xf32>,
    return
  }
  func.func @transform_0(%arg0: i32, %arg1: i32) -> (i32, i32, i32, i32) {
    %c0_i32 = arith.constant 0 : i32
    %c0_i32_0 = arith.constant 0 : i32
    %c0_i32_1 = arith.constant 0 : i32
    return %arg0, %arg1, %c0_i32, %c0_i32_0 : i32, i32, i32, i32
  }
  func.func @transform_1(%arg0: i32, %arg1: i32) -> (i32, i32, i32, i32) {
    %c0_i32 = arith.constant 0 : i32
    %c0_i32_0 = arith.constant 0 : i32
    %c0_i32_1 = arith.constant 0 : i32
    %c0_i32_2 = arith.constant 0 : i32
    return %arg0, %c0_i32, %c0_i32_0, %c0_i32_1 : i32, i32, i32, i32
  }
  func.func @transform_2(%arg0: i32, %arg1: i32) -> (i32, i32, i32, i32) {
    %c0_i32 = arith.constant 0 : i32
    %c0_i32_0 = arith.constant 0 : i32
    %c0_i32_1 = arith.constant 0 : i32
    return %arg0, %arg1, %c0_i32, %c0_i32_0 : i32, i32, i32, i32
  }
  func.func @transform_3(%arg0: i32, %arg1: i32) -> (i32, i32) {
    %c0_i32 = arith.constant 0 : i32
    %c0_i32_0 = arith.constant 0 : i32
    %c0_i32_1 = arith.constant 0 : i32
    return %c0_i32, %c0_i32_0 : i32, i32
  }
  func.func @transform_4(%arg0: i32, %arg1: i32) -> (i32, i32) {
    %c0_i32 = arith.constant 0 : i32
    %c0_i32_0 = arith.constant 0 : i32
    %c0_i32_1 = arith.constant 0 : i32
    return %c0_i32, %c0_i32_0 : i32, i32
  }
  func.func @transform_5(%arg0: i32, %arg1: i32) -> (i32, i32, i32, i32) {
    %c0_i32 = arith.constant 0 : i32
    %c0_i32_0 = arith.constant 0 : i32
    %c0_i32_1 = arith.constant 0 : i32
    return %arg0, %arg1, %c0_i32, %c0_i32_0 : i32, i32, i32, i32
  }
}

module attributes {stable_mosaic.version = 11 : i64} {
  func.func @_transition_kernel(%arg0: i32, %arg1: memref<16x32xf32, #tpu.memory_space<vmem>>, %arg2: memref<1x32xf32, #tpu.memory_space<vmem>>, %arg3: memref<1x32xf32, #tpu.memory_space<vmem>>, %arg4: memref<32x256xbf16, #tpu.memory_space<vmem>>, %arg5: memref<1x256xf32, #tpu.memory_space<vmem>>, %arg6: memref<128x32xbf16, #tpu.memory_space<vmem>>, %arg7: memref<1x32xf32, #tpu.memory_space<vmem>>, %arg8: memref<16x32xf32, #tpu.memory_space<vmem>>) attributes {dimension_semantics = [#tpu.dimension_semantics<parallel>], iteration_bounds = array<i64: 1>, scalar_prefetch = 0 : i64, scratch_operands = 0 : i64, tpu.core_type = #tpu.core_type<tc>, window_params = [{transform_indices = @transform_0, window_bounds = array<i64: 16, 32>}, {pipeline_mode = #tpu.pipeline_mode<synchronous>, transform_indices = @transform_1, window_bounds = array<i64: 1, 32>}, {pipeline_mode = #tpu.pipeline_mode<synchronous>, transform_indices = @transform_2, window_bounds = array<i64: 1, 32>}, {pipeline_mode = #tpu.pipeline_mode<synchronous>, transform_indices = @transform_3, window_bounds = array<i64: 32, 256>}, {pipeline_mode = #tpu.pipeline_mode<synchronous>, transform_indices = @transform_4, window_bounds = array<i64: 1, 256>}, {pipeline_mode = #tpu.pipeline_mode<synchronous>, transform_indices = @transform_5, window_bounds = array<i64: 128, 32>}, {pipeline_mode = #tpu.pipeline_mode<synchronous>, transform_indices = @transform_6, window_bounds = array<i64: 1, 32>}, {transform_indices = @transform_7, window_bounds = array<i64: 16, 32>}]} {
    %c0 = arith.constant 0 : index
    %c0_0 = arith.constant 0 : index
    %0 = vector.load %arg1[%c0, %c0_0] : memref<16x32xf32, #tpu.memory_space<vmem>>, vector<16x32xf32>
    %c0_1 = arith.constant 0 : index
    %c0_2 = arith.constant 0 : index
    %1 = vector.load %arg2[%c0_1, %c0_2] : memref<1x32xf32, #tpu.memory_space<vmem>>, vector<1x32xf32>
    %c0_3 = arith.constant 0 : index
    %c0_4 = arith.constant 0 : index
    %2 = vector.load %arg3[%c0_3, %c0_4] : memref<1x32xf32, #tpu.memory_space<vmem>>, vector<1x32xf32>
    %cst = arith.constant dense<0.000000e+00> : vector<16xf32>
    %3 = vector.multi_reduction <add>, %0, %cst [1] : vector<16x32xf32> to vector<16xf32>
    %4 = vector.shape_cast %3 : vector<16xf32> to vector<16x1xf32>
    %cst_5 = arith.constant 3.200000e+01 : f32
    %5 = vector.broadcast %cst_5 : f32 to vector<16x1xf32>
    %6 = arith.divf %4, %5 : vector<16x1xf32>
    %7 = vector.broadcast %6 : vector<16x1xf32> to vector<16x32xf32>
    %8 = arith.subf %0, %7 : vector<16x32xf32>
    %9 = arith.mulf %8, %8 : vector<16x32xf32>
    %cst_6 = arith.constant dense<0.000000e+00> : vector<16xf32>
    %10 = vector.multi_reduction <add>, %9, %cst_6 [1] : vector<16x32xf32> to vector<16xf32>
    %11 = vector.shape_cast %10 : vector<16xf32> to vector<16x1xf32>
    %cst_7 = arith.constant 3.200000e+01 : f32
    %12 = vector.broadcast %cst_7 : f32 to vector<16x1xf32>
    %13 = arith.divf %11, %12 : vector<16x1xf32>
    %cst_8 = arith.constant 9.99999974E-6 : f32
    %14 = vector.broadcast %cst_8 : f32 to vector<16x1xf32>
    %15 = arith.addf %13, %14 : vector<16x1xf32>
    %16 = math.rsqrt %15 : vector<16x1xf32>
    %17 = vector.broadcast %16 : vector<16x1xf32> to vector<16x32xf32>
    %18 = arith.mulf %8, %17 : vector<16x32xf32>
    %19 = vector.broadcast %1 : vector<1x32xf32> to vector<16x32xf32>
    %20 = arith.mulf %18, %19 : vector<16x32xf32>
    %21 = vector.broadcast %2 : vector<1x32xf32> to vector<16x32xf32>
    %22 = arith.addf %20, %21 : vector<16x32xf32>
    %23 = arith.truncf %22 : vector<16x32xf32> to vector<16x32xbf16>
    %c0_9 = arith.constant 0 : index
    %c0_10 = arith.constant 0 : index
    %24 = vector.load %arg4[%c0_9, %c0_10] : memref<32x256xbf16, #tpu.memory_space<vmem>>, vector<32x256xbf16>
    %cst_11 = arith.constant dense<0.000000e+00> : vector<16x256xf32>
    %25 = tpu.matmul %23, %24, %cst_11 {dimension_numbers = #tpu.dot_dimension_numbers<[1], [0], [0], [1], [0, 0, 1, 1], [], []>} : vector<16x32xbf16>, vector<32x256xbf16>, vector<16x256xf32> -> vector<16x256xf32>
    %c0_12 = arith.constant 0 : index
    %c0_13 = arith.constant 0 : index
    %26 = vector.load %arg5[%c0_12, %c0_13] : memref<1x256xf32, #tpu.memory_space<vmem>>, vector<1x256xf32>
    %27 = vector.broadcast %26 : vector<1x256xf32> to vector<16x256xf32>
    %28 = arith.addf %25, %27 : vector<16x256xf32>
    %29 = vector.extract_strided_slice %28 {offsets = [0, 0], sizes = [16, 128], strides = [1, 1]} : vector<16x256xf32> to vector<16x128xf32>
    %cst_14 = arith.constant 0.000000e+00 : f32
    %30 = vector.broadcast %cst_14 : f32 to vector<16x128xf32>
    %31 = arith.subf %30, %29 : vector<16x128xf32>
    %32 = math.exp %31 : vector<16x128xf32>
    %cst_15 = arith.constant 1.000000e+00 : f32
    %33 = vector.broadcast %cst_15 : f32 to vector<16x128xf32>
    %34 = arith.addf %33, %32 : vector<16x128xf32>
    %cst_16 = arith.constant 1.000000e+00 : f32
    %35 = vector.broadcast %cst_16 : f32 to vector<16x128xf32>
    %36 = arith.divf %35, %34 : vector<16x128xf32>
    %37 = arith.mulf %29, %36 : vector<16x128xf32>
    %38 = vector.extract_strided_slice %28 {offsets = [0, 128], sizes = [16, 128], strides = [1, 1]} : vector<16x256xf32> to vector<16x128xf32>
    %39 = arith.mulf %37, %38 : vector<16x128xf32>
    %40 = arith.truncf %39 : vector<16x128xf32> to vector<16x128xbf16>
    %c0_17 = arith.constant 0 : index
    %c0_18 = arith.constant 0 : index
    %41 = vector.load %arg6[%c0_17, %c0_18] : memref<128x32xbf16, #tpu.memory_space<vmem>>, vector<128x32xbf16>
    %cst_19 = arith.constant dense<0.000000e+00> : vector<16x32xf32>
    %42 = tpu.matmul %40, %41, %cst_19 {dimension_numbers = #tpu.dot_dimension_numbers<[1], [0], [0], [1], [0, 0, 1, 1], [], []>} : vector<16x128xbf16>, vector<128x32xbf16>, vector<16x32xf32> -> vector<16x32xf32>
    %c0_20 = arith.constant 0 : index
    %c0_21 = arith.constant 0 : index
    %43 = vector.load %arg7[%c0_20, %c0_21] : memref<1x32xf32, #tpu.memory_space<vmem>>, vector<1x32xf32>
    %44 = vector.broadcast %43 : vector<1x32xf32> to vector<16x32xf32>
    %45 = arith.addf %42, %44 : vector<16x32xf32>
    %c0_22 = arith.constant 0 : index
    %c0_23 = arith.constant 0 : index
    %46 = vector.load %arg8[%c0_22, %c0_23] : memref<16x32xf32, #tpu.memory_space<vmem>>, vector<16x32xf32>
    tpu.vector_store %arg8[%c0_22, %c0_23], %45 {strides = array<i32>} : memref<16x32xf32, #tpu.memory_space<vmem>>, vector<16x32xf32>,
    return
  }
  func.func @transform_0(%arg0: i32) -> (i32, i32) {
    %c0_i32 = arith.constant 0 : i32
    %c0_i32_0 = arith.constant 0 : i32
    return %arg0, %c0_i32 : i32, i32
  }
  func.func @transform_1(%arg0: i32) -> (i32, i32) {
    %c0_i32 = arith.constant 0 : i32
    %c0_i32_0 = arith.constant 0 : i32
    %c0_i32_1 = arith.constant 0 : i32
    return %c0_i32, %c0_i32_0 : i32, i32
  }
  func.func @transform_2(%arg0: i32) -> (i32, i32) {
    %c0_i32 = arith.constant 0 : i32
    %c0_i32_0 = arith.constant 0 : i32
    %c0_i32_1 = arith.constant 0 : i32
    return %c0_i32, %c0_i32_0 : i32, i32
  }
  func.func @transform_3(%arg0: i32) -> (i32, i32) {
    %c0_i32 = arith.constant 0 : i32
    %c0_i32_0 = arith.constant 0 : i32
    %c0_i32_1 = arith.constant 0 : i32
    return %c0_i32, %c0_i32_0 : i32, i32
  }
  func.func @transform_4(%arg0: i32) -> (i32, i32) {
    %c0_i32 = arith.constant 0 : i32
    %c0_i32_0 = arith.constant 0 : i32
    %c0_i32_1 = arith.constant 0 : i32
    return %c0_i32, %c0_i32_0 : i32, i32
  }
  func.func @transform_5(%arg0: i32) -> (i32, i32) {
    %c0_i32 = arith.constant 0 : i32
    %c0_i32_0 = arith.constant 0 : i32
    %c0_i32_1 = arith.constant 0 : i32
    return %c0_i32, %c0_i32_0 : i32, i32
  }
  func.func @transform_6(%arg0: i32) -> (i32, i32) {
    %c0_i32 = arith.constant 0 : i32
    %c0_i32_0 = arith.constant 0 : i32
    %c0_i32_1 = arith.constant 0 : i32
    return %c0_i32, %c0_i32_0 : i32, i32
  }
  func.func @transform_7(%arg0: i32) -> (i32, i32) {
    %c0_i32 = arith.constant 0 : i32
    %c0_i32_0 = arith.constant 0 : i32
    return %arg0, %c0_i32 : i32, i32
  }
}

</mosaic_0001>

<llo_original>
// kernel: _lambda_.41
$region0: #{_lambda_.41}
  #allocation0 [shape = 'u32[]', space=smem, size = 0x4, offset = 0x4, fixed_abs, tag = 'smem constant byte address 0x4 - core index']
  #allocation1 [shape = 'u32[144,128]{1,0:T(1,128)}', space=vmem, size = 0x12000, scoped, tag = 'internal scratch']
  %s0 = inlined_call_operand.vmem [shape: f32[16,32], index: 0, kind: input, shape index: {}]
  %s1 = inlined_call_operand.vmem [shape: f32[1,32], index: 1, kind: input, shape index: {}]
  %s2 = inlined_call_operand.vmem [shape: f32[1,32], index: 2, kind: input, shape index: {}]
  %s3 = inlined_call_operand.vmem [shape: bf16[32,128], index: 3, kind: input, shape index: {}]
  %s4 = inlined_call_operand.vmem [shape: f32[1,128], index: 4, kind: input, shape index: {}]
  %s5 = inlined_call_operand.vmem [shape: bf16[16,128], index: 5, kind: output, shape index: {}]
  %s6 = sld [smem:[#allocation0]]
  $region30: #{_lambda_.41} parent=0
    _
  %s8 = ssub.s32 1, %s6
  %s9 = scalar_select 0, %s8, %s6
  // Predicated region
  $region2: #{_lambda_.41} parent=0 // pred_check
    _
  $region3: #{_lambda_.41} parent=0 // pred_check_branch
    %11 = sbr.rel (0) target = $region5
  $region4: #{_lambda_.41} parent=0 // pred_region
    _
  $region5: #{_lambda_.41} parent=0 // pred_fallthru
    _
  // Predicated region
  $region6: #{_lambda_.41} parent=0 // pred_check
    _
  $region7: #{_lambda_.41} parent=0 // pred_check_branch
    %13 = sbr.rel (0) target = $region9
  $region8: #{_lambda_.41} parent=0 // pred_region
    _
  $region9: #{_lambda_.41} parent=0 // pred_fallthru
    _
  // Predicated region
  $region10: #{_lambda_.41} parent=0 // pred_check
    _
  $region11: #{_lambda_.41} parent=0 // pred_check_branch
    %15 = sbr.rel (0) target = $region13
  $region12: #{_lambda_.41} parent=0 // pred_region
    _
  $region13: #{_lambda_.41} parent=0 // pred_fallthru
    _
  // Predicated region
  $region14: #{_lambda_.41} parent=0 // pred_check
    _
  $region15: #{_lambda_.41} parent=0 // pred_check_branch
    %17 = sbr.rel (0) target = $region17
  $region16: #{_lambda_.41} parent=0 // pred_region
    _
  $region17: #{_lambda_.41} parent=0 // pred_fallthru
    _
  // Predicated region
  $region18: #{_lambda_.41} parent=0 // pred_check
    _
  $region19: #{_lambda_.41} parent=0 // pred_check_branch
    %19 = sbr.rel (0) target = $region21
  $region20: #{_lambda_.41} parent=0 // pred_region
    _
  $region21: #{_lambda_.41} parent=0 // pred_fallthru
    _
  %v21 = vld [vmem:[%s0] sm:$0xff]
  %v22 = vld [vmem:[%s0 + $0x8] sm:$0xff]
  %v23 = vld [vmem:[%s1] sm:$0x1]
  %v24 = vld [vmem:[%s2] sm:$0x1]
  %vm25 = vcmask 261120
  %v26 = vsel %vm25, %v21, 0.0
  %27 = vadd.xlane.f32.xlu0 %v26
  %v28 = vpop.xlane.xlu0 %27
  %v29 = vsel %vm25, %v22, 0.0
  %30 = vadd.xlane.f32.xlu0 %v29
  %v31 = vpop.xlane.xlu0 %30
  %v32 = vrcp.pop 32.0
  %v33 = vmul.f32 %v28, %v32
  %v34 = vmul.f32 %v31, %v32
  %v35 = vsub.f32 %v21, %v33
  %v36 = vsub.f32 %v22, %v34
  %v37 = vmul.f32 %v35, %v35
  %v38 = vmul.f32 %v36, %v36
  %v39 = vsel %vm25, %v37, 0.0
  %40 = vadd.xlane.f32.xlu0 %v39
  %v41 = vpop.xlane.xlu0 %40
  %v42 = vsel %vm25, %v38, 0.0
  %43 = vadd.xlane.f32.xlu0 %v42
  %v44 = vpop.xlane.xlu0 %43
  %v45 = vmul.f32 %v41, %v32
  %v46 = vmul.f32 %v44, %v32
  %v47 = vadd.f32 %v45, 1e-05
  %v48 = vadd.f32 %v46, 1e-05
  %v49 = vrsqrt.pop %v47
  %v50 = vrsqrt.pop %v48
  %v51 = vmul.f32 %v35, %v49
  %v52 = vmul.f32 %v36, %v50
  %v54 = vlaneseq
  %v55 = vshrl.u32 %v54, 7
  %v56 = vsub.s32 0, %v55
  %v57 = vrot.slane %v23, %v56
  %v59 = vmul.f32 %v51, %v57
  %v60 = vmul.f32 %v52, %v57
  %v62 = vlaneseq
  %v63 = vshrl.u32 %v62, 7
  %v64 = vsub.s32 0, %v63
  %v65 = vrot.slane %v24, %v64
  %v67 = vadd.f32 %v59, %v65
  %v68 = vadd.f32 %v60, %v65
  %v69 = vpack.c.bf16 %v68, %v67
  %v70 = vld [vmem:[%s3] sm:$0xf]
  %v71 = vld [vmem:[%s3 + $0x4] sm:$0xf]
  %v72 = vld [vmem:[%s3 + $0x8] sm:$0xf]
  %v73 = vld [vmem:[%s3 + $0xc] sm:$0xf]
  %v74 = vld [vmem:[%s4] sm:$0x1]
  %v76 = vlaneseq
  %v77 = vshrl.u32 %v76, 7
  %v78 = vsub.s32 0, %v77
  %v79 = vrot.slane %v74, %v78
  %v85 = vunpack.c.l.b16 %v70
  %v86 = vunpack.c.l.b16 %v71
  %v87 = vunpack.c.l.b16 %v72
  %v88 = vunpack.c.l.b16 %v73
  %v89 = vpack.c.b16 %v86, %v85
  %v90 = vpack.c.b16 %v88, %v87
  %v94 = vsel %vm25, %v69, 0
  %96 = vmatprep.subr.bf16.mxu0 0
  %97 = vmatpush1.bf16.msra.mxu0 %v89
  %98 = vmatprep.subr.bf16.mxu0 0
  %99 = vmatpush1.bf16.msra.mxu0 %v90
  %100 = vmatprep.subr.bf16.mxu0 0
  %101 = vmatpush1.bf16.msra.mxu0 0
  %102 = vmatprep.subr.bf16.mxu0 0
  %103 = vmatpush1.bf16.msra.mxu0 0
  %104 = vmatprep.subr.bf16.mxu0 0
  %105 = vmatpush1.bf16.msra.mxu0 0
  %106 = vmatprep.subr.bf16.mxu0 0
  %107 = vmatpush1.bf16.msra.mxu0 0
  %108 = vmatprep.subr.bf16.mxu0 0
  %109 = vmatpush1.bf16.msra.mxu0 0
  %110 = vmatprep.subr.bf16.mxu0 0
  %111 = vmatpush1.bf16.msra.mxu0 0
  %112 = vmatprep.subr.bf16.mxu0 0
  %113 = vmatpush1.bf16.msra.mxu0 0
  %114 = vmatprep.subr.bf16.mxu0 0
  %115 = vmatpush1.bf16.msra.mxu0 0
  %116 = vmatprep.subr.bf16.mxu0 0
  %117 = vmatpush1.bf16.msra.mxu0 0
  %118 = vmatprep.subr.bf16.mxu0 0
  %119 = vmatpush1.bf16.msra.mxu0 0
  %120 = vmatprep.subr.bf16.mxu0 0
  %121 = vmatpush1.bf16.msra.mxu0 0
  %122 = vmatprep.subr.bf16.mxu0 0
  %123 = vmatpush1.bf16.msra.mxu0 0
  %124 = vmatprep.subr.bf16.mxu0 0
  %125 = vmatpush1.bf16.msra.mxu0 0
  %126 = vmatprep.subr.bf16.mxu0 0
  %127 = vmatpush1.bf16.msra.mxu0 0
  %128 = vmatprep.mubr.bf16.mxu0 0
  %129 = vmatmul.mubr.bf16.gmra.mrb[0].mxu0 %v94
  %v130 = vpop.f32.mrb[0].mxu0
  %v131 = vadd.f32 %v79, %v130
  %v132 = vpop.f32.mrb[0].mxu0
  %v133 = vpop.f32.mrb[0].mxu0
  %v134 = vadd.f32 %v79, %v133
  %v135 = vpop.f32.mrb[0].mxu0
  %136 = vdwg.mxu0
  %v137 = vpack.c.bf16 %v134, %v131
  %v139 = vunpack.c.l.b16 %v137
  %v140 = vunpack.c.h.b16 %v137
  %v141 = vpack.c.b16 %v139, %v139
  %v142 = vpack.c.b16 %v140, %v140
  %145 = vst [vmem:[%s5] sm:$0xf] %v141
  %146 = vst [vmem:[%s5 + $0x4] sm:$0xf] %v142
  // Predicated region
  $region22: #{_lambda_.41} parent=0 // pred_check
    _
  $region23: #{_lambda_.41} parent=0 // pred_check_branch
    %148 = sbr.rel (0) target = $region25
  $region24: #{_lambda_.41} parent=0 // pred_region
    _
  $region25: #{_lambda_.41} parent=0 // pred_fallthru
    _
  // Predicated region
  $region26: #{_lambda_.41} parent=0 // pred_check
    _
  $region27: #{_lambda_.41} parent=0 // pred_check_branch
    %150 = sbr.rel (0) target = $region29
  $region28: #{_lambda_.41} parent=0 // pred_region
    _
  $region29: #{_lambda_.41} parent=0 // pred_fallthru
    _

// kernel: _lambda_.30
$region0: #{_lambda_.30}
  #allocation0 [shape = 'u32[]', space=smem, size = 0x4, offset = 0x4, fixed_abs, tag = 'smem constant byte address 0x4 - core index']
  #allocation1 [shape = 'u32[144,128]{1,0:T(1,128)}', space=vmem, size = 0x12000, scoped, tag = 'internal scratch']
  %s0 = inlined_call_operand.vmem [shape: f32[128,32], index: 0, kind: input, shape index: {}]
  %s1 = inlined_call_operand.vmem [shape: f32[128,1], index: 1, kind: input, shape index: {}]
  %s2 = inlined_call_operand.vmem [shape: f32[1,32], index: 2, kind: input, shape index: {}]
  %s3 = inlined_call_operand.vmem [shape: f32[1,32], index: 3, kind: input, shape index: {}]
  %s4 = inlined_call_operand.vmem [shape: bf16[32,96], index: 4, kind: input, shape index: {}]
  %s5 = inlined_call_operand.vmem [shape: f32[1,96], index: 5, kind: input, shape index: {}]
  %s6 = inlined_call_operand.vmem [shape: bf16[128,16], index: 6, kind: output, shape index: {0}]
  %s7 = inlined_call_operand.vmem [shape: bf16[128,16], index: 7, kind: output, shape index: {1}]
  %s8 = inlined_call_operand.vmem [shape: bf16[128,32], index: 8, kind: output, shape index: {2}]
  %9 = xla_tuple %s6, %s7, %s8
  %s10 = sld [smem:[#allocation0]]
  $region50: #{_lambda_.30} parent=0
    _
  %s12 = ssub.s32 1, %s10
  %s13 = scalar_select 0, %s12, %s10
  // Predicated region
  $region2: #{_lambda_.30} parent=0 // pred_check
    _
  $region3: #{_lambda_.30} parent=0 // pred_check_branch
    %15 = sbr.rel (0) target = $region5
  $region4: #{_lambda_.30} parent=0 // pred_region
    _
  $region5: #{_lambda_.30} parent=0 // pred_fallthru
    _
  // Predicated region
  $region6: #{_lambda_.30} parent=0 // pred_check
    _
  $region7: #{_lambda_.30} parent=0 // pred_check_branch
    %17 = sbr.rel (0) target = $region9
  $region8: #{_lambda_.30} parent=0 // pred_region
    _
  $region9: #{_lambda_.30} parent=0 // pred_fallthru
    _
  // Predicated region
  $region10: #{_lambda_.30} parent=0 // pred_check
    _
  $region11: #{_lambda_.30} parent=0 // pred_check_branch
    %19 = sbr.rel (0) target = $region13
  $region12: #{_lambda_.30} parent=0 // pred_region
    _
  $region13: #{_lambda_.30} parent=0 // pred_fallthru
    _
  // Predicated region
  $region14: #{_lambda_.30} parent=0 // pred_check
    _
  $region15: #{_lambda_.30} parent=0 // pred_check_branch
    %21 = sbr.rel (0) target = $region17
  $region16: #{_lambda_.30} parent=0 // pred_region
    _
  $region17: #{_lambda_.30} parent=0 // pred_fallthru
    _
  // Predicated region
  $region18: #{_lambda_.30} parent=0 // pred_check
    _
  $region19: #{_lambda_.30} parent=0 // pred_check_branch
    %23 = sbr.rel (0) target = $region21
  $region20: #{_lambda_.30} parent=0 // pred_region
    _
  $region21: #{_lambda_.30} parent=0 // pred_fallthru
    _
  // Predicated region
  $region22: #{_lambda_.30} parent=0 // pred_check
    _
  $region23: #{_lambda_.30} parent=0 // pred_check_branch
    %25 = sbr.rel (0) target = $region25
  $region24: #{_lambda_.30} parent=0 // pred_region
    _
  $region25: #{_lambda_.30} parent=0 // pred_fallthru
    _
  %v27 = vld [vmem:[%s0] sm:$0xff]
  %v28 = vld [vmem:[%s0 + $0x8] sm:$0xff]
  %v29 = vld [vmem:[%s0 + $0x10] sm:$0xff]
  %v30 = vld [vmem:[%s0 + $0x18] sm:$0xff]
  %v31 = vld [vmem:[%s0 + $0x20] sm:$0xff]
  %v32 = vld [vmem:[%s0 + $0x28] sm:$0xff]
  %v33 = vld [vmem:[%s0 + $0x30] sm:$0xff]
  %v34 = vld [vmem:[%s0 + $0x38] sm:$0xff]
  %v35 = vld [vmem:[%s0 + $0x40] sm:$0xff]
  %v36 = vld [vmem:[%s0 + $0x48] sm:$0xff]
  %v37 = vld [vmem:[%s0 + $0x50] sm:$0xff]
  %v38 = vld [vmem:[%s0 + $0x58] sm:$0xff]
  %v39 = vld [vmem:[%s0 + $0x60] sm:$0xff]
  %v40 = vld [vmem:[%s0 + $0x68] sm:$0xff]
  %v41 = vld [vmem:[%s0 + $0x70] sm:$0xff]
  %v42 = vld [vmem:[%s0 + $0x78] sm:$0xff]
  %v43 = vld [vmem:[%s2] sm:$0x1]
  %v44 = vld [vmem:[%s3] sm:$0x1]
  %vm45 = vcmask 261120
  %v46 = vsel %vm45, %v27, 0.0
  %47 = vadd.xlane.f32.xlu0 %v46
  %v48 = vpop.xlane.xlu0 %47
  %v49 = vsel %vm45, %v28, 0.0
  %50 = vadd.xlane.f32.xlu0 %v49
  %v51 = vpop.xlane.xlu0 %50
  %v52 = vsel %vm45, %v29, 0.0
  %53 = vadd.xlane.f32.xlu0 %v52
  %v54 = vpop.xlane.xlu0 %53
  %v55 = vsel %vm45, %v30, 0.0
  %56 = vadd.xlane.f32.xlu0 %v55
  %v57 = vpop.xlane.xlu0 %56
  %v58 = vsel %vm45, %v31, 0.0
  %59 = vadd.xlane.f32.xlu0 %v58
  %v60 = vpop.xlane.xlu0 %59
  %v61 = vsel %vm45, %v32, 0.0
  %62 = vadd.xlane.f32.xlu0 %v61
  %v63 = vpop.xlane.xlu0 %62
  %v64 = vsel %vm45, %v33, 0.0
  %65 = vadd.xlane.f32.xlu0 %v64
  %v66 = vpop.xlane.xlu0 %65
  %v67 = vsel %vm45, %v34, 0.0
  %68 = vadd.xlane.f32.xlu0 %v67
  %v69 = vpop.xlane.xlu0 %68
  %v70 = vsel %vm45, %v35, 0.0
  %71 = vadd.xlane.f32.xlu0 %v70
  %v72 = vpop.xlane.xlu0 %71
  %v73 = vsel %vm45, %v36, 0.0
  %74 = vadd.xlane.f32.xlu0 %v73
  %v75 = vpop.xlane.xlu0 %74
  %v76 = vsel %vm45, %v37, 0.0
  %77 = vadd.xlane.f32.xlu0 %v76
  %v78 = vpop.xlane.xlu0 %77
  %v79 = vsel %vm45, %v38, 0.0
  %80 = vadd.xlane.f32.xlu0 %v79
  %v81 = vpop.xlane.xlu0 %80
  %v82 = vsel %vm45, %v39, 0.0
  %83 = vadd.xlane.f32.xlu0 %v82
  %v84 = vpop.xlane.xlu0 %83
  %v85 = vsel %vm45, %v40, 0.0
  %86 = vadd.xlane.f32.xlu0 %v85
  %v87 = vpop.xlane.xlu0 %86
  %v88 = vsel %vm45, %v41, 0.0
  %89 = vadd.xlane.f32.xlu0 %v88
  %v90 = vpop.xlane.xlu0 %89
  %v91 = vsel %vm45, %v42, 0.0
  %92 = vadd.xlane.f32.xlu0 %v91
  %v93 = vpop.xlane.xlu0 %92
  %v94 = vrcp.pop 32.0
  %v95 = vmul.f32 %v48, %v94
  %v96 = vmul.f32 %v51, %v94
  %v97 = vmul.f32 %v54, %v94
  %v98 = vmul.f32 %v57, %v94
  %v99 = vmul.f32 %v60, %v94
  %v100 = vmul.f32 %v63, %v94
  %v101 = vmul.f32 %v66, %v94
  %v102 = vmul.f32 %v69, %v94
  %v103 = vmul.f32 %v72, %v94
  %v104 = vmul.f32 %v75, %v94
  %v105 = vmul.f32 %v78, %v94
  %v106 = vmul.f32 %v81, %v94
  %v107 = vmul.f32 %v84, %v94
  %v108 = vmul.f32 %v87, %v94
  %v109 = vmul.f32 %v90, %v94
  %v110 = vmul.f32 %v93, %v94
  %v111 = vsub.f32 %v27, %v95
  %v112 = vsub.f32 %v28, %v96
  %v113 = vsub.f32 %v29, %v97
  %v114 = vsub.f32 %v30, %v98
  %v115 = vsub.f32 %v31, %v99
  %v116 = vsub.f32 %v32, %v100
  %v117 = vsub.f32 %v33, %v101
  %v118 = vsub.f32 %v34, %v102
  %v119 = vsub.f32 %v35, %v103
  %v120 = vsub.f32 %v36, %v104
  %v121 = vsub.f32 %v37, %v105
  %v122 = vsub.f32 %v38, %v106
  %v123 = vsub.f32 %v39, %v107
  %v124 = vsub.f32 %v40, %v108
  %v125 = vsub.f32 %v41, %v109
  %v126 = vsub.f32 %v42, %v110
  %v127 = vmul.f32 %v111, %v111
  %v128 = vmul.f32 %v112, %v112
  %v129 = vmul.f32 %v113, %v113
  %v130 = vmul.f32 %v114, %v114
  %v131 = vmul.f32 %v115, %v115
  %v132 = vmul.f32 %v116, %v116
  %v133 = vmul.f32 %v117, %v117
  %v134 = vmul.f32 %v118, %v118
  %v135 = vmul.f32 %v119, %v119
  %v136 = vmul.f32 %v120, %v120
  %v137 = vmul.f32 %v121, %v121
  %v138 = vmul.f32 %v122, %v122
  %v139 = vmul.f32 %v123, %v123
  %v140 = vmul.f32 %v124, %v124
  %v141 = vmul.f32 %v125, %v125
  %v142 = vmul.f32 %v126, %v126
  %v143 = vsel %vm45, %v127, 0.0
  %144 = vadd.xlane.f32.xlu0 %v143
  %v145 = vpop.xlane.xlu0 %144
  %v146 = vsel %vm45, %v128, 0.0
  %147 = vadd.xlane.f32.xlu0 %v146
  %v148 = vpop.xlane.xlu0 %147
  %v149 = vsel %vm45, %v129, 0.0
  %150 = vadd.xlane.f32.xlu0 %v149
  %v151 = vpop.xlane.xlu0 %150
  %v152 = vsel %vm45, %v130, 0.0
  %153 = vadd.xlane.f32.xlu0 %v152
  %v154 = vpop.xlane.xlu0 %153
  %v155 = vsel %vm45, %v131, 0.0
  %156 = vadd.xlane.f32.xlu0 %v155
  %v157 = vpop.xlane.xlu0 %156
  %v158 = vsel %vm45, %v132, 0.0
  %159 = vadd.xlane.f32.xlu0 %v158
  %v160 = vpop.xlane.xlu0 %159
  %v161 = vsel %vm45, %v133, 0.0
  %162 = vadd.xlane.f32.xlu0 %v161
  %v163 = vpop.xlane.xlu0 %162
  %v164 = vsel %vm45, %v134, 0.0
  %165 = vadd.xlane.f32.xlu0 %v164
  %v166 = vpop.xlane.xlu0 %165
  %v167 = vsel %vm45, %v135, 0.0
  %168 = vadd.xlane.f32.xlu0 %v167
  %v169 = vpop.xlane.xlu0 %168
  %v170 = vsel %vm45, %v136, 0.0
  %171 = vadd.xlane.f32.xlu0 %v170
  %v172 = vpop.xlane.xlu0 %171
  %v173 = vsel %vm45, %v137, 0.0
  %174 = vadd.xlane.f32.xlu0 %v173
  %v175 = vpop.xlane.xlu0 %174
  %v176 = vsel %vm45, %v138, 0.0
  %177 = vadd.xlane.f32.xlu0 %v176
  %v178 = vpop.xlane.xlu0 %177
  %v179 = vsel %vm45, %v139, 0.0
  %180 = vadd.xlane.f32.xlu0 %v179
  %v181 = vpop.xlane.xlu0 %180
  %v182 = vsel %vm45, %v140, 0.0
  %183 = vadd.xlane.f32.xlu0 %v182
  %v184 = vpop.xlane.xlu0 %183
  %v185 = vsel %vm45, %v141, 0.0
  %186 = vadd.xlane.f32.xlu0 %v185
  %v187 = vpop.xlane.xlu0 %186
  %v188 = vsel %vm45, %v142, 0.0
  %189 = vadd.xlane.f32.xlu0 %v188
  %v190 = vpop.xlane.xlu0 %189
  %v191 = vmul.f32 %v145, %v94
  %v192 = vmul.f32 %v148, %v94
  %v193 = vmul.f32 %v151, %v94
  %v194 = vmul.f32 %v154, %v94
  %v195 = vmul.f32 %v157, %v94
  %v196 = vmul.f32 %v160, %v94
  %v197 = vmul.f32 %v163, %v94
  %v198 = vmul.f32 %v166, %v94
  %v199 = vmul.f32 %v169, %v94
  %v200 = vmul.f32 %v172, %v94
  %v201 = vmul.f32 %v175, %v94
  %v202 = vmul.f32 %v178, %v94
  %v203 = vmul.f32 %v181, %v94
  %v204 = vmul.f32 %v184, %v94
  %v205 = vmul.f32 %v187, %v94
  %v206 = vmul.f32 %v190, %v94
  %v207 = vadd.f32 %v191, 1e-05
  %v208 = vadd.f32 %v192, 1e-05
  %v209 = vadd.f32 %v193, 1e-05
  %v210 = vadd.f32 %v194, 1e-05
  %v211 = vadd.f32 %v195, 1e-05
  %v212 = vadd.f32 %v196, 1e-05
  %v213 = vadd.f32 %v197, 1e-05
  %v214 = vadd.f32 %v198, 1e-05
  %v215 = vadd.f32 %v199, 1e-05
  %v216 = vadd.f32 %v200, 1e-05
  %v217 = vadd.f32 %v201, 1e-05
  %v218 = vadd.f32 %v202, 1e-05
  %v219 = vadd.f32 %v203, 1e-05
  %v220 = vadd.f32 %v204, 1e-05
  %v221 = vadd.f32 %v205, 1e-05
  %v222 = vadd.f32 %v206, 1e-05
  %v223 = vrsqrt.pop %v207
  %v224 = vrsqrt.pop %v208
  %v225 = vrsqrt.pop %v209
  %v226 = vrsqrt.pop %v210
  %v227 = vrsqrt.pop %v211
  %v228 = vrsqrt.pop %v212
  %v229 = vrsqrt.pop %v213
  %v230 = vrsqrt.pop %v214
  %v231 = vrsqrt.pop %v215
  %v232 = vrsqrt.pop %v216
  %v233 = vrsqrt.pop %v217
  %v234 = vrsqrt.pop %v218
  %v235 = vrsqrt.pop %v219
  %v236 = vrsqrt.pop %v220
  %v237 = vrsqrt.pop %v221
  %v238 = vrsqrt.pop %v222
  %v239 = vmul.f32 %v111, %v223
  %v240 = vmul.f32 %v112, %v224
  %v241 = vmul.f32 %v113, %v225
  %v242 = vmul.f32 %v114, %v226
  %v243 = vmul.f32 %v115, %v227
  %v244 = vmul.f32 %v116, %v228
  %v245 = vmul.f32 %v117, %v229
  %v246 = vmul.f32 %v118, %v230
  %v247 = vmul.f32 %v119, %v231
  %v248 = vmul.f32 %v120, %v232
  %v249 = vmul.f32 %v121, %v233
  %v250 = vmul.f32 %v122, %v234
  %v251 = vmul.f32 %v123, %v235
  %v252 = vmul.f32 %v124, %v236
  %v253 = vmul.f32 %v125, %v237
  %v254 = vmul.f32 %v126, %v238
  %v256 = vlaneseq
  %v257 = vshrl.u32 %v256, 7
  %v258 = vsub.s32 0, %v257
  %v259 = vrot.slane %v43, %v258
  %v261 = vmul.f32 %v239, %v259
  %v262 = vmul.f32 %v240, %v259
  %v263 = vmul.f32 %v241, %v259
  %v264 = vmul.f32 %v242, %v259
  %v265 = vmul.f32 %v243, %v259
  %v266 = vmul.f32 %v244, %v259
  %v267 = vmul.f32 %v245, %v259
  %v268 = vmul.f32 %v246, %v259
  %v269 = vmul.f32 %v247, %v259
  %v270 = vmul.f32 %v248, %v259
  %v271 = vmul.f32 %v249, %v259
  %v272 = vmul.f32 %v250, %v259
  %v273 = vmul.f32 %v251, %v259
  %v274 = vmul.f32 %v252, %v259
  %v275 = vmul.f32 %v253, %v259
  %v276 = vmul.f32 %v254, %v259
  %v278 = vlaneseq
  %v279 = vshrl.u32 %v278, 7
  %v280 = vsub.s32 0, %v279
  %v281 = vrot.slane %v44, %v280
  %v283 = vadd.f32 %v261, %v281
  %v284 = vadd.f32 %v262, %v281
  %v285 = vadd.f32 %v263, %v281
  %v286 = vadd.f32 %v264, %v281
  %v287 = vadd.f32 %v265, %v281
  %v288 = vadd.f32 %v266, %v281
  %v289 = vadd.f32 %v267, %v281
  %v290 = vadd.f32 %v268, %v281
  %v291 = vadd.f32 %v269, %v281
  %v292 = vadd.f32 %v270, %v281
  %v293 = vadd.f32 %v271, %v281
  %v294 = vadd.f32 %v272, %v281
  %v295 = vadd.f32 %v273, %v281
  %v296 = vadd.f32 %v274, %v281
  %v297 = vadd.f32 %v275, %v281
  %v298 = vadd.f32 %v276, %v281
  %v299 = vpack.c.bf16 %v284, %v283
  %v300 = vpack.c.bf16 %v286, %v285
  %v301 = vpack.c.bf16 %v288, %v287
  %v302 = vpack.c.bf16 %v290, %v289
  %v303 = vpack.c.bf16 %v292, %v291
  %v304 = vpack.c.bf16 %v294, %v293
  %v305 = vpack.c.bf16 %v296, %v295
  %v306 = vpack.c.bf16 %v298, %v297
  %v307 = vld [vmem:[%s4] sm:$0xf]
  %v308 = vld [vmem:[%s4 + $0x4] sm:$0xf]
  %v309 = vld [vmem:[%s4 + $0x8] sm:$0xf]
  %v310 = vld [vmem:[%s4 + $0xc] sm:$0xf]
  %v311 = vld [vmem:[%s5] sm:$0x1]
  %v313 = vlaneseq
  %v314 = vshrl.u32 %v313, 7
  %v315 = vsub.s32 0, %v314
  %v316 = vrot.slane %v311, %v315
  %v322 = vunpack.c.l.b16 %v307
  %v323 = vunpack.c.l.b16 %v308
  %v324 = vunpack.c.l.b16 %v309
  %v325 = vunpack.c.l.b16 %v310
  %v326 = vpack.c.b16 %v323, %v322
  %v327 = vpack.c.b16 %v325, %v324
  %v331 = vsel %vm45, %v299, 0
  %v334 = vsel %vm45, %v300, 0
  %v337 = vsel %vm45, %v301, 0
  %v340 = vsel %vm45, %v302, 0
  %v343 = vsel %vm45, %v303, 0
  %v346 = vsel %vm45, %v304, 0
  %v349 = vsel %vm45, %v305, 0
  %v352 = vsel %vm45, %v306, 0
  %354 = vmatprep.subr.bf16.mxu0 0
  %355 = vmatpush1.bf16.msra.mxu0 %v326
  %356 = vmatprep.subr.bf16.mxu0 0
  %357 = vmatpush1.bf16.msra.mxu0 %v327
  %358 = vmatprep.subr.bf16.mxu0 0
  %359 = vmatpush1.bf16.msra.mxu0 0
  %360 = vmatprep.subr.bf16.mxu0 0
  %361 = vmatpush1.bf16.msra.mxu0 0
  %362 = vmatprep.subr.bf16.mxu0 0
  %363 = vmatpush1.bf16.msra.mxu0 0
  %364 = vmatprep.subr.bf16.mxu0 0
  %365 = vmatpush1.bf16.msra.mxu0 0
  %366 = vmatprep.subr.bf16.mxu0 0
  %367 = vmatpush1.bf16.msra.mxu0 0
  %368 = vmatprep.subr.bf16.mxu0 0
  %369 = vmatpush1.bf16.msra.mxu0 0
  %370 = vmatprep.subr.bf16.mxu0 0
  %371 = vmatpush1.bf16.msra.mxu0 0
  %372 = vmatprep.subr.bf16.mxu0 0
  %373 = vmatpush1.bf16.msra.mxu0 0
  %374 = vmatprep.subr.bf16.mxu0 0
  %375 = vmatpush1.bf16.msra.mxu0 0
  %376 = vmatprep.subr.bf16.mxu0 0
  %377 = vmatpush1.bf16.msra.mxu0 0
  %378 = vmatprep.subr.bf16.mxu0 0
  %379 = vmatpush1.bf16.msra.mxu0 0
  %380 = vmatprep.subr.bf16.mxu0 0
  %381 = vmatpush1.bf16.msra.mxu0 0
  %382 = vmatprep.subr.bf16.mxu0 0
  %383 = vmatpush1.bf16.msra.mxu0 0
  %384 = vmatprep.subr.bf16.mxu0 0
  %385 = vmatpush1.bf16.msra.mxu0 0
  %386 = vmatprep.mubr.bf16.mxu0 0
  %387 = vmatmul.mubr.bf16.gmra.mrb[0].mxu0 %v331
  %v388 = vpop.f32.mrb[0].mxu0
  %v389 = vadd.f32 %v316, %v388
  %v390 = vpop.f32.mrb[0].mxu0
  %v391 = vpop.f32.mrb[0].mxu0
  %v392 = vadd.f32 %v316, %v391
  %v393 = vpop.f32.mrb[0].mxu0
  %394 = vmatprep.mubr.bf16.mxu0 0
  %395 = vmatmul.mubr.bf16.gmra.mrb[0].mxu0 %v334
  %v396 = vpop.f32.mrb[0].mxu0
  %v397 = vadd.f32 %v316, %v396
  %v398 = vpop.f32.mrb[0].mxu0
  %v399 = vpop.f32.mrb[0].mxu0
  %v400 = vadd.f32 %v316, %v399
  %v401 = vpop.f32.mrb[0].mxu0
  %402 = vmatprep.mubr.bf16.mxu0 0
  %403 = vmatmul.mubr.bf16.gmra.mrb[0].mxu0 %v337
  %v404 = vpop.f32.mrb[0].mxu0
  %v405 = vadd.f32 %v316, %v404
  %v406 = vpop.f32.mrb[0].mxu0
  %v407 = vpop.f32.mrb[0].mxu0
  %v408 = vadd.f32 %v316, %v407
  %v409 = vpop.f32.mrb[0].mxu0
  %410 = vmatprep.mubr.bf16.mxu0 0
  %411 = vmatmul.mubr.bf16.gmra.mrb[0].mxu0 %v340
  %v412 = vpop.f32.mrb[0].mxu0
  %v413 = vadd.f32 %v316, %v412
  %v414 = vpop.f32.mrb[0].mxu0
  %v415 = vpop.f32.mrb[0].mxu0
  %v416 = vadd.f32 %v316, %v415
  %v417 = vpop.f32.mrb[0].mxu0
  %418 = vmatprep.mubr.bf16.mxu0 0
  %419 = vmatmul.mubr.bf16.gmra.mrb[0].mxu0 %v343
  %v420 = vpop.f32.mrb[0].mxu0
  %v421 = vadd.f32 %v316, %v420
  %v422 = vpop.f32.mrb[0].mxu0
  %v423 = vpop.f32.mrb[0].mxu0
  %v424 = vadd.f32 %v316, %v423
  %v425 = vpop.f32.mrb[0].mxu0
  %426 = vmatprep.mubr.bf16.mxu0 0
  %427 = vmatmul.mubr.bf16.gmra.mrb[0].mxu0 %v346
  %v428 = vpop.f32.mrb[0].mxu0
  %v429 = vadd.f32 %v316, %v428
  %v430 = vpop.f32.mrb[0].mxu0
  %v431 = vpop.f32.mrb[0].mxu0
  %v432 = vadd.f32 %v316, %v431
  %v433 = vpop.f32.mrb[0].mxu0
  %434 = vmatprep.mubr.bf16.mxu0 0
  %435 = vmatmul.mubr.bf16.gmra.mrb[0].mxu0 %v349
  %v436 = vpop.f32.mrb[0].mxu0
  %v437 = vadd.f32 %v316, %v436
  %v438 = vpop.f32.mrb[0].mxu0
  %v439 = vpop.f32.mrb[0].mxu0
  %v440 = vadd.f32 %v316, %v439
  %v441 = vpop.f32.mrb[0].mxu0
  %442 = vmatprep.mubr.bf16.mxu0 0
  %443 = vmatmul.mubr.bf16.gmra.mrb[0].mxu0 %v352
  %v444 = vpop.f32.mrb[0].mxu0
  %v445 = vadd.f32 %v316, %v444
  %v446 = vpop.f32.mrb[0].mxu0
  %v447 = vpop.f32.mrb[0].mxu0
  %v448 = vadd.f32 %v316, %v447
  %v449 = vpop.f32.mrb[0].mxu0
  %450 = vdwg.mxu0
  %v451 = vld [vmem:[%s1] sm:$0xff]
  %v452 = vld [vmem:[%s1 + $0x8] sm:$0xff]
  %v453 = vld [vmem:[%s1 + $0x10] sm:$0xff]
  %v454 = vld [vmem:[%s1 + $0x18] sm:$0xff]
  %v455 = vld [vmem:[%s1 + $0x20] sm:$0xff]
  %v456 = vld [vmem:[%s1 + $0x28] sm:$0xff]
  %v457 = vld [vmem:[%s1 + $0x30] sm:$0xff]
  %v458 = vld [vmem:[%s1 + $0x38] sm:$0xff]
  %v459 = vld [vmem:[%s1 + $0x40] sm:$0xff]
  %v460 = vld [vmem:[%s1 + $0x48] sm:$0xff]
  %v461 = vld [vmem:[%s1 + $0x50] sm:$0xff]
  %v462 = vld [vmem:[%s1 + $0x58] sm:$0xff]
  %v463 = vld [vmem:[%s1 + $0x60] sm:$0xff]
  %v464 = vld [vmem:[%s1 + $0x68] sm:$0xff]
  %v465 = vld [vmem:[%s1 + $0x70] sm:$0xff]
  %v466 = vld [vmem:[%s1 + $0x78] sm:$0xff]
  %v467 = vsub.f32 0.0, %v389
  %v468 = vsub.f32 0.0, %v392
  %v469 = vsub.f32 0.0, %v397
  %v470 = vsub.f32 0.0, %v400
  %v471 = vsub.f32 0.0, %v405
  %v472 = vsub.f32 0.0, %v408
  %v473 = vsub.f32 0.0, %v413
  %v474 = vsub.f32 0.0, %v416
  %v475 = vsub.f32 0.0, %v421
  %v476 = vsub.f32 0.0, %v424
  %v477 = vsub.f32 0.0, %v429
  %v478 = vsub.f32 0.0, %v432
  %v479 = vsub.f32 0.0, %v437
  %v480 = vsub.f32 0.0, %v440
  %v481 = vsub.f32 0.0, %v445
  %v482 = vsub.f32 0.0, %v448
  %v483 = vmul.f32 %v467, 1.442695
  %v484 = vpow.pop %v483
  %v485 = vmul.f32 %v468, 1.442695
  %v486 = vpow.pop %v485
  %v487 = vmul.f32 %v469, 1.442695
  %v488 = vpow.pop %v487
  %v489 = vmul.f32 %v470, 1.442695
  %v490 = vpow.pop %v489
  %v491 = vmul.f32 %v471, 1.442695
  %v492 = vpow.pop %v491
  %v493 = vmul.f32 %v472, 1.442695
  %v494 = vpow.pop %v493
  %v495 = vmul.f32 %v473, 1.442695
  %v496 = vpow.pop %v495
  %v497 = vmul.f32 %v474, 1.442695
  %v498 = vpow.pop %v497
  %v499 = vmul.f32 %v475, 1.442695
  %v500 = vpow.pop %v499
  %v501 = vmul.f32 %v476, 1.442695
  %v502 = vpow.pop %v501
  %v503 = vmul.f32 %v477, 1.442695
  %v504 = vpow.pop %v503
  %v505 = vmul.f32 %v478, 1.442695
  %v506 = vpow.pop %v505
  %v507 = vmul.f32 %v479, 1.442695
  %v508 = vpow.pop %v507
  %v509 = vmul.f32 %v480, 1.442695
  %v510 = vpow.pop %v509
  %v511 = vmul.f32 %v481, 1.442695
  %v512 = vpow.pop %v511
  %v513 = vmul.f32 %v482, 1.442695
  %v514 = vpow.pop %v513
  %v515 = vadd.f32 %v484, 1.0
  %v516 = vadd.f32 %v486, 1.0
  %v517 = vadd.f32 %v488, 1.0
  %v518 = vadd.f32 %v490, 1.0
  %v519 = vadd.f32 %v492, 1.0
  %v520 = vadd.f32 %v494, 1.0
  %v521 = vadd.f32 %v496, 1.0
  %v522 = vadd.f32 %v498, 1.0
  %v523 = vadd.f32 %v500, 1.0
  %v524 = vadd.f32 %v502, 1.0
  %v525 = vadd.f32 %v504, 1.0
  %v526 = vadd.f32 %v506, 1.0
  %v527 = vadd.f32 %v508, 1.0
  %v528 = vadd.f32 %v510, 1.0
  %v529 = vadd.f32 %v512, 1.0
  %v530 = vadd.f32 %v514, 1.0
  %v531 = vrcp.pop %v515
  %v532 = vmul.f32 1.0, %v531
  %v533 = vrcp.pop %v516
  %v534 = vmul.f32 1.0, %v533
  %v535 = vrcp.pop %v517
  %v536 = vmul.f32 1.0, %v535
  %v537 = vrcp.pop %v518
  %v538 = vmul.f32 1.0, %v537
  %v539 = vrcp.pop %v519
  %v540 = vmul.f32 1.0, %v539
  %v541 = vrcp.pop %v520
  %v542 = vmul.f32 1.0, %v541
  %v543 = vrcp.pop %v521
  %v544 = vmul.f32 1.0, %v543
  %v545 = vrcp.pop %v522
  %v546 = vmul.f32 1.0, %v545
  %v547 = vrcp.pop %v523
  %v548 = vmul.f32 1.0, %v547
  %v549 = vrcp.pop %v524
  %v550 = vmul.f32 1.0, %v549
  %v551 = vrcp.pop %v525
  %v552 = vmul.f32 1.0, %v551
  %v553 = vrcp.pop %v526
  %v554 = vmul.f32 1.0, %v553
  %v555 = vrcp.pop %v527
  %v556 = vmul.f32 1.0, %v555
  %v557 = vrcp.pop %v528
  %v558 = vmul.f32 1.0, %v557
  %v559 = vrcp.pop %v529
  %v560 = vmul.f32 1.0, %v559
  %v561 = vrcp.pop %v530
  %v562 = vmul.f32 1.0, %v561
  %579 = vrot.lane.b32.xlu0 %v389, 112
  %v580 = vpop.permute.xlu0 %579
  %581 = vrot.lane.b32.xlu0 %v392, 112
  %v582 = vpop.permute.xlu0 %581
  %583 = vrot.lane.b32.xlu0 %v397, 112
  %v584 = vpop.permute.xlu0 %583
  %585 = vrot.lane.b32.xlu0 %v400, 112
  %v586 = vpop.permute.xlu0 %585
  %587 = vrot.lane.b32.xlu0 %v405, 112
  %v588 = vpop.permute.xlu0 %587
  %589 = vrot.lane.b32.xlu0 %v408, 112
  %v590 = vpop.permute.xlu0 %589
  %591 = vrot.lane.b32.xlu0 %v413, 112
  %v592 = vpop.permute.xlu0 %591
  %593 = vrot.lane.b32.xlu0 %v416, 112
  %v594 = vpop.permute.xlu0 %593
  %595 = vrot.lane.b32.xlu0 %v421, 112
  %v596 = vpop.permute.xlu0 %595
  %597 = vrot.lane.b32.xlu0 %v424, 112
  %v598 = vpop.permute.xlu0 %597
  %599 = vrot.lane.b32.xlu0 %v429, 112
  %v600 = vpop.permute.xlu0 %599
  %601 = vrot.lane.b32.xlu0 %v432, 112
  %v602 = vpop.permute.xlu0 %601
  %603 = vrot.lane.b32.xlu0 %v437, 112
  %v604 = vpop.permute.xlu0 %603
  %605 = vrot.lane.b32.xlu0 %v440, 112
  %v606 = vpop.permute.xlu0 %605
  %607 = vrot.lane.b32.xlu0 %v445, 112
  %v608 = vpop.permute.xlu0 %607
  %609 = vrot.lane.b32.xlu0 %v448, 112
  %v610 = vpop.permute.xlu0 %609
  %v627 = vmul.f32 %v532, %v580
  %v628 = vmul.f32 %v534, %v582
  %v629 = vmul.f32 %v536, %v584
  %v630 = vmul.f32 %v538, %v586
  %v631 = vmul.f32 %v540, %v588
  %v632 = vmul.f32 %v542, %v590
  %v633 = vmul.f32 %v544, %v592
  %v634 = vmul.f32 %v546, %v594
  %v635 = vmul.f32 %v548, %v596
  %v636 = vmul.f32 %v550, %v598
  %v637 = vmul.f32 %v552, %v600
  %v638 = vmul.f32 %v554, %v602
  %v639 = vmul.f32 %v556, %v604
  %v640 = vmul.f32 %v558, %v606
  %v641 = vmul.f32 %v560, %v608
  %v642 = vmul.f32 %v562, %v610
  %644 = vset.pattern.permute.xlu0 0
  %645 = vperm.xlu0 %644, %v451
  %v646 = vpop.permute.xlu0 %645
  %649 = vset.pattern.permute.xlu0 0
  %650 = vperm.xlu0 %649, %v452
  %v651 = vpop.permute.xlu0 %650
  %654 = vset.pattern.permute.xlu0 0
  %655 = vperm.xlu0 %654, %v453
  %v656 = vpop.permute.xlu0 %655
  %659 = vset.pattern.permute.xlu0 0
  %660 = vperm.xlu0 %659, %v454
  %v661 = vpop.permute.xlu0 %660
  %664 = vset.pattern.permute.xlu0 0
  %665 = vperm.xlu0 %664, %v455
  %v666 = vpop.permute.xlu0 %665
  %669 = vset.pattern.permute.xlu0 0
  %670 = vperm.xlu0 %669, %v456
  %v671 = vpop.permute.xlu0 %670
  %674 = vset.pattern.permute.xlu0 0
  %675 = vperm.xlu0 %674, %v457
  %v676 = vpop.permute.xlu0 %675
  %679 = vset.pattern.permute.xlu0 0
  %680 = vperm.xlu0 %679, %v458
  %v681 = vpop.permute.xlu0 %680
  %684 = vset.pattern.permute.xlu0 0
  %685 = vperm.xlu0 %684, %v459
  %v686 = vpop.permute.xlu0 %685
  %689 = vset.pattern.permute.xlu0 0
  %690 = vperm.xlu0 %689, %v460
  %v691 = vpop.permute.xlu0 %690
  %694 = vset.pattern.permute.xlu0 0
  %695 = vperm.xlu0 %694, %v461
  %v696 = vpop.permute.xlu0 %695
  %699 = vset.pattern.permute.xlu0 0
  %700 = vperm.xlu0 %699, %v462
  %v701 = vpop.permute.xlu0 %700
  %704 = vset.pattern.permute.xlu0 0
  %705 = vperm.xlu0 %704, %v463
  %v706 = vpop.permute.xlu0 %705
  %709 = vset.pattern.permute.xlu0 0
  %710 = vperm.xlu0 %709, %v464
  %v711 = vpop.permute.xlu0 %710
  %714 = vset.pattern.permute.xlu0 0
  %715 = vperm.xlu0 %714, %v465
  %v716 = vpop.permute.xlu0 %715
  %719 = vset.pattern.permute.xlu0 0
  %720 = vperm.xlu0 %719, %v466
  %v721 = vpop.permute.xlu0 %720
  %v723 = vmul.f32 %v627, %v646
  %v724 = vmul.f32 %v628, %v651
  %v725 = vmul.f32 %v629, %v656
  %v726 = vmul.f32 %v630, %v661
  %v727 = vmul.f32 %v631, %v666
  %v728 = vmul.f32 %v632, %v671
  %v729 = vmul.f32 %v633, %v676
  %v730 = vmul.f32 %v634, %v681
  %v731 = vmul.f32 %v635, %v686
  %v732 = vmul.f32 %v636, %v691
  %v733 = vmul.f32 %v637, %v696
  %v734 = vmul.f32 %v638, %v701
  %v735 = vmul.f32 %v639, %v706
  %v736 = vmul.f32 %v640, %v711
  %v737 = vmul.f32 %v641, %v716
  %v738 = vmul.f32 %v642, %v721
  %v739 = vpack.c.bf16 %v724, %v723
  %v740 = vpack.c.bf16 %v726, %v725
  %v741 = vpack.c.bf16 %v728, %v727
  %v742 = vpack.c.bf16 %v730, %v729
  %v743 = vpack.c.bf16 %v732, %v731
  %v744 = vpack.c.bf16 %v734, %v733
  %v745 = vpack.c.bf16 %v736, %v735
  %v746 = vpack.c.bf16 %v738, %v737
  %v755 = vunpack.c.l.b16 %v739
  %v756 = vunpack.c.h.b16 %v739
  %v757 = vunpack.c.l.b16 %v740
  %v758 = vunpack.c.h.b16 %v740
  %v759 = vunpack.c.l.b16 %v741
  %v760 = vunpack.c.h.b16 %v741
  %v761 = vunpack.c.l.b16 %v742
  %v762 = vunpack.c.h.b16 %v742
  %v763 = vunpack.c.l.b16 %v743
  %v764 = vunpack.c.h.b16 %v743
  %v765 = vunpack.c.l.b16 %v744
  %v766 = vunpack.c.h.b16 %v744
  %v767 = vunpack.c.l.b16 %v745
  %v768 = vunpack.c.h.b16 %v745
  %v769 = vunpack.c.l.b16 %v746
  %v770 = vunpack.c.h.b16 %v746
  %v771 = vpack.c.b16 %v755, %v755
  %v772 = vpack.c.b16 %v756, %v756
  %v773 = vpack.c.b16 %v757, %v757
  %v774 = vpack.c.b16 %v758, %v758
  %v775 = vpack.c.b16 %v759, %v759
  %v776 = vpack.c.b16 %v760, %v760
  %v777 = vpack.c.b16 %v761, %v761
  %v778 = vpack.c.b16 %v762, %v762
  %v779 = vpack.c.b16 %v763, %v763
  %v780 = vpack.c.b16 %v764, %v764
  %v781 = vpack.c.b16 %v765, %v765
  %v782 = vpack.c.b16 %v766, %v766
  %v783 = vpack.c.b16 %v767, %v767
  %v784 = vpack.c.b16 %v768, %v768
  %v785 = vpack.c.b16 %v769, %v769
  %v786 = vpack.c.b16 %v770, %v770
  %vm803 = vcmask 125952
  %804 = vst.msk [vmem:[%s6] sm:$0xf] %vm803, %v771
  %805 = vst.msk [vmem:[%s6 + $0x4] sm:$0xf] %vm803, %v772
  %806 = vst.msk [vmem:[%s6 + $0x8] sm:$0xf] %vm803, %v773
  %807 = vst.msk [vmem:[%s6 + $0xc] sm:$0xf] %vm803, %v774
  %808 = vst.msk [vmem:[%s6 + $0x10] sm:$0xf] %vm803, %v775
  %809 = vst.msk [vmem:[%s6 + $0x14] sm:$0xf] %vm803, %v776
  %810 = vst.msk [vmem:[%s6 + $0x18] sm:$0xf] %vm803, %v777
  %811 = vst.msk [vmem:[%s6 + $0x1c] sm:$0xf] %vm803, %v778
  %812 = vst.msk [vmem:[%s6 + $0x20] sm:$0xf] %vm803, %v779
  %813 = vst.msk [vmem:[%s6 + $0x24] sm:$0xf] %vm803, %v780
  %814 = vst.msk [vmem:[%s6 + $0x28] sm:$0xf] %vm803, %v781
  %815 = vst.msk [vmem:[%s6 + $0x2c] sm:$0xf] %vm803, %v782
  %816 = vst.msk [vmem:[%s6 + $0x30] sm:$0xf] %vm803, %v783
  %817 = vst.msk [vmem:[%s6 + $0x34] sm:$0xf] %vm803, %v784
  %818 = vst.msk [vmem:[%s6 + $0x38] sm:$0xf] %vm803, %v785
  %819 = vst.msk [vmem:[%s6 + $0x3c] sm:$0xf] %vm803, %v786
  %820 = vrot.lane.b32.xlu0 %v771, 96
  %v821 = vpop.permute.xlu0 %820
  %822 = vrot.lane.b32.xlu0 %v772, 96
  %v823 = vpop.permute.xlu0 %822
  %824 = vrot.lane.b32.xlu0 %v773, 96
  %v825 = vpop.permute.xlu0 %824
  %826 = vrot.lane.b32.xlu0 %v774, 96
  %v827 = vpop.permute.xlu0 %826
  %828 = vrot.lane.b32.xlu0 %v775, 96
  %v829 = vpop.permute.xlu0 %828
  %830 = vrot.lane.b32.xlu0 %v776, 96
  %v831 = vpop.permute.xlu0 %830
  %832 = vrot.lane.b32.xlu0 %v777, 96
  %v833 = vpop.permute.xlu0 %832
  %834 = vrot.lane.b32.xlu0 %v778, 96
  %v835 = vpop.permute.xlu0 %834
  %836 = vrot.lane.b32.xlu0 %v779, 96
  %v837 = vpop.permute.xlu0 %836
  %838 = vrot.lane.b32.xlu0 %v780, 96
  %v839 = vpop.permute.xlu0 %838
  %840 = vrot.lane.b32.xlu0 %v781, 96
  %v841 = vpop.permute.xlu0 %840
  %842 = vrot.lane.b32.xlu0 %v782, 96
  %v843 = vpop.permute.xlu0 %842
  %844 = vrot.lane.b32.xlu0 %v783, 96
  %v845 = vpop.permute.xlu0 %844
  %846 = vrot.lane.b32.xlu0 %v784, 96
  %v847 = vpop.permute.xlu0 %846
  %848 = vrot.lane.b32.xlu0 %v785, 96
  %v849 = vpop.permute.xlu0 %848
  %850 = vrot.lane.b32.xlu0 %v786, 96
  %v851 = vpop.permute.xlu0 %850
  %868 = vst.msk [vmem:[%s7] sm:$0xf] %vm803, %v821
  %869 = vst.msk [vmem:[%s7 + $0x4] sm:$0xf] %vm803, %v823
  %870 = vst.msk [vmem:[%s7 + $0x8] sm:$0xf] %vm803, %v825
  %871 = vst.msk [vmem:[%s7 + $0xc] sm:$0xf] %vm803, %v827
  %872 = vst.msk [vmem:[%s7 + $0x10] sm:$0xf] %vm803, %v829
  %873 = vst.msk [vmem:[%s7 + $0x14] sm:$0xf] %vm803, %v831
  %874 = vst.msk [vmem:[%s7 + $0x18] sm:$0xf] %vm803, %v833
  %875 = vst.msk [vmem:[%s7 + $0x1c] sm:$0xf] %vm803, %v835
  %876 = vst.msk [vmem:[%s7 + $0x20] sm:$0xf] %vm803, %v837
  %877 = vst.msk [vmem:[%s7 + $0x24] sm:$0xf] %vm803, %v839
  %878 = vst.msk [vmem:[%s7 + $0x28] sm:$0xf] %vm803, %v841
  %879 = vst.msk [vmem:[%s7 + $0x2c] sm:$0xf] %vm803, %v843
  %880 = vst.msk [vmem:[%s7 + $0x30] sm:$0xf] %vm803, %v845
  %881 = vst.msk [vmem:[%s7 + $0x34] sm:$0xf] %vm803, %v847
  %882 = vst.msk [vmem:[%s7 + $0x38] sm:$0xf] %vm803, %v849
  %883 = vst.msk [vmem:[%s7 + $0x3c] sm:$0xf] %vm803, %v851
  %v884 = vpack.c.bf16 %v392, %v389
  %v885 = vpack.c.bf16 %v400, %v397
  %v886 = vpack.c.bf16 %v408, %v405
  %v887 = vpack.c.bf16 %v416, %v413
  %v888 = vpack.c.bf16 %v424, %v421
  %v889 = vpack.c.bf16 %v432, %v429
  %v890 = vpack.c.bf16 %v440, %v437
  %v891 = vpack.c.bf16 %v448, %v445
  %v900 = vunpack.c.l.b16 %v884
  %v901 = vunpack.c.h.b16 %v884
  %v902 = vunpack.c.l.b16 %v885
  %v903 = vunpack.c.h.b16 %v885
  %v904 = vunpack.c.l.b16 %v886
  %v905 = vunpack.c.h.b16 %v886
  %v906 = vunpack.c.l.b16 %v887
  %v907 = vunpack.c.h.b16 %v887
  %v908 = vunpack.c.l.b16 %v888
  %v909 = vunpack.c.h.b16 %v888
  %v910 = vunpack.c.l.b16 %v889
  %v911 = vunpack.c.h.b16 %v889
  %v912 = vunpack.c.l.b16 %v890
  %v913 = vunpack.c.h.b16 %v890
  %v914 = vunpack.c.l.b16 %v891
  %v915 = vunpack.c.h.b16 %v891
  %v916 = vpack.c.b16 %v900, %v900
  %v917 = vpack.c.b16 %v901, %v901
  %v918 = vpack.c.b16 %v902, %v902
  %v919 = vpack.c.b16 %v903, %v903
  %v920 = vpack.c.b16 %v904, %v904
  %v921 = vpack.c.b16 %v905, %v905
  %v922 = vpack.c.b16 %v906, %v906
  %v923 = vpack.c.b16 %v907, %v907
  %v924 = vpack.c.b16 %v908, %v908
  %v925 = vpack.c.b16 %v909, %v909
  %v926 = vpack.c.b16 %v910, %v910
  %v927 = vpack.c.b16 %v911, %v911
  %v928 = vpack.c.b16 %v912, %v912
  %v929 = vpack.c.b16 %v913, %v913
  %v930 = vpack.c.b16 %v914, %v914
  %v931 = vpack.c.b16 %v915, %v915
  %932 = vrot.lane.b32.xlu0 %v916, 64
  %v933 = vpop.permute.xlu0 %932
  %934 = vrot.lane.b32.xlu0 %v917, 64
  %v935 = vpop.permute.xlu0 %934
  %936 = vrot.lane.b32.xlu0 %v918, 64
  %v937 = vpop.permute.xlu0 %936
  %938 = vrot.lane.b32.xlu0 %v919, 64
  %v939 = vpop.permute.xlu0 %938
  %940 = vrot.lane.b32.xlu0 %v920, 64
  %v941 = vpop.permute.xlu0 %940
  %942 = vrot.lane.b32.xlu0 %v921, 64
  %v943 = vpop.permute.xlu0 %942
  %944 = vrot.lane.b32.xlu0 %v922, 64
  %v945 = vpop.permute.xlu0 %944
  %946 = vrot.lane.b32.xlu0 %v923, 64
  %v947 = vpop.permute.xlu0 %946
  %948 = vrot.lane.b32.xlu0 %v924, 64
  %v949 = vpop.permute.xlu0 %948
  %950 = vrot.lane.b32.xlu0 %v925, 64
  %v951 = vpop.permute.xlu0 %950
  %952 = vrot.lane.b32.xlu0 %v926, 64
  %v953 = vpop.permute.xlu0 %952
  %954 = vrot.lane.b32.xlu0 %v927, 64
  %v955 = vpop.permute.xlu0 %954
  %956 = vrot.lane.b32.xlu0 %v928, 64
  %v957 = vpop.permute.xlu0 %956
  %958 = vrot.lane.b32.xlu0 %v929, 64
  %v959 = vpop.permute.xlu0 %958
  %960 = vrot.lane.b32.xlu0 %v930, 64
  %v961 = vpop.permute.xlu0 %960
  %962 = vrot.lane.b32.xlu0 %v931, 64
  %v963 = vpop.permute.xlu0 %962
  %vm980 = vcmask 257024
  %981 = vst.msk [vmem:[%s8] sm:$0xf] %vm980, %v933
  %982 = vst.msk [vmem:[%s8 + $0x4] sm:$0xf] %vm980, %v935
  %983 = vst.msk [vmem:[%s8 + $0x8] sm:$0xf] %vm980, %v937
  %984 = vst.msk [vmem:[%s8 + $0xc] sm:$0xf] %vm980, %v939
  %985 = vst.msk [vmem:[%s8 + $0x10] sm:$0xf] %vm980, %v941
  %986 = vst.msk [vmem:[%s8 + $0x14] sm:$0xf] %vm980, %v943
  %987 = vst.msk [vmem:[%s8 + $0x18] sm:$0xf] %vm980, %v945
  %988 = vst.msk [vmem:[%s8 + $0x1c] sm:$0xf] %vm980, %v947
  %989 = vst.msk [vmem:[%s8 + $0x20] sm:$0xf] %vm980, %v949
  %990 = vst.msk [vmem:[%s8 + $0x24] sm:$0xf] %vm980, %v951
  %991 = vst.msk [vmem:[%s8 + $0x28] sm:$0xf] %vm980, %v953
  %992 = vst.msk [vmem:[%s8 + $0x2c] sm:$0xf] %vm980, %v955
  %993 = vst.msk [vmem:[%s8 + $0x30] sm:$0xf] %vm980, %v957
  %994 = vst.msk [vmem:[%s8 + $0x34] sm:$0xf] %vm980, %v959
  %995 = vst.msk [vmem:[%s8 + $0x38] sm:$0xf] %vm980, %v961
  %996 = vst.msk [vmem:[%s8 + $0x3c] sm:$0xf] %vm980, %v963
  // Predicated region
  $region26: #{_lambda_.30} parent=0 // pred_check
    _
  $region27: #{_lambda_.30} parent=0 // pred_check_branch
    %998 = sbr.rel (0) target = $region29
  $region28: #{_lambda_.30} parent=0 // pred_region
    _
  $region29: #{_lambda_.30} parent=0 // pred_fallthru
    _
  // Predicated region
  $region30: #{_lambda_.30} parent=0 // pred_check
    _
  $region31: #{_lambda_.30} parent=0 // pred_check_branch
    %1000 = sbr.rel (0) target = $region33
  $region32: #{_lambda_.30} parent=0 // pred_region
    _
  $region33: #{_lambda_.30} parent=0 // pred_fallthru
    _
  // Predicated region
  $region34: #{_lambda_.30} parent=0 // pred_check
    _
  $region35: #{_lambda_.30} parent=0 // pred_check_branch
    %1002 = sbr.rel (0) target = $region37
  $region36: #{_lambda_.30} parent=0 // pred_region
    _
  $region37: #{_lambda_.30} parent=0 // pred_fallthru
    _
  // Predicated region
  $region38: #{_lambda_.30} parent=0 // pred_check
    _
  $region39: #{_lambda_.30} parent=0 // pred_check_branch
    %1004 = sbr.rel (0) target = $region41
  $region40: #{_lambda_.30} parent=0 // pred_region
    _
  $region41: #{_lambda_.30} parent=0 // pred_fallthru
    _
  // Predicated region
  $region42: #{_lambda_.30} parent=0 // pred_check
    _
  $region43: #{_lambda_.30} parent=0 // pred_check_branch
    %1006 = sbr.rel (0) target = $region45
  $region44: #{_lambda_.30} parent=0 // pred_region
    _
  $region45: #{_lambda_.30} parent=0 // pred_fallthru
    _
  // Predicated region
  $region46: #{_lambda_.30} parent=0 // pred_check
    _
  $region47: #{_lambda_.30} parent=0 // pred_check_branch
    %1008 = sbr.rel (0) target = $region49
  $region48: #{_lambda_.30} parent=0 // pred_region
    _
  $region49: #{_lambda_.30} parent=0 // pred_fallthru
    _

// kernel: _lambda_.31
$region0: #{_lambda_.31}
  #allocation0 [shape = 'u32[]', space=smem, size = 0x4, offset = 0x4, fixed_abs, tag = 'smem constant byte address 0x4 - core index']
  #allocation1 [shape = 'u32[144,128]{1,0:T(1,128)}', space=vmem, size = 0x12000, scoped, tag = 'internal scratch']
  #allocation2 [shape = 'f32[16,8,8]{2,1,0:T(8,128)}', space=vmem, size = 0x10000, scoped, tag = 'scratch operand']
  %s0 = inlined_call_operand.vmem [shape: bf16[2,16,8,8], index: 0, kind: input, shape index: {}]
  %s1 = inlined_call_operand.vmem [shape: bf16[2,16,8,8], index: 1, kind: input, shape index: {}]
  %s2 = inlined_call_operand.vmem [shape: bf16[2,16,8,8], index: 2, kind: output, shape index: {}]
  %s3 = sld [smem:[#allocation0]]
  $region49: #{_lambda_.31} parent=0
    _
  %s5 = ssub.s32 1, %s3
  %s6 = scalar_select 0, %s5, %s3
  loop: start=0, step=1, limit=4
  $region2: #{_lambda_.31} parent=0 // loop_pre_header
    _
  $region3: #{_lambda_.31} parent=0 // loop_header
    %s8 = sphi 0, %s12
    %p9 = scmp.ge.s32.totalorder %s8, 4
    %s15 = sphi 0, %s41
    %s16 = sphi 0, %s37
    %s17 = sphi 0, %s33
    %s18 = sphi 0, %s29
    %s19 = sphi 0, %s15
    %s20 = sphi 0, %s16
    %s21 = sphi 0, %s17
    %s22 = sphi 0, %s18
    %s23 = sphi 0, %s19
    %s24 = sphi 0, %s20
    %s25 = sphi 0, %s21
    %s26 = sphi 0, %s22
    %s48 = sphi 0, %s50
    %s51 = sphi 0, %s48
    %s52 = sphi 0, %s51
    %s68 = sphi 0, %s52
    %s78 = sphi 0, %s80
    %s81 = sphi 0, %s78
    %s82 = sphi 0, %s81
    %s98 = sphi 0, %s82
    %s108 = sphi 0, %s110
    %s111 = sphi 0, %s108
    %s112 = sphi 0, %s111
    %s128 = sphi 0, %s112
  $region4: #{_lambda_.31} parent=0 // loop_header_branch
    %11 = sbr.rel (%p9) target = $region8
  $region5: #{_lambda_.31} parent=0 // loop_body
    %s13 = ssub.s32 %s8, 1
    %s14 = ssub.s32 %s8, 2
    %s27 = sadd.s32 1, %s18
    %p28 = scmp.ge.s32.totalorder %s27, 1
    %s29 = scalar_select %p28, 0, %s27
    %s30 = sadd.s32 1, %s17
    %s31 = scalar_select %p28, %s30, %s17
    %p32 = scmp.ge.s32.totalorder %s31, 1
    %s33 = scalar_select %p32, 0, %s31
    %s34 = sadd.s32 1, %s16
    %s35 = scalar_select %p32, %s34, %s16
    %p36 = scmp.ge.s32.totalorder %s35, 1
    %s37 = scalar_select %p36, 0, %s35
    %s38 = sadd.s32 1, %s15
    %s39 = scalar_select %p36, %s38, %s15
    %p40 = scmp.ge.s32.totalorder %s39, 2
    %s41 = scalar_select %p40, 0, %s39
    %s42 = ssub.s32 %s15, %s41
    %s43 = ssub.s32 %s16, %s37
    %s44 = sor.u32 %s42, %s43
    %s45 = ssub.s32 %s18, %s29
    %s46 = sor.u32 %s44, %s45
    %p47 = scmp.eq.s32.totalorder %s46, 0
    %s49 = sadd.s32 %s48, 1
    %s50 = scalar_select %p47, %s48, %s49
    %p53 = pneg %p47
    %p54 = scmp.eq.s32.totalorder %s8, 1
    %p55 = por %p53, %p54
    %p56 = scmp.ne.s32.totalorder %s48, %s51
    %p57 = scmp.eq.s32.totalorder %s8, 0
    %p58 = por %p56, %p57
    %p59 = scmp.ne.s32.totalorder %s48, %s51
    %p60 = scmp.eq.s32.totalorder %s13, 1
    %p61 = por %p59, %p60
    %p62 = scmp.ne.s32.totalorder %s51, %s52
    %p63 = scmp.eq.s32.totalorder %s13, 0
    %p64 = por %p62, %p63
    %p65 = scmp.ne.s32.totalorder %s51, %s52
    %p66 = scmp.eq.s32.totalorder %s14, 1
    %p67 = por %p65, %p66
    %p69 = scmp.ne.s32.totalorder %s52, %s68
    %p70 = scmp.eq.s32.totalorder %s14, 0
    %p71 = por %p69, %p70
    %s72 = ssub.s32 %s15, %s41
    %s73 = ssub.s32 %s17, %s33
    %s74 = sor.u32 %s72, %s73
    %s75 = ssub.s32 %s18, %s29
    %s76 = sor.u32 %s74, %s75
    %p77 = scmp.eq.s32.totalorder %s76, 0
    %s79 = sadd.s32 %s78, 1
    %s80 = scalar_select %p77, %s78, %s79
    %p83 = pneg %p77
    %p84 = scmp.eq.s32.totalorder %s8, 1
    %p85 = por %p83, %p84
    %p86 = scmp.ne.s32.totalorder %s78, %s81
    %p87 = scmp.eq.s32.totalorder %s8, 0
    %p88 = por %p86, %p87
    %p89 = scmp.ne.s32.totalorder %s78, %s81
    %p90 = scmp.eq.s32.totalorder %s13, 1
    %p91 = por %p89, %p90
    %p92 = scmp.ne.s32.totalorder %s81, %s82
    %p93 = scmp.eq.s32.totalorder %s13, 0
    %p94 = por %p92, %p93
    %p95 = scmp.ne.s32.totalorder %s81, %s82
    %p96 = scmp.eq.s32.totalorder %s14, 1
    %p97 = por %p95, %p96
    %p99 = scmp.ne.s32.totalorder %s82, %s98
    %p100 = scmp.eq.s32.totalorder %s14, 0
    %p101 = por %p99, %p100
    %s102 = ssub.s32 %s15, %s41
    %s103 = ssub.s32 %s16, %s37
    %s104 = sor.u32 %s102, %s103
    %s105 = ssub.s32 %s17, %s33
    %s106 = sor.u32 %s104, %s105
    %p107 = scmp.eq.s32.totalorder %s106, 0
    %s109 = sadd.s32 %s108, 1
    %s110 = scalar_select %p107, %s108, %s109
    %p113 = pneg %p107
    %p114 = scmp.eq.s32.totalorder %s8, 1
    %p115 = por %p113, %p114
    %p116 = scmp.ne.s32.totalorder %s108, %s111
    %p117 = scmp.eq.s32.totalorder %s8, 0
    %p118 = por %p116, %p117
    %p119 = scmp.ne.s32.totalorder %s108, %s111
    %p120 = scmp.eq.s32.totalorder %s13, 1
    %p121 = por %p119, %p120
    %p122 = scmp.ne.s32.totalorder %s111, %s112
    %p123 = scmp.eq.s32.totalorder %s13, 0
    %p124 = por %p122, %p123
    %p125 = scmp.ne.s32.totalorder %s111, %s112
    %p126 = scmp.eq.s32.totalorder %s14, 1
    %p127 = por %p125, %p126
    %p129 = scmp.ne.s32.totalorder %s112, %s128
    %p130 = scmp.eq.s32.totalorder %s14, 0
    %p131 = por %p129, %p130
    %p132 = scmp.le.s32.totalorder 1, %s8
    %p133 = scmp.lt.s32.totalorder %s8, 3
    %p134 = pnand %p132, %p133
    %p135 = pneg %p134
    // Predicated region
    $region9: #{_lambda_.31} parent=5 // pred_check
      _
    $region10: #{_lambda_.31} parent=5 // pred_check_branch
      %137 = sbr.rel (%p134) target = $region12
    $region11: #{_lambda_.31} parent=5 // pred_region
      %s138 = ssub.s32 %s8, 1
    $region12: #{_lambda_.31} parent=5 // pred_fallthru
      _
    %p139 = scmp.lt.s32.totalorder %s8, 2
    // Predicated region
    $region13: #{_lambda_.31} parent=5 // pred_check
      %p140 = pneg %p139
    $region14: #{_lambda_.31} parent=5 // pred_check_branch
      %142 = sbr.rel (%p140) target = $region16
    $region15: #{_lambda_.31} parent=5 // pred_region
      // Predicated region
      $region17: #{_lambda_.31} parent=15 // pred_check
        %p143 = pneg %p58
      $region18: #{_lambda_.31} parent=15 // pred_check_branch
        %145 = sbr.rel (%p143) target = $region20
      $region19: #{_lambda_.31} parent=15 // pred_region
        %p146 = scmp.lt.s32.totalorder %s15, 1
        %s147 = scalar_select %p146, %s15, 1
        %p148 = scmp.lt.s32.totalorder %s16, 0
        %s149 = scalar_select %p148, %s16, 0
        %p150 = scmp.lt.s32.totalorder %s18, 0
        %s151 = scalar_select %p150, %s18, 0
        %s152 = sadd.s32 %s151, %s149
        %s153 = smul.addr %s147, 16
        %s154 = sadd.s32 %s152, %s153
        %s155 = smul.addr %s154, 4
        %s156 = scalar_lea.vmem %s0, %s155
      $region20: #{_lambda_.31} parent=15 // pred_fallthru
        _
      // Predicated region
      $region21: #{_lambda_.31} parent=15 // pred_check
        %p157 = pneg %p88
      $region22: #{_lambda_.31} parent=15 // pred_check_branch
        %159 = sbr.rel (%p157) target = $region24
      $region23: #{_lambda_.31} parent=15 // pred_region
        %p160 = scmp.lt.s32.totalorder %s15, 1
        %s161 = scalar_select %p160, %s15, 1
        %p162 = scmp.lt.s32.totalorder %s17, 0
        %s163 = scalar_select %p162, %s17, 0
        %p164 = scmp.lt.s32.totalorder %s18, 0
        %s165 = scalar_select %p164, %s18, 0
        %s166 = sadd.s32 %s165, %s163
        %s167 = smul.addr %s161, 16
        %s168 = sadd.s32 %s166, %s167
        %s169 = smul.addr %s168, 4
        %s170 = scalar_lea.vmem %s1, %s169
      $region24: #{_lambda_.31} parent=15 // pred_fallthru
        _
    $region16: #{_lambda_.31} parent=5 // pred_fallthru
      _
    %p171 = scmp.le.s32.totalorder 1, %s8
    %p172 = scmp.lt.s32.totalorder %s8, 3
    %p173 = pnand %p171, %p172
    %p174 = pneg %p173
    // Predicated region
    $region25: #{_lambda_.31} parent=5 // pred_check
      _
    $region26: #{_lambda_.31} parent=5 // pred_check_branch
      %176 = sbr.rel (%p173) target = $region28
    $region27: #{_lambda_.31} parent=5 // pred_region
      %s177 = ssub.s32 %s8, 1
      %p178 = scmp.lt.s32.totalorder %s19, 1
      %s179 = scalar_select %p178, %s19, 1
      %p180 = scmp.lt.s32.totalorder %s20, 0
      %s181 = scalar_select %p180, %s20, 0
      %p182 = scmp.lt.s32.totalorder %s22, 0
      %s183 = scalar_select %p182, %s22, 0
      %s184 = sadd.s32 %s183, %s181
      %s185 = smul.addr %s179, 16
      %s186 = sadd.s32 %s184, %s185
      %s187 = smul.addr %s186, 4
      %s188 = scalar_lea.vmem %s0, %s187
      %p189 = pneg %p64
      %p190 = pneg %p61
      %p191 = scmp.lt.s32.totalorder %s19, 1
      %s192 = scalar_select %p191, %s19, 1
      %p193 = scmp.lt.s32.totalorder %s21, 0
      %s194 = scalar_select %p193, %s21, 0
      %p195 = scmp.lt.s32.totalorder %s22, 0
      %s196 = scalar_select %p195, %s22, 0
      %s197 = sadd.s32 %s196, %s194
      %s198 = smul.addr %s192, 16
      %s199 = sadd.s32 %s197, %s198
      %s200 = smul.addr %s199, 4
      %s201 = scalar_lea.vmem %s1, %s200
      %p202 = pneg %p94
      %p203 = pneg %p91
      %p204 = pneg %p124
      %p205 = pneg %p121
      %p206 = scmp.lt.s32.totalorder %s19, 1
      %s207 = scalar_select %p206, %s19, 1
      %p208 = scmp.lt.s32.totalorder %s20, 0
      %s209 = scalar_select %p208, %s20, 0
      %p210 = scmp.lt.s32.totalorder %s21, 0
      %s211 = scalar_select %p210, %s21, 0
      %s212 = sadd.s32 %s211, %s209
      %s213 = smul.addr %s207, 16
      %s214 = sadd.s32 %s212, %s213
      %s215 = smul.addr %s214, 4
      %s216 = scalar_lea.vmem %s2, %s215
      %p217 = scmp.lt.s32.totalorder %s19, 1
      %s218 = scalar_select %p217, %s19, 1
      %p219 = scmp.lt.s32.totalorder %s20, 0
      %s220 = scalar_select %p219, %s20, 0
      %p221 = scmp.lt.s32.totalorder %s22, 0
      %s222 = scalar_select %p221, %s22, 0
      %s223 = sadd.s32 %s222, %s220
      %s224 = smul.addr %s218, 16
      %s225 = sadd.s32 %s223, %s224
      %s226 = smul.addr %s225, 4
      %s227 = scalar_lea.vmem %s0, %s226
      %p228 = scmp.lt.s32.totalorder %s19, 1
      %s229 = scalar_select %p228, %s19, 1
      %p230 = scmp.lt.s32.totalorder %s21, 0
      %s231 = scalar_select %p230, %s21, 0
      %p232 = scmp.lt.s32.totalorder %s22, 0
      %s233 = scalar_select %p232, %s22, 0
      %s234 = sadd.s32 %s233, %s231
      %s235 = smul.addr %s229, 16
      %s236 = sadd.s32 %s234, %s235
      %s237 = smul.addr %s236, 4
      %s238 = scalar_lea.vmem %s1, %s237
      %p239 = scmp.lt.s32.totalorder %s19, 1
      %s240 = scalar_select %p239, %s19, 1
      %p241 = scmp.lt.s32.totalorder %s20, 0
      %s242 = scalar_select %p241, %s20, 0
      %p243 = scmp.lt.s32.totalorder %s21, 0
      %s244 = scalar_select %p243, %s21, 0
      %s245 = sadd.s32 %s244, %s242
      %s246 = smul.addr %s240, 16
      %s247 = sadd.s32 %s245, %s246
      %s248 = smul.addr %s247, 4
      %s249 = scalar_lea.vmem %s2, %s248
      %p251 = scmp.eq.s32.totalorder %s22, 0
      // Predicated region
      $region29: #{_lambda_.31} parent=27 // pred_check
        %p252 = pneg %p251
      $region30: #{_lambda_.31} parent=27 // pred_check_branch
        %254 = sbr.rel (%p252) target = $region32
      $region31: #{_lambda_.31} parent=27 // pred_region
        %vm255 = vcmask 64512
        %256 = vst.msk [vmem:[#allocation2] sm:$0xff] %vm255, 0.0
        %257 = vst.msk [vmem:[#allocation2 + $0x8] sm:$0xff] %vm255, 0.0
        %258 = vst.msk [vmem:[#allocation2 + $0x10] sm:$0xff] %vm255, 0.0
        %259 = vst.msk [vmem:[#allocation2 + $0x18] sm:$0xff] %vm255, 0.0
        %260 = vst.msk [vmem:[#allocation2 + $0x20] sm:$0xff] %vm255, 0.0
        %261 = vst.msk [vmem:[#allocation2 + $0x28] sm:$0xff] %vm255, 0.0
        %262 = vst.msk [vmem:[#allocation2 + $0x30] sm:$0xff] %vm255, 0.0
        %263 = vst.msk [vmem:[#allocation2 + $0x38] sm:$0xff] %vm255, 0.0
        %264 = vst.msk [vmem:[#allocation2 + $0x40] sm:$0xff] %vm255, 0.0
        %265 = vst.msk [vmem:[#allocation2 + $0x48] sm:$0xff] %vm255, 0.0
        %266 = vst.msk [vmem:[#allocation2 + $0x50] sm:$0xff] %vm255, 0.0
        %267 = vst.msk [vmem:[#allocation2 + $0x58] sm:$0xff] %vm255, 0.0
        %268 = vst.msk [vmem:[#allocation2 + $0x60] sm:$0xff] %vm255, 0.0
        %269 = vst.msk [vmem:[#allocation2 + $0x68] sm:$0xff] %vm255, 0.0
        %270 = vst.msk [vmem:[#allocation2 + $0x70] sm:$0xff] %vm255, 0.0
        %271 = vst.msk [vmem:[#allocation2 + $0x78] sm:$0xff] %vm255, 0.0
      $region32: #{_lambda_.31} parent=27 // pred_fallthru
        _
      %v272 = vld [vmem:[#allocation2] sm:$0xff]
      %v273 = vld [vmem:[#allocation2 + $0x8] sm:$0xff]
      %v274 = vld [vmem:[#allocation2 + $0x10] sm:$0xff]
      %v275 = vld [vmem:[#allocation2 + $0x18] sm:$0xff]
      %v276 = vld [vmem:[#allocation2 + $0x20] sm:$0xff]
      %v277 = vld [vmem:[#allocation2 + $0x28] sm:$0xff]
      %v278 = vld [vmem:[#allocation2 + $0x30] sm:$0xff]
      %v279 = vld [vmem:[#allocation2 + $0x38] sm:$0xff]
      %v280 = vld [vmem:[#allocation2 + $0x40] sm:$0xff]
      %v281 = vld [vmem:[#allocation2 + $0x48] sm:$0xff]
      %v282 = vld [vmem:[#allocation2 + $0x50] sm:$0xff]
      %v283 = vld [vmem:[#allocation2 + $0x58] sm:$0xff]
      %v284 = vld [vmem:[#allocation2 + $0x60] sm:$0xff]
      %v285 = vld [vmem:[#allocation2 + $0x68] sm:$0xff]
      %v286 = vld [vmem:[#allocation2 + $0x70] sm:$0xff]
      %v287 = vld [vmem:[#allocation2 + $0x78] sm:$0xff]
      %v288 = vld [vmem:[%s227] sm:$0xf]
      %v289 = vld [vmem:[%s227 + $0x4] sm:$0xf]
      %v290 = vld [vmem:[%s227 + $0x8] sm:$0xf]
      %v291 = vld [vmem:[%s227 + $0xc] sm:$0xf]
      %v292 = vld [vmem:[%s227 + $0x10] sm:$0xf]
      %v293 = vld [vmem:[%s227 + $0x14] sm:$0xf]
      %v294 = vld [vmem:[%s227 + $0x18] sm:$0xf]
      %v295 = vld [vmem:[%s227 + $0x1c] sm:$0xf]
      %v296 = vld [vmem:[%s227 + $0x20] sm:$0xf]
      %v297 = vld [vmem:[%s227 + $0x24] sm:$0xf]
      %v298 = vld [vmem:[%s227 + $0x28] sm:$0xf]
      %v299 = vld [vmem:[%s227 + $0x2c] sm:$0xf]
      %v300 = vld [vmem:[%s227 + $0x30] sm:$0xf]
      %v301 = vld [vmem:[%s227 + $0x34] sm:$0xf]
      %v302 = vld [vmem:[%s227 + $0x38] sm:$0xf]
      %v303 = vld [vmem:[%s227 + $0x3c] sm:$0xf]
      %v304 = vld [vmem:[%s238] sm:$0xf]
      %v305 = vld [vmem:[%s238 + $0x4] sm:$0xf]
      %v306 = vld [vmem:[%s238 + $0x8] sm:$0xf]
      %v307 = vld [vmem:[%s238 + $0xc] sm:$0xf]
      %v308 = vld [vmem:[%s238 + $0x10] sm:$0xf]
      %v309 = vld [vmem:[%s238 + $0x14] sm:$0xf]
      %v310 = vld [vmem:[%s238 + $0x18] sm:$0xf]
      %v311 = vld [vmem:[%s238 + $0x1c] sm:$0xf]
      %v312 = vld [vmem:[%s238 + $0x20] sm:$0xf]
      %v313 = vld [vmem:[%s238 + $0x24] sm:$0xf]
      %v314 = vld [vmem:[%s238 + $0x28] sm:$0xf]
      %v315 = vld [vmem:[%s238 + $0x2c] sm:$0xf]
      %v316 = vld [vmem:[%s238 + $0x30] sm:$0xf]
      %v317 = vld [vmem:[%s238 + $0x34] sm:$0xf]
      %v318 = vld [vmem:[%s238 + $0x38] sm:$0xf]
      %v319 = vld [vmem:[%s238 + $0x3c] sm:$0xf]
      %vm320 = vcmask 64512
      %v322 = vsel %vm320, %v288, 0
      %v325 = vsel %vm320, %v304, 0
      %327 = vmatprep.subr.bf16.mxu0 0
      %328 = vmatpush1.bf16.xpose.msra.mxu0 %v325
      %329 = vmatprep.subr.bf16.mxu0 0
      %330 = vmatpush1.bf16.xpose.msra.mxu0 0
      %331 = vmatprep.subr.bf16.mxu0 0
      %332 = vmatpush1.bf16.xpose.msra.mxu0 0
      %333 = vmatprep.subr.bf16.mxu0 0
      %334 = vmatpush1.bf16.xpose.msra.mxu0 0
      %335 = vmatprep.subr.bf16.mxu0 0
      %336 = vmatpush1.bf16.xpose.msra.mxu0 0
      %337 = vmatprep.subr.bf16.mxu0 0
      %338 = vmatpush1.bf16.xpose.msra.mxu0 0
      %339 = vmatprep.subr.bf16.mxu0 0
      %340 = vmatpush1.bf16.xpose.msra.mxu0 0
      %341 = vmatprep.subr.bf16.mxu0 0
      %342 = vmatpush1.bf16.xpose.msra.mxu0 0
      %343 = vmatprep.subr.bf16.mxu0 0
      %344 = vmatpush1.bf16.xpose.msra.mxu0 0
      %345 = vmatprep.subr.bf16.mxu0 0
      %346 = vmatpush1.bf16.xpose.msra.mxu0 0
      %347 = vmatprep.subr.bf16.mxu0 0
      %348 = vmatpush1.bf16.xpose.msra.mxu0 0
      %349 = vmatprep.subr.bf16.mxu0 0
      %350 = vmatpush1.bf16.xpose.msra.mxu0 0
      %351 = vmatprep.subr.bf16.mxu0 0
      %352 = vmatpush1.bf16.xpose.msra.mxu0 0
      %353 = vmatprep.subr.bf16.mxu0 0
      %354 = vmatpush1.bf16.xpose.msra.mxu0 0
      %355 = vmatprep.subr.bf16.mxu0 0
      %356 = vmatpush1.bf16.xpose.msra.mxu0 0
      %357 = vmatprep.subr.bf16.mxu0 0
      %358 = vmatpush1.bf16.xpose.msra.mxu0 0
      %359 = vmatprep.mubr.bf16.mxu0 0
      %360 = vmatmul.mubr.bf16.gmra.mrb[0].mxu0 %v322
      %v361 = vpop.f32.mrb[0].mxu0
      %v362 = vadd.f32 0.0, %v361
      %v363 = vpop.f32.mrb[0].mxu0
      %v364 = vpop.f32.mrb[0].mxu0
      %v365 = vpop.f32.mrb[0].mxu0
      %366 = vdwg.mxu0
      %v368 = vsel %vm320, %v289, 0
      %v371 = vsel %vm320, %v305, 0
      %373 = vmatprep.subr.bf16.mxu0 0
      %374 = vmatpush1.bf16.xpose.msra.mxu0 %v371
      %375 = vmatprep.subr.bf16.mxu0 0
      %376 = vmatpush1.bf16.xpose.msra.mxu0 0
      %377 = vmatprep.subr.bf16.mxu0 0
      %378 = vmatpush1.bf16.xpose.msra.mxu0 0
      %379 = vmatprep.subr.bf16.mxu0 0
      %380 = vmatpush1.bf16.xpose.msra.mxu0 0
      %381 = vmatprep.subr.bf16.mxu0 0
      %382 = vmatpush1.bf16.xpose.msra.mxu0 0
      %383 = vmatprep.subr.bf16.mxu0 0
      %384 = vmatpush1.bf16.xpose.msra.mxu0 0
      %385 = vmatprep.subr.bf16.mxu0 0
      %386 = vmatpush1.bf16.xpose.msra.mxu0 0
      %387 = vmatprep.subr.bf16.mxu0 0
      %388 = vmatpush1.bf16.xpose.msra.mxu0 0
      %389 = vmatprep.subr.bf16.mxu0 0
      %390 = vmatpush1.bf16.xpose.msra.mxu0 0
      %391 = vmatprep.subr.bf16.mxu0 0
      %392 = vmatpush1.bf16.xpose.msra.mxu0 0
      %393 = vmatprep.subr.bf16.mxu0 0
      %394 = vmatpush1.bf16.xpose.msra.mxu0 0
      %395 = vmatprep.subr.bf16.mxu0 0
      %396 = vmatpush1.bf16.xpose.msra.mxu0 0
      %397 = vmatprep.subr.bf16.mxu0 0
      %398 = vmatpush1.bf16.xpose.msra.mxu0 0
      %399 = vmatprep.subr.bf16.mxu0 0
      %400 = vmatpush1.bf16.xpose.msra.mxu0 0
      %401 = vmatprep.subr.bf16.mxu0 0
      %402 = vmatpush1.bf16.xpose.msra.mxu0 0
      %403 = vmatprep.subr.bf16.mxu0 0
      %404 = vmatpush1.bf16.xpose.msra.mxu0 0
      %405 = vmatprep.mubr.bf16.mxu0 0
      %406 = vmatmul.mubr.bf16.gmra.mrb[0].mxu0 %v368
      %v407 = vpop.f32.mrb[0].mxu0
      %v408 = vadd.f32 0.0, %v407
      %v409 = vpop.f32.mrb[0].mxu0
      %v410 = vpop.f32.mrb[0].mxu0
      %v411 = vpop.f32.mrb[0].mxu0
      %412 = vdwg.mxu0
      %v414 = vsel %vm320, %v290, 0
      %v417 = vsel %vm320, %v306, 0
      %419 = vmatprep.subr.bf16.mxu0 0
      %420 = vmatpush1.bf16.xpose.msra.mxu0 %v417
      %421 = vmatprep.subr.bf16.mxu0 0
      %422 = vmatpush1.bf16.xpose.msra.mxu0 0
      %423 = vmatprep.subr.bf16.mxu0 0
      %424 = vmatpush1.bf16.xpose.msra.mxu0 0
      %425 = vmatprep.subr.bf16.mxu0 0
      %426 = vmatpush1.bf16.xpose.msra.mxu0 0
      %427 = vmatprep.subr.bf16.mxu0 0
      %428 = vmatpush1.bf16.xpose.msra.mxu0 0
      %429 = vmatprep.subr.bf16.mxu0 0
      %430 = vmatpush1.bf16.xpose.msra.mxu0 0
      %431 = vmatprep.subr.bf16.mxu0 0
      %432 = vmatpush1.bf16.xpose.msra.mxu0 0
      %433 = vmatprep.subr.bf16.mxu0 0
      %434 = vmatpush1.bf16.xpose.msra.mxu0 0
      %435 = vmatprep.subr.bf16.mxu0 0
      %436 = vmatpush1.bf16.xpose.msra.mxu0 0
      %437 = vmatprep.subr.bf16.mxu0 0
      %438 = vmatpush1.bf16.xpose.msra.mxu0 0
      %439 = vmatprep.subr.bf16.mxu0 0
      %440 = vmatpush1.bf16.xpose.msra.mxu0 0
      %441 = vmatprep.subr.bf16.mxu0 0
      %442 = vmatpush1.bf16.xpose.msra.mxu0 0
      %443 = vmatprep.subr.bf16.mxu0 0
      %444 = vmatpush1.bf16.xpose.msra.mxu0 0
      %445 = vmatprep.subr.bf16.mxu0 0
      %446 = vmatpush1.bf16.xpose.msra.mxu0 0
      %447 = vmatprep.subr.bf16.mxu0 0
      %448 = vmatpush1.bf16.xpose.msra.mxu0 0
      %449 = vmatprep.subr.bf16.mxu0 0
      %450 = vmatpush1.bf16.xpose.msra.mxu0 0
      %451 = vmatprep.mubr.bf16.mxu0 0
      %452 = vmatmul.mubr.bf16.gmra.mrb[0].mxu0 %v414
      %v453 = vpop.f32.mrb[0].mxu0
      %v454 = vadd.f32 0.0, %v453
      %v455 = vpop.f32.mrb[0].mxu0
      %v456 = vpop.f32.mrb[0].mxu0
      %v457 = vpop.f32.mrb[0].mxu0
      %458 = vdwg.mxu0
      %v460 = vsel %vm320, %v291, 0
      %v463 = vsel %vm320, %v307, 0
      %465 = vmatprep.subr.bf16.mxu0 0
      %466 = vmatpush1.bf16.xpose.msra.mxu0 %v463
      %467 = vmatprep.subr.bf16.mxu0 0
      %468 = vmatpush1.bf16.xpose.msra.mxu0 0
      %469 = vmatprep.subr.bf16.mxu0 0
      %470 = vmatpush1.bf16.xpose.msra.mxu0 0
      %471 = vmatprep.subr.bf16.mxu0 0
      %472 = vmatpush1.bf16.xpose.msra.mxu0 0
      %473 = vmatprep.subr.bf16.mxu0 0
      %474 = vmatpush1.bf16.xpose.msra.mxu0 0
      %475 = vmatprep.subr.bf16.mxu0 0
      %476 = vmatpush1.bf16.xpose.msra.mxu0 0
      %477 = vmatprep.subr.bf16.mxu0 0
      %478 = vmatpush1.bf16.xpose.msra.mxu0 0
      %479 = vmatprep.subr.bf16.mxu0 0
      %480 = vmatpush1.bf16.xpose.msra.mxu0 0
      %481 = vmatprep.subr.bf16.mxu0 0
      %482 = vmatpush1.bf16.xpose.msra.mxu0 0
      %483 = vmatprep.subr.bf16.mxu0 0
      %484 = vmatpush1.bf16.xpose.msra.mxu0 0
      %485 = vmatprep.subr.bf16.mxu0 0
      %486 = vmatpush1.bf16.xpose.msra.mxu0 0
      %487 = vmatprep.subr.bf16.mxu0 0
      %488 = vmatpush1.bf16.xpose.msra.mxu0 0
      %489 = vmatprep.subr.bf16.mxu0 0
      %490 = vmatpush1.bf16.xpose.msra.mxu0 0
      %491 = vmatprep.subr.bf16.mxu0 0
      %492 = vmatpush1.bf16.xpose.msra.mxu0 0
      %493 = vmatprep.subr.bf16.mxu0 0
      %494 = vmatpush1.bf16.xpose.msra.mxu0 0
      %495 = vmatprep.subr.bf16.mxu0 0
      %496 = vmatpush1.bf16.xpose.msra.mxu0 0
      %497 = vmatprep.mubr.bf16.mxu0 0
      %498 = vmatmul.mubr.bf16.gmra.mrb[0].mxu0 %v460
      %v499 = vpop.f32.mrb[0].mxu0
      %v500 = vadd.f32 0.0, %v499
      %v501 = vpop.f32.mrb[0].mxu0
      %v502 = vpop.f32.mrb[0].mxu0
      %v503 = vpop.f32.mrb[0].mxu0
      %504 = vdwg.mxu0
      %v506 = vsel %vm320, %v292, 0
      %v509 = vsel %vm320, %v308, 0
      %511 = vmatprep.subr.bf16.mxu0 0
      %512 = vmatpush1.bf16.xpose.msra.mxu0 %v509
      %513 = vmatprep.subr.bf16.mxu0 0
      %514 = vmatpush1.bf16.xpose.msra.mxu0 0
      %515 = vmatprep.subr.bf16.mxu0 0
      %516 = vmatpush1.bf16.xpose.msra.mxu0 0
      %517 = vmatprep.subr.bf16.mxu0 0
      %518 = vmatpush1.bf16.xpose.msra.mxu0 0
      %519 = vmatprep.subr.bf16.mxu0 0
      %520 = vmatpush1.bf16.xpose.msra.mxu0 0
      %521 = vmatprep.subr.bf16.mxu0 0
      %522 = vmatpush1.bf16.xpose.msra.mxu0 0
      %523 = vmatprep.subr.bf16.mxu0 0
      %524 = vmatpush1.bf16.xpose.msra.mxu0 0
      %525 = vmatprep.subr.bf16.mxu0 0
      %526 = vmatpush1.bf16.xpose.msra.mxu0 0
      %527 = vmatprep.subr.bf16.mxu0 0
      %528 = vmatpush1.bf16.xpose.msra.mxu0 0
      %529 = vmatprep.subr.bf16.mxu0 0
      %530 = vmatpush1.bf16.xpose.msra.mxu0 0
      %531 = vmatprep.subr.bf16.mxu0 0
      %532 = vmatpush1.bf16.xpose.msra.mxu0 0
      %533 = vmatprep.subr.bf16.mxu0 0
      %534 = vmatpush1.bf16.xpose.msra.mxu0 0
      %535 = vmatprep.subr.bf16.mxu0 0
      %536 = vmatpush1.bf16.xpose.msra.mxu0 0
      %537 = vmatprep.subr.bf16.mxu0 0
      %538 = vmatpush1.bf16.xpose.msra.mxu0 0
      %539 = vmatprep.subr.bf16.mxu0 0
      %540 = vmatpush1.bf16.xpose.msra.mxu0 0
      %541 = vmatprep.subr.bf16.mxu0 0
      %542 = vmatpush1.bf16.xpose.msra.mxu0 0
      %543 = vmatprep.mubr.bf16.mxu0 0
      %544 = vmatmul.mubr.bf16.gmra.mrb[0].mxu0 %v506
      %v545 = vpop.f32.mrb[0].mxu0
      %v546 = vadd.f32 0.0, %v545
      %v547 = vpop.f32.mrb[0].mxu0
      %v548 = vpop.f32.mrb[0].mxu0
      %v549 = vpop.f32.mrb[0].mxu0
      %550 = vdwg.mxu0
      %v552 = vsel %vm320, %v293, 0
      %v555 = vsel %vm320, %v309, 0
      %557 = vmatprep.subr.bf16.mxu0 0
      %558 = vmatpush1.bf16.xpose.msra.mxu0 %v555
      %559 = vmatprep.subr.bf16.mxu0 0
      %560 = vmatpush1.bf16.xpose.msra.mxu0 0
      %561 = vmatprep.subr.bf16.mxu0 0
      %562 = vmatpush1.bf16.xpose.msra.mxu0 0
      %563 = vmatprep.subr.bf16.mxu0 0
      %564 = vmatpush1.bf16.xpose.msra.mxu0 0
      %565 = vmatprep.subr.bf16.mxu0 0
      %566 = vmatpush1.bf16.xpose.msra.mxu0 0
      %567 = vmatprep.subr.bf16.mxu0 0
      %568 = vmatpush1.bf16.xpose.msra.mxu0 0
      %569 = vmatprep.subr.bf16.mxu0 0
      %570 = vmatpush1.bf16.xpose.msra.mxu0 0
      %571 = vmatprep.subr.bf16.mxu0 0
      %572 = vmatpush1.bf16.xpose.msra.mxu0 0
      %573 = vmatprep.subr.bf16.mxu0 0
      %574 = vmatpush1.bf16.xpose.msra.mxu0 0
      %575 = vmatprep.subr.bf16.mxu0 0
      %576 = vmatpush1.bf16.xpose.msra.mxu0 0
      %577 = vmatprep.subr.bf16.mxu0 0
      %578 = vmatpush1.bf16.xpose.msra.mxu0 0
      %579 = vmatprep.subr.bf16.mxu0 0
      %580 = vmatpush1.bf16.xpose.msra.mxu0 0
      %581 = vmatprep.subr.bf16.mxu0 0
      %582 = vmatpush1.bf16.xpose.msra.mxu0 0
      %583 = vmatprep.subr.bf16.mxu0 0
      %584 = vmatpush1.bf16.xpose.msra.mxu0 0
      %585 = vmatprep.subr.bf16.mxu0 0
      %586 = vmatpush1.bf16.xpose.msra.mxu0 0
      %587 = vmatprep.subr.bf16.mxu0 0
      %588 = vmatpush1.bf16.xpose.msra.mxu0 0
      %589 = vmatprep.mubr.bf16.mxu0 0
      %590 = vmatmul.mubr.bf16.gmra.mrb[0].mxu0 %v552
      %v591 = vpop.f32.mrb[0].mxu0
      %v592 = vadd.f32 0.0, %v591
      %v593 = vpop.f32.mrb[0].mxu0
      %v594 = vpop.f32.mrb[0].mxu0
      %v595 = vpop.f32.mrb[0].mxu0
      %596 = vdwg.mxu0
      %v598 = vsel %vm320, %v294, 0
      %v601 = vsel %vm320, %v310, 0
      %603 = vmatprep.subr.bf16.mxu0 0
      %604 = vmatpush1.bf16.xpose.msra.mxu0 %v601
      %605 = vmatprep.subr.bf16.mxu0 0
      %606 = vmatpush1.bf16.xpose.msra.mxu0 0
      %607 = vmatprep.subr.bf16.mxu0 0
      %608 = vmatpush1.bf16.xpose.msra.mxu0 0
      %609 = vmatprep.subr.bf16.mxu0 0
      %610 = vmatpush1.bf16.xpose.msra.mxu0 0
      %611 = vmatprep.subr.bf16.mxu0 0
      %612 = vmatpush1.bf16.xpose.msra.mxu0 0
      %613 = vmatprep.subr.bf16.mxu0 0
      %614 = vmatpush1.bf16.xpose.msra.mxu0 0
      %615 = vmatprep.subr.bf16.mxu0 0
      %616 = vmatpush1.bf16.xpose.msra.mxu0 0
      %617 = vmatprep.subr.bf16.mxu0 0
      %618 = vmatpush1.bf16.xpose.msra.mxu0 0
      %619 = vmatprep.subr.bf16.mxu0 0
      %620 = vmatpush1.bf16.xpose.msra.mxu0 0
      %621 = vmatprep.subr.bf16.mxu0 0
      %622 = vmatpush1.bf16.xpose.msra.mxu0 0
      %623 = vmatprep.subr.bf16.mxu0 0
      %624 = vmatpush1.bf16.xpose.msra.mxu0 0
      %625 = vmatprep.subr.bf16.mxu0 0
      %626 = vmatpush1.bf16.xpose.msra.mxu0 0
      %627 = vmatprep.subr.bf16.mxu0 0
      %628 = vmatpush1.bf16.xpose.msra.mxu0 0
      %629 = vmatprep.subr.bf16.mxu0 0
      %630 = vmatpush1.bf16.xpose.msra.mxu0 0
      %631 = vmatprep.subr.bf16.mxu0 0
      %632 = vmatpush1.bf16.xpose.msra.mxu0 0
      %633 = vmatprep.subr.bf16.mxu0 0
      %634 = vmatpush1.bf16.xpose.msra.mxu0 0
      %635 = vmatprep.mubr.bf16.mxu0 0
      %636 = vmatmul.mubr.bf16.gmra.mrb[0].mxu0 %v598
      %v637 = vpop.f32.mrb[0].mxu0
      %v638 = vadd.f32 0.0, %v637
      %v639 = vpop.f32.mrb[0].mxu0
      %v640 = vpop.f32.mrb[0].mxu0
      %v641 = vpop.f32.mrb[0].mxu0
      %642 = vdwg.mxu0
      %v644 = vsel %vm320, %v295, 0
      %v647 = vsel %vm320, %v311, 0
      %649 = vmatprep.subr.bf16.mxu0 0
      %650 = vmatpush1.bf16.xpose.msra.mxu0 %v647
      %651 = vmatprep.subr.bf16.mxu0 0
      %652 = vmatpush1.bf16.xpose.msra.mxu0 0
      %653 = vmatprep.subr.bf16.mxu0 0
      %654 = vmatpush1.bf16.xpose.msra.mxu0 0
      %655 = vmatprep.subr.bf16.mxu0 0
      %656 = vmatpush1.bf16.xpose.msra.mxu0 0
      %657 = vmatprep.subr.bf16.mxu0 0
      %658 = vmatpush1.bf16.xpose.msra.mxu0 0
      %659 = vmatprep.subr.bf16.mxu0 0
      %660 = vmatpush1.bf16.xpose.msra.mxu0 0
      %661 = vmatprep.subr.bf16.mxu0 0
      %662 = vmatpush1.bf16.xpose.msra.mxu0 0
      %663 = vmatprep.subr.bf16.mxu0 0
      %664 = vmatpush1.bf16.xpose.msra.mxu0 0
      %665 = vmatprep.subr.bf16.mxu0 0
      %666 = vmatpush1.bf16.xpose.msra.mxu0 0
      %667 = vmatprep.subr.bf16.mxu0 0
      %668 = vmatpush1.bf16.xpose.msra.mxu0 0
      %669 = vmatprep.subr.bf16.mxu0 0
      %670 = vmatpush1.bf16.xpose.msra.mxu0 0
      %671 = vmatprep.subr.bf16.mxu0 0
      %672 = vmatpush1.bf16.xpose.msra.mxu0 0
      %673 = vmatprep.subr.bf16.mxu0 0
      %674 = vmatpush1.bf16.xpose.msra.mxu0 0
      %675 = vmatprep.subr.bf16.mxu0 0
      %676 = vmatpush1.bf16.xpose.msra.mxu0 0
      %677 = vmatprep.subr.bf16.mxu0 0
      %678 = vmatpush1.bf16.xpose.msra.mxu0 0
      %679 = vmatprep.subr.bf16.mxu0 0
      %680 = vmatpush1.bf16.xpose.msra.mxu0 0
      %681 = vmatprep.mubr.bf16.mxu0 0
      %682 = vmatmul.mubr.bf16.gmra.mrb[0].mxu0 %v644
      %v683 = vpop.f32.mrb[0].mxu0
      %v684 = vadd.f32 0.0, %v683
      %v685 = vpop.f32.mrb[0].mxu0
      %v686 = vpop.f32.mrb[0].mxu0
      %v687 = vpop.f32.mrb[0].mxu0
      %688 = vdwg.mxu0
      %v690 = vsel %vm320, %v296, 0
      %v693 = vsel %vm320, %v312, 0
      %695 = vmatprep.subr.bf16.mxu0 0
      %696 = vmatpush1.bf16.xpose.msra.mxu0 %v693
      %697 = vmatprep.subr.bf16.mxu0 0
      %698 = vmatpush1.bf16.xpose.msra.mxu0 0
      %699 = vmatprep.subr.bf16.mxu0 0
      %700 = vmatpush1.bf16.xpose.msra.mxu0 0
      %701 = vmatprep.subr.bf16.mxu0 0
      %702 = vmatpush1.bf16.xpose.msra.mxu0 0
      %703 = vmatprep.subr.bf16.mxu0 0
      %704 = vmatpush1.bf16.xpose.msra.mxu0 0
      %705 = vmatprep.subr.bf16.mxu0 0
      %706 = vmatpush1.bf16.xpose.msra.mxu0 0
      %707 = vmatprep.subr.bf16.mxu0 0
      %708 = vmatpush1.bf16.xpose.msra.mxu0 0
      %709 = vmatprep.subr.bf16.mxu0 0
      %710 = vmatpush1.bf16.xpose.msra.mxu0 0
      %711 = vmatprep.subr.bf16.mxu0 0
      %712 = vmatpush1.bf16.xpose.msra.mxu0 0
      %713 = vmatprep.subr.bf16.mxu0 0
      %714 = vmatpush1.bf16.xpose.msra.mxu0 0
      %715 = vmatprep.subr.bf16.mxu0 0
      %716 = vmatpush1.bf16.xpose.msra.mxu0 0
      %717 = vmatprep.subr.bf16.mxu0 0
      %718 = vmatpush1.bf16.xpose.msra.mxu0 0
      %719 = vmatprep.subr.bf16.mxu0 0
      %720 = vmatpush1.bf16.xpose.msra.mxu0 0
      %721 = vmatprep.subr.bf16.mxu0 0
      %722 = vmatpush1.bf16.xpose.msra.mxu0 0
      %723 = vmatprep.subr.bf16.mxu0 0
      %724 = vmatpush1.bf16.xpose.msra.mxu0 0
      %725 = vmatprep.subr.bf16.mxu0 0
      %726 = vmatpush1.bf16.xpose.msra.mxu0 0
      %727 = vmatprep.mubr.bf16.mxu0 0
      %728 = vmatmul.mubr.bf16.gmra.mrb[0].mxu0 %v690
      %v729 = vpop.f32.mrb[0].mxu0
      %v730 = vadd.f32 0.0, %v729
      %v731 = vpop.f32.mrb[0].mxu0
      %v732 = vpop.f32.mrb[0].mxu0
      %v733 = vpop.f32.mrb[0].mxu0
      %734 = vdwg.mxu0
      %v736 = vsel %vm320, %v297, 0
      %v739 = vsel %vm320, %v313, 0
      %741 = vmatprep.subr.bf16.mxu0 0
      %742 = vmatpush1.bf16.xpose.msra.mxu0 %v739
      %743 = vmatprep.subr.bf16.mxu0 0
      %744 = vmatpush1.bf16.xpose.msra.mxu0 0
      %745 = vmatprep.subr.bf16.mxu0 0
      %746 = vmatpush1.bf16.xpose.msra.mxu0 0
      %747 = vmatprep.subr.bf16.mxu0 0
      %748 = vmatpush1.bf16.xpose.msra.mxu0 0
      %749 = vmatprep.subr.bf16.mxu0 0
      %750 = vmatpush1.bf16.xpose.msra.mxu0 0
      %751 = vmatprep.subr.bf16.mxu0 0
      %752 = vmatpush1.bf16.xpose.msra.mxu0 0
      %753 = vmatprep.subr.bf16.mxu0 0
      %754 = vmatpush1.bf16.xpose.msra.mxu0 0
      %755 = vmatprep.subr.bf16.mxu0 0
      %756 = vmatpush1.bf16.xpose.msra.mxu0 0
      %757 = vmatprep.subr.bf16.mxu0 0
      %758 = vmatpush1.bf16.xpose.msra.mxu0 0
      %759 = vmatprep.subr.bf16.mxu0 0
      %760 = vmatpush1.bf16.xpose.msra.mxu0 0
      %761 = vmatprep.subr.bf16.mxu0 0
      %762 = vmatpush1.bf16.xpose.msra.mxu0 0
      %763 = vmatprep.subr.bf16.mxu0 0
      %764 = vmatpush1.bf16.xpose.msra.mxu0 0
      %765 = vmatprep.subr.bf16.mxu0 0
      %766 = vmatpush1.bf16.xpose.msra.mxu0 0
      %767 = vmatprep.subr.bf16.mxu0 0
      %768 = vmatpush1.bf16.xpose.msra.mxu0 0
      %769 = vmatprep.subr.bf16.mxu0 0
      %770 = vmatpush1.bf16.xpose.msra.mxu0 0
      %771 = vmatprep.subr.bf16.mxu0 0
      %772 = vmatpush1.bf16.xpose.msra.mxu0 0
      %773 = vmatprep.mubr.bf16.mxu0 0
      %774 = vmatmul.mubr.bf16.gmra.mrb[0].mxu0 %v736
      %v775 = vpop.f32.mrb[0].mxu0
      %v776 = vadd.f32 0.0, %v775
      %v777 = vpop.f32.mrb[0].mxu0
      %v778 = vpop.f32.mrb[0].mxu0
      %v779 = vpop.f32.mrb[0].mxu0
      %780 = vdwg.mxu0
      %v782 = vsel %vm320, %v298, 0
      %v785 = vsel %vm320, %v314, 0
      %787 = vmatprep.subr.bf16.mxu0 0
      %788 = vmatpush1.bf16.xpose.msra.mxu0 %v785
      %789 = vmatprep.subr.bf16.mxu0 0
      %790 = vmatpush1.bf16.xpose.msra.mxu0 0
      %791 = vmatprep.subr.bf16.mxu0 0
      %792 = vmatpush1.bf16.xpose.msra.mxu0 0
      %793 = vmatprep.subr.bf16.mxu0 0
      %794 = vmatpush1.bf16.xpose.msra.mxu0 0
      %795 = vmatprep.subr.bf16.mxu0 0
      %796 = vmatpush1.bf16.xpose.msra.mxu0 0
      %797 = vmatprep.subr.bf16.mxu0 0
      %798 = vmatpush1.bf16.xpose.msra.mxu0 0
      %799 = vmatprep.subr.bf16.mxu0 0
      %800 = vmatpush1.bf16.xpose.msra.mxu0 0
      %801 = vmatprep.subr.bf16.mxu0 0
      %802 = vmatpush1.bf16.xpose.msra.mxu0 0
      %803 = vmatprep.subr.bf16.mxu0 0
      %804 = vmatpush1.bf16.xpose.msra.mxu0 0
      %805 = vmatprep.subr.bf16.mxu0 0
      %806 = vmatpush1.bf16.xpose.msra.mxu0 0
      %807 = vmatprep.subr.bf16.mxu0 0
      %808 = vmatpush1.bf16.xpose.msra.mxu0 0
      %809 = vmatprep.subr.bf16.mxu0 0
      %810 = vmatpush1.bf16.xpose.msra.mxu0 0
      %811 = vmatprep.subr.bf16.mxu0 0
      %812 = vmatpush1.bf16.xpose.msra.mxu0 0
      %813 = vmatprep.subr.bf16.mxu0 0
      %814 = vmatpush1.bf16.xpose.msra.mxu0 0
      %815 = vmatprep.subr.bf16.mxu0 0
      %816 = vmatpush1.bf16.xpose.msra.mxu0 0
      %817 = vmatprep.subr.bf16.mxu0 0
      %818 = vmatpush1.bf16.xpose.msra.mxu0 0
      %819 = vmatprep.mubr.bf16.mxu0 0
      %820 = vmatmul.mubr.bf16.gmra.mrb[0].mxu0 %v782
      %v821 = vpop.f32.mrb[0].mxu0
      %v822 = vadd.f32 0.0, %v821
      %v823 = vpop.f32.mrb[0].mxu0
      %v824 = vpop.f32.mrb[0].mxu0
      %v825 = vpop.f32.mrb[0].mxu0
      %826 = vdwg.mxu0
      %v828 = vsel %vm320, %v299, 0
      %v831 = vsel %vm320, %v315, 0
      %833 = vmatprep.subr.bf16.mxu0 0
      %834 = vmatpush1.bf16.xpose.msra.mxu0 %v831
      %835 = vmatprep.subr.bf16.mxu0 0
      %836 = vmatpush1.bf16.xpose.msra.mxu0 0
      %837 = vmatprep.subr.bf16.mxu0 0
      %838 = vmatpush1.bf16.xpose.msra.mxu0 0
      %839 = vmatprep.subr.bf16.mxu0 0
      %840 = vmatpush1.bf16.xpose.msra.mxu0 0
      %841 = vmatprep.subr.bf16.mxu0 0
      %842 = vmatpush1.bf16.xpose.msra.mxu0 0
      %843 = vmatprep.subr.bf16.mxu0 0
      %844 = vmatpush1.bf16.xpose.msra.mxu0 0
      %845 = vmatprep.subr.bf16.mxu0 0
      %846 = vmatpush1.bf16.xpose.msra.mxu0 0
      %847 = vmatprep.subr.bf16.mxu0 0
      %848 = vmatpush1.bf16.xpose.msra.mxu0 0
      %849 = vmatprep.subr.bf16.mxu0 0
      %850 = vmatpush1.bf16.xpose.msra.mxu0 0
      %851 = vmatprep.subr.bf16.mxu0 0
      %852 = vmatpush1.bf16.xpose.msra.mxu0 0
      %853 = vmatprep.subr.bf16.mxu0 0
      %854 = vmatpush1.bf16.xpose.msra.mxu0 0
      %855 = vmatprep.subr.bf16.mxu0 0
      %856 = vmatpush1.bf16.xpose.msra.mxu0 0
      %857 = vmatprep.subr.bf16.mxu0 0
      %858 = vmatpush1.bf16.xpose.msra.mxu0 0
      %859 = vmatprep.subr.bf16.mxu0 0
      %860 = vmatpush1.bf16.xpose.msra.mxu0 0
      %861 = vmatprep.subr.bf16.mxu0 0
      %862 = vmatpush1.bf16.xpose.msra.mxu0 0
      %863 = vmatprep.subr.bf16.mxu0 0
      %864 = vmatpush1.bf16.xpose.msra.mxu0 0
      %865 = vmatprep.mubr.bf16.mxu0 0
      %866 = vmatmul.mubr.bf16.gmra.mrb[0].mxu0 %v828
      %v867 = vpop.f32.mrb[0].mxu0
      %v868 = vadd.f32 0.0, %v867
      %v869 = vpop.f32.mrb[0].mxu0
      %v870 = vpop.f32.mrb[0].mxu0
      %v871 = vpop.f32.mrb[0].mxu0
      %872 = vdwg.mxu0
      %v874 = vsel %vm320, %v300, 0
      %v877 = vsel %vm320, %v316, 0
      %879 = vmatprep.subr.bf16.mxu0 0
      %880 = vmatpush1.bf16.xpose.msra.mxu0 %v877
      %881 = vmatprep.subr.bf16.mxu0 0
      %882 = vmatpush1.bf16.xpose.msra.mxu0 0
      %883 = vmatprep.subr.bf16.mxu0 0
      %884 = vmatpush1.bf16.xpose.msra.mxu0 0
      %885 = vmatprep.subr.bf16.mxu0 0
      %886 = vmatpush1.bf16.xpose.msra.mxu0 0
      %887 = vmatprep.subr.bf16.mxu0 0
      %888 = vmatpush1.bf16.xpose.msra.mxu0 0
      %889 = vmatprep.subr.bf16.mxu0 0
      %890 = vmatpush1.bf16.xpose.msra.mxu0 0
      %891 = vmatprep.subr.bf16.mxu0 0
      %892 = vmatpush1.bf16.xpose.msra.mxu0 0
      %893 = vmatprep.subr.bf16.mxu0 0
      %894 = vmatpush1.bf16.xpose.msra.mxu0 0
      %895 = vmatprep.subr.bf16.mxu0 0
      %896 = vmatpush1.bf16.xpose.msra.mxu0 0
      %897 = vmatprep.subr.bf16.mxu0 0
      %898 = vmatpush1.bf16.xpose.msra.mxu0 0
      %899 = vmatprep.subr.bf16.mxu0 0
      %900 = vmatpush1.bf16.xpose.msra.mxu0 0
      %901 = vmatprep.subr.bf16.mxu0 0
      %902 = vmatpush1.bf16.xpose.msra.mxu0 0
      %903 = vmatprep.subr.bf16.mxu0 0
      %904 = vmatpush1.bf16.xpose.msra.mxu0 0
      %905 = vmatprep.subr.bf16.mxu0 0
      %906 = vmatpush1.bf16.xpose.msra.mxu0 0
      %907 = vmatprep.subr.bf16.mxu0 0
      %908 = vmatpush1.bf16.xpose.msra.mxu0 0
      %909 = vmatprep.subr.bf16.mxu0 0
      %910 = vmatpush1.bf16.xpose.msra.mxu0 0
      %911 = vmatprep.mubr.bf16.mxu0 0
      %912 = vmatmul.mubr.bf16.gmra.mrb[0].mxu0 %v874
      %v913 = vpop.f32.mrb[0].mxu0
      %v914 = vadd.f32 0.0, %v913
      %v915 = vpop.f32.mrb[0].mxu0
      %v916 = vpop.f32.mrb[0].mxu0
      %v917 = vpop.f32.mrb[0].mxu0
      %918 = vdwg.mxu0
      %v920 = vsel %vm320, %v301, 0
      %v923 = vsel %vm320, %v317, 0
      %925 = vmatprep.subr.bf16.mxu0 0
      %926 = vmatpush1.bf16.xpose.msra.mxu0 %v923
      %927 = vmatprep.subr.bf16.mxu0 0
      %928 = vmatpush1.bf16.xpose.msra.mxu0 0
      %929 = vmatprep.subr.bf16.mxu0 0
      %930 = vmatpush1.bf16.xpose.msra.mxu0 0
      %931 = vmatprep.subr.bf16.mxu0 0
      %932 = vmatpush1.bf16.xpose.msra.mxu0 0
      %933 = vmatprep.subr.bf16.mxu0 0
      %934 = vmatpush1.bf16.xpose.msra.mxu0 0
      %935 = vmatprep.subr.bf16.mxu0 0
      %936 = vmatpush1.bf16.xpose.msra.mxu0 0
      %937 = vmatprep.subr.bf16.mxu0 0
      %938 = vmatpush1.bf16.xpose.msra.mxu0 0
      %939 = vmatprep.subr.bf16.mxu0 0
      %940 = vmatpush1.bf16.xpose.msra.mxu0 0
      %941 = vmatprep.subr.bf16.mxu0 0
      %942 = vmatpush1.bf16.xpose.msra.mxu0 0
      %943 = vmatprep.subr.bf16.mxu0 0
      %944 = vmatpush1.bf16.xpose.msra.mxu0 0
      %945 = vmatprep.subr.bf16.mxu0 0
      %946 = vmatpush1.bf16.xpose.msra.mxu0 0
      %947 = vmatprep.subr.bf16.mxu0 0
      %948 = vmatpush1.bf16.xpose.msra.mxu0 0
      %949 = vmatprep.subr.bf16.mxu0 0
      %950 = vmatpush1.bf16.xpose.msra.mxu0 0
      %951 = vmatprep.subr.bf16.mxu0 0
      %952 = vmatpush1.bf16.xpose.msra.mxu0 0
      %953 = vmatprep.subr.bf16.mxu0 0
      %954 = vmatpush1.bf16.xpose.msra.mxu0 0
      %955 = vmatprep.subr.bf16.mxu0 0
      %956 = vmatpush1.bf16.xpose.msra.mxu0 0
      %957 = vmatprep.mubr.bf16.mxu0 0
      %958 = vmatmul.mubr.bf16.gmra.mrb[0].mxu0 %v920
      %v959 = vpop.f32.mrb[0].mxu0
      %v960 = vadd.f32 0.0, %v959
      %v961 = vpop.f32.mrb[0].mxu0
      %v962 = vpop.f32.mrb[0].mxu0
      %v963 = vpop.f32.mrb[0].mxu0
      %964 = vdwg.mxu0
      %v966 = vsel %vm320, %v302, 0
      %v969 = vsel %vm320, %v318, 0
      %971 = vmatprep.subr.bf16.mxu0 0
      %972 = vmatpush1.bf16.xpose.msra.mxu0 %v969
      %973 = vmatprep.subr.bf16.mxu0 0
      %974 = vmatpush1.bf16.xpose.msra.mxu0 0
      %975 = vmatprep.subr.bf16.mxu0 0
      %976 = vmatpush1.bf16.xpose.msra.mxu0 0
      %977 = vmatprep.subr.bf16.mxu0 0
      %978 = vmatpush1.bf16.xpose.msra.mxu0 0
      %979 = vmatprep.subr.bf16.mxu0 0
      %980 = vmatpush1.bf16.xpose.msra.mxu0 0
      %981 = vmatprep.subr.bf16.mxu0 0
      %982 = vmatpush1.bf16.xpose.msra.mxu0 0
      %983 = vmatprep.subr.bf16.mxu0 0
      %984 = vmatpush1.bf16.xpose.msra.mxu0 0
      %985 = vmatprep.subr.bf16.mxu0 0
      %986 = vmatpush1.bf16.xpose.msra.mxu0 0
      %987 = vmatprep.subr.bf16.mxu0 0
      %988 = vmatpush1.bf16.xpose.msra.mxu0 0
      %989 = vmatprep.subr.bf16.mxu0 0
      %990 = vmatpush1.bf16.xpose.msra.mxu0 0
      %991 = vmatprep.subr.bf16.mxu0 0
      %992 = vmatpush1.bf16.xpose.msra.mxu0 0
      %993 = vmatprep.subr.bf16.mxu0 0
      %994 = vmatpush1.bf16.xpose.msra.mxu0 0
      %995 = vmatprep.subr.bf16.mxu0 0
      %996 = vmatpush1.bf16.xpose.msra.mxu0 0
      %997 = vmatprep.subr.bf16.mxu0 0
      %998 = vmatpush1.bf16.xpose.msra.mxu0 0
      %999 = vmatprep.subr.bf16.mxu0 0
      %1000 = vmatpush1.bf16.xpose.msra.mxu0 0
      %1001 = vmatprep.subr.bf16.mxu0 0
      %1002 = vmatpush1.bf16.xpose.msra.mxu0 0
      %1003 = vmatprep.mubr.bf16.mxu0 0
      %1004 = vmatmul.mubr.bf16.gmra.mrb[0].mxu0 %v966
      %v1005 = vpop.f32.mrb[0].mxu0
      %v1006 = vadd.f32 0.0, %v1005
      %v1007 = vpop.f32.mrb[0].mxu0
      %v1008 = vpop.f32.mrb[0].mxu0
      %v1009 = vpop.f32.mrb[0].mxu0
      %1010 = vdwg.mxu0
      %v1012 = vsel %vm320, %v303, 0
      %v1015 = vsel %vm320, %v319, 0
      %1017 = vmatprep.subr.bf16.mxu0 0
      %1018 = vmatpush1.bf16.xpose.msra.mxu0 %v1015
      %1019 = vmatprep.subr.bf16.mxu0 0
      %1020 = vmatpush1.bf16.xpose.msra.mxu0 0
      %1021 = vmatprep.subr.bf16.mxu0 0
      %1022 = vmatpush1.bf16.xpose.msra.mxu0 0
      %1023 = vmatprep.subr.bf16.mxu0 0
      %1024 = vmatpush1.bf16.xpose.msra.mxu0 0
      %1025 = vmatprep.subr.bf16.mxu0 0
      %1026 = vmatpush1.bf16.xpose.msra.mxu0 0
      %1027 = vmatprep.subr.bf16.mxu0 0
      %1028 = vmatpush1.bf16.xpose.msra.mxu0 0
      %1029 = vmatprep.subr.bf16.mxu0 0
      %1030 = vmatpush1.bf16.xpose.msra.mxu0 0
      %1031 = vmatprep.subr.bf16.mxu0 0
      %1032 = vmatpush1.bf16.xpose.msra.mxu0 0
      %1033 = vmatprep.subr.bf16.mxu0 0
      %1034 = vmatpush1.bf16.xpose.msra.mxu0 0
      %1035 = vmatprep.subr.bf16.mxu0 0
      %1036 = vmatpush1.bf16.xpose.msra.mxu0 0
      %1037 = vmatprep.subr.bf16.mxu0 0
      %1038 = vmatpush1.bf16.xpose.msra.mxu0 0
      %1039 = vmatprep.subr.bf16.mxu0 0
      %1040 = vmatpush1.bf16.xpose.msra.mxu0 0
      %1041 = vmatprep.subr.bf16.mxu0 0
      %1042 = vmatpush1.bf16.xpose.msra.mxu0 0
      %1043 = vmatprep.subr.bf16.mxu0 0
      %1044 = vmatpush1.bf16.xpose.msra.mxu0 0
      %1045 = vmatprep.subr.bf16.mxu0 0
      %1046 = vmatpush1.bf16.xpose.msra.mxu0 0
      %1047 = vmatprep.subr.bf16.mxu0 0
      %1048 = vmatpush1.bf16.xpose.msra.mxu0 0
      %1049 = vmatprep.mubr.bf16.mxu0 0
      %1050 = vmatmul.mubr.bf16.gmra.mrb[0].mxu0 %v1012
      %v1051 = vpop.f32.mrb[0].mxu0
      %v1052 = vadd.f32 0.0, %v1051
      %v1053 = vpop.f32.mrb[0].mxu0
      %v1054 = vpop.f32.mrb[0].mxu0
      %v1055 = vpop.f32.mrb[0].mxu0
      %1056 = vdwg.mxu0
      %v1057 = vadd.f32 %v272, %v362
      %v1058 = vadd.f32 %v273, %v408
      %v1059 = vadd.f32 %v274, %v454
      %v1060 = vadd.f32 %v275, %v500
      %v1061 = vadd.f32 %v276, %v546
      %v1062 = vadd.f32 %v277, %v592
      %v1063 = vadd.f32 %v278, %v638
      %v1064 = vadd.f32 %v279, %v684
      %v1065 = vadd.f32 %v280, %v730
      %v1066 = vadd.f32 %v281, %v776
      %v1067 = vadd.f32 %v282, %v822
      %v1068 = vadd.f32 %v283, %v868
      %v1069 = vadd.f32 %v284, %v914
      %v1070 = vadd.f32 %v285, %v960
      %v1071 = vadd.f32 %v286, %v1006
      %v1072 = vadd.f32 %v287, %v1052
      %1073 = vst.msk [vmem:[#allocation2] sm:$0xff] %vm320, %v1057
      %1074 = vst.msk [vmem:[#allocation2 + $0x8] sm:$0xff] %vm320, %v1058
      %1075 = vst.msk [vmem:[#allocation2 + $0x10] sm:$0xff] %vm320, %v1059
      %1076 = vst.msk [vmem:[#allocation2 + $0x18] sm:$0xff] %vm320, %v1060
      %1077 = vst.msk [vmem:[#allocation2 + $0x20] sm:$0xff] %vm320, %v1061
      %1078 = vst.msk [vmem:[#allocation2 + $0x28] sm:$0xff] %vm320, %v1062
      %1079 = vst.msk [vmem:[#allocation2 + $0x30] sm:$0xff] %vm320, %v1063
      %1080 = vst.msk [vmem:[#allocation2 + $0x38] sm:$0xff] %vm320, %v1064
      %1081 = vst.msk [vmem:[#allocation2 + $0x40] sm:$0xff] %vm320, %v1065
      %1082 = vst.msk [vmem:[#allocation2 + $0x48] sm:$0xff] %vm320, %v1066
      %1083 = vst.msk [vmem:[#allocation2 + $0x50] sm:$0xff] %vm320, %v1067
      %1084 = vst.msk [vmem:[#allocation2 + $0x58] sm:$0xff] %vm320, %v1068
      %1085 = vst.msk [vmem:[#allocation2 + $0x60] sm:$0xff] %vm320, %v1069
      %1086 = vst.msk [vmem:[#allocation2 + $0x68] sm:$0xff] %vm320, %v1070
      %1087 = vst.msk [vmem:[#allocation2 + $0x70] sm:$0xff] %vm320, %v1071
      %1088 = vst.msk [vmem:[#allocation2 + $0x78] sm:$0xff] %vm320, %v1072
      // Predicated region
      $region33: #{_lambda_.31} parent=27 // pred_check
        %p1089 = pneg %p251
      $region34: #{_lambda_.31} parent=27 // pred_check_branch
        %1091 = sbr.rel (%p1089) target = $region36
      $region35: #{_lambda_.31} parent=27 // pred_region
        %v1092 = vld [vmem:[#allocation2] sm:$0xff]
        %v1093 = vld [vmem:[#allocation2 + $0x8] sm:$0xff]
        %v1094 = vld [vmem:[#allocation2 + $0x10] sm:$0xff]
        %v1095 = vld [vmem:[#allocation2 + $0x18] sm:$0xff]
        %v1096 = vld [vmem:[#allocation2 + $0x20] sm:$0xff]
        %v1097 = vld [vmem:[#allocation2 + $0x28] sm:$0xff]
        %v1098 = vld [vmem:[#allocation2 + $0x30] sm:$0xff]
        %v1099 = vld [vmem:[#allocation2 + $0x38] sm:$0xff]
        %v1100 = vld [vmem:[#allocation2 + $0x40] sm:$0xff]
        %v1101 = vld [vmem:[#allocation2 + $0x48] sm:$0xff]
        %v1102 = vld [vmem:[#allocation2 + $0x50] sm:$0xff]
        %v1103 = vld [vmem:[#allocation2 + $0x58] sm:$0xff]
        %v1104 = vld [vmem:[#allocation2 + $0x60] sm:$0xff]
        %v1105 = vld [vmem:[#allocation2 + $0x68] sm:$0xff]
        %v1106 = vld [vmem:[#allocation2 + $0x70] sm:$0xff]
        %v1107 = vld [vmem:[#allocation2 + $0x78] sm:$0xff]
        %v1108 = vpack.c.bf16 %v1092, %v1092
        %v1109 = vpack.c.bf16 %v1093, %v1093
        %v1110 = vpack.c.bf16 %v1094, %v1094
        %v1111 = vpack.c.bf16 %v1095, %v1095
        %v1112 = vpack.c.bf16 %v1096, %v1096
        %v1113 = vpack.c.bf16 %v1097, %v1097
        %v1114 = vpack.c.bf16 %v1098, %v1098
        %v1115 = vpack.c.bf16 %v1099, %v1099
        %v1116 = vpack.c.bf16 %v1100, %v1100
        %v1117 = vpack.c.bf16 %v1101, %v1101
        %v1118 = vpack.c.bf16 %v1102, %v1102
        %v1119 = vpack.c.bf16 %v1103, %v1103
        %v1120 = vpack.c.bf16 %v1104, %v1104
        %v1121 = vpack.c.bf16 %v1105, %v1105
        %v1122 = vpack.c.bf16 %v1106, %v1106
        %v1123 = vpack.c.bf16 %v1107, %v1107
        %vm1124 = vcmask 60416
        %1125 = vst.msk [vmem:[%s249] sm:$0xf] %vm1124, %v1108
        %1126 = vst.msk [vmem:[%s249 + $0x4] sm:$0xf] %vm1124, %v1109
        %1127 = vst.msk [vmem:[%s249 + $0x8] sm:$0xf] %vm1124, %v1110
        %1128 = vst.msk [vmem:[%s249 + $0xc] sm:$0xf] %vm1124, %v1111
        %1129 = vst.msk [vmem:[%s249 + $0x10] sm:$0xf] %vm1124, %v1112
        %1130 = vst.msk [vmem:[%s249 + $0x14] sm:$0xf] %vm1124, %v1113
        %1131 = vst.msk [vmem:[%s249 + $0x18] sm:$0xf] %vm1124, %v1114
        %1132 = vst.msk [vmem:[%s249 + $0x1c] sm:$0xf] %vm1124, %v1115
        %1133 = vst.msk [vmem:[%s249 + $0x20] sm:$0xf] %vm1124, %v1116
        %1134 = vst.msk [vmem:[%s249 + $0x24] sm:$0xf] %vm1124, %v1117
        %1135 = vst.msk [vmem:[%s249 + $0x28] sm:$0xf] %vm1124, %v1118
        %1136 = vst.msk [vmem:[%s249 + $0x2c] sm:$0xf] %vm1124, %v1119
        %1137 = vst.msk [vmem:[%s249 + $0x30] sm:$0xf] %vm1124, %v1120
        %1138 = vst.msk [vmem:[%s249 + $0x34] sm:$0xf] %vm1124, %v1121
        %1139 = vst.msk [vmem:[%s249 + $0x38] sm:$0xf] %vm1124, %v1122
        %1140 = vst.msk [vmem:[%s249 + $0x3c] sm:$0xf] %vm1124, %v1123
      $region36: #{_lambda_.31} parent=27 // pred_fallthru
        _
      %p1141 = scmp.lt.s32.totalorder %s19, 1
      %s1142 = scalar_select %p1141, %s19, 1
      %p1143 = scmp.lt.s32.totalorder %s20, 0
      %s1144 = scalar_select %p1143, %s20, 0
      %p1145 = scmp.lt.s32.totalorder %s21, 0
      %s1146 = scalar_select %p1145, %s21, 0
      %s1147 = sadd.s32 %s1146, %s1144
      %s1148 = smul.addr %s1142, 16
      %s1149 = sadd.s32 %s1147, %s1148
      %s1150 = smul.addr %s1149, 4
      %s1151 = scalar_lea.vmem %s2, %s1150
      // Predicated region
      $region37: #{_lambda_.31} parent=27 // pred_check
        %p1152 = pneg %p121
      $region38: #{_lambda_.31} parent=27 // pred_check_branch
        %1154 = sbr.rel (%p1152) target = $region40
      $region39: #{_lambda_.31} parent=27 // pred_region
        _
      $region40: #{_lambda_.31} parent=27 // pred_fallthru
        _
    $region28: #{_lambda_.31} parent=5 // pred_fallthru
      _
    %p1155 = scmp.le.s32.totalorder 2, %s8
    // Predicated region
    $region41: #{_lambda_.31} parent=5 // pred_check
      %p1156 = pneg %p1155
    $region42: #{_lambda_.31} parent=5 // pred_check_branch
      %1158 = sbr.rel (%p1156) target = $region44
    $region43: #{_lambda_.31} parent=5 // pred_region
      %s1159 = ssub.s32 %s8, 2
      // Predicated region
      $region45: #{_lambda_.31} parent=43 // pred_check
        %p1160 = pneg %p127
      $region46: #{_lambda_.31} parent=43 // pred_check_branch
        %1162 = sbr.rel (%p1160) target = $region48
      $region47: #{_lambda_.31} parent=43 // pred_region
        %p1163 = scmp.lt.s32.totalorder %s23, 1
        %s1164 = scalar_select %p1163, %s23, 1
        %p1165 = scmp.lt.s32.totalorder %s24, 0
        %s1166 = scalar_select %p1165, %s24, 0
        %p1167 = scmp.lt.s32.totalorder %s25, 0
        %s1168 = scalar_select %p1167, %s25, 0
        %s1169 = sadd.s32 %s1168, %s1166
        %s1170 = smul.addr %s1164, 16
        %s1171 = sadd.s32 %s1169, %s1170
        %s1172 = smul.addr %s1171, 4
        %s1173 = scalar_lea.vmem %s2, %s1172
      $region48: #{_lambda_.31} parent=43 // pred_fallthru
        _
    $region44: #{_lambda_.31} parent=5 // pred_fallthru
      _
  $region6: #{_lambda_.31} parent=0 // loop_footer
    %s12 = sadd.s32 1, %s8
  $region7: #{_lambda_.31} parent=0 // loop_footer_branch
    %7 = sbr.rel target = $region3
  $region8: #{_lambda_.31} parent=0 // loop_exit
    _

// kernel: _lambda_.32
$region0: #{_lambda_.32}
  #allocation0 [shape = 'u32[]', space=smem, size = 0x4, offset = 0x4, fixed_abs, tag = 'smem constant byte address 0x4 - core index']
  #allocation1 [shape = 'u32[144,128]{1,0:T(1,128)}', space=vmem, size = 0x12000, scoped, tag = 'internal scratch']
  %s0 = inlined_call_operand.vmem [shape: bf16[128,16], index: 0, kind: input, shape index: {}]
  %s1 = inlined_call_operand.vmem [shape: bf16[128,32], index: 1, kind: input, shape index: {}]
  %s2 = inlined_call_operand.vmem [shape: f32[1,16], index: 2, kind: input, shape index: {}]
  %s3 = inlined_call_operand.vmem [shape: f32[1,16], index: 3, kind: input, shape index: {}]
  %s4 = inlined_call_operand.vmem [shape: bf16[16,32], index: 4, kind: input, shape index: {}]
  %s5 = inlined_call_operand.vmem [shape: f32[1,32], index: 5, kind: input, shape index: {}]
  %s6 = inlined_call_operand.vmem [shape: f32[128,32], index: 6, kind: output, shape index: {}]
  %s7 = sld [smem:[#allocation0]]
  $region34: #{_lambda_.32} parent=0
    _
  %s9 = ssub.s32 1, %s7
  %s10 = scalar_select 0, %s9, %s7
  // Predicated region
  $region2: #{_lambda_.32} parent=0 // pred_check
    _
  $region3: #{_lambda_.32} parent=0 // pred_check_branch
    %12 = sbr.rel (0) target = $region5
  $region4: #{_lambda_.32} parent=0 // pred_region
    _
  $region5: #{_lambda_.32} parent=0 // pred_fallthru
    _
  // Predicated region
  $region6: #{_lambda_.32} parent=0 // pred_check
    _
  $region7: #{_lambda_.32} parent=0 // pred_check_branch
    %14 = sbr.rel (0) target = $region9
  $region8: #{_lambda_.32} parent=0 // pred_region
    _
  $region9: #{_lambda_.32} parent=0 // pred_fallthru
    _
  // Predicated region
  $region10: #{_lambda_.32} parent=0 // pred_check
    _
  $region11: #{_lambda_.32} parent=0 // pred_check_branch
    %16 = sbr.rel (0) target = $region13
  $region12: #{_lambda_.32} parent=0 // pred_region
    _
  $region13: #{_lambda_.32} parent=0 // pred_fallthru
    _
  // Predicated region
  $region14: #{_lambda_.32} parent=0 // pred_check
    _
  $region15: #{_lambda_.32} parent=0 // pred_check_branch
    %18 = sbr.rel (0) target = $region17
  $region16: #{_lambda_.32} parent=0 // pred_region
    _
  $region17: #{_lambda_.32} parent=0 // pred_fallthru
    _
  // Predicated region
  $region18: #{_lambda_.32} parent=0 // pred_check
    _
  $region19: #{_lambda_.32} parent=0 // pred_check_branch
    %20 = sbr.rel (0) target = $region21
  $region20: #{_lambda_.32} parent=0 // pred_region
    _
  $region21: #{_lambda_.32} parent=0 // pred_fallthru
    _
  // Predicated region
  $region22: #{_lambda_.32} parent=0 // pred_check
    _
  $region23: #{_lambda_.32} parent=0 // pred_check_branch
    %22 = sbr.rel (0) target = $region25
  $region24: #{_lambda_.32} parent=0 // pred_region
    _
  $region25: #{_lambda_.32} parent=0 // pred_fallthru
    _
  %v24 = vld [vmem:[%s0] sm:$0xf]
  %v25 = vld [vmem:[%s0 + $0x4] sm:$0xf]
  %v26 = vld [vmem:[%s0 + $0x8] sm:$0xf]
  %v27 = vld [vmem:[%s0 + $0xc] sm:$0xf]
  %v28 = vld [vmem:[%s0 + $0x10] sm:$0xf]
  %v29 = vld [vmem:[%s0 + $0x14] sm:$0xf]
  %v30 = vld [vmem:[%s0 + $0x18] sm:$0xf]
  %v31 = vld [vmem:[%s0 + $0x1c] sm:$0xf]
  %v32 = vld [vmem:[%s0 + $0x20] sm:$0xf]
  %v33 = vld [vmem:[%s0 + $0x24] sm:$0xf]
  %v34 = vld [vmem:[%s0 + $0x28] sm:$0xf]
  %v35 = vld [vmem:[%s0 + $0x2c] sm:$0xf]
  %v36 = vld [vmem:[%s0 + $0x30] sm:$0xf]
  %v37 = vld [vmem:[%s0 + $0x34] sm:$0xf]
  %v38 = vld [vmem:[%s0 + $0x38] sm:$0xf]
  %v39 = vld [vmem:[%s0 + $0x3c] sm:$0xf]
  %v40 = vunpack.c.l.bf16 %v24
  %v41 = vunpack.c.l.bf16 %v25
  %v42 = vunpack.c.l.bf16 %v26
  %v43 = vunpack.c.l.bf16 %v27
  %v44 = vunpack.c.l.bf16 %v28
  %v45 = vunpack.c.l.bf16 %v29
  %v46 = vunpack.c.l.bf16 %v30
  %v47 = vunpack.c.l.bf16 %v31
  %v48 = vunpack.c.l.bf16 %v32
  %v49 = vunpack.c.l.bf16 %v33
  %v50 = vunpack.c.l.bf16 %v34
  %v51 = vunpack.c.l.bf16 %v35
  %v52 = vunpack.c.l.bf16 %v36
  %v53 = vunpack.c.l.bf16 %v37
  %v54 = vunpack.c.l.bf16 %v38
  %v55 = vunpack.c.l.bf16 %v39
  %v56 = vld [vmem:[%s2] sm:$0x1]
  %v57 = vld [vmem:[%s3] sm:$0x1]
  %vm58 = vcmask 130048
  %v59 = vsel %vm58, %v40, 0.0
  %60 = vadd.xlane.f32.xlu0 %v59
  %v61 = vpop.xlane.xlu0 %60
  %v62 = vsel %vm58, %v41, 0.0
  %63 = vadd.xlane.f32.xlu0 %v62
  %v64 = vpop.xlane.xlu0 %63
  %v65 = vsel %vm58, %v42, 0.0
  %66 = vadd.xlane.f32.xlu0 %v65
  %v67 = vpop.xlane.xlu0 %66
  %v68 = vsel %vm58, %v43, 0.0
  %69 = vadd.xlane.f32.xlu0 %v68
  %v70 = vpop.xlane.xlu0 %69
  %v71 = vsel %vm58, %v44, 0.0
  %72 = vadd.xlane.f32.xlu0 %v71
  %v73 = vpop.xlane.xlu0 %72
  %v74 = vsel %vm58, %v45, 0.0
  %75 = vadd.xlane.f32.xlu0 %v74
  %v76 = vpop.xlane.xlu0 %75
  %v77 = vsel %vm58, %v46, 0.0
  %78 = vadd.xlane.f32.xlu0 %v77
  %v79 = vpop.xlane.xlu0 %78
  %v80 = vsel %vm58, %v47, 0.0
  %81 = vadd.xlane.f32.xlu0 %v80
  %v82 = vpop.xlane.xlu0 %81
  %v83 = vsel %vm58, %v48, 0.0
  %84 = vadd.xlane.f32.xlu0 %v83
  %v85 = vpop.xlane.xlu0 %84
  %v86 = vsel %vm58, %v49, 0.0
  %87 = vadd.xlane.f32.xlu0 %v86
  %v88 = vpop.xlane.xlu0 %87
  %v89 = vsel %vm58, %v50, 0.0
  %90 = vadd.xlane.f32.xlu0 %v89
  %v91 = vpop.xlane.xlu0 %90
  %v92 = vsel %vm58, %v51, 0.0
  %93 = vadd.xlane.f32.xlu0 %v92
  %v94 = vpop.xlane.xlu0 %93
  %v95 = vsel %vm58, %v52, 0.0
  %96 = vadd.xlane.f32.xlu0 %v95
  %v97 = vpop.xlane.xlu0 %96
  %v98 = vsel %vm58, %v53, 0.0
  %99 = vadd.xlane.f32.xlu0 %v98
  %v100 = vpop.xlane.xlu0 %99
  %v101 = vsel %vm58, %v54, 0.0
  %102 = vadd.xlane.f32.xlu0 %v101
  %v103 = vpop.xlane.xlu0 %102
  %v104 = vsel %vm58, %v55, 0.0
  %105 = vadd.xlane.f32.xlu0 %v104
  %v106 = vpop.xlane.xlu0 %105
  %v107 = vrcp.pop 16.0
  %v108 = vmul.f32 %v61, %v107
  %v109 = vmul.f32 %v64, %v107
  %v110 = vmul.f32 %v67, %v107
  %v111 = vmul.f32 %v70, %v107
  %v112 = vmul.f32 %v73, %v107
  %v113 = vmul.f32 %v76, %v107
  %v114 = vmul.f32 %v79, %v107
  %v115 = vmul.f32 %v82, %v107
  %v116 = vmul.f32 %v85, %v107
  %v117 = vmul.f32 %v88, %v107
  %v118 = vmul.f32 %v91, %v107
  %v119 = vmul.f32 %v94, %v107
  %v120 = vmul.f32 %v97, %v107
  %v121 = vmul.f32 %v100, %v107
  %v122 = vmul.f32 %v103, %v107
  %v123 = vmul.f32 %v106, %v107
  %v124 = vsub.f32 %v40, %v108
  %v125 = vsub.f32 %v41, %v109
  %v126 = vsub.f32 %v42, %v110
  %v127 = vsub.f32 %v43, %v111
  %v128 = vsub.f32 %v44, %v112
  %v129 = vsub.f32 %v45, %v113
  %v130 = vsub.f32 %v46, %v114
  %v131 = vsub.f32 %v47, %v115
  %v132 = vsub.f32 %v48, %v116
  %v133 = vsub.f32 %v49, %v117
  %v134 = vsub.f32 %v50, %v118
  %v135 = vsub.f32 %v51, %v119
  %v136 = vsub.f32 %v52, %v120
  %v137 = vsub.f32 %v53, %v121
  %v138 = vsub.f32 %v54, %v122
  %v139 = vsub.f32 %v55, %v123
  %v140 = vmul.f32 %v124, %v124
  %v141 = vmul.f32 %v125, %v125
  %v142 = vmul.f32 %v126, %v126
  %v143 = vmul.f32 %v127, %v127
  %v144 = vmul.f32 %v128, %v128
  %v145 = vmul.f32 %v129, %v129
  %v146 = vmul.f32 %v130, %v130
  %v147 = vmul.f32 %v131, %v131
  %v148 = vmul.f32 %v132, %v132
  %v149 = vmul.f32 %v133, %v133
  %v150 = vmul.f32 %v134, %v134
  %v151 = vmul.f32 %v135, %v135
  %v152 = vmul.f32 %v136, %v136
  %v153 = vmul.f32 %v137, %v137
  %v154 = vmul.f32 %v138, %v138
  %v155 = vmul.f32 %v139, %v139
  %v156 = vsel %vm58, %v140, 0.0
  %157 = vadd.xlane.f32.xlu0 %v156
  %v158 = vpop.xlane.xlu0 %157
  %v159 = vsel %vm58, %v141, 0.0
  %160 = vadd.xlane.f32.xlu0 %v159
  %v161 = vpop.xlane.xlu0 %160
  %v162 = vsel %vm58, %v142, 0.0
  %163 = vadd.xlane.f32.xlu0 %v162
  %v164 = vpop.xlane.xlu0 %163
  %v165 = vsel %vm58, %v143, 0.0
  %166 = vadd.xlane.f32.xlu0 %v165
  %v167 = vpop.xlane.xlu0 %166
  %v168 = vsel %vm58, %v144, 0.0
  %169 = vadd.xlane.f32.xlu0 %v168
  %v170 = vpop.xlane.xlu0 %169
  %v171 = vsel %vm58, %v145, 0.0
  %172 = vadd.xlane.f32.xlu0 %v171
  %v173 = vpop.xlane.xlu0 %172
  %v174 = vsel %vm58, %v146, 0.0
  %175 = vadd.xlane.f32.xlu0 %v174
  %v176 = vpop.xlane.xlu0 %175
  %v177 = vsel %vm58, %v147, 0.0
  %178 = vadd.xlane.f32.xlu0 %v177
  %v179 = vpop.xlane.xlu0 %178
  %v180 = vsel %vm58, %v148, 0.0
  %181 = vadd.xlane.f32.xlu0 %v180
  %v182 = vpop.xlane.xlu0 %181
  %v183 = vsel %vm58, %v149, 0.0
  %184 = vadd.xlane.f32.xlu0 %v183
  %v185 = vpop.xlane.xlu0 %184
  %v186 = vsel %vm58, %v150, 0.0
  %187 = vadd.xlane.f32.xlu0 %v186
  %v188 = vpop.xlane.xlu0 %187
  %v189 = vsel %vm58, %v151, 0.0
  %190 = vadd.xlane.f32.xlu0 %v189
  %v191 = vpop.xlane.xlu0 %190
  %v192 = vsel %vm58, %v152, 0.0
  %193 = vadd.xlane.f32.xlu0 %v192
  %v194 = vpop.xlane.xlu0 %193
  %v195 = vsel %vm58, %v153, 0.0
  %196 = vadd.xlane.f32.xlu0 %v195
  %v197 = vpop.xlane.xlu0 %196
  %v198 = vsel %vm58, %v154, 0.0
  %199 = vadd.xlane.f32.xlu0 %v198
  %v200 = vpop.xlane.xlu0 %199
  %v201 = vsel %vm58, %v155, 0.0
  %202 = vadd.xlane.f32.xlu0 %v201
  %v203 = vpop.xlane.xlu0 %202
  %v204 = vmul.f32 %v158, %v107
  %v205 = vmul.f32 %v161, %v107
  %v206 = vmul.f32 %v164, %v107
  %v207 = vmul.f32 %v167, %v107
  %v208 = vmul.f32 %v170, %v107
  %v209 = vmul.f32 %v173, %v107
  %v210 = vmul.f32 %v176, %v107
  %v211 = vmul.f32 %v179, %v107
  %v212 = vmul.f32 %v182, %v107
  %v213 = vmul.f32 %v185, %v107
  %v214 = vmul.f32 %v188, %v107
  %v215 = vmul.f32 %v191, %v107
  %v216 = vmul.f32 %v194, %v107
  %v217 = vmul.f32 %v197, %v107
  %v218 = vmul.f32 %v200, %v107
  %v219 = vmul.f32 %v203, %v107
  %v220 = vadd.f32 %v204, 1e-05
  %v221 = vadd.f32 %v205, 1e-05
  %v222 = vadd.f32 %v206, 1e-05
  %v223 = vadd.f32 %v207, 1e-05
  %v224 = vadd.f32 %v208, 1e-05
  %v225 = vadd.f32 %v209, 1e-05
  %v226 = vadd.f32 %v210, 1e-05
  %v227 = vadd.f32 %v211, 1e-05
  %v228 = vadd.f32 %v212, 1e-05
  %v229 = vadd.f32 %v213, 1e-05
  %v230 = vadd.f32 %v214, 1e-05
  %v231 = vadd.f32 %v215, 1e-05
  %v232 = vadd.f32 %v216, 1e-05
  %v233 = vadd.f32 %v217, 1e-05
  %v234 = vadd.f32 %v218, 1e-05
  %v235 = vadd.f32 %v219, 1e-05
  %v236 = vrsqrt.pop %v220
  %v237 = vrsqrt.pop %v221
  %v238 = vrsqrt.pop %v222
  %v239 = vrsqrt.pop %v223
  %v240 = vrsqrt.pop %v224
  %v241 = vrsqrt.pop %v225
  %v242 = vrsqrt.pop %v226
  %v243 = vrsqrt.pop %v227
  %v244 = vrsqrt.pop %v228
  %v245 = vrsqrt.pop %v229
  %v246 = vrsqrt.pop %v230
  %v247 = vrsqrt.pop %v231
  %v248 = vrsqrt.pop %v232
  %v249 = vrsqrt.pop %v233
  %v250 = vrsqrt.pop %v234
  %v251 = vrsqrt.pop %v235
  %v252 = vmul.f32 %v124, %v236
  %v253 = vmul.f32 %v125, %v237
  %v254 = vmul.f32 %v126, %v238
  %v255 = vmul.f32 %v127, %v239
  %v256 = vmul.f32 %v128, %v240
  %v257 = vmul.f32 %v129, %v241
  %v258 = vmul.f32 %v130, %v242
  %v259 = vmul.f32 %v131, %v243
  %v260 = vmul.f32 %v132, %v244
  %v261 = vmul.f32 %v133, %v245
  %v262 = vmul.f32 %v134, %v246
  %v263 = vmul.f32 %v135, %v247
  %v264 = vmul.f32 %v136, %v248
  %v265 = vmul.f32 %v137, %v249
  %v266 = vmul.f32 %v138, %v250
  %v267 = vmul.f32 %v139, %v251
  %v269 = vlaneseq
  %v270 = vshrl.u32 %v269, 7
  %v271 = vsub.s32 0, %v270
  %v272 = vrot.slane %v56, %v271
  %v274 = vmul.f32 %v252, %v272
  %v275 = vmul.f32 %v253, %v272
  %v276 = vmul.f32 %v254, %v272
  %v277 = vmul.f32 %v255, %v272
  %v278 = vmul.f32 %v256, %v272
  %v279 = vmul.f32 %v257, %v272
  %v280 = vmul.f32 %v258, %v272
  %v281 = vmul.f32 %v259, %v272
  %v282 = vmul.f32 %v260, %v272
  %v283 = vmul.f32 %v261, %v272
  %v284 = vmul.f32 %v262, %v272
  %v285 = vmul.f32 %v263, %v272
  %v286 = vmul.f32 %v264, %v272
  %v287 = vmul.f32 %v265, %v272
  %v288 = vmul.f32 %v266, %v272
  %v289 = vmul.f32 %v267, %v272
  %v291 = vlaneseq
  %v292 = vshrl.u32 %v291, 7
  %v293 = vsub.s32 0, %v292
  %v294 = vrot.slane %v57, %v293
  %v296 = vadd.f32 %v274, %v294
  %v297 = vadd.f32 %v275, %v294
  %v298 = vadd.f32 %v276, %v294
  %v299 = vadd.f32 %v277, %v294
  %v300 = vadd.f32 %v278, %v294
  %v301 = vadd.f32 %v279, %v294
  %v302 = vadd.f32 %v280, %v294
  %v303 = vadd.f32 %v281, %v294
  %v304 = vadd.f32 %v282, %v294
  %v305 = vadd.f32 %v283, %v294
  %v306 = vadd.f32 %v284, %v294
  %v307 = vadd.f32 %v285, %v294
  %v308 = vadd.f32 %v286, %v294
  %v309 = vadd.f32 %v287, %v294
  %v310 = vadd.f32 %v288, %v294
  %v311 = vadd.f32 %v289, %v294
  %v312 = vpack.c.bf16 %v297, %v296
  %v313 = vpack.c.bf16 %v299, %v298
  %v314 = vpack.c.bf16 %v301, %v300
  %v315 = vpack.c.bf16 %v303, %v302
  %v316 = vpack.c.bf16 %v305, %v304
  %v317 = vpack.c.bf16 %v307, %v306
  %v318 = vpack.c.bf16 %v309, %v308
  %v319 = vpack.c.bf16 %v311, %v310
  %v320 = vld [vmem:[%s4] sm:$0xf]
  %v321 = vld [vmem:[%s4 + $0x4] sm:$0xf]
  %v322 = vld [vmem:[%s5] sm:$0x1]
  %v324 = vlaneseq
  %v325 = vshrl.u32 %v324, 7
  %v326 = vsub.s32 0, %v325
  %v327 = vrot.slane %v322, %v326
  %v331 = vunpack.c.l.b16 %v320
  %v332 = vunpack.c.l.b16 %v321
  %v333 = vpack.c.b16 %v332, %v331
  %v336 = vsel %vm58, %v312, 0
  %v339 = vsel %vm58, %v313, 0
  %v342 = vsel %vm58, %v314, 0
  %v345 = vsel %vm58, %v315, 0
  %v348 = vsel %vm58, %v316, 0
  %v351 = vsel %vm58, %v317, 0
  %v354 = vsel %vm58, %v318, 0
  %v357 = vsel %vm58, %v319, 0
  %359 = vmatprep.subr.bf16.mxu0 0
  %360 = vmatpush1.bf16.msra.mxu0 %v333
  %361 = vmatprep.subr.bf16.mxu0 0
  %362 = vmatpush1.bf16.msra.mxu0 0
  %363 = vmatprep.subr.bf16.mxu0 0
  %364 = vmatpush1.bf16.msra.mxu0 0
  %365 = vmatprep.subr.bf16.mxu0 0
  %366 = vmatpush1.bf16.msra.mxu0 0
  %367 = vmatprep.subr.bf16.mxu0 0
  %368 = vmatpush1.bf16.msra.mxu0 0
  %369 = vmatprep.subr.bf16.mxu0 0
  %370 = vmatpush1.bf16.msra.mxu0 0
  %371 = vmatprep.subr.bf16.mxu0 0
  %372 = vmatpush1.bf16.msra.mxu0 0
  %373 = vmatprep.subr.bf16.mxu0 0
  %374 = vmatpush1.bf16.msra.mxu0 0
  %375 = vmatprep.subr.bf16.mxu0 0
  %376 = vmatpush1.bf16.msra.mxu0 0
  %377 = vmatprep.subr.bf16.mxu0 0
  %378 = vmatpush1.bf16.msra.mxu0 0
  %379 = vmatprep.subr.bf16.mxu0 0
  %380 = vmatpush1.bf16.msra.mxu0 0
  %381 = vmatprep.subr.bf16.mxu0 0
  %382 = vmatpush1.bf16.msra.mxu0 0
  %383 = vmatprep.subr.bf16.mxu0 0
  %384 = vmatpush1.bf16.msra.mxu0 0
  %385 = vmatprep.subr.bf16.mxu0 0
  %386 = vmatpush1.bf16.msra.mxu0 0
  %387 = vmatprep.subr.bf16.mxu0 0
  %388 = vmatpush1.bf16.msra.mxu0 0
  %389 = vmatprep.subr.bf16.mxu0 0
  %390 = vmatpush1.bf16.msra.mxu0 0
  %391 = vmatprep.mubr.bf16.mxu0 0
  %392 = vmatmul.mubr.bf16.gmra.mrb[0].mxu0 %v336
  %v393 = vpop.f32.mrb[0].mxu0
  %v394 = vadd.f32 %v327, %v393
  %v395 = vpop.f32.mrb[0].mxu0
  %v396 = vpop.f32.mrb[0].mxu0
  %v397 = vadd.f32 %v327, %v396
  %v398 = vpop.f32.mrb[0].mxu0
  %399 = vmatprep.mubr.bf16.mxu0 0
  %400 = vmatmul.mubr.bf16.gmra.mrb[0].mxu0 %v339
  %v401 = vpop.f32.mrb[0].mxu0
  %v402 = vadd.f32 %v327, %v401
  %v403 = vpop.f32.mrb[0].mxu0
  %v404 = vpop.f32.mrb[0].mxu0
  %v405 = vadd.f32 %v327, %v404
  %v406 = vpop.f32.mrb[0].mxu0
  %407 = vmatprep.mubr.bf16.mxu0 0
  %408 = vmatmul.mubr.bf16.gmra.mrb[0].mxu0 %v342
  %v409 = vpop.f32.mrb[0].mxu0
  %v410 = vadd.f32 %v327, %v409
  %v411 = vpop.f32.mrb[0].mxu0
  %v412 = vpop.f32.mrb[0].mxu0
  %v413 = vadd.f32 %v327, %v412
  %v414 = vpop.f32.mrb[0].mxu0
  %415 = vmatprep.mubr.bf16.mxu0 0
  %416 = vmatmul.mubr.bf16.gmra.mrb[0].mxu0 %v345
  %v417 = vpop.f32.mrb[0].mxu0
  %v418 = vadd.f32 %v327, %v417
  %v419 = vpop.f32.mrb[0].mxu0
  %v420 = vpop.f32.mrb[0].mxu0
  %v421 = vadd.f32 %v327, %v420
  %v422 = vpop.f32.mrb[0].mxu0
  %423 = vmatprep.mubr.bf16.mxu0 0
  %424 = vmatmul.mubr.bf16.gmra.mrb[0].mxu0 %v348
  %v425 = vpop.f32.mrb[0].mxu0
  %v426 = vadd.f32 %v327, %v425
  %v427 = vpop.f32.mrb[0].mxu0
  %v428 = vpop.f32.mrb[0].mxu0
  %v429 = vadd.f32 %v327, %v428
  %v430 = vpop.f32.mrb[0].mxu0
  %431 = vmatprep.mubr.bf16.mxu0 0
  %432 = vmatmul.mubr.bf16.gmra.mrb[0].mxu0 %v351
  %v433 = vpop.f32.mrb[0].mxu0
  %v434 = vadd.f32 %v327, %v433
  %v435 = vpop.f32.mrb[0].mxu0
  %v436 = vpop.f32.mrb[0].mxu0
  %v437 = vadd.f32 %v327, %v436
  %v438 = vpop.f32.mrb[0].mxu0
  %439 = vmatprep.mubr.bf16.mxu0 0
  %440 = vmatmul.mubr.bf16.gmra.mrb[0].mxu0 %v354
  %v441 = vpop.f32.mrb[0].mxu0
  %v442 = vadd.f32 %v327, %v441
  %v443 = vpop.f32.mrb[0].mxu0
  %v444 = vpop.f32.mrb[0].mxu0
  %v445 = vadd.f32 %v327, %v444
  %v446 = vpop.f32.mrb[0].mxu0
  %447 = vmatprep.mubr.bf16.mxu0 0
  %448 = vmatmul.mubr.bf16.gmra.mrb[0].mxu0 %v357
  %v449 = vpop.f32.mrb[0].mxu0
  %v450 = vadd.f32 %v327, %v449
  %v451 = vpop.f32.mrb[0].mxu0
  %v452 = vpop.f32.mrb[0].mxu0
  %v453 = vadd.f32 %v327, %v452
  %v454 = vpop.f32.mrb[0].mxu0
  %455 = vdwg.mxu0
  %v456 = vld [vmem:[%s1] sm:$0xf]
  %v457 = vld [vmem:[%s1 + $0x4] sm:$0xf]
  %v458 = vld [vmem:[%s1 + $0x8] sm:$0xf]
  %v459 = vld [vmem:[%s1 + $0xc] sm:$0xf]
  %v460 = vld [vmem:[%s1 + $0x10] sm:$0xf]
  %v461 = vld [vmem:[%s1 + $0x14] sm:$0xf]
  %v462 = vld [vmem:[%s1 + $0x18] sm:$0xf]
  %v463 = vld [vmem:[%s1 + $0x1c] sm:$0xf]
  %v464 = vld [vmem:[%s1 + $0x20] sm:$0xf]
  %v465 = vld [vmem:[%s1 + $0x24] sm:$0xf]
  %v466 = vld [vmem:[%s1 + $0x28] sm:$0xf]
  %v467 = vld [vmem:[%s1 + $0x2c] sm:$0xf]
  %v468 = vld [vmem:[%s1 + $0x30] sm:$0xf]
  %v469 = vld [vmem:[%s1 + $0x34] sm:$0xf]
  %v470 = vld [vmem:[%s1 + $0x38] sm:$0xf]
  %v471 = vld [vmem:[%s1 + $0x3c] sm:$0xf]
  %v472 = vunpack.c.l.bf16 %v456
  %v473 = vunpack.c.l.bf16 %v457
  %v474 = vunpack.c.l.bf16 %v458
  %v475 = vunpack.c.l.bf16 %v459
  %v476 = vunpack.c.l.bf16 %v460
  %v477 = vunpack.c.l.bf16 %v461
  %v478 = vunpack.c.l.bf16 %v462
  %v479 = vunpack.c.l.bf16 %v463
  %v480 = vunpack.c.l.bf16 %v464
  %v481 = vunpack.c.l.bf16 %v465
  %v482 = vunpack.c.l.bf16 %v466
  %v483 = vunpack.c.l.bf16 %v467
  %v484 = vunpack.c.l.bf16 %v468
  %v485 = vunpack.c.l.bf16 %v469
  %v486 = vunpack.c.l.bf16 %v470
  %v487 = vunpack.c.l.bf16 %v471
  %v488 = vsub.f32 0.0, %v472
  %v489 = vsub.f32 0.0, %v473
  %v490 = vsub.f32 0.0, %v474
  %v491 = vsub.f32 0.0, %v475
  %v492 = vsub.f32 0.0, %v476
  %v493 = vsub.f32 0.0, %v477
  %v494 = vsub.f32 0.0, %v478
  %v495 = vsub.f32 0.0, %v479
  %v496 = vsub.f32 0.0, %v480
  %v497 = vsub.f32 0.0, %v481
  %v498 = vsub.f32 0.0, %v482
  %v499 = vsub.f32 0.0, %v483
  %v500 = vsub.f32 0.0, %v484
  %v501 = vsub.f32 0.0, %v485
  %v502 = vsub.f32 0.0, %v486
  %v503 = vsub.f32 0.0, %v487
  %v504 = vmul.f32 %v488, 1.442695
  %v505 = vpow.pop %v504
  %v506 = vmul.f32 %v489, 1.442695
  %v507 = vpow.pop %v506
  %v508 = vmul.f32 %v490, 1.442695
  %v509 = vpow.pop %v508
  %v510 = vmul.f32 %v491, 1.442695
  %v511 = vpow.pop %v510
  %v512 = vmul.f32 %v492, 1.442695
  %v513 = vpow.pop %v512
  %v514 = vmul.f32 %v493, 1.442695
  %v515 = vpow.pop %v514
  %v516 = vmul.f32 %v494, 1.442695
  %v517 = vpow.pop %v516
  %v518 = vmul.f32 %v495, 1.442695
  %v519 = vpow.pop %v518
  %v520 = vmul.f32 %v496, 1.442695
  %v521 = vpow.pop %v520
  %v522 = vmul.f32 %v497, 1.442695
  %v523 = vpow.pop %v522
  %v524 = vmul.f32 %v498, 1.442695
  %v525 = vpow.pop %v524
  %v526 = vmul.f32 %v499, 1.442695
  %v527 = vpow.pop %v526
  %v528 = vmul.f32 %v500, 1.442695
  %v529 = vpow.pop %v528
  %v530 = vmul.f32 %v501, 1.442695
  %v531 = vpow.pop %v530
  %v532 = vmul.f32 %v502, 1.442695
  %v533 = vpow.pop %v532
  %v534 = vmul.f32 %v503, 1.442695
  %v535 = vpow.pop %v534
  %v536 = vadd.f32 %v505, 1.0
  %v537 = vadd.f32 %v507, 1.0
  %v538 = vadd.f32 %v509, 1.0
  %v539 = vadd.f32 %v511, 1.0
  %v540 = vadd.f32 %v513, 1.0
  %v541 = vadd.f32 %v515, 1.0
  %v542 = vadd.f32 %v517, 1.0
  %v543 = vadd.f32 %v519, 1.0
  %v544 = vadd.f32 %v521, 1.0
  %v545 = vadd.f32 %v523, 1.0
  %v546 = vadd.f32 %v525, 1.0
  %v547 = vadd.f32 %v527, 1.0
  %v548 = vadd.f32 %v529, 1.0
  %v549 = vadd.f32 %v531, 1.0
  %v550 = vadd.f32 %v533, 1.0
  %v551 = vadd.f32 %v535, 1.0
  %v552 = vrcp.pop %v536
  %v553 = vmul.f32 1.0, %v552
  %v554 = vrcp.pop %v537
  %v555 = vmul.f32 1.0, %v554
  %v556 = vrcp.pop %v538
  %v557 = vmul.f32 1.0, %v556
  %v558 = vrcp.pop %v539
  %v559 = vmul.f32 1.0, %v558
  %v560 = vrcp.pop %v540
  %v561 = vmul.f32 1.0, %v560
  %v562 = vrcp.pop %v541
  %v563 = vmul.f32 1.0, %v562
  %v564 = vrcp.pop %v542
  %v565 = vmul.f32 1.0, %v564
  %v566 = vrcp.pop %v543
  %v567 = vmul.f32 1.0, %v566
  %v568 = vrcp.pop %v544
  %v569 = vmul.f32 1.0, %v568
  %v570 = vrcp.pop %v545
  %v571 = vmul.f32 1.0, %v570
  %v572 = vrcp.pop %v546
  %v573 = vmul.f32 1.0, %v572
  %v574 = vrcp.pop %v547
  %v575 = vmul.f32 1.0, %v574
  %v576 = vrcp.pop %v548
  %v577 = vmul.f32 1.0, %v576
  %v578 = vrcp.pop %v549
  %v579 = vmul.f32 1.0, %v578
  %v580 = vrcp.pop %v550
  %v581 = vmul.f32 1.0, %v580
  %v582 = vrcp.pop %v551
  %v583 = vmul.f32 1.0, %v582
  %v584 = vmul.f32 %v553, %v394
  %v585 = vmul.f32 %v555, %v397
  %v586 = vmul.f32 %v557, %v402
  %v587 = vmul.f32 %v559, %v405
  %v588 = vmul.f32 %v561, %v410
  %v589 = vmul.f32 %v563, %v413
  %v590 = vmul.f32 %v565, %v418
  %v591 = vmul.f32 %v567, %v421
  %v592 = vmul.f32 %v569, %v426
  %v593 = vmul.f32 %v571, %v429
  %v594 = vmul.f32 %v573, %v434
  %v595 = vmul.f32 %v575, %v437
  %v596 = vmul.f32 %v577, %v442
  %v597 = vmul.f32 %v579, %v445
  %v598 = vmul.f32 %v581, %v450
  %v599 = vmul.f32 %v583, %v453
  %vm600 = vcmask 261120
  %601 = vst.msk [vmem:[%s6] sm:$0xff] %vm600, %v584
  %602 = vst.msk [vmem:[%s6 + $0x8] sm:$0xff] %vm600, %v585
  %603 = vst.msk [vmem:[%s6 + $0x10] sm:$0xff] %vm600, %v586
  %604 = vst.msk [vmem:[%s6 + $0x18] sm:$0xff] %vm600, %v587
  %605 = vst.msk [vmem:[%s6 + $0x20] sm:$0xff] %vm600, %v588
  %606 = vst.msk [vmem:[%s6 + $0x28] sm:$0xff] %vm600, %v589
  %607 = vst.msk [vmem:[%s6 + $0x30] sm:$0xff] %vm600, %v590
  %608 = vst.msk [vmem:[%s6 + $0x38] sm:$0xff] %vm600, %v591
  %609 = vst.msk [vmem:[%s6 + $0x40] sm:$0xff] %vm600, %v592
  %610 = vst.msk [vmem:[%s6 + $0x48] sm:$0xff] %vm600, %v593
  %611 = vst.msk [vmem:[%s6 + $0x50] sm:$0xff] %vm600, %v594
  %612 = vst.msk [vmem:[%s6 + $0x58] sm:$0xff] %vm600, %v595
  %613 = vst.msk [vmem:[%s6 + $0x60] sm:$0xff] %vm600, %v596
  %614 = vst.msk [vmem:[%s6 + $0x68] sm:$0xff] %vm600, %v597
  %615 = vst.msk [vmem:[%s6 + $0x70] sm:$0xff] %vm600, %v598
  %616 = vst.msk [vmem:[%s6 + $0x78] sm:$0xff] %vm600, %v599
  // Predicated region
  $region26: #{_lambda_.32} parent=0 // pred_check
    _
  $region27: #{_lambda_.32} parent=0 // pred_check_branch
    %618 = sbr.rel (0) target = $region29
  $region28: #{_lambda_.32} parent=0 // pred_region
    _
  $region29: #{_lambda_.32} parent=0 // pred_fallthru
    _
  // Predicated region
  $region30: #{_lambda_.32} parent=0 // pred_check
    _
  $region31: #{_lambda_.32} parent=0 // pred_check_branch
    %620 = sbr.rel (0) target = $region33
  $region32: #{_lambda_.32} parent=0 // pred_region
    _
  $region33: #{_lambda_.32} parent=0 // pred_fallthru
    _

// kernel: _lambda_.36
$region0: #{_lambda_.36}
  #allocation0 [shape = 'u32[]', space=smem, size = 0x4, offset = 0x4, fixed_abs, tag = 'smem constant byte address 0x4 - core index']
  #allocation1 [shape = 'u32[144,128]{1,0:T(1,128)}', space=vmem, size = 0x12000, scoped, tag = 'internal scratch']
  %s0 = inlined_call_operand.vmem [shape: f32[128,32], index: 0, kind: input, shape index: {}]
  %s1 = inlined_call_operand.vmem [shape: f32[1,32], index: 1, kind: input, shape index: {}]
  %s2 = inlined_call_operand.vmem [shape: f32[1,32], index: 2, kind: input, shape index: {}]
  %s3 = inlined_call_operand.vmem [shape: bf16[32,128], index: 3, kind: input, shape index: {}]
  %s4 = inlined_call_operand.vmem [shape: f32[1,128], index: 4, kind: input, shape index: {}]
  %s5 = inlined_call_operand.vmem [shape: bf16[32,4], index: 5, kind: input, shape index: {}]
  %s6 = inlined_call_operand.vmem [shape: f32[1,4], index: 6, kind: input, shape index: {}]
  %s7 = inlined_call_operand.vmem [shape: bf16[128,128], index: 7, kind: output, shape index: {0}]
  %s8 = inlined_call_operand.vmem [shape: f32[128,4], index: 8, kind: output, shape index: {1}]
  %9 = xla_tuple %s7, %s8
  %s10 = sld [smem:[#allocation0]]
  $region46: #{_lambda_.36} parent=0
    _
  %s12 = ssub.s32 1, %s10
  %s13 = scalar_select 0, %s12, %s10
  // Predicated region
  $region2: #{_lambda_.36} parent=0 // pred_check
    _
  $region3: #{_lambda_.36} parent=0 // pred_check_branch
    %15 = sbr.rel (0) target = $region5
  $region4: #{_lambda_.36} parent=0 // pred_region
    _
  $region5: #{_lambda_.36} parent=0 // pred_fallthru
    _
  // Predicated region
  $region6: #{_lambda_.36} parent=0 // pred_check
    _
  $region7: #{_lambda_.36} parent=0 // pred_check_branch
    %17 = sbr.rel (0) target = $region9
  $region8: #{_lambda_.36} parent=0 // pred_region
    _
  $region9: #{_lambda_.36} parent=0 // pred_fallthru
    _
  // Predicated region
  $region10: #{_lambda_.36} parent=0 // pred_check
    _
  $region11: #{_lambda_.36} parent=0 // pred_check_branch
    %19 = sbr.rel (0) target = $region13
  $region12: #{_lambda_.36} parent=0 // pred_region
    _
  $region13: #{_lambda_.36} parent=0 // pred_fallthru
    _
  // Predicated region
  $region14: #{_lambda_.36} parent=0 // pred_check
    _
  $region15: #{_lambda_.36} parent=0 // pred_check_branch
    %21 = sbr.rel (0) target = $region17
  $region16: #{_lambda_.36} parent=0 // pred_region
    _
  $region17: #{_lambda_.36} parent=0 // pred_fallthru
    _
  // Predicated region
  $region18: #{_lambda_.36} parent=0 // pred_check
    _
  $region19: #{_lambda_.36} parent=0 // pred_check_branch
    %23 = sbr.rel (0) target = $region21
  $region20: #{_lambda_.36} parent=0 // pred_region
    _
  $region21: #{_lambda_.36} parent=0 // pred_fallthru
    _
  // Predicated region
  $region22: #{_lambda_.36} parent=0 // pred_check
    _
  $region23: #{_lambda_.36} parent=0 // pred_check_branch
    %25 = sbr.rel (0) target = $region25
  $region24: #{_lambda_.36} parent=0 // pred_region
    _
  $region25: #{_lambda_.36} parent=0 // pred_fallthru
    _
  // Predicated region
  $region26: #{_lambda_.36} parent=0 // pred_check
    _
  $region27: #{_lambda_.36} parent=0 // pred_check_branch
    %27 = sbr.rel (0) target = $region29
  $region28: #{_lambda_.36} parent=0 // pred_region
    _
  $region29: #{_lambda_.36} parent=0 // pred_fallthru
    _
  %v29 = vld [vmem:[%s0] sm:$0xff]
  %v30 = vld [vmem:[%s0 + $0x8] sm:$0xff]
  %v31 = vld [vmem:[%s0 + $0x10] sm:$0xff]
  %v32 = vld [vmem:[%s0 + $0x18] sm:$0xff]
  %v33 = vld [vmem:[%s0 + $0x20] sm:$0xff]
  %v34 = vld [vmem:[%s0 + $0x28] sm:$0xff]
  %v35 = vld [vmem:[%s0 + $0x30] sm:$0xff]
  %v36 = vld [vmem:[%s0 + $0x38] sm:$0xff]
  %v37 = vld [vmem:[%s0 + $0x40] sm:$0xff]
  %v38 = vld [vmem:[%s0 + $0x48] sm:$0xff]
  %v39 = vld [vmem:[%s0 + $0x50] sm:$0xff]
  %v40 = vld [vmem:[%s0 + $0x58] sm:$0xff]
  %v41 = vld [vmem:[%s0 + $0x60] sm:$0xff]
  %v42 = vld [vmem:[%s0 + $0x68] sm:$0xff]
  %v43 = vld [vmem:[%s0 + $0x70] sm:$0xff]
  %v44 = vld [vmem:[%s0 + $0x78] sm:$0xff]
  %v45 = vld [vmem:[%s1] sm:$0x1]
  %v46 = vld [vmem:[%s2] sm:$0x1]
  %vm47 = vcmask 261120
  %v48 = vsel %vm47, %v29, 0.0
  %49 = vadd.xlane.f32.xlu0 %v48
  %v50 = vpop.xlane.xlu0 %49
  %v51 = vsel %vm47, %v30, 0.0
  %52 = vadd.xlane.f32.xlu0 %v51
  %v53 = vpop.xlane.xlu0 %52
  %v54 = vsel %vm47, %v31, 0.0
  %55 = vadd.xlane.f32.xlu0 %v54
  %v56 = vpop.xlane.xlu0 %55
  %v57 = vsel %vm47, %v32, 0.0
  %58 = vadd.xlane.f32.xlu0 %v57
  %v59 = vpop.xlane.xlu0 %58
  %v60 = vsel %vm47, %v33, 0.0
  %61 = vadd.xlane.f32.xlu0 %v60
  %v62 = vpop.xlane.xlu0 %61
  %v63 = vsel %vm47, %v34, 0.0
  %64 = vadd.xlane.f32.xlu0 %v63
  %v65 = vpop.xlane.xlu0 %64
  %v66 = vsel %vm47, %v35, 0.0
  %67 = vadd.xlane.f32.xlu0 %v66
  %v68 = vpop.xlane.xlu0 %67
  %v69 = vsel %vm47, %v36, 0.0
  %70 = vadd.xlane.f32.xlu0 %v69
  %v71 = vpop.xlane.xlu0 %70
  %v72 = vsel %vm47, %v37, 0.0
  %73 = vadd.xlane.f32.xlu0 %v72
  %v74 = vpop.xlane.xlu0 %73
  %v75 = vsel %vm47, %v38, 0.0
  %76 = vadd.xlane.f32.xlu0 %v75
  %v77 = vpop.xlane.xlu0 %76
  %v78 = vsel %vm47, %v39, 0.0
  %79 = vadd.xlane.f32.xlu0 %v78
  %v80 = vpop.xlane.xlu0 %79
  %v81 = vsel %vm47, %v40, 0.0
  %82 = vadd.xlane.f32.xlu0 %v81
  %v83 = vpop.xlane.xlu0 %82
  %v84 = vsel %vm47, %v41, 0.0
  %85 = vadd.xlane.f32.xlu0 %v84
  %v86 = vpop.xlane.xlu0 %85
  %v87 = vsel %vm47, %v42, 0.0
  %88 = vadd.xlane.f32.xlu0 %v87
  %v89 = vpop.xlane.xlu0 %88
  %v90 = vsel %vm47, %v43, 0.0
  %91 = vadd.xlane.f32.xlu0 %v90
  %v92 = vpop.xlane.xlu0 %91
  %v93 = vsel %vm47, %v44, 0.0
  %94 = vadd.xlane.f32.xlu0 %v93
  %v95 = vpop.xlane.xlu0 %94
  %v96 = vrcp.pop 32.0
  %v97 = vmul.f32 %v50, %v96
  %v98 = vmul.f32 %v53, %v96
  %v99 = vmul.f32 %v56, %v96
  %v100 = vmul.f32 %v59, %v96
  %v101 = vmul.f32 %v62, %v96
  %v102 = vmul.f32 %v65, %v96
  %v103 = vmul.f32 %v68, %v96
  %v104 = vmul.f32 %v71, %v96
  %v105 = vmul.f32 %v74, %v96
  %v106 = vmul.f32 %v77, %v96
  %v107 = vmul.f32 %v80, %v96
  %v108 = vmul.f32 %v83, %v96
  %v109 = vmul.f32 %v86, %v96
  %v110 = vmul.f32 %v89, %v96
  %v111 = vmul.f32 %v92, %v96
  %v112 = vmul.f32 %v95, %v96
  %v113 = vsub.f32 %v29, %v97
  %v114 = vsub.f32 %v30, %v98
  %v115 = vsub.f32 %v31, %v99
  %v116 = vsub.f32 %v32, %v100
  %v117 = vsub.f32 %v33, %v101
  %v118 = vsub.f32 %v34, %v102
  %v119 = vsub.f32 %v35, %v103
  %v120 = vsub.f32 %v36, %v104
  %v121 = vsub.f32 %v37, %v105
  %v122 = vsub.f32 %v38, %v106
  %v123 = vsub.f32 %v39, %v107
  %v124 = vsub.f32 %v40, %v108
  %v125 = vsub.f32 %v41, %v109
  %v126 = vsub.f32 %v42, %v110
  %v127 = vsub.f32 %v43, %v111
  %v128 = vsub.f32 %v44, %v112
  %v129 = vmul.f32 %v113, %v113
  %v130 = vmul.f32 %v114, %v114
  %v131 = vmul.f32 %v115, %v115
  %v132 = vmul.f32 %v116, %v116
  %v133 = vmul.f32 %v117, %v117
  %v134 = vmul.f32 %v118, %v118
  %v135 = vmul.f32 %v119, %v119
  %v136 = vmul.f32 %v120, %v120
  %v137 = vmul.f32 %v121, %v121
  %v138 = vmul.f32 %v122, %v122
  %v139 = vmul.f32 %v123, %v123
  %v140 = vmul.f32 %v124, %v124
  %v141 = vmul.f32 %v125, %v125
  %v142 = vmul.f32 %v126, %v126
  %v143 = vmul.f32 %v127, %v127
  %v144 = vmul.f32 %v128, %v128
  %v145 = vsel %vm47, %v129, 0.0
  %146 = vadd.xlane.f32.xlu0 %v145
  %v147 = vpop.xlane.xlu0 %146
  %v148 = vsel %vm47, %v130, 0.0
  %149 = vadd.xlane.f32.xlu0 %v148
  %v150 = vpop.xlane.xlu0 %149
  %v151 = vsel %vm47, %v131, 0.0
  %152 = vadd.xlane.f32.xlu0 %v151
  %v153 = vpop.xlane.xlu0 %152
  %v154 = vsel %vm47, %v132, 0.0
  %155 = vadd.xlane.f32.xlu0 %v154
  %v156 = vpop.xlane.xlu0 %155
  %v157 = vsel %vm47, %v133, 0.0
  %158 = vadd.xlane.f32.xlu0 %v157
  %v159 = vpop.xlane.xlu0 %158
  %v160 = vsel %vm47, %v134, 0.0
  %161 = vadd.xlane.f32.xlu0 %v160
  %v162 = vpop.xlane.xlu0 %161
  %v163 = vsel %vm47, %v135, 0.0
  %164 = vadd.xlane.f32.xlu0 %v163
  %v165 = vpop.xlane.xlu0 %164
  %v166 = vsel %vm47, %v136, 0.0
  %167 = vadd.xlane.f32.xlu0 %v166
  %v168 = vpop.xlane.xlu0 %167
  %v169 = vsel %vm47, %v137, 0.0
  %170 = vadd.xlane.f32.xlu0 %v169
  %v171 = vpop.xlane.xlu0 %170
  %v172 = vsel %vm47, %v138, 0.0
  %173 = vadd.xlane.f32.xlu0 %v172
  %v174 = vpop.xlane.xlu0 %173
  %v175 = vsel %vm47, %v139, 0.0
  %176 = vadd.xlane.f32.xlu0 %v175
  %v177 = vpop.xlane.xlu0 %176
  %v178 = vsel %vm47, %v140, 0.0
  %179 = vadd.xlane.f32.xlu0 %v178
  %v180 = vpop.xlane.xlu0 %179
  %v181 = vsel %vm47, %v141, 0.0
  %182 = vadd.xlane.f32.xlu0 %v181
  %v183 = vpop.xlane.xlu0 %182
  %v184 = vsel %vm47, %v142, 0.0
  %185 = vadd.xlane.f32.xlu0 %v184
  %v186 = vpop.xlane.xlu0 %185
  %v187 = vsel %vm47, %v143, 0.0
  %188 = vadd.xlane.f32.xlu0 %v187
  %v189 = vpop.xlane.xlu0 %188
  %v190 = vsel %vm47, %v144, 0.0
  %191 = vadd.xlane.f32.xlu0 %v190
  %v192 = vpop.xlane.xlu0 %191
  %v193 = vmul.f32 %v147, %v96
  %v194 = vmul.f32 %v150, %v96
  %v195 = vmul.f32 %v153, %v96
  %v196 = vmul.f32 %v156, %v96
  %v197 = vmul.f32 %v159, %v96
  %v198 = vmul.f32 %v162, %v96
  %v199 = vmul.f32 %v165, %v96
  %v200 = vmul.f32 %v168, %v96
  %v201 = vmul.f32 %v171, %v96
  %v202 = vmul.f32 %v174, %v96
  %v203 = vmul.f32 %v177, %v96
  %v204 = vmul.f32 %v180, %v96
  %v205 = vmul.f32 %v183, %v96
  %v206 = vmul.f32 %v186, %v96
  %v207 = vmul.f32 %v189, %v96
  %v208 = vmul.f32 %v192, %v96
  %v209 = vadd.f32 %v193, 1e-05
  %v210 = vadd.f32 %v194, 1e-05
  %v211 = vadd.f32 %v195, 1e-05
  %v212 = vadd.f32 %v196, 1e-05
  %v213 = vadd.f32 %v197, 1e-05
  %v214 = vadd.f32 %v198, 1e-05
  %v215 = vadd.f32 %v199, 1e-05
  %v216 = vadd.f32 %v200, 1e-05
  %v217 = vadd.f32 %v201, 1e-05
  %v218 = vadd.f32 %v202, 1e-05
  %v219 = vadd.f32 %v203, 1e-05
  %v220 = vadd.f32 %v204, 1e-05
  %v221 = vadd.f32 %v205, 1e-05
  %v222 = vadd.f32 %v206, 1e-05
  %v223 = vadd.f32 %v207, 1e-05
  %v224 = vadd.f32 %v208, 1e-05
  %v225 = vrsqrt.pop %v209
  %v226 = vrsqrt.pop %v210
  %v227 = vrsqrt.pop %v211
  %v228 = vrsqrt.pop %v212
  %v229 = vrsqrt.pop %v213
  %v230 = vrsqrt.pop %v214
  %v231 = vrsqrt.pop %v215
  %v232 = vrsqrt.pop %v216
  %v233 = vrsqrt.pop %v217
  %v234 = vrsqrt.pop %v218
  %v235 = vrsqrt.pop %v219
  %v236 = vrsqrt.pop %v220
  %v237 = vrsqrt.pop %v221
  %v238 = vrsqrt.pop %v222
  %v239 = vrsqrt.pop %v223
  %v240 = vrsqrt.pop %v224
  %v241 = vmul.f32 %v113, %v225
  %v242 = vmul.f32 %v114, %v226
  %v243 = vmul.f32 %v115, %v227
  %v244 = vmul.f32 %v116, %v228
  %v245 = vmul.f32 %v117, %v229
  %v246 = vmul.f32 %v118, %v230
  %v247 = vmul.f32 %v119, %v231
  %v248 = vmul.f32 %v120, %v232
  %v249 = vmul.f32 %v121, %v233
  %v250 = vmul.f32 %v122, %v234
  %v251 = vmul.f32 %v123, %v235
  %v252 = vmul.f32 %v124, %v236
  %v253 = vmul.f32 %v125, %v237
  %v254 = vmul.f32 %v126, %v238
  %v255 = vmul.f32 %v127, %v239
  %v256 = vmul.f32 %v128, %v240
  %v258 = vlaneseq
  %v259 = vshrl.u32 %v258, 7
  %v260 = vsub.s32 0, %v259
  %v261 = vrot.slane %v45, %v260
  %v263 = vmul.f32 %v241, %v261
  %v264 = vmul.f32 %v242, %v261
  %v265 = vmul.f32 %v243, %v261
  %v266 = vmul.f32 %v244, %v261
  %v267 = vmul.f32 %v245, %v261
  %v268 = vmul.f32 %v246, %v261
  %v269 = vmul.f32 %v247, %v261
  %v270 = vmul.f32 %v248, %v261
  %v271 = vmul.f32 %v249, %v261
  %v272 = vmul.f32 %v250, %v261
  %v273 = vmul.f32 %v251, %v261
  %v274 = vmul.f32 %v252, %v261
  %v275 = vmul.f32 %v253, %v261
  %v276 = vmul.f32 %v254, %v261
  %v277 = vmul.f32 %v255, %v261
  %v278 = vmul.f32 %v256, %v261
  %v280 = vlaneseq
  %v281 = vshrl.u32 %v280, 7
  %v282 = vsub.s32 0, %v281
  %v283 = vrot.slane %v46, %v282
  %v285 = vadd.f32 %v263, %v283
  %v286 = vadd.f32 %v264, %v283
  %v287 = vadd.f32 %v265, %v283
  %v288 = vadd.f32 %v266, %v283
  %v289 = vadd.f32 %v267, %v283
  %v290 = vadd.f32 %v268, %v283
  %v291 = vadd.f32 %v269, %v283
  %v292 = vadd.f32 %v270, %v283
  %v293 = vadd.f32 %v271, %v283
  %v294 = vadd.f32 %v272, %v283
  %v295 = vadd.f32 %v273, %v283
  %v296 = vadd.f32 %v274, %v283
  %v297 = vadd.f32 %v275, %v283
  %v298 = vadd.f32 %v276, %v283
  %v299 = vadd.f32 %v277, %v283
  %v300 = vadd.f32 %v278, %v283
  %v301 = vpack.c.bf16 %v286, %v285
  %v302 = vpack.c.bf16 %v288, %v287
  %v303 = vpack.c.bf16 %v290, %v289
  %v304 = vpack.c.bf16 %v292, %v291
  %v305 = vpack.c.bf16 %v294, %v293
  %v306 = vpack.c.bf16 %v296, %v295
  %v307 = vpack.c.bf16 %v298, %v297
  %v308 = vpack.c.bf16 %v300, %v299
  %v309 = vld [vmem:[%s3] sm:$0xf]
  %v310 = vld [vmem:[%s3 + $0x4] sm:$0xf]
  %v311 = vld [vmem:[%s3 + $0x8] sm:$0xf]
  %v312 = vld [vmem:[%s3 + $0xc] sm:$0xf]
  %v313 = vld [vmem:[%s4] sm:$0x1]
  %v315 = vlaneseq
  %v316 = vshrl.u32 %v315, 7
  %v317 = vsub.s32 0, %v316
  %v318 = vrot.slane %v313, %v317
  %v324 = vunpack.c.l.b16 %v309
  %v325 = vunpack.c.l.b16 %v310
  %v326 = vunpack.c.l.b16 %v311
  %v327 = vunpack.c.l.b16 %v312
  %v328 = vpack.c.b16 %v325, %v324
  %v329 = vpack.c.b16 %v327, %v326
  %v333 = vsel %vm47, %v301, 0
  %v336 = vsel %vm47, %v302, 0
  %v339 = vsel %vm47, %v303, 0
  %v342 = vsel %vm47, %v304, 0
  %v345 = vsel %vm47, %v305, 0
  %v348 = vsel %vm47, %v306, 0
  %v351 = vsel %vm47, %v307, 0
  %v354 = vsel %vm47, %v308, 0
  %356 = vmatprep.subr.bf16.mxu0 0
  %357 = vmatpush1.bf16.msra.mxu0 %v328
  %358 = vmatprep.subr.bf16.mxu0 0
  %359 = vmatpush1.bf16.msra.mxu0 %v329
  %360 = vmatprep.subr.bf16.mxu0 0
  %361 = vmatpush1.bf16.msra.mxu0 0
  %362 = vmatprep.subr.bf16.mxu0 0
  %363 = vmatpush1.bf16.msra.mxu0 0
  %364 = vmatprep.subr.bf16.mxu0 0
  %365 = vmatpush1.bf16.msra.mxu0 0
  %366 = vmatprep.subr.bf16.mxu0 0
  %367 = vmatpush1.bf16.msra.mxu0 0
  %368 = vmatprep.subr.bf16.mxu0 0
  %369 = vmatpush1.bf16.msra.mxu0 0
  %370 = vmatprep.subr.bf16.mxu0 0
  %371 = vmatpush1.bf16.msra.mxu0 0
  %372 = vmatprep.subr.bf16.mxu0 0
  %373 = vmatpush1.bf16.msra.mxu0 0
  %374 = vmatprep.subr.bf16.mxu0 0
  %375 = vmatpush1.bf16.msra.mxu0 0
  %376 = vmatprep.subr.bf16.mxu0 0
  %377 = vmatpush1.bf16.msra.mxu0 0
  %378 = vmatprep.subr.bf16.mxu0 0
  %379 = vmatpush1.bf16.msra.mxu0 0
  %380 = vmatprep.subr.bf16.mxu0 0
  %381 = vmatpush1.bf16.msra.mxu0 0
  %382 = vmatprep.subr.bf16.mxu0 0
  %383 = vmatpush1.bf16.msra.mxu0 0
  %384 = vmatprep.subr.bf16.mxu0 0
  %385 = vmatpush1.bf16.msra.mxu0 0
  %386 = vmatprep.subr.bf16.mxu0 0
  %387 = vmatpush1.bf16.msra.mxu0 0
  %388 = vmatprep.mubr.bf16.mxu0 0
  %389 = vmatmul.mubr.bf16.gmra.mrb[0].mxu0 %v333
  %v390 = vpop.f32.mrb[0].mxu0
  %v391 = vadd.f32 %v318, %v390
  %v392 = vpop.f32.mrb[0].mxu0
  %v393 = vpop.f32.mrb[0].mxu0
  %v394 = vadd.f32 %v318, %v393
  %v395 = vpop.f32.mrb[0].mxu0
  %396 = vmatprep.mubr.bf16.mxu0 0
  %397 = vmatmul.mubr.bf16.gmra.mrb[0].mxu0 %v336
  %v398 = vpop.f32.mrb[0].mxu0
  %v399 = vadd.f32 %v318, %v398
  %v400 = vpop.f32.mrb[0].mxu0
  %v401 = vpop.f32.mrb[0].mxu0
  %v402 = vadd.f32 %v318, %v401
  %v403 = vpop.f32.mrb[0].mxu0
  %404 = vmatprep.mubr.bf16.mxu0 0
  %405 = vmatmul.mubr.bf16.gmra.mrb[0].mxu0 %v339
  %v406 = vpop.f32.mrb[0].mxu0
  %v407 = vadd.f32 %v318, %v406
  %v408 = vpop.f32.mrb[0].mxu0
  %v409 = vpop.f32.mrb[0].mxu0
  %v410 = vadd.f32 %v318, %v409
  %v411 = vpop.f32.mrb[0].mxu0
  %412 = vmatprep.mubr.bf16.mxu0 0
  %413 = vmatmul.mubr.bf16.gmra.mrb[0].mxu0 %v342
  %v414 = vpop.f32.mrb[0].mxu0
  %v415 = vadd.f32 %v318, %v414
  %v416 = vpop.f32.mrb[0].mxu0
  %v417 = vpop.f32.mrb[0].mxu0
  %v418 = vadd.f32 %v318, %v417
  %v419 = vpop.f32.mrb[0].mxu0
  %420 = vmatprep.mubr.bf16.mxu0 0
  %421 = vmatmul.mubr.bf16.gmra.mrb[0].mxu0 %v345
  %v422 = vpop.f32.mrb[0].mxu0
  %v423 = vadd.f32 %v318, %v422
  %v424 = vpop.f32.mrb[0].mxu0
  %v425 = vpop.f32.mrb[0].mxu0
  %v426 = vadd.f32 %v318, %v425
  %v427 = vpop.f32.mrb[0].mxu0
  %428 = vmatprep.mubr.bf16.mxu0 0
  %429 = vmatmul.mubr.bf16.gmra.mrb[0].mxu0 %v348
  %v430 = vpop.f32.mrb[0].mxu0
  %v431 = vadd.f32 %v318, %v430
  %v432 = vpop.f32.mrb[0].mxu0
  %v433 = vpop.f32.mrb[0].mxu0
  %v434 = vadd.f32 %v318, %v433
  %v435 = vpop.f32.mrb[0].mxu0
  %436 = vmatprep.mubr.bf16.mxu0 0
  %437 = vmatmul.mubr.bf16.gmra.mrb[0].mxu0 %v351
  %v438 = vpop.f32.mrb[0].mxu0
  %v439 = vadd.f32 %v318, %v438
  %v440 = vpop.f32.mrb[0].mxu0
  %v441 = vpop.f32.mrb[0].mxu0
  %v442 = vadd.f32 %v318, %v441
  %v443 = vpop.f32.mrb[0].mxu0
  %444 = vmatprep.mubr.bf16.mxu0 0
  %445 = vmatmul.mubr.bf16.gmra.mrb[0].mxu0 %v354
  %v446 = vpop.f32.mrb[0].mxu0
  %v447 = vadd.f32 %v318, %v446
  %v448 = vpop.f32.mrb[0].mxu0
  %v449 = vpop.f32.mrb[0].mxu0
  %v450 = vadd.f32 %v318, %v449
  %v451 = vpop.f32.mrb[0].mxu0
  %452 = vdwg.mxu0
  %v453 = vpack.c.bf16 %v394, %v391
  %v454 = vpack.c.bf16 %v402, %v399
  %v455 = vpack.c.bf16 %v410, %v407
  %v456 = vpack.c.bf16 %v418, %v415
  %v457 = vpack.c.bf16 %v426, %v423
  %v458 = vpack.c.bf16 %v434, %v431
  %v459 = vpack.c.bf16 %v442, %v439
  %v460 = vpack.c.bf16 %v450, %v447
  %v469 = vunpack.c.l.b16 %v453
  %v470 = vunpack.c.h.b16 %v453
  %v471 = vunpack.c.l.b16 %v454
  %v472 = vunpack.c.h.b16 %v454
  %v473 = vunpack.c.l.b16 %v455
  %v474 = vunpack.c.h.b16 %v455
  %v475 = vunpack.c.l.b16 %v456
  %v476 = vunpack.c.h.b16 %v456
  %v477 = vunpack.c.l.b16 %v457
  %v478 = vunpack.c.h.b16 %v457
  %v479 = vunpack.c.l.b16 %v458
  %v480 = vunpack.c.h.b16 %v458
  %v481 = vunpack.c.l.b16 %v459
  %v482 = vunpack.c.h.b16 %v459
  %v483 = vunpack.c.l.b16 %v460
  %v484 = vunpack.c.h.b16 %v460
  %v485 = vpack.c.b16 %v469, %v469
  %v486 = vpack.c.b16 %v470, %v470
  %v487 = vpack.c.b16 %v471, %v471
  %v488 = vpack.c.b16 %v472, %v472
  %v489 = vpack.c.b16 %v473, %v473
  %v490 = vpack.c.b16 %v474, %v474
  %v491 = vpack.c.b16 %v475, %v475
  %v492 = vpack.c.b16 %v476, %v476
  %v493 = vpack.c.b16 %v477, %v477
  %v494 = vpack.c.b16 %v478, %v478
  %v495 = vpack.c.b16 %v479, %v479
  %v496 = vpack.c.b16 %v480, %v480
  %v497 = vpack.c.b16 %v481, %v481
  %v498 = vpack.c.b16 %v482, %v482
  %v499 = vpack.c.b16 %v483, %v483
  %v500 = vpack.c.b16 %v484, %v484
  %517 = vst [vmem:[%s7] sm:$0xf] %v485
  %518 = vst [vmem:[%s7 + $0x4] sm:$0xf] %v486
  %519 = vst [vmem:[%s7 + $0x8] sm:$0xf] %v487
  %520 = vst [vmem:[%s7 + $0xc] sm:$0xf] %v488
  %521 = vst [vmem:[%s7 + $0x10] sm:$0xf] %v489
  %522 = vst [vmem:[%s7 + $0x14] sm:$0xf] %v490
  %523 = vst [vmem:[%s7 + $0x18] sm:$0xf] %v491
  %524 = vst [vmem:[%s7 + $0x1c] sm:$0xf] %v492
  %525 = vst [vmem:[%s7 + $0x20] sm:$0xf] %v493
  %526 = vst [vmem:[%s7 + $0x24] sm:$0xf] %v494
  %527 = vst [vmem:[%s7 + $0x28] sm:$0xf] %v495
  %528 = vst [vmem:[%s7 + $0x2c] sm:$0xf] %v496
  %529 = vst [vmem:[%s7 + $0x30] sm:$0xf] %v497
  %530 = vst [vmem:[%s7 + $0x34] sm:$0xf] %v498
  %531 = vst [vmem:[%s7 + $0x38] sm:$0xf] %v499
  %532 = vst [vmem:[%s7 + $0x3c] sm:$0xf] %v500
  %v533 = vld [vmem:[%s5] sm:$0xf]
  %v534 = vld [vmem:[%s5 + $0x4] sm:$0xf]
  %v535 = vld [vmem:[%s5 + $0x8] sm:$0xf]
  %v536 = vld [vmem:[%s5 + $0xc] sm:$0xf]
  %v537 = vld [vmem:[%s6] sm:$0x1]
  %v539 = vlaneseq
  %v540 = vshrl.u32 %v539, 7
  %v541 = vsub.s32 0, %v540
  %v542 = vrot.slane %v537, %v541
  %v548 = vunpack.c.l.b16 %v533
  %v549 = vunpack.c.l.b16 %v534
  %v550 = vunpack.c.l.b16 %v535
  %v551 = vunpack.c.l.b16 %v536
  %v552 = vpack.c.b16 %v549, %v548
  %v553 = vpack.c.b16 %v551, %v550
  %556 = vmatprep.subr.bf16.mxu0 0
  %557 = vmatpush1.bf16.msra.mxu0 %v552
  %558 = vmatprep.subr.bf16.mxu0 0
  %559 = vmatpush1.bf16.msra.mxu0 %v553
  %560 = vmatprep.subr.bf16.mxu0 0
  %561 = vmatpush1.bf16.msra.mxu0 0
  %562 = vmatprep.subr.bf16.mxu0 0
  %563 = vmatpush1.bf16.msra.mxu0 0
  %564 = vmatprep.subr.bf16.mxu0 0
  %565 = vmatpush1.bf16.msra.mxu0 0
  %566 = vmatprep.subr.bf16.mxu0 0
  %567 = vmatpush1.bf16.msra.mxu0 0
  %568 = vmatprep.subr.bf16.mxu0 0
  %569 = vmatpush1.bf16.msra.mxu0 0
  %570 = vmatprep.subr.bf16.mxu0 0
  %571 = vmatpush1.bf16.msra.mxu0 0
  %572 = vmatprep.subr.bf16.mxu0 0
  %573 = vmatpush1.bf16.msra.mxu0 0
  %574 = vmatprep.subr.bf16.mxu0 0
  %575 = vmatpush1.bf16.msra.mxu0 0
  %576 = vmatprep.subr.bf16.mxu0 0
  %577 = vmatpush1.bf16.msra.mxu0 0
  %578 = vmatprep.subr.bf16.mxu0 0
  %579 = vmatpush1.bf16.msra.mxu0 0
  %580 = vmatprep.subr.bf16.mxu0 0
  %581 = vmatpush1.bf16.msra.mxu0 0
  %582 = vmatprep.subr.bf16.mxu0 0
  %583 = vmatpush1.bf16.msra.mxu0 0
  %584 = vmatprep.subr.bf16.mxu0 0
  %585 = vmatpush1.bf16.msra.mxu0 0
  %586 = vmatprep.subr.bf16.mxu0 0
  %587 = vmatpush1.bf16.msra.mxu0 0
  %588 = vmatprep.mubr.bf16.mxu0 0
  %589 = vmatmul.mubr.bf16.gmra.mrb[0].mxu0 %v333
  %v590 = vpop.f32.mrb[0].mxu0
  %v591 = vadd.f32 %v542, %v590
  %v592 = vpop.f32.mrb[0].mxu0
  %v593 = vpop.f32.mrb[0].mxu0
  %v594 = vadd.f32 %v542, %v593
  %v595 = vpop.f32.mrb[0].mxu0
  %596 = vmatprep.mubr.bf16.mxu0 0
  %597 = vmatmul.mubr.bf16.gmra.mrb[0].mxu0 %v336
  %v598 = vpop.f32.mrb[0].mxu0
  %v599 = vadd.f32 %v542, %v598
  %v600 = vpop.f32.mrb[0].mxu0
  %v601 = vpop.f32.mrb[0].mxu0
  %v602 = vadd.f32 %v542, %v601
  %v603 = vpop.f32.mrb[0].mxu0
  %604 = vmatprep.mubr.bf16.mxu0 0
  %605 = vmatmul.mubr.bf16.gmra.mrb[0].mxu0 %v339
  %v606 = vpop.f32.mrb[0].mxu0
  %v607 = vadd.f32 %v542, %v606
  %v608 = vpop.f32.mrb[0].mxu0
  %v609 = vpop.f32.mrb[0].mxu0
  %v610 = vadd.f32 %v542, %v609
  %v611 = vpop.f32.mrb[0].mxu0
  %612 = vmatprep.mubr.bf16.mxu0 0
  %613 = vmatmul.mubr.bf16.gmra.mrb[0].mxu0 %v342
  %v614 = vpop.f32.mrb[0].mxu0
  %v615 = vadd.f32 %v542, %v614
  %v616 = vpop.f32.mrb[0].mxu0
  %v617 = vpop.f32.mrb[0].mxu0
  %v618 = vadd.f32 %v542, %v617
  %v619 = vpop.f32.mrb[0].mxu0
  %620 = vmatprep.mubr.bf16.mxu0 0
  %621 = vmatmul.mubr.bf16.gmra.mrb[0].mxu0 %v345
  %v622 = vpop.f32.mrb[0].mxu0
  %v623 = vadd.f32 %v542, %v622
  %v624 = vpop.f32.mrb[0].mxu0
  %v625 = vpop.f32.mrb[0].mxu0
  %v626 = vadd.f32 %v542, %v625
  %v627 = vpop.f32.mrb[0].mxu0
  %628 = vmatprep.mubr.bf16.mxu0 0
  %629 = vmatmul.mubr.bf16.gmra.mrb[0].mxu0 %v348
  %v630 = vpop.f32.mrb[0].mxu0
  %v631 = vadd.f32 %v542, %v630
  %v632 = vpop.f32.mrb[0].mxu0
  %v633 = vpop.f32.mrb[0].mxu0
  %v634 = vadd.f32 %v542, %v633
  %v635 = vpop.f32.mrb[0].mxu0
  %636 = vmatprep.mubr.bf16.mxu0 0
  %637 = vmatmul.mubr.bf16.gmra.mrb[0].mxu0 %v351
  %v638 = vpop.f32.mrb[0].mxu0
  %v639 = vadd.f32 %v542, %v638
  %v640 = vpop.f32.mrb[0].mxu0
  %v641 = vpop.f32.mrb[0].mxu0
  %v642 = vadd.f32 %v542, %v641
  %v643 = vpop.f32.mrb[0].mxu0
  %644 = vmatprep.mubr.bf16.mxu0 0
  %645 = vmatmul.mubr.bf16.gmra.mrb[0].mxu0 %v354
  %v646 = vpop.f32.mrb[0].mxu0
  %v647 = vadd.f32 %v542, %v646
  %v648 = vpop.f32.mrb[0].mxu0
  %v649 = vpop.f32.mrb[0].mxu0
  %v650 = vadd.f32 %v542, %v649
  %v651 = vpop.f32.mrb[0].mxu0
  %652 = vdwg.mxu0
  %vm653 = vcmask 31744
  %654 = vst.msk [vmem:[%s8] sm:$0xff] %vm653, %v591
  %655 = vst.msk [vmem:[%s8 + $0x8] sm:$0xff] %vm653, %v594
  %656 = vst.msk [vmem:[%s8 + $0x10] sm:$0xff] %vm653, %v599
  %657 = vst.msk [vmem:[%s8 + $0x18] sm:$0xff] %vm653, %v602
  %658 = vst.msk [vmem:[%s8 + $0x20] sm:$0xff] %vm653, %v607
  %659 = vst.msk [vmem:[%s8 + $0x28] sm:$0xff] %vm653, %v610
  %660 = vst.msk [vmem:[%s8 + $0x30] sm:$0xff] %vm653, %v615
  %661 = vst.msk [vmem:[%s8 + $0x38] sm:$0xff] %vm653, %v618
  %662 = vst.msk [vmem:[%s8 + $0x40] sm:$0xff] %vm653, %v623
  %663 = vst.msk [vmem:[%s8 + $0x48] sm:$0xff] %vm653, %v626
  %664 = vst.msk [vmem:[%s8 + $0x50] sm:$0xff] %vm653, %v631
  %665 = vst.msk [vmem:[%s8 + $0x58] sm:$0xff] %vm653, %v634
  %666 = vst.msk [vmem:[%s8 + $0x60] sm:$0xff] %vm653, %v639
  %667 = vst.msk [vmem:[%s8 + $0x68] sm:$0xff] %vm653, %v642
  %668 = vst.msk [vmem:[%s8 + $0x70] sm:$0xff] %vm653, %v647
  %669 = vst.msk [vmem:[%s8 + $0x78] sm:$0xff] %vm653, %v650
  // Predicated region
  $region30: #{_lambda_.36} parent=0 // pred_check
    _
  $region31: #{_lambda_.36} parent=0 // pred_check_branch
    %671 = sbr.rel (0) target = $region33
  $region32: #{_lambda_.36} parent=0 // pred_region
    _
  $region33: #{_lambda_.36} parent=0 // pred_fallthru
    _
  // Predicated region
  $region34: #{_lambda_.36} parent=0 // pred_check
    _
  $region35: #{_lambda_.36} parent=0 // pred_check_branch
    %673 = sbr.rel (0) target = $region37
  $region36: #{_lambda_.36} parent=0 // pred_region
    _
  $region37: #{_lambda_.36} parent=0 // pred_fallthru
    _
  // Predicated region
  $region38: #{_lambda_.36} parent=0 // pred_check
    _
  $region39: #{_lambda_.36} parent=0 // pred_check_branch
    %675 = sbr.rel (0) target = $region41
  $region40: #{_lambda_.36} parent=0 // pred_region
    _
  $region41: #{_lambda_.36} parent=0 // pred_fallthru
    _
  // Predicated region
  $region42: #{_lambda_.36} parent=0 // pred_check
    _
  $region43: #{_lambda_.36} parent=0 // pred_check_branch
    %677 = sbr.rel (0) target = $region45
  $region44: #{_lambda_.36} parent=0 // pred_region
    _
  $region45: #{_lambda_.36} parent=0 // pred_fallthru
    _

// kernel: _lambda_.42
$region0: #{_lambda_.42}
  #allocation0 [shape = 'u32[]', space=smem, size = 0x4, offset = 0x4, fixed_abs, tag = 'smem constant byte address 0x4 - core index']
  #allocation1 [shape = 'u32[144,128]{1,0:T(1,128)}', space=vmem, size = 0x12000, scoped, tag = 'internal scratch']
  %s0 = inlined_call_operand.vmem [shape: f32[128,32], index: 0, kind: input, shape index: {}]
  %s1 = inlined_call_operand.vmem [shape: f32[1,32], index: 1, kind: input, shape index: {}]
  %s2 = inlined_call_operand.vmem [shape: f32[1,32], index: 2, kind: input, shape index: {}]
  %s3 = inlined_call_operand.vmem [shape: bf16[32,4], index: 3, kind: input, shape index: {}]
  %s4 = inlined_call_operand.vmem [shape: f32[1,4], index: 4, kind: input, shape index: {}]
  %s5 = inlined_call_operand.vmem [shape: f32[128,4], index: 5, kind: output, shape index: {}]
  %s6 = sld [smem:[#allocation0]]
  $region30: #{_lambda_.42} parent=0
    _
  %s8 = ssub.s32 1, %s6
  %s9 = scalar_select 0, %s8, %s6
  // Predicated region
  $region2: #{_lambda_.42} parent=0 // pred_check
    _
  $region3: #{_lambda_.42} parent=0 // pred_check_branch
    %11 = sbr.rel (0) target = $region5
  $region4: #{_lambda_.42} parent=0 // pred_region
    _
  $region5: #{_lambda_.42} parent=0 // pred_fallthru
    _
  // Predicated region
  $region6: #{_lambda_.42} parent=0 // pred_check
    _
  $region7: #{_lambda_.42} parent=0 // pred_check_branch
    %13 = sbr.rel (0) target = $region9
  $region8: #{_lambda_.42} parent=0 // pred_region
    _
  $region9: #{_lambda_.42} parent=0 // pred_fallthru
    _
  // Predicated region
  $region10: #{_lambda_.42} parent=0 // pred_check
    _
  $region11: #{_lambda_.42} parent=0 // pred_check_branch
    %15 = sbr.rel (0) target = $region13
  $region12: #{_lambda_.42} parent=0 // pred_region
    _
  $region13: #{_lambda_.42} parent=0 // pred_fallthru
    _
  // Predicated region
  $region14: #{_lambda_.42} parent=0 // pred_check
    _
  $region15: #{_lambda_.42} parent=0 // pred_check_branch
    %17 = sbr.rel (0) target = $region17
  $region16: #{_lambda_.42} parent=0 // pred_region
    _
  $region17: #{_lambda_.42} parent=0 // pred_fallthru
    _
  // Predicated region
  $region18: #{_lambda_.42} parent=0 // pred_check
    _
  $region19: #{_lambda_.42} parent=0 // pred_check_branch
    %19 = sbr.rel (0) target = $region21
  $region20: #{_lambda_.42} parent=0 // pred_region
    _
  $region21: #{_lambda_.42} parent=0 // pred_fallthru
    _
  %v21 = vld [vmem:[%s0] sm:$0xff]
  %v22 = vld [vmem:[%s0 + $0x8] sm:$0xff]
  %v23 = vld [vmem:[%s0 + $0x10] sm:$0xff]
  %v24 = vld [vmem:[%s0 + $0x18] sm:$0xff]
  %v25 = vld [vmem:[%s0 + $0x20] sm:$0xff]
  %v26 = vld [vmem:[%s0 + $0x28] sm:$0xff]
  %v27 = vld [vmem:[%s0 + $0x30] sm:$0xff]
  %v28 = vld [vmem:[%s0 + $0x38] sm:$0xff]
  %v29 = vld [vmem:[%s0 + $0x40] sm:$0xff]
  %v30 = vld [vmem:[%s0 + $0x48] sm:$0xff]
  %v31 = vld [vmem:[%s0 + $0x50] sm:$0xff]
  %v32 = vld [vmem:[%s0 + $0x58] sm:$0xff]
  %v33 = vld [vmem:[%s0 + $0x60] sm:$0xff]
  %v34 = vld [vmem:[%s0 + $0x68] sm:$0xff]
  %v35 = vld [vmem:[%s0 + $0x70] sm:$0xff]
  %v36 = vld [vmem:[%s0 + $0x78] sm:$0xff]
  %v37 = vld [vmem:[%s1] sm:$0x1]
  %v38 = vld [vmem:[%s2] sm:$0x1]
  %vm39 = vcmask 261120
  %v40 = vsel %vm39, %v21, 0.0
  %41 = vadd.xlane.f32.xlu0 %v40
  %v42 = vpop.xlane.xlu0 %41
  %v43 = vsel %vm39, %v22, 0.0
  %44 = vadd.xlane.f32.xlu0 %v43
  %v45 = vpop.xlane.xlu0 %44
  %v46 = vsel %vm39, %v23, 0.0
  %47 = vadd.xlane.f32.xlu0 %v46
  %v48 = vpop.xlane.xlu0 %47
  %v49 = vsel %vm39, %v24, 0.0
  %50 = vadd.xlane.f32.xlu0 %v49
  %v51 = vpop.xlane.xlu0 %50
  %v52 = vsel %vm39, %v25, 0.0
  %53 = vadd.xlane.f32.xlu0 %v52
  %v54 = vpop.xlane.xlu0 %53
  %v55 = vsel %vm39, %v26, 0.0
  %56 = vadd.xlane.f32.xlu0 %v55
  %v57 = vpop.xlane.xlu0 %56
  %v58 = vsel %vm39, %v27, 0.0
  %59 = vadd.xlane.f32.xlu0 %v58
  %v60 = vpop.xlane.xlu0 %59
  %v61 = vsel %vm39, %v28, 0.0
  %62 = vadd.xlane.f32.xlu0 %v61
  %v63 = vpop.xlane.xlu0 %62
  %v64 = vsel %vm39, %v29, 0.0
  %65 = vadd.xlane.f32.xlu0 %v64
  %v66 = vpop.xlane.xlu0 %65
  %v67 = vsel %vm39, %v30, 0.0
  %68 = vadd.xlane.f32.xlu0 %v67
  %v69 = vpop.xlane.xlu0 %68
  %v70 = vsel %vm39, %v31, 0.0
  %71 = vadd.xlane.f32.xlu0 %v70
  %v72 = vpop.xlane.xlu0 %71
  %v73 = vsel %vm39, %v32, 0.0
  %74 = vadd.xlane.f32.xlu0 %v73
  %v75 = vpop.xlane.xlu0 %74
  %v76 = vsel %vm39, %v33, 0.0
  %77 = vadd.xlane.f32.xlu0 %v76
  %v78 = vpop.xlane.xlu0 %77
  %v79 = vsel %vm39, %v34, 0.0
  %80 = vadd.xlane.f32.xlu0 %v79
  %v81 = vpop.xlane.xlu0 %80
  %v82 = vsel %vm39, %v35, 0.0
  %83 = vadd.xlane.f32.xlu0 %v82
  %v84 = vpop.xlane.xlu0 %83
  %v85 = vsel %vm39, %v36, 0.0
  %86 = vadd.xlane.f32.xlu0 %v85
  %v87 = vpop.xlane.xlu0 %86
  %v88 = vrcp.pop 32.0
  %v89 = vmul.f32 %v42, %v88
  %v90 = vmul.f32 %v45, %v88
  %v91 = vmul.f32 %v48, %v88
  %v92 = vmul.f32 %v51, %v88
  %v93 = vmul.f32 %v54, %v88
  %v94 = vmul.f32 %v57, %v88
  %v95 = vmul.f32 %v60, %v88
  %v96 = vmul.f32 %v63, %v88
  %v97 = vmul.f32 %v66, %v88
  %v98 = vmul.f32 %v69, %v88
  %v99 = vmul.f32 %v72, %v88
  %v100 = vmul.f32 %v75, %v88
  %v101 = vmul.f32 %v78, %v88
  %v102 = vmul.f32 %v81, %v88
  %v103 = vmul.f32 %v84, %v88
  %v104 = vmul.f32 %v87, %v88
  %v105 = vsub.f32 %v21, %v89
  %v106 = vsub.f32 %v22, %v90
  %v107 = vsub.f32 %v23, %v91
  %v108 = vsub.f32 %v24, %v92
  %v109 = vsub.f32 %v25, %v93
  %v110 = vsub.f32 %v26, %v94
  %v111 = vsub.f32 %v27, %v95
  %v112 = vsub.f32 %v28, %v96
  %v113 = vsub.f32 %v29, %v97
  %v114 = vsub.f32 %v30, %v98
  %v115 = vsub.f32 %v31, %v99
  %v116 = vsub.f32 %v32, %v100
  %v117 = vsub.f32 %v33, %v101
  %v118 = vsub.f32 %v34, %v102
  %v119 = vsub.f32 %v35, %v103
  %v120 = vsub.f32 %v36, %v104
  %v121 = vmul.f32 %v105, %v105
  %v122 = vmul.f32 %v106, %v106
  %v123 = vmul.f32 %v107, %v107
  %v124 = vmul.f32 %v108, %v108
  %v125 = vmul.f32 %v109, %v109
  %v126 = vmul.f32 %v110, %v110
  %v127 = vmul.f32 %v111, %v111
  %v128 = vmul.f32 %v112, %v112
  %v129 = vmul.f32 %v113, %v113
  %v130 = vmul.f32 %v114, %v114
  %v131 = vmul.f32 %v115, %v115
  %v132 = vmul.f32 %v116, %v116
  %v133 = vmul.f32 %v117, %v117
  %v134 = vmul.f32 %v118, %v118
  %v135 = vmul.f32 %v119, %v119
  %v136 = vmul.f32 %v120, %v120
  %v137 = vsel %vm39, %v121, 0.0
  %138 = vadd.xlane.f32.xlu0 %v137
  %v139 = vpop.xlane.xlu0 %138
  %v140 = vsel %vm39, %v122, 0.0
  %141 = vadd.xlane.f32.xlu0 %v140
  %v142 = vpop.xlane.xlu0 %141
  %v143 = vsel %vm39, %v123, 0.0
  %144 = vadd.xlane.f32.xlu0 %v143
  %v145 = vpop.xlane.xlu0 %144
  %v146 = vsel %vm39, %v124, 0.0
  %147 = vadd.xlane.f32.xlu0 %v146
  %v148 = vpop.xlane.xlu0 %147
  %v149 = vsel %vm39, %v125, 0.0
  %150 = vadd.xlane.f32.xlu0 %v149
  %v151 = vpop.xlane.xlu0 %150
  %v152 = vsel %vm39, %v126, 0.0
  %153 = vadd.xlane.f32.xlu0 %v152
  %v154 = vpop.xlane.xlu0 %153
  %v155 = vsel %vm39, %v127, 0.0
  %156 = vadd.xlane.f32.xlu0 %v155
  %v157 = vpop.xlane.xlu0 %156
  %v158 = vsel %vm39, %v128, 0.0
  %159 = vadd.xlane.f32.xlu0 %v158
  %v160 = vpop.xlane.xlu0 %159
  %v161 = vsel %vm39, %v129, 0.0
  %162 = vadd.xlane.f32.xlu0 %v161
  %v163 = vpop.xlane.xlu0 %162
  %v164 = vsel %vm39, %v130, 0.0
  %165 = vadd.xlane.f32.xlu0 %v164
  %v166 = vpop.xlane.xlu0 %165
  %v167 = vsel %vm39, %v131, 0.0
  %168 = vadd.xlane.f32.xlu0 %v167
  %v169 = vpop.xlane.xlu0 %168
  %v170 = vsel %vm39, %v132, 0.0
  %171 = vadd.xlane.f32.xlu0 %v170
  %v172 = vpop.xlane.xlu0 %171
  %v173 = vsel %vm39, %v133, 0.0
  %174 = vadd.xlane.f32.xlu0 %v173
  %v175 = vpop.xlane.xlu0 %174
  %v176 = vsel %vm39, %v134, 0.0
  %177 = vadd.xlane.f32.xlu0 %v176
  %v178 = vpop.xlane.xlu0 %177
  %v179 = vsel %vm39, %v135, 0.0
  %180 = vadd.xlane.f32.xlu0 %v179
  %v181 = vpop.xlane.xlu0 %180
  %v182 = vsel %vm39, %v136, 0.0
  %183 = vadd.xlane.f32.xlu0 %v182
  %v184 = vpop.xlane.xlu0 %183
  %v185 = vmul.f32 %v139, %v88
  %v186 = vmul.f32 %v142, %v88
  %v187 = vmul.f32 %v145, %v88
  %v188 = vmul.f32 %v148, %v88
  %v189 = vmul.f32 %v151, %v88
  %v190 = vmul.f32 %v154, %v88
  %v191 = vmul.f32 %v157, %v88
  %v192 = vmul.f32 %v160, %v88
  %v193 = vmul.f32 %v163, %v88
  %v194 = vmul.f32 %v166, %v88
  %v195 = vmul.f32 %v169, %v88
  %v196 = vmul.f32 %v172, %v88
  %v197 = vmul.f32 %v175, %v88
  %v198 = vmul.f32 %v178, %v88
  %v199 = vmul.f32 %v181, %v88
  %v200 = vmul.f32 %v184, %v88
  %v201 = vadd.f32 %v185, 1e-05
  %v202 = vadd.f32 %v186, 1e-05
  %v203 = vadd.f32 %v187, 1e-05
  %v204 = vadd.f32 %v188, 1e-05
  %v205 = vadd.f32 %v189, 1e-05
  %v206 = vadd.f32 %v190, 1e-05
  %v207 = vadd.f32 %v191, 1e-05
  %v208 = vadd.f32 %v192, 1e-05
  %v209 = vadd.f32 %v193, 1e-05
  %v210 = vadd.f32 %v194, 1e-05
  %v211 = vadd.f32 %v195, 1e-05
  %v212 = vadd.f32 %v196, 1e-05
  %v213 = vadd.f32 %v197, 1e-05
  %v214 = vadd.f32 %v198, 1e-05
  %v215 = vadd.f32 %v199, 1e-05
  %v216 = vadd.f32 %v200, 1e-05
  %v217 = vrsqrt.pop %v201
  %v218 = vrsqrt.pop %v202
  %v219 = vrsqrt.pop %v203
  %v220 = vrsqrt.pop %v204
  %v221 = vrsqrt.pop %v205
  %v222 = vrsqrt.pop %v206
  %v223 = vrsqrt.pop %v207
  %v224 = vrsqrt.pop %v208
  %v225 = vrsqrt.pop %v209
  %v226 = vrsqrt.pop %v210
  %v227 = vrsqrt.pop %v211
  %v228 = vrsqrt.pop %v212
  %v229 = vrsqrt.pop %v213
  %v230 = vrsqrt.pop %v214
  %v231 = vrsqrt.pop %v215
  %v232 = vrsqrt.pop %v216
  %v233 = vmul.f32 %v105, %v217
  %v234 = vmul.f32 %v106, %v218
  %v235 = vmul.f32 %v107, %v219
  %v236 = vmul.f32 %v108, %v220
  %v237 = vmul.f32 %v109, %v221
  %v238 = vmul.f32 %v110, %v222
  %v239 = vmul.f32 %v111, %v223
  %v240 = vmul.f32 %v112, %v224
  %v241 = vmul.f32 %v113, %v225
  %v242 = vmul.f32 %v114, %v226
  %v243 = vmul.f32 %v115, %v227
  %v244 = vmul.f32 %v116, %v228
  %v245 = vmul.f32 %v117, %v229
  %v246 = vmul.f32 %v118, %v230
  %v247 = vmul.f32 %v119, %v231
  %v248 = vmul.f32 %v120, %v232
  %v250 = vlaneseq
  %v251 = vshrl.u32 %v250, 7
  %v252 = vsub.s32 0, %v251
  %v253 = vrot.slane %v37, %v252
  %v255 = vmul.f32 %v233, %v253
  %v256 = vmul.f32 %v234, %v253
  %v257 = vmul.f32 %v235, %v253
  %v258 = vmul.f32 %v236, %v253
  %v259 = vmul.f32 %v237, %v253
  %v260 = vmul.f32 %v238, %v253
  %v261 = vmul.f32 %v239, %v253
  %v262 = vmul.f32 %v240, %v253
  %v263 = vmul.f32 %v241, %v253
  %v264 = vmul.f32 %v242, %v253
  %v265 = vmul.f32 %v243, %v253
  %v266 = vmul.f32 %v244, %v253
  %v267 = vmul.f32 %v245, %v253
  %v268 = vmul.f32 %v246, %v253
  %v269 = vmul.f32 %v247, %v253
  %v270 = vmul.f32 %v248, %v253
  %v272 = vlaneseq
  %v273 = vshrl.u32 %v272, 7
  %v274 = vsub.s32 0, %v273
  %v275 = vrot.slane %v38, %v274
  %v277 = vadd.f32 %v255, %v275
  %v278 = vadd.f32 %v256, %v275
  %v279 = vadd.f32 %v257, %v275
  %v280 = vadd.f32 %v258, %v275
  %v281 = vadd.f32 %v259, %v275
  %v282 = vadd.f32 %v260, %v275
  %v283 = vadd.f32 %v261, %v275
  %v284 = vadd.f32 %v262, %v275
  %v285 = vadd.f32 %v263, %v275
  %v286 = vadd.f32 %v264, %v275
  %v287 = vadd.f32 %v265, %v275
  %v288 = vadd.f32 %v266, %v275
  %v289 = vadd.f32 %v267, %v275
  %v290 = vadd.f32 %v268, %v275
  %v291 = vadd.f32 %v269, %v275
  %v292 = vadd.f32 %v270, %v275
  %v293 = vpack.c.bf16 %v278, %v277
  %v294 = vpack.c.bf16 %v280, %v279
  %v295 = vpack.c.bf16 %v282, %v281
  %v296 = vpack.c.bf16 %v284, %v283
  %v297 = vpack.c.bf16 %v286, %v285
  %v298 = vpack.c.bf16 %v288, %v287
  %v299 = vpack.c.bf16 %v290, %v289
  %v300 = vpack.c.bf16 %v292, %v291
  %v301 = vld [vmem:[%s3] sm:$0xf]
  %v302 = vld [vmem:[%s3 + $0x4] sm:$0xf]
  %v303 = vld [vmem:[%s3 + $0x8] sm:$0xf]
  %v304 = vld [vmem:[%s3 + $0xc] sm:$0xf]
  %v305 = vld [vmem:[%s4] sm:$0x1]
  %v307 = vlaneseq
  %v308 = vshrl.u32 %v307, 7
  %v309 = vsub.s32 0, %v308
  %v310 = vrot.slane %v305, %v309
  %v316 = vunpack.c.l.b16 %v301
  %v317 = vunpack.c.l.b16 %v302
  %v318 = vunpack.c.l.b16 %v303
  %v319 = vunpack.c.l.b16 %v304
  %v320 = vpack.c.b16 %v317, %v316
  %v321 = vpack.c.b16 %v319, %v318
  %v325 = vsel %vm39, %v293, 0
  %v328 = vsel %vm39, %v294, 0
  %v331 = vsel %vm39, %v295, 0
  %v334 = vsel %vm39, %v296, 0
  %v337 = vsel %vm39, %v297, 0
  %v340 = vsel %vm39, %v298, 0
  %v343 = vsel %vm39, %v299, 0
  %v346 = vsel %vm39, %v300, 0
  %348 = vmatprep.subr.bf16.mxu0 0
  %349 = vmatpush1.bf16.msra.mxu0 %v320
  %350 = vmatprep.subr.bf16.mxu0 0
  %351 = vmatpush1.bf16.msra.mxu0 %v321
  %352 = vmatprep.subr.bf16.mxu0 0
  %353 = vmatpush1.bf16.msra.mxu0 0
  %354 = vmatprep.subr.bf16.mxu0 0
  %355 = vmatpush1.bf16.msra.mxu0 0
  %356 = vmatprep.subr.bf16.mxu0 0
  %357 = vmatpush1.bf16.msra.mxu0 0
  %358 = vmatprep.subr.bf16.mxu0 0
  %359 = vmatpush1.bf16.msra.mxu0 0
  %360 = vmatprep.subr.bf16.mxu0 0
  %361 = vmatpush1.bf16.msra.mxu0 0
  %362 = vmatprep.subr.bf16.mxu0 0
  %363 = vmatpush1.bf16.msra.mxu0 0
  %364 = vmatprep.subr.bf16.mxu0 0
  %365 = vmatpush1.bf16.msra.mxu0 0
  %366 = vmatprep.subr.bf16.mxu0 0
  %367 = vmatpush1.bf16.msra.mxu0 0
  %368 = vmatprep.subr.bf16.mxu0 0
  %369 = vmatpush1.bf16.msra.mxu0 0
  %370 = vmatprep.subr.bf16.mxu0 0
  %371 = vmatpush1.bf16.msra.mxu0 0
  %372 = vmatprep.subr.bf16.mxu0 0
  %373 = vmatpush1.bf16.msra.mxu0 0
  %374 = vmatprep.subr.bf16.mxu0 0
  %375 = vmatpush1.bf16.msra.mxu0 0
  %376 = vmatprep.subr.bf16.mxu0 0
  %377 = vmatpush1.bf16.msra.mxu0 0
  %378 = vmatprep.subr.bf16.mxu0 0
  %379 = vmatpush1.bf16.msra.mxu0 0
  %380 = vmatprep.mubr.bf16.mxu0 0
  %381 = vmatmul.mubr.bf16.gmra.mrb[0].mxu0 %v325
  %v382 = vpop.f32.mrb[0].mxu0
  %v383 = vadd.f32 %v310, %v382
  %v384 = vpop.f32.mrb[0].mxu0
  %v385 = vpop.f32.mrb[0].mxu0
  %v386 = vadd.f32 %v310, %v385
  %v387 = vpop.f32.mrb[0].mxu0
  %388 = vmatprep.mubr.bf16.mxu0 0
  %389 = vmatmul.mubr.bf16.gmra.mrb[0].mxu0 %v328
  %v390 = vpop.f32.mrb[0].mxu0
  %v391 = vadd.f32 %v310, %v390
  %v392 = vpop.f32.mrb[0].mxu0
  %v393 = vpop.f32.mrb[0].mxu0
  %v394 = vadd.f32 %v310, %v393
  %v395 = vpop.f32.mrb[0].mxu0
  %396 = vmatprep.mubr.bf16.mxu0 0
  %397 = vmatmul.mubr.bf16.gmra.mrb[0].mxu0 %v331
  %v398 = vpop.f32.mrb[0].mxu0
  %v399 = vadd.f32 %v310, %v398
  %v400 = vpop.f32.mrb[0].mxu0
  %v401 = vpop.f32.mrb[0].mxu0
  %v402 = vadd.f32 %v310, %v401
  %v403 = vpop.f32.mrb[0].mxu0
  %404 = vmatprep.mubr.bf16.mxu0 0
  %405 = vmatmul.mubr.bf16.gmra.mrb[0].mxu0 %v334
  %v406 = vpop.f32.mrb[0].mxu0
  %v407 = vadd.f32 %v310, %v406
  %v408 = vpop.f32.mrb[0].mxu0
  %v409 = vpop.f32.mrb[0].mxu0
  %v410 = vadd.f32 %v310, %v409
  %v411 = vpop.f32.mrb[0].mxu0
  %412 = vmatprep.mubr.bf16.mxu0 0
  %413 = vmatmul.mubr.bf16.gmra.mrb[0].mxu0 %v337
  %v414 = vpop.f32.mrb[0].mxu0
  %v415 = vadd.f32 %v310, %v414
  %v416 = vpop.f32.mrb[0].mxu0
  %v417 = vpop.f32.mrb[0].mxu0
  %v418 = vadd.f32 %v310, %v417
  %v419 = vpop.f32.mrb[0].mxu0
  %420 = vmatprep.mubr.bf16.mxu0 0
  %421 = vmatmul.mubr.bf16.gmra.mrb[0].mxu0 %v340
  %v422 = vpop.f32.mrb[0].mxu0
  %v423 = vadd.f32 %v310, %v422
  %v424 = vpop.f32.mrb[0].mxu0
  %v425 = vpop.f32.mrb[0].mxu0
  %v426 = vadd.f32 %v310, %v425
  %v427 = vpop.f32.mrb[0].mxu0
  %428 = vmatprep.mubr.bf16.mxu0 0
  %429 = vmatmul.mubr.bf16.gmra.mrb[0].mxu0 %v343
  %v430 = vpop.f32.mrb[0].mxu0
  %v431 = vadd.f32 %v310, %v430
  %v432 = vpop.f32.mrb[0].mxu0
  %v433 = vpop.f32.mrb[0].mxu0
  %v434 = vadd.f32 %v310, %v433
  %v435 = vpop.f32.mrb[0].mxu0
  %436 = vmatprep.mubr.bf16.mxu0 0
  %437 = vmatmul.mubr.bf16.gmra.mrb[0].mxu0 %v346
  %v438 = vpop.f32.mrb[0].mxu0
  %v439 = vadd.f32 %v310, %v438
  %v440 = vpop.f32.mrb[0].mxu0
  %v441 = vpop.f32.mrb[0].mxu0
  %v442 = vadd.f32 %v310, %v441
  %v443 = vpop.f32.mrb[0].mxu0
  %444 = vdwg.mxu0
  %vm445 = vcmask 31744
  %446 = vst.msk [vmem:[%s5] sm:$0xff] %vm445, %v383
  %447 = vst.msk [vmem:[%s5 + $0x8] sm:$0xff] %vm445, %v386
  %448 = vst.msk [vmem:[%s5 + $0x10] sm:$0xff] %vm445, %v391
  %449 = vst.msk [vmem:[%s5 + $0x18] sm:$0xff] %vm445, %v394
  %450 = vst.msk [vmem:[%s5 + $0x20] sm:$0xff] %vm445, %v399
  %451 = vst.msk [vmem:[%s5 + $0x28] sm:$0xff] %vm445, %v402
  %452 = vst.msk [vmem:[%s5 + $0x30] sm:$0xff] %vm445, %v407
  %453 = vst.msk [vmem:[%s5 + $0x38] sm:$0xff] %vm445, %v410
  %454 = vst.msk [vmem:[%s5 + $0x40] sm:$0xff] %vm445, %v415
  %455 = vst.msk [vmem:[%s5 + $0x48] sm:$0xff] %vm445, %v418
  %456 = vst.msk [vmem:[%s5 + $0x50] sm:$0xff] %vm445, %v423
  %457 = vst.msk [vmem:[%s5 + $0x58] sm:$0xff] %vm445, %v426
  %458 = vst.msk [vmem:[%s5 + $0x60] sm:$0xff] %vm445, %v431
  %459 = vst.msk [vmem:[%s5 + $0x68] sm:$0xff] %vm445, %v434
  %460 = vst.msk [vmem:[%s5 + $0x70] sm:$0xff] %vm445, %v439
  %461 = vst.msk [vmem:[%s5 + $0x78] sm:$0xff] %vm445, %v442
  // Predicated region
  $region22: #{_lambda_.42} parent=0 // pred_check
    _
  $region23: #{_lambda_.42} parent=0 // pred_check_branch
    %463 = sbr.rel (0) target = $region25
  $region24: #{_lambda_.42} parent=0 // pred_region
    _
  $region25: #{_lambda_.42} parent=0 // pred_fallthru
    _
  // Predicated region
  $region26: #{_lambda_.42} parent=0 // pred_check
    _
  $region27: #{_lambda_.42} parent=0 // pred_check_branch
    %465 = sbr.rel (0) target = $region29
  $region28: #{_lambda_.42} parent=0 // pred_region
    _
  $region29: #{_lambda_.42} parent=0 // pred_fallthru
    _

// kernel: _lambda_.37
$region0: #{_lambda_.37}
  #allocation0 [shape = 'u32[]', space=smem, size = 0x4, offset = 0x4, fixed_abs, tag = 'smem constant byte address 0x4 - core index']
  #allocation1 [shape = 'u32[144,128]{1,0:T(1,128)}', space=vmem, size = 0x12000, scoped, tag = 'internal scratch']
  %s0 = inlined_call_operand.vmem [shape: bf16[2,8,8,128], index: 0, kind: input, shape index: {}]
  %s1 = inlined_call_operand.vmem [shape: f32[2,4,8,8], index: 1, kind: input, shape index: {}]
  %s2 = inlined_call_operand.vmem [shape: f32[2,8,1,8], index: 2, kind: input, shape index: {}]
  %s3 = inlined_call_operand.vmem [shape: bf16[32,32], index: 3, kind: input, shape index: {}]
  %s4 = inlined_call_operand.vmem [shape: f32[1,32], index: 4, kind: input, shape index: {}]
  %s5 = inlined_call_operand.vmem [shape: f32[2,8,8,32], index: 5, kind: output, shape index: {}]
  %s6 = sld [smem:[#allocation0]]
  $region53: #{_lambda_.37} parent=0
    _
  %s8 = ssub.s32 1, %s6
  %s9 = scalar_select 0, %s8, %s6
  loop: start=0, step=1, limit=18
  $region2: #{_lambda_.37} parent=0 // loop_pre_header
    _
  $region3: #{_lambda_.37} parent=0 // loop_header
    %s11 = sphi 0, %s15
    %p12 = scmp.ge.s32.totalorder %s11, 18
    %s18 = sphi 0, %s30
    %s19 = sphi 0, %s26
    %s20 = sphi 0, %s18
    %s21 = sphi 0, %s19
    %s22 = sphi 0, %s20
    %s23 = sphi 0, %s21
    %s35 = sphi 0, %s37
    %s38 = sphi 0, %s35
    %s39 = sphi 0, %s38
    %s55 = sphi 0, %s39
    %s61 = sphi 0, %s63
    %s64 = sphi 0, %s61
    %s65 = sphi 0, %s64
    %s81 = sphi 0, %s65
    %s89 = sphi 0, %s91
    %s92 = sphi 0, %s89
    %s93 = sphi 0, %s92
    %s109 = sphi 0, %s93
    %s113 = sphi 0, %s113
    %s115 = sphi 0, %s113
    %s116 = sphi 0, %s115
    %s130 = sphi 0, %s116
    %s134 = sphi 0, %s134
    %s136 = sphi 0, %s134
    %s137 = sphi 0, %s136
    %s151 = sphi 0, %s137
    %s159 = sphi 0, %s161
    %s162 = sphi 0, %s159
    %s163 = sphi 0, %s162
    %s179 = sphi 0, %s163
  $region4: #{_lambda_.37} parent=0 // loop_header_branch
    %14 = sbr.rel (%p12) target = $region8
  $region5: #{_lambda_.37} parent=0 // loop_body
    %s16 = ssub.s32 %s11, 1
    %s17 = ssub.s32 %s11, 2
    %s24 = sadd.s32 1, %s19
    %p25 = scmp.ge.s32.totalorder %s24, 8
    %s26 = scalar_select %p25, 0, %s24
    %s27 = sadd.s32 1, %s18
    %s28 = scalar_select %p25, %s27, %s18
    %p29 = scmp.ge.s32.totalorder %s28, 2
    %s30 = scalar_select %p29, 0, %s28
    %s31 = ssub.s32 %s18, %s30
    %s32 = ssub.s32 %s19, %s26
    %s33 = sor.u32 %s31, %s32
    %p34 = scmp.eq.s32.totalorder %s33, 0
    %s36 = sadd.s32 %s35, 1
    %s37 = scalar_select %p34, %s35, %s36
    %p40 = pneg %p34
    %p41 = scmp.eq.s32.totalorder %s11, 15
    %p42 = por %p40, %p41
    %p43 = scmp.ne.s32.totalorder %s35, %s38
    %p44 = scmp.eq.s32.totalorder %s11, 0
    %p45 = por %p43, %p44
    %p46 = scmp.ne.s32.totalorder %s35, %s38
    %p47 = scmp.eq.s32.totalorder %s16, 15
    %p48 = por %p46, %p47
    %p49 = scmp.ne.s32.totalorder %s38, %s39
    %p50 = scmp.eq.s32.totalorder %s16, 0
    %p51 = por %p49, %p50
    %p52 = scmp.ne.s32.totalorder %s38, %s39
    %p53 = scmp.eq.s32.totalorder %s17, 15
    %p54 = por %p52, %p53
    %p56 = scmp.ne.s32.totalorder %s39, %s55
    %p57 = scmp.eq.s32.totalorder %s17, 0
    %p58 = por %p56, %p57
    %s59 = ssub.s32 %s18, %s30
    %p60 = scmp.eq.s32.totalorder %s59, 0
    %s62 = sadd.s32 %s61, 1
    %s63 = scalar_select %p60, %s61, %s62
    %p66 = pneg %p60
    %p67 = scmp.eq.s32.totalorder %s11, 15
    %p68 = por %p66, %p67
    %p69 = scmp.ne.s32.totalorder %s61, %s64
    %p70 = scmp.eq.s32.totalorder %s11, 0
    %p71 = por %p69, %p70
    %p72 = scmp.ne.s32.totalorder %s61, %s64
    %p73 = scmp.eq.s32.totalorder %s16, 15
    %p74 = por %p72, %p73
    %p75 = scmp.ne.s32.totalorder %s64, %s65
    %p76 = scmp.eq.s32.totalorder %s16, 0
    %p77 = por %p75, %p76
    %p78 = scmp.ne.s32.totalorder %s64, %s65
    %p79 = scmp.eq.s32.totalorder %s17, 15
    %p80 = por %p78, %p79
    %p82 = scmp.ne.s32.totalorder %s65, %s81
    %p83 = scmp.eq.s32.totalorder %s17, 0
    %p84 = por %p82, %p83
    %s85 = ssub.s32 %s18, %s30
    %s86 = ssub.s32 %s19, %s26
    %s87 = sor.u32 %s85, %s86
    %p88 = scmp.eq.s32.totalorder %s87, 0
    %s90 = sadd.s32 %s89, 1
    %s91 = scalar_select %p88, %s89, %s90
    %p94 = pneg %p88
    %p95 = scmp.eq.s32.totalorder %s11, 15
    %p96 = por %p94, %p95
    %p97 = scmp.ne.s32.totalorder %s89, %s92
    %p98 = scmp.eq.s32.totalorder %s11, 0
    %p99 = por %p97, %p98
    %p100 = scmp.ne.s32.totalorder %s89, %s92
    %p101 = scmp.eq.s32.totalorder %s16, 15
    %p102 = por %p100, %p101
    %p103 = scmp.ne.s32.totalorder %s92, %s93
    %p104 = scmp.eq.s32.totalorder %s16, 0
    %p105 = por %p103, %p104
    %p106 = scmp.ne.s32.totalorder %s92, %s93
    %p107 = scmp.eq.s32.totalorder %s17, 15
    %p108 = por %p106, %p107
    %p110 = scmp.ne.s32.totalorder %s93, %s109
    %p111 = scmp.eq.s32.totalorder %s17, 0
    %p112 = por %p110, %p111
    %s114 = sadd.s32 %s113, 1
    %p117 = scmp.eq.s32.totalorder %s11, 15
    %p118 = scmp.ne.s32.totalorder %s113, %s115
    %p119 = scmp.eq.s32.totalorder %s11, 0
    %p120 = por %p118, %p119
    %p121 = scmp.ne.s32.totalorder %s113, %s115
    %p122 = scmp.eq.s32.totalorder %s16, 15
    %p123 = por %p121, %p122
    %p124 = scmp.ne.s32.totalorder %s115, %s116
    %p125 = scmp.eq.s32.totalorder %s16, 0
    %p126 = por %p124, %p125
    %p127 = scmp.ne.s32.totalorder %s115, %s116
    %p128 = scmp.eq.s32.totalorder %s17, 15
    %p129 = por %p127, %p128
    %p131 = scmp.ne.s32.totalorder %s116, %s130
    %p132 = scmp.eq.s32.totalorder %s17, 0
    %p133 = por %p131, %p132
    %s135 = sadd.s32 %s134, 1
    %p138 = scmp.eq.s32.totalorder %s11, 15
    %p139 = scmp.ne.s32.totalorder %s134, %s136
    %p140 = scmp.eq.s32.totalorder %s11, 0
    %p141 = por %p139, %p140
    %p142 = scmp.ne.s32.totalorder %s134, %s136
    %p143 = scmp.eq.s32.totalorder %s16, 15
    %p144 = por %p142, %p143
    %p145 = scmp.ne.s32.totalorder %s136, %s137
    %p146 = scmp.eq.s32.totalorder %s16, 0
    %p147 = por %p145, %p146
    %p148 = scmp.ne.s32.totalorder %s136, %s137
    %p149 = scmp.eq.s32.totalorder %s17, 15
    %p150 = por %p148, %p149
    %p152 = scmp.ne.s32.totalorder %s137, %s151
    %p153 = scmp.eq.s32.totalorder %s17, 0
    %p154 = por %p152, %p153
    %s155 = ssub.s32 %s18, %s30
    %s156 = ssub.s32 %s19, %s26
    %s157 = sor.u32 %s155, %s156
    %p158 = scmp.eq.s32.totalorder %s157, 0
    %s160 = sadd.s32 %s159, 1
    %s161 = scalar_select %p158, %s159, %s160
    %p164 = pneg %p158
    %p165 = scmp.eq.s32.totalorder %s11, 15
    %p166 = por %p164, %p165
    %p167 = scmp.ne.s32.totalorder %s159, %s162
    %p168 = scmp.eq.s32.totalorder %s11, 0
    %p169 = por %p167, %p168
    %p170 = scmp.ne.s32.totalorder %s159, %s162
    %p171 = scmp.eq.s32.totalorder %s16, 15
    %p172 = por %p170, %p171
    %p173 = scmp.ne.s32.totalorder %s162, %s163
    %p174 = scmp.eq.s32.totalorder %s16, 0
    %p175 = por %p173, %p174
    %p176 = scmp.ne.s32.totalorder %s162, %s163
    %p177 = scmp.eq.s32.totalorder %s17, 15
    %p178 = por %p176, %p177
    %p180 = scmp.ne.s32.totalorder %s163, %s179
    %p181 = scmp.eq.s32.totalorder %s17, 0
    %p182 = por %p180, %p181
    %p183 = scmp.le.s32.totalorder 1, %s11
    %p184 = scmp.lt.s32.totalorder %s11, 17
    %p185 = pnand %p183, %p184
    %p186 = pneg %p185
    // Predicated region
    $region9: #{_lambda_.37} parent=5 // pred_check
      _
    $region10: #{_lambda_.37} parent=5 // pred_check_branch
      %188 = sbr.rel (%p185) target = $region12
    $region11: #{_lambda_.37} parent=5 // pred_region
      %s189 = ssub.s32 %s11, 1
      // Predicated region
      $region13: #{_lambda_.37} parent=11 // pred_check
        %p190 = pneg %p126
      $region14: #{_lambda_.37} parent=11 // pred_check_branch
        %192 = sbr.rel (%p190) target = $region16
      $region15: #{_lambda_.37} parent=11 // pred_region
        _
      $region16: #{_lambda_.37} parent=11 // pred_fallthru
        _
      // Predicated region
      $region17: #{_lambda_.37} parent=11 // pred_check
        %p193 = pneg %p147
      $region18: #{_lambda_.37} parent=11 // pred_check_branch
        %195 = sbr.rel (%p193) target = $region20
      $region19: #{_lambda_.37} parent=11 // pred_region
        _
      $region20: #{_lambda_.37} parent=11 // pred_fallthru
        _
    $region12: #{_lambda_.37} parent=5 // pred_fallthru
      _
    %p196 = scmp.lt.s32.totalorder %s11, 16
    // Predicated region
    $region21: #{_lambda_.37} parent=5 // pred_check
      %p197 = pneg %p196
    $region22: #{_lambda_.37} parent=5 // pred_check_branch
      %199 = sbr.rel (%p197) target = $region24
    $region23: #{_lambda_.37} parent=5 // pred_region
      // Predicated region
      $region25: #{_lambda_.37} parent=23 // pred_check
        %p200 = pneg %p45
      $region26: #{_lambda_.37} parent=23 // pred_check_branch
        %202 = sbr.rel (%p200) target = $region28
      $region27: #{_lambda_.37} parent=23 // pred_region
        %p203 = scmp.lt.s32.totalorder %s18, 1
        %s204 = scalar_select %p203, %s18, 1
        %p205 = scmp.lt.s32.totalorder %s19, 7
        %s206 = scalar_select %p205, %s19, 7
        %s207 = smul.addr %s204, 8
        %s208 = sadd.s32 %s206, %s207
        %s209 = smul.addr %s208, 4
        %s210 = scalar_lea.vmem %s0, %s209
      $region28: #{_lambda_.37} parent=23 // pred_fallthru
        _
      // Predicated region
      $region29: #{_lambda_.37} parent=23 // pred_check
        %p211 = pneg %p71
      $region30: #{_lambda_.37} parent=23 // pred_check_branch
        %213 = sbr.rel (%p211) target = $region32
      $region31: #{_lambda_.37} parent=23 // pred_region
        %p214 = scmp.lt.s32.totalorder %s18, 1
        %s215 = scalar_select %p214, %s18, 1
        %s216 = smul.addr %s215, 4
        %s217 = smul.addr %s216, 8
        %s218 = scalar_lea.vmem %s1, %s217
      $region32: #{_lambda_.37} parent=23 // pred_fallthru
        _
      // Predicated region
      $region33: #{_lambda_.37} parent=23 // pred_check
        %p219 = pneg %p99
      $region34: #{_lambda_.37} parent=23 // pred_check_branch
        %221 = sbr.rel (%p219) target = $region36
      $region35: #{_lambda_.37} parent=23 // pred_region
        %p222 = scmp.lt.s32.totalorder %s18, 1
        %s223 = scalar_select %p222, %s18, 1
        %p224 = scmp.lt.s32.totalorder %s19, 7
        %s225 = scalar_select %p224, %s19, 7
        %s226 = smul.addr %s223, 8
        %s227 = sadd.s32 %s225, %s226
        %s228 = scalar_lea.vmem %s2, %s227
      $region36: #{_lambda_.37} parent=23 // pred_fallthru
        _
    $region24: #{_lambda_.37} parent=5 // pred_fallthru
      _
    %p229 = scmp.le.s32.totalorder 1, %s11
    %p230 = scmp.lt.s32.totalorder %s11, 17
    %p231 = pnand %p229, %p230
    %p232 = pneg %p231
    // Predicated region
    $region37: #{_lambda_.37} parent=5 // pred_check
      _
    $region38: #{_lambda_.37} parent=5 // pred_check_branch
      %234 = sbr.rel (%p231) target = $region40
    $region39: #{_lambda_.37} parent=5 // pred_region
      %s235 = ssub.s32 %s11, 1
      %p236 = scmp.lt.s32.totalorder %s20, 1
      %s237 = scalar_select %p236, %s20, 1
      %p238 = scmp.lt.s32.totalorder %s21, 7
      %s239 = scalar_select %p238, %s21, 7
      %s240 = smul.addr %s237, 8
      %s241 = sadd.s32 %s239, %s240
      %s242 = smul.addr %s241, 4
      %s243 = scalar_lea.vmem %s0, %s242
      %p244 = pneg %p51
      %p245 = pneg %p48
      %p246 = scmp.lt.s32.totalorder %s20, 1
      %s247 = scalar_select %p246, %s20, 1
      %s248 = smul.addr %s247, 4
      %s249 = smul.addr %s248, 8
      %s250 = scalar_lea.vmem %s1, %s249
      %p251 = pneg %p77
      %p252 = pneg %p74
      %p253 = scmp.lt.s32.totalorder %s20, 1
      %s254 = scalar_select %p253, %s20, 1
      %p255 = scmp.lt.s32.totalorder %s21, 7
      %s256 = scalar_select %p255, %s21, 7
      %s257 = smul.addr %s254, 8
      %s258 = sadd.s32 %s256, %s257
      %s259 = scalar_lea.vmem %s2, %s258
      %p260 = pneg %p105
      %p261 = pneg %p102
      %p262 = pneg %p126
      %p263 = pneg %p123
      %p264 = pneg %p147
      %p265 = pneg %p144
      %p266 = pneg %p175
      %p267 = pneg %p172
      %p268 = scmp.lt.s32.totalorder %s20, 1
      %s269 = scalar_select %p268, %s20, 1
      %p270 = scmp.lt.s32.totalorder %s21, 7
      %s271 = scalar_select %p270, %s21, 7
      %s272 = smul.addr %s269, 8
      %s273 = sadd.s32 %s271, %s272
      %s274 = smul.addr %s273, 8
      %s275 = scalar_lea.vmem %s5, %s274
      %p276 = scmp.lt.s32.totalorder %s20, 1
      %s277 = scalar_select %p276, %s20, 1
      %p278 = scmp.lt.s32.totalorder %s21, 7
      %s279 = scalar_select %p278, %s21, 7
      %s280 = smul.addr %s277, 8
      %s281 = sadd.s32 %s279, %s280
      %s282 = smul.addr %s281, 4
      %s283 = scalar_lea.vmem %s0, %s282
      %p284 = scmp.lt.s32.totalorder %s20, 1
      %s285 = scalar_select %p284, %s20, 1
      %s286 = smul.addr %s285, 4
      %s287 = smul.addr %s286, 8
      %s288 = scalar_lea.vmem %s1, %s287
      %p289 = scmp.lt.s32.totalorder %s20, 1
      %s290 = scalar_select %p289, %s20, 1
      %p291 = scmp.lt.s32.totalorder %s21, 7
      %s292 = scalar_select %p291, %s21, 7
      %s293 = smul.addr %s290, 8
      %s294 = sadd.s32 %s292, %s293
      %s295 = scalar_lea.vmem %s2, %s294
      %p296 = scmp.lt.s32.totalorder %s20, 1
      %s297 = scalar_select %p296, %s20, 1
      %p298 = scmp.lt.s32.totalorder %s21, 7
      %s299 = scalar_select %p298, %s21, 7
      %s300 = smul.addr %s297, 8
      %s301 = sadd.s32 %s299, %s300
      %s302 = smul.addr %s301, 8
      %s303 = scalar_lea.vmem %s5, %s302
      %v305 = vld [vmem:[%s283] sm:$0xf]
      %v306 = vunpack.c.l.bf16 %v305
      %v307 = vld [vmem:[%s288] sm:$0xff]
      %v308 = vld [vmem:[%s288 + $0x8] sm:$0xff]
      %v309 = vld [vmem:[%s288 + $0x10] sm:$0xff]
      %v310 = vld [vmem:[%s288 + $0x18] sm:$0xff]
      %v311 = vld [vmem:[%s295] sm:$0x1]
      %v312 = vpack.c.bf16 %v306, %v306
      %314 = vrot.lane.b32.xlu0 %v312, 96
      %v315 = vpop.permute.xlu0 %314
      %vm316 = vcmask 64512
      %v318 = vsel %vm316, %v312, 0
      %v321 = vsel %vm316, %v315, 0
      %323 = vmatprep.subr.bf16.mxu0 0
      %324 = vmatpush1.bf16.xpose.msra.mxu0 %v321
      %325 = vmatprep.subr.bf16.mxu0 0
      %326 = vmatpush1.bf16.xpose.msra.mxu0 0
      %327 = vmatprep.subr.bf16.mxu0 0
      %328 = vmatpush1.bf16.xpose.msra.mxu0 0
      %329 = vmatprep.subr.bf16.mxu0 0
      %330 = vmatpush1.bf16.xpose.msra.mxu0 0
      %331 = vmatprep.subr.bf16.mxu0 0
      %332 = vmatpush1.bf16.xpose.msra.mxu0 0
      %333 = vmatprep.subr.bf16.mxu0 0
      %334 = vmatpush1.bf16.xpose.msra.mxu0 0
      %335 = vmatprep.subr.bf16.mxu0 0
      %336 = vmatpush1.bf16.xpose.msra.mxu0 0
      %337 = vmatprep.subr.bf16.mxu0 0
      %338 = vmatpush1.bf16.xpose.msra.mxu0 0
      %339 = vmatprep.subr.bf16.mxu0 0
      %340 = vmatpush1.bf16.xpose.msra.mxu0 0
      %341 = vmatprep.subr.bf16.mxu0 0
      %342 = vmatpush1.bf16.xpose.msra.mxu0 0
      %343 = vmatprep.subr.bf16.mxu0 0
      %344 = vmatpush1.bf16.xpose.msra.mxu0 0
      %345 = vmatprep.subr.bf16.mxu0 0
      %346 = vmatpush1.bf16.xpose.msra.mxu0 0
      %347 = vmatprep.subr.bf16.mxu0 0
      %348 = vmatpush1.bf16.xpose.msra.mxu0 0
      %349 = vmatprep.subr.bf16.mxu0 0
      %350 = vmatpush1.bf16.xpose.msra.mxu0 0
      %351 = vmatprep.subr.bf16.mxu0 0
      %352 = vmatpush1.bf16.xpose.msra.mxu0 0
      %353 = vmatprep.subr.bf16.mxu0 0
      %354 = vmatpush1.bf16.xpose.msra.mxu0 0
      %355 = vmatprep.mubr.bf16.mxu0 0
      %356 = vmatmul.mubr.bf16.gmra.mrb[0].mxu0 %v318
      %v357 = vpop.f32.mrb[0].mxu0
      %v358 = vadd.f32 %v307, %v357
      %v359 = vpop.f32.mrb[0].mxu0
      %v360 = vpop.f32.mrb[0].mxu0
      %v361 = vpop.f32.mrb[0].mxu0
      %362 = vdwg.mxu0
      %v364 = vlaneseq
      %v365 = vshrl.u32 %v364, 7
      %v366 = vsub.s32 0, %v365
      %v367 = vrot.slane %v311, %v366
      %v369 = vadd.f32 %v358, %v367
      %v370 = vsel %vm316, %v369, -inf
      %371 = vmax.xlane.f32.xlu0 %v370
      %v372 = vpop.xlane.xlu0 %371
      %v373 = vsub.f32 %v369, %v372
      %v374 = vmul.f32 %v373, 1.442695
      %v375 = vpow.pop %v374
      %v376 = vsel %vm316, %v375, 0.0
      %377 = vadd.xlane.f32.xlu0 %v376
      %v378 = vpop.xlane.xlu0 %377
      %v379 = vrcp.pop %v378
      %v380 = vmul.f32 %v375, %v379
      %v381 = vpack.c.bf16 %v380, %v380
      %382 = vrot.lane.b32.xlu0 %v312, 64
      %v383 = vpop.permute.xlu0 %382
      %v385 = vsel %vm316, %v381, 0
      %vm387 = vcmask 1043456
      %v389 = vsel %vm387, %v383, 0
      %391 = vmatprep.subr.bf16.mxu0 0
      %392 = vmatpush1.bf16.msra.mxu0 %v389
      %393 = vmatprep.subr.bf16.mxu0 0
      %394 = vmatpush1.bf16.msra.mxu0 0
      %395 = vmatprep.subr.bf16.mxu0 0
      %396 = vmatpush1.bf16.msra.mxu0 0
      %397 = vmatprep.subr.bf16.mxu0 0
      %398 = vmatpush1.bf16.msra.mxu0 0
      %399 = vmatprep.subr.bf16.mxu0 0
      %400 = vmatpush1.bf16.msra.mxu0 0
      %401 = vmatprep.subr.bf16.mxu0 0
      %402 = vmatpush1.bf16.msra.mxu0 0
      %403 = vmatprep.subr.bf16.mxu0 0
      %404 = vmatpush1.bf16.msra.mxu0 0
      %405 = vmatprep.subr.bf16.mxu0 0
      %406 = vmatpush1.bf16.msra.mxu0 0
      %407 = vmatprep.subr.bf16.mxu0 0
      %408 = vmatpush1.bf16.msra.mxu0 0
      %409 = vmatprep.subr.bf16.mxu0 0
      %410 = vmatpush1.bf16.msra.mxu0 0
      %411 = vmatprep.subr.bf16.mxu0 0
      %412 = vmatpush1.bf16.msra.mxu0 0
      %413 = vmatprep.subr.bf16.mxu0 0
      %414 = vmatpush1.bf16.msra.mxu0 0
      %415 = vmatprep.subr.bf16.mxu0 0
      %416 = vmatpush1.bf16.msra.mxu0 0
      %417 = vmatprep.subr.bf16.mxu0 0
      %418 = vmatpush1.bf16.msra.mxu0 0
      %419 = vmatprep.subr.bf16.mxu0 0
      %420 = vmatpush1.bf16.msra.mxu0 0
      %421 = vmatprep.subr.bf16.mxu0 0
      %422 = vmatpush1.bf16.msra.mxu0 0
      %423 = vmatprep.mubr.bf16.mxu0 0
      %424 = vmatmul.mubr.bf16.gmra.mrb[0].mxu0 %v385
      %v425 = vpop.f32.mrb[0].mxu0
      %v426 = vadd.f32 0.0, %v425
      %v427 = vpop.f32.mrb[0].mxu0
      %v428 = vpop.f32.mrb[0].mxu0
      %v429 = vpop.f32.mrb[0].mxu0
      %430 = vdwg.mxu0
      %431 = vrot.lane.b32.xlu0 %v312, 120
      %v432 = vpop.permute.xlu0 %431
      %433 = vrot.lane.b32.xlu0 %v312, 88
      %v434 = vpop.permute.xlu0 %433
      %v436 = vsel %vm316, %v432, 0
      %v439 = vsel %vm316, %v434, 0
      %441 = vmatprep.subr.bf16.mxu0 0
      %442 = vmatpush1.bf16.xpose.msra.mxu0 %v439
      %443 = vmatprep.subr.bf16.mxu0 0
      %444 = vmatpush1.bf16.xpose.msra.mxu0 0
      %445 = vmatprep.subr.bf16.mxu0 0
      %446 = vmatpush1.bf16.xpose.msra.mxu0 0
      %447 = vmatprep.subr.bf16.mxu0 0
      %448 = vmatpush1.bf16.xpose.msra.mxu0 0
      %449 = vmatprep.subr.bf16.mxu0 0
      %450 = vmatpush1.bf16.xpose.msra.mxu0 0
      %451 = vmatprep.subr.bf16.mxu0 0
      %452 = vmatpush1.bf16.xpose.msra.mxu0 0
      %453 = vmatprep.subr.bf16.mxu0 0
      %454 = vmatpush1.bf16.xpose.msra.mxu0 0
      %455 = vmatprep.subr.bf16.mxu0 0
      %456 = vmatpush1.bf16.xpose.msra.mxu0 0
      %457 = vmatprep.subr.bf16.mxu0 0
      %458 = vmatpush1.bf16.xpose.msra.mxu0 0
      %459 = vmatprep.subr.bf16.mxu0 0
      %460 = vmatpush1.bf16.xpose.msra.mxu0 0
      %461 = vmatprep.subr.bf16.mxu0 0
      %462 = vmatpush1.bf16.xpose.msra.mxu0 0
      %463 = vmatprep.subr.bf16.mxu0 0
      %464 = vmatpush1.bf16.xpose.msra.mxu0 0
      %465 = vmatprep.subr.bf16.mxu0 0
      %466 = vmatpush1.bf16.xpose.msra.mxu0 0
      %467 = vmatprep.subr.bf16.mxu0 0
      %468 = vmatpush1.bf16.xpose.msra.mxu0 0
      %469 = vmatprep.subr.bf16.mxu0 0
      %470 = vmatpush1.bf16.xpose.msra.mxu0 0
      %471 = vmatprep.subr.bf16.mxu0 0
      %472 = vmatpush1.bf16.xpose.msra.mxu0 0
      %473 = vmatprep.mubr.bf16.mxu0 0
      %474 = vmatmul.mubr.bf16.gmra.mrb[0].mxu0 %v436
      %v475 = vpop.f32.mrb[0].mxu0
      %v476 = vadd.f32 %v308, %v475
      %v477 = vpop.f32.mrb[0].mxu0
      %v478 = vpop.f32.mrb[0].mxu0
      %v479 = vpop.f32.mrb[0].mxu0
      %480 = vdwg.mxu0
      %v481 = vadd.f32 %v476, %v367
      %v482 = vsel %vm316, %v481, -inf
      %483 = vmax.xlane.f32.xlu0 %v482
      %v484 = vpop.xlane.xlu0 %483
      %v485 = vsub.f32 %v481, %v484
      %v486 = vmul.f32 %v485, 1.442695
      %v487 = vpow.pop %v486
      %v488 = vsel %vm316, %v487, 0.0
      %489 = vadd.xlane.f32.xlu0 %v488
      %v490 = vpop.xlane.xlu0 %489
      %v491 = vrcp.pop %v490
      %v492 = vmul.f32 %v487, %v491
      %v493 = vpack.c.bf16 %v492, %v492
      %494 = vrot.lane.b32.xlu0 %v312, 56
      %v495 = vpop.permute.xlu0 %494
      %v497 = vsel %vm316, %v493, 0
      %v500 = vsel %vm387, %v495, 0
      %502 = vmatprep.subr.bf16.mxu0 0
      %503 = vmatpush1.bf16.msra.mxu0 %v500
      %504 = vmatprep.subr.bf16.mxu0 0
      %505 = vmatpush1.bf16.msra.mxu0 0
      %506 = vmatprep.subr.bf16.mxu0 0
      %507 = vmatpush1.bf16.msra.mxu0 0
      %508 = vmatprep.subr.bf16.mxu0 0
      %509 = vmatpush1.bf16.msra.mxu0 0
      %510 = vmatprep.subr.bf16.mxu0 0
      %511 = vmatpush1.bf16.msra.mxu0 0
      %512 = vmatprep.subr.bf16.mxu0 0
      %513 = vmatpush1.bf16.msra.mxu0 0
      %514 = vmatprep.subr.bf16.mxu0 0
      %515 = vmatpush1.bf16.msra.mxu0 0
      %516 = vmatprep.subr.bf16.mxu0 0
      %517 = vmatpush1.bf16.msra.mxu0 0
      %518 = vmatprep.subr.bf16.mxu0 0
      %519 = vmatpush1.bf16.msra.mxu0 0
      %520 = vmatprep.subr.bf16.mxu0 0
      %521 = vmatpush1.bf16.msra.mxu0 0
      %522 = vmatprep.subr.bf16.mxu0 0
      %523 = vmatpush1.bf16.msra.mxu0 0
      %524 = vmatprep.subr.bf16.mxu0 0
      %525 = vmatpush1.bf16.msra.mxu0 0
      %526 = vmatprep.subr.bf16.mxu0 0
      %527 = vmatpush1.bf16.msra.mxu0 0
      %528 = vmatprep.subr.bf16.mxu0 0
      %529 = vmatpush1.bf16.msra.mxu0 0
      %530 = vmatprep.subr.bf16.mxu0 0
      %531 = vmatpush1.bf16.msra.mxu0 0
      %532 = vmatprep.subr.bf16.mxu0 0
      %533 = vmatpush1.bf16.msra.mxu0 0
      %534 = vmatprep.mubr.bf16.mxu0 0
      %535 = vmatmul.mubr.bf16.gmra.mrb[0].mxu0 %v497
      %v536 = vpop.f32.mrb[0].mxu0
      %v537 = vadd.f32 0.0, %v536
      %v538 = vpop.f32.mrb[0].mxu0
      %v539 = vpop.f32.mrb[0].mxu0
      %v540 = vpop.f32.mrb[0].mxu0
      %541 = vdwg.mxu0
      %542 = vrot.lane.b32.xlu0 %v312, 112
      %v543 = vpop.permute.xlu0 %542
      %544 = vrot.lane.b32.xlu0 %v312, 80
      %v545 = vpop.permute.xlu0 %544
      %v547 = vsel %vm316, %v543, 0
      %v550 = vsel %vm316, %v545, 0
      %552 = vmatprep.subr.bf16.mxu0 0
      %553 = vmatpush1.bf16.xpose.msra.mxu0 %v550
      %554 = vmatprep.subr.bf16.mxu0 0
      %555 = vmatpush1.bf16.xpose.msra.mxu0 0
      %556 = vmatprep.subr.bf16.mxu0 0
      %557 = vmatpush1.bf16.xpose.msra.mxu0 0
      %558 = vmatprep.subr.bf16.mxu0 0
      %559 = vmatpush1.bf16.xpose.msra.mxu0 0
      %560 = vmatprep.subr.bf16.mxu0 0
      %561 = vmatpush1.bf16.xpose.msra.mxu0 0
      %562 = vmatprep.subr.bf16.mxu0 0
      %563 = vmatpush1.bf16.xpose.msra.mxu0 0
      %564 = vmatprep.subr.bf16.mxu0 0
      %565 = vmatpush1.bf16.xpose.msra.mxu0 0
      %566 = vmatprep.subr.bf16.mxu0 0
      %567 = vmatpush1.bf16.xpose.msra.mxu0 0
      %568 = vmatprep.subr.bf16.mxu0 0
      %569 = vmatpush1.bf16.xpose.msra.mxu0 0
      %570 = vmatprep.subr.bf16.mxu0 0
      %571 = vmatpush1.bf16.xpose.msra.mxu0 0
      %572 = vmatprep.subr.bf16.mxu0 0
      %573 = vmatpush1.bf16.xpose.msra.mxu0 0
      %574 = vmatprep.subr.bf16.mxu0 0
      %575 = vmatpush1.bf16.xpose.msra.mxu0 0
      %576 = vmatprep.subr.bf16.mxu0 0
      %577 = vmatpush1.bf16.xpose.msra.mxu0 0
      %578 = vmatprep.subr.bf16.mxu0 0
      %579 = vmatpush1.bf16.xpose.msra.mxu0 0
      %580 = vmatprep.subr.bf16.mxu0 0
      %581 = vmatpush1.bf16.xpose.msra.mxu0 0
      %582 = vmatprep.subr.bf16.mxu0 0
      %583 = vmatpush1.bf16.xpose.msra.mxu0 0
      %584 = vmatprep.mubr.bf16.mxu0 0
      %585 = vmatmul.mubr.bf16.gmra.mrb[0].mxu0 %v547
      %v586 = vpop.f32.mrb[0].mxu0
      %v587 = vadd.f32 %v309, %v586
      %v588 = vpop.f32.mrb[0].mxu0
      %v589 = vpop.f32.mrb[0].mxu0
      %v590 = vpop.f32.mrb[0].mxu0
      %591 = vdwg.mxu0
      %v592 = vadd.f32 %v587, %v367
      %v593 = vsel %vm316, %v592, -inf
      %594 = vmax.xlane.f32.xlu0 %v593
      %v595 = vpop.xlane.xlu0 %594
      %v596 = vsub.f32 %v592, %v595
      %v597 = vmul.f32 %v596, 1.442695
      %v598 = vpow.pop %v597
      %v599 = vsel %vm316, %v598, 0.0
      %600 = vadd.xlane.f32.xlu0 %v599
      %v601 = vpop.xlane.xlu0 %600
      %v602 = vrcp.pop %v601
      %v603 = vmul.f32 %v598, %v602
      %v604 = vpack.c.bf16 %v603, %v603
      %605 = vrot.lane.b32.xlu0 %v312, 48
      %v606 = vpop.permute.xlu0 %605
      %v608 = vsel %vm316, %v604, 0
      %v611 = vsel %vm387, %v606, 0
      %613 = vmatprep.subr.bf16.mxu0 0
      %614 = vmatpush1.bf16.msra.mxu0 %v611
      %615 = vmatprep.subr.bf16.mxu0 0
      %616 = vmatpush1.bf16.msra.mxu0 0
      %617 = vmatprep.subr.bf16.mxu0 0
      %618 = vmatpush1.bf16.msra.mxu0 0
      %619 = vmatprep.subr.bf16.mxu0 0
      %620 = vmatpush1.bf16.msra.mxu0 0
      %621 = vmatprep.subr.bf16.mxu0 0
      %622 = vmatpush1.bf16.msra.mxu0 0
      %623 = vmatprep.subr.bf16.mxu0 0
      %624 = vmatpush1.bf16.msra.mxu0 0
      %625 = vmatprep.subr.bf16.mxu0 0
      %626 = vmatpush1.bf16.msra.mxu0 0
      %627 = vmatprep.subr.bf16.mxu0 0
      %628 = vmatpush1.bf16.msra.mxu0 0
      %629 = vmatprep.subr.bf16.mxu0 0
      %630 = vmatpush1.bf16.msra.mxu0 0
      %631 = vmatprep.subr.bf16.mxu0 0
      %632 = vmatpush1.bf16.msra.mxu0 0
      %633 = vmatprep.subr.bf16.mxu0 0
      %634 = vmatpush1.bf16.msra.mxu0 0
      %635 = vmatprep.subr.bf16.mxu0 0
      %636 = vmatpush1.bf16.msra.mxu0 0
      %637 = vmatprep.subr.bf16.mxu0 0
      %638 = vmatpush1.bf16.msra.mxu0 0
      %639 = vmatprep.subr.bf16.mxu0 0
      %640 = vmatpush1.bf16.msra.mxu0 0
      %641 = vmatprep.subr.bf16.mxu0 0
      %642 = vmatpush1.bf16.msra.mxu0 0
      %643 = vmatprep.subr.bf16.mxu0 0
      %644 = vmatpush1.bf16.msra.mxu0 0
      %645 = vmatprep.mubr.bf16.mxu0 0
      %646 = vmatmul.mubr.bf16.gmra.mrb[0].mxu0 %v608
      %v647 = vpop.f32.mrb[0].mxu0
      %v648 = vadd.f32 0.0, %v647
      %v649 = vpop.f32.mrb[0].mxu0
      %v650 = vpop.f32.mrb[0].mxu0
      %v651 = vpop.f32.mrb[0].mxu0
      %652 = vdwg.mxu0
      %653 = vrot.lane.b32.xlu0 %v312, 104
      %v654 = vpop.permute.xlu0 %653
      %655 = vrot.lane.b32.xlu0 %v312, 72
      %v656 = vpop.permute.xlu0 %655
      %v658 = vsel %vm316, %v654, 0
      %v661 = vsel %vm316, %v656, 0
      %663 = vmatprep.subr.bf16.mxu0 0
      %664 = vmatpush1.bf16.xpose.msra.mxu0 %v661
      %665 = vmatprep.subr.bf16.mxu0 0
      %666 = vmatpush1.bf16.xpose.msra.mxu0 0
      %667 = vmatprep.subr.bf16.mxu0 0
      %668 = vmatpush1.bf16.xpose.msra.mxu0 0
      %669 = vmatprep.subr.bf16.mxu0 0
      %670 = vmatpush1.bf16.xpose.msra.mxu0 0
      %671 = vmatprep.subr.bf16.mxu0 0
      %672 = vmatpush1.bf16.xpose.msra.mxu0 0
      %673 = vmatprep.subr.bf16.mxu0 0
      %674 = vmatpush1.bf16.xpose.msra.mxu0 0
      %675 = vmatprep.subr.bf16.mxu0 0
      %676 = vmatpush1.bf16.xpose.msra.mxu0 0
      %677 = vmatprep.subr.bf16.mxu0 0
      %678 = vmatpush1.bf16.xpose.msra.mxu0 0
      %679 = vmatprep.subr.bf16.mxu0 0
      %680 = vmatpush1.bf16.xpose.msra.mxu0 0
      %681 = vmatprep.subr.bf16.mxu0 0
      %682 = vmatpush1.bf16.xpose.msra.mxu0 0
      %683 = vmatprep.subr.bf16.mxu0 0
      %684 = vmatpush1.bf16.xpose.msra.mxu0 0
      %685 = vmatprep.subr.bf16.mxu0 0
      %686 = vmatpush1.bf16.xpose.msra.mxu0 0
      %687 = vmatprep.subr.bf16.mxu0 0
      %688 = vmatpush1.bf16.xpose.msra.mxu0 0
      %689 = vmatprep.subr.bf16.mxu0 0
      %690 = vmatpush1.bf16.xpose.msra.mxu0 0
      %691 = vmatprep.subr.bf16.mxu0 0
      %692 = vmatpush1.bf16.xpose.msra.mxu0 0
      %693 = vmatprep.subr.bf16.mxu0 0
      %694 = vmatpush1.bf16.xpose.msra.mxu0 0
      %695 = vmatprep.mubr.bf16.mxu0 0
      %696 = vmatmul.mubr.bf16.gmra.mrb[0].mxu0 %v658
      %v697 = vpop.f32.mrb[0].mxu0
      %v698 = vadd.f32 %v310, %v697
      %v699 = vpop.f32.mrb[0].mxu0
      %v700 = vpop.f32.mrb[0].mxu0
      %v701 = vpop.f32.mrb[0].mxu0
      %702 = vdwg.mxu0
      %v703 = vadd.f32 %v698, %v367
      %v704 = vsel %vm316, %v703, -inf
      %705 = vmax.xlane.f32.xlu0 %v704
      %v706 = vpop.xlane.xlu0 %705
      %v707 = vsub.f32 %v703, %v706
      %v708 = vmul.f32 %v707, 1.442695
      %v709 = vpow.pop %v708
      %v710 = vsel %vm316, %v709, 0.0
      %711 = vadd.xlane.f32.xlu0 %v710
      %v712 = vpop.xlane.xlu0 %711
      %v713 = vrcp.pop %v712
      %v714 = vmul.f32 %v709, %v713
      %v715 = vpack.c.bf16 %v714, %v714
      %716 = vrot.lane.b32.xlu0 %v312, 40
      %v717 = vpop.permute.xlu0 %716
      %v719 = vsel %vm316, %v715, 0
      %v722 = vsel %vm387, %v717, 0
      %724 = vmatprep.subr.bf16.mxu0 0
      %725 = vmatpush1.bf16.msra.mxu0 %v722
      %726 = vmatprep.subr.bf16.mxu0 0
      %727 = vmatpush1.bf16.msra.mxu0 0
      %728 = vmatprep.subr.bf16.mxu0 0
      %729 = vmatpush1.bf16.msra.mxu0 0
      %730 = vmatprep.subr.bf16.mxu0 0
      %731 = vmatpush1.bf16.msra.mxu0 0
      %732 = vmatprep.subr.bf16.mxu0 0
      %733 = vmatpush1.bf16.msra.mxu0 0
      %734 = vmatprep.subr.bf16.mxu0 0
      %735 = vmatpush1.bf16.msra.mxu0 0
      %736 = vmatprep.subr.bf16.mxu0 0
      %737 = vmatpush1.bf16.msra.mxu0 0
      %738 = vmatprep.subr.bf16.mxu0 0
      %739 = vmatpush1.bf16.msra.mxu0 0
      %740 = vmatprep.subr.bf16.mxu0 0
      %741 = vmatpush1.bf16.msra.mxu0 0
      %742 = vmatprep.subr.bf16.mxu0 0
      %743 = vmatpush1.bf16.msra.mxu0 0
      %744 = vmatprep.subr.bf16.mxu0 0
      %745 = vmatpush1.bf16.msra.mxu0 0
      %746 = vmatprep.subr.bf16.mxu0 0
      %747 = vmatpush1.bf16.msra.mxu0 0
      %748 = vmatprep.subr.bf16.mxu0 0
      %749 = vmatpush1.bf16.msra.mxu0 0
      %750 = vmatprep.subr.bf16.mxu0 0
      %751 = vmatpush1.bf16.msra.mxu0 0
      %752 = vmatprep.subr.bf16.mxu0 0
      %753 = vmatpush1.bf16.msra.mxu0 0
      %754 = vmatprep.subr.bf16.mxu0 0
      %755 = vmatpush1.bf16.msra.mxu0 0
      %756 = vmatprep.mubr.bf16.mxu0 0
      %757 = vmatmul.mubr.bf16.gmra.mrb[0].mxu0 %v719
      %v758 = vpop.f32.mrb[0].mxu0
      %v759 = vadd.f32 0.0, %v758
      %v760 = vpop.f32.mrb[0].mxu0
      %v761 = vpop.f32.mrb[0].mxu0
      %v762 = vpop.f32.mrb[0].mxu0
      %763 = vdwg.mxu0
      %765 = vrot.lane.b32.xlu0 %v537, 8
      %v766 = vpop.permute.xlu0 %765
      %769 = vrot.lane.b32.xlu0 %v648, 16
      %v770 = vpop.permute.xlu0 %769
      %773 = vrot.lane.b32.xlu0 %v759, 24
      %v774 = vpop.permute.xlu0 %773
      %v776 = vsel %vm316, %v426, %v766
      %vm777 = vcmask 130048
      %v778 = vsel %vm777, %v776, %v770
      %vm779 = vcmask 195584
      %v780 = vsel %vm779, %v778, %v774
      %v781 = vsub.f32 0.0, %v306
      %v782 = vmul.f32 %v781, 1.442695
      %v783 = vpow.pop %v782
      %v784 = vadd.f32 %v783, 1.0
      %v785 = vrcp.pop %v784
      %v786 = vmul.f32 1.0, %v785
      %788 = vrot.lane.b32.xlu0 %v780, 96
      %v789 = vpop.permute.xlu0 %788
      %v791 = vmul.f32 %v786, %v789
      %v792 = vpack.c.bf16 %v791, %v791
      %v793 = vld [vmem:[%s3] sm:$0xf]
      %v794 = vld [vmem:[%s3 + $0x4] sm:$0xf]
      %v795 = vld [vmem:[%s3 + $0x8] sm:$0xf]
      %v796 = vld [vmem:[%s3 + $0xc] sm:$0xf]
      %v797 = vld [vmem:[%s4] sm:$0x1]
      %v799 = vlaneseq
      %v800 = vshrl.u32 %v799, 7
      %v801 = vsub.s32 0, %v800
      %v802 = vrot.slane %v797, %v801
      %805 = vrot.lane.b32.xlu0 %v792, 32
      %v806 = vpop.permute.xlu0 %805
      %v811 = vunpack.c.l.b16 %v793
      %v812 = vunpack.c.l.b16 %v794
      %v813 = vunpack.c.l.b16 %v795
      %v814 = vunpack.c.l.b16 %v796
      %v815 = vpack.c.b16 %v812, %v811
      %v816 = vpack.c.b16 %v814, %v813
      %vm819 = vcmask 261120
      %v821 = vsel %vm819, %v806, 0
      %823 = vmatprep.subr.bf16.mxu0 0
      %824 = vmatpush1.bf16.msra.mxu0 %v815
      %825 = vmatprep.subr.bf16.mxu0 0
      %826 = vmatpush1.bf16.msra.mxu0 %v816
      %827 = vmatprep.subr.bf16.mxu0 0
      %828 = vmatpush1.bf16.msra.mxu0 0
      %829 = vmatprep.subr.bf16.mxu0 0
      %830 = vmatpush1.bf16.msra.mxu0 0
      %831 = vmatprep.subr.bf16.mxu0 0
      %832 = vmatpush1.bf16.msra.mxu0 0
      %833 = vmatprep.subr.bf16.mxu0 0
      %834 = vmatpush1.bf16.msra.mxu0 0
      %835 = vmatprep.subr.bf16.mxu0 0
      %836 = vmatpush1.bf16.msra.mxu0 0
      %837 = vmatprep.subr.bf16.mxu0 0
      %838 = vmatpush1.bf16.msra.mxu0 0
      %839 = vmatprep.subr.bf16.mxu0 0
      %840 = vmatpush1.bf16.msra.mxu0 0
      %841 = vmatprep.subr.bf16.mxu0 0
      %842 = vmatpush1.bf16.msra.mxu0 0
      %843 = vmatprep.subr.bf16.mxu0 0
      %844 = vmatpush1.bf16.msra.mxu0 0
      %845 = vmatprep.subr.bf16.mxu0 0
      %846 = vmatpush1.bf16.msra.mxu0 0
      %847 = vmatprep.subr.bf16.mxu0 0
      %848 = vmatpush1.bf16.msra.mxu0 0
      %849 = vmatprep.subr.bf16.mxu0 0
      %850 = vmatpush1.bf16.msra.mxu0 0
      %851 = vmatprep.subr.bf16.mxu0 0
      %852 = vmatpush1.bf16.msra.mxu0 0
      %853 = vmatprep.subr.bf16.mxu0 0
      %854 = vmatpush1.bf16.msra.mxu0 0
      %855 = vmatprep.mubr.bf16.mxu0 0
      %856 = vmatmul.mubr.bf16.gmra.mrb[0].mxu0 %v821
      %v857 = vpop.f32.mrb[0].mxu0
      %v858 = vadd.f32 %v802, %v857
      %v859 = vpop.f32.mrb[0].mxu0
      %v860 = vpop.f32.mrb[0].mxu0
      %v861 = vpop.f32.mrb[0].mxu0
      %862 = vdwg.mxu0
      %863 = vst.msk [vmem:[%s303] sm:$0xff] %vm819, %v858
      %p864 = scmp.lt.s32.totalorder %s20, 1
      %s865 = scalar_select %p864, %s20, 1
      %p866 = scmp.lt.s32.totalorder %s21, 7
      %s867 = scalar_select %p866, %s21, 7
      %s868 = smul.addr %s865, 8
      %s869 = sadd.s32 %s867, %s868
      %s870 = smul.addr %s869, 8
      %s871 = scalar_lea.vmem %s5, %s870
      // Predicated region
      $region41: #{_lambda_.37} parent=39 // pred_check
        %p872 = pneg %p172
      $region42: #{_lambda_.37} parent=39 // pred_check_branch
        %874 = sbr.rel (%p872) target = $region44
      $region43: #{_lambda_.37} parent=39 // pred_region
        _
      $region44: #{_lambda_.37} parent=39 // pred_fallthru
        _
    $region40: #{_lambda_.37} parent=5 // pred_fallthru
      _
    %p875 = scmp.le.s32.totalorder 2, %s11
    // Predicated region
    $region45: #{_lambda_.37} parent=5 // pred_check
      %p876 = pneg %p875
    $region46: #{_lambda_.37} parent=5 // pred_check_branch
      %878 = sbr.rel (%p876) target = $region48
    $region47: #{_lambda_.37} parent=5 // pred_region
      %s879 = ssub.s32 %s11, 2
      // Predicated region
      $region49: #{_lambda_.37} parent=47 // pred_check
        %p880 = pneg %p178
      $region50: #{_lambda_.37} parent=47 // pred_check_branch
        %882 = sbr.rel (%p880) target = $region52
      $region51: #{_lambda_.37} parent=47 // pred_region
        %p883 = scmp.lt.s32.totalorder %s22, 1
        %s884 = scalar_select %p883, %s22, 1
        %p885 = scmp.lt.s32.totalorder %s23, 7
        %s886 = scalar_select %p885, %s23, 7
        %s887 = smul.addr %s884, 8
        %s888 = sadd.s32 %s886, %s887
        %s889 = smul.addr %s888, 8
        %s890 = scalar_lea.vmem %s5, %s889
      $region52: #{_lambda_.37} parent=47 // pred_fallthru
        _
    $region48: #{_lambda_.37} parent=5 // pred_fallthru
      _
  $region6: #{_lambda_.37} parent=0 // loop_footer
    %s15 = sadd.s32 1, %s11
  $region7: #{_lambda_.37} parent=0 // loop_footer_branch
    %10 = sbr.rel target = $region3
  $region8: #{_lambda_.37} parent=0 // loop_exit
    _

// kernel: _lambda_.40
$region0: #{_lambda_.40}
  #allocation0 [shape = 'u32[]', space=smem, size = 0x4, offset = 0x4, fixed_abs, tag = 'smem constant byte address 0x4 - core index']
  #allocation1 [shape = 'u32[144,128]{1,0:T(1,128)}', space=vmem, size = 0x12000, scoped, tag = 'internal scratch']
  %s0 = inlined_call_operand.vmem [shape: f32[128,32], index: 0, kind: input, shape index: {}]
  %s1 = inlined_call_operand.vmem [shape: f32[1,32], index: 1, kind: input, shape index: {}]
  %s2 = inlined_call_operand.vmem [shape: f32[1,32], index: 2, kind: input, shape index: {}]
  %s3 = inlined_call_operand.vmem [shape: bf16[32,256], index: 3, kind: input, shape index: {}]
  %s4 = inlined_call_operand.vmem [shape: f32[1,256], index: 4, kind: input, shape index: {}]
  %s5 = inlined_call_operand.vmem [shape: bf16[128,32], index: 5, kind: input, shape index: {}]
  %s6 = inlined_call_operand.vmem [shape: f32[1,32], index: 6, kind: input, shape index: {}]
  %s7 = inlined_call_operand.vmem [shape: f32[128,32], index: 7, kind: output, shape index: {}]
  %s8 = sld [smem:[#allocation0]]
  $region38: #{_lambda_.40} parent=0
    _
  %s10 = ssub.s32 1, %s8
  %s11 = scalar_select 0, %s10, %s8
  // Predicated region
  $region2: #{_lambda_.40} parent=0 // pred_check
    _
  $region3: #{_lambda_.40} parent=0 // pred_check_branch
    %13 = sbr.rel (0) target = $region5
  $region4: #{_lambda_.40} parent=0 // pred_region
    _
  $region5: #{_lambda_.40} parent=0 // pred_fallthru
    _
  // Predicated region
  $region6: #{_lambda_.40} parent=0 // pred_check
    _
  $region7: #{_lambda_.40} parent=0 // pred_check_branch
    %15 = sbr.rel (0) target = $region9
  $region8: #{_lambda_.40} parent=0 // pred_region
    _
  $region9: #{_lambda_.40} parent=0 // pred_fallthru
    _
  // Predicated region
  $region10: #{_lambda_.40} parent=0 // pred_check
    _
  $region11: #{_lambda_.40} parent=0 // pred_check_branch
    %17 = sbr.rel (0) target = $region13
  $region12: #{_lambda_.40} parent=0 // pred_region
    _
  $region13: #{_lambda_.40} parent=0 // pred_fallthru
    _
  // Predicated region
  $region14: #{_lambda_.40} parent=0 // pred_check
    _
  $region15: #{_lambda_.40} parent=0 // pred_check_branch
    %19 = sbr.rel (0) target = $region17
  $region16: #{_lambda_.40} parent=0 // pred_region
    _
  $region17: #{_lambda_.40} parent=0 // pred_fallthru
    _
  // Predicated region
  $region18: #{_lambda_.40} parent=0 // pred_check
    _
  $region19: #{_lambda_.40} parent=0 // pred_check_branch
    %21 = sbr.rel (0) target = $region21
  $region20: #{_lambda_.40} parent=0 // pred_region
    _
  $region21: #{_lambda_.40} parent=0 // pred_fallthru
    _
  // Predicated region
  $region22: #{_lambda_.40} parent=0 // pred_check
    _
  $region23: #{_lambda_.40} parent=0 // pred_check_branch
    %23 = sbr.rel (0) target = $region25
  $region24: #{_lambda_.40} parent=0 // pred_region
    _
  $region25: #{_lambda_.40} parent=0 // pred_fallthru
    _
  // Predicated region
  $region26: #{_lambda_.40} parent=0 // pred_check
    _
  $region27: #{_lambda_.40} parent=0 // pred_check_branch
    %25 = sbr.rel (0) target = $region29
  $region28: #{_lambda_.40} parent=0 // pred_region
    _
  $region29: #{_lambda_.40} parent=0 // pred_fallthru
    _
  %v27 = vld [vmem:[%s0] sm:$0xff]
  %v28 = vld [vmem:[%s0 + $0x8] sm:$0xff]
  %v29 = vld [vmem:[%s0 + $0x10] sm:$0xff]
  %v30 = vld [vmem:[%s0 + $0x18] sm:$0xff]
  %v31 = vld [vmem:[%s0 + $0x20] sm:$0xff]
  %v32 = vld [vmem:[%s0 + $0x28] sm:$0xff]
  %v33 = vld [vmem:[%s0 + $0x30] sm:$0xff]
  %v34 = vld [vmem:[%s0 + $0x38] sm:$0xff]
  %v35 = vld [vmem:[%s0 + $0x40] sm:$0xff]
  %v36 = vld [vmem:[%s0 + $0x48] sm:$0xff]
  %v37 = vld [vmem:[%s0 + $0x50] sm:$0xff]
  %v38 = vld [vmem:[%s0 + $0x58] sm:$0xff]
  %v39 = vld [vmem:[%s0 + $0x60] sm:$0xff]
  %v40 = vld [vmem:[%s0 + $0x68] sm:$0xff]
  %v41 = vld [vmem:[%s0 + $0x70] sm:$0xff]
  %v42 = vld [vmem:[%s0 + $0x78] sm:$0xff]
  %v43 = vld [vmem:[%s1] sm:$0x1]
  %v44 = vld [vmem:[%s2] sm:$0x1]
  %vm45 = vcmask 261120
  %v46 = vsel %vm45, %v27, 0.0
  %47 = vadd.xlane.f32.xlu0 %v46
  %v48 = vpop.xlane.xlu0 %47
  %v49 = vsel %vm45, %v28, 0.0
  %50 = vadd.xlane.f32.xlu0 %v49
  %v51 = vpop.xlane.xlu0 %50
  %v52 = vsel %vm45, %v29, 0.0
  %53 = vadd.xlane.f32.xlu0 %v52
  %v54 = vpop.xlane.xlu0 %53
  %v55 = vsel %vm45, %v30, 0.0
  %56 = vadd.xlane.f32.xlu0 %v55
  %v57 = vpop.xlane.xlu0 %56
  %v58 = vsel %vm45, %v31, 0.0
  %59 = vadd.xlane.f32.xlu0 %v58
  %v60 = vpop.xlane.xlu0 %59
  %v61 = vsel %vm45, %v32, 0.0
  %62 = vadd.xlane.f32.xlu0 %v61
  %v63 = vpop.xlane.xlu0 %62
  %v64 = vsel %vm45, %v33, 0.0
  %65 = vadd.xlane.f32.xlu0 %v64
  %v66 = vpop.xlane.xlu0 %65
  %v67 = vsel %vm45, %v34, 0.0
  %68 = vadd.xlane.f32.xlu0 %v67
  %v69 = vpop.xlane.xlu0 %68
  %v70 = vsel %vm45, %v35, 0.0
  %71 = vadd.xlane.f32.xlu0 %v70
  %v72 = vpop.xlane.xlu0 %71
  %v73 = vsel %vm45, %v36, 0.0
  %74 = vadd.xlane.f32.xlu0 %v73
  %v75 = vpop.xlane.xlu0 %74
  %v76 = vsel %vm45, %v37, 0.0
  %77 = vadd.xlane.f32.xlu0 %v76
  %v78 = vpop.xlane.xlu0 %77
  %v79 = vsel %vm45, %v38, 0.0
  %80 = vadd.xlane.f32.xlu0 %v79
  %v81 = vpop.xlane.xlu0 %80
  %v82 = vsel %vm45, %v39, 0.0
  %83 = vadd.xlane.f32.xlu0 %v82
  %v84 = vpop.xlane.xlu0 %83
  %v85 = vsel %vm45, %v40, 0.0
  %86 = vadd.xlane.f32.xlu0 %v85
  %v87 = vpop.xlane.xlu0 %86
  %v88 = vsel %vm45, %v41, 0.0
  %89 = vadd.xlane.f32.xlu0 %v88
  %v90 = vpop.xlane.xlu0 %89
  %v91 = vsel %vm45, %v42, 0.0
  %92 = vadd.xlane.f32.xlu0 %v91
  %v93 = vpop.xlane.xlu0 %92
  %v94 = vrcp.pop 32.0
  %v95 = vmul.f32 %v48, %v94
  %v96 = vmul.f32 %v51, %v94
  %v97 = vmul.f32 %v54, %v94
  %v98 = vmul.f32 %v57, %v94
  %v99 = vmul.f32 %v60, %v94
  %v100 = vmul.f32 %v63, %v94
  %v101 = vmul.f32 %v66, %v94
  %v102 = vmul.f32 %v69, %v94
  %v103 = vmul.f32 %v72, %v94
  %v104 = vmul.f32 %v75, %v94
  %v105 = vmul.f32 %v78, %v94
  %v106 = vmul.f32 %v81, %v94
  %v107 = vmul.f32 %v84, %v94
  %v108 = vmul.f32 %v87, %v94
  %v109 = vmul.f32 %v90, %v94
  %v110 = vmul.f32 %v93, %v94
  %v111 = vsub.f32 %v27, %v95
  %v112 = vsub.f32 %v28, %v96
  %v113 = vsub.f32 %v29, %v97
  %v114 = vsub.f32 %v30, %v98
  %v115 = vsub.f32 %v31, %v99
  %v116 = vsub.f32 %v32, %v100
  %v117 = vsub.f32 %v33, %v101
  %v118 = vsub.f32 %v34, %v102
  %v119 = vsub.f32 %v35, %v103
  %v120 = vsub.f32 %v36, %v104
  %v121 = vsub.f32 %v37, %v105
  %v122 = vsub.f32 %v38, %v106
  %v123 = vsub.f32 %v39, %v107
  %v124 = vsub.f32 %v40, %v108
  %v125 = vsub.f32 %v41, %v109
  %v126 = vsub.f32 %v42, %v110
  %v127 = vmul.f32 %v111, %v111
  %v128 = vmul.f32 %v112, %v112
  %v129 = vmul.f32 %v113, %v113
  %v130 = vmul.f32 %v114, %v114
  %v131 = vmul.f32 %v115, %v115
  %v132 = vmul.f32 %v116, %v116
  %v133 = vmul.f32 %v117, %v117
  %v134 = vmul.f32 %v118, %v118
  %v135 = vmul.f32 %v119, %v119
  %v136 = vmul.f32 %v120, %v120
  %v137 = vmul.f32 %v121, %v121
  %v138 = vmul.f32 %v122, %v122
  %v139 = vmul.f32 %v123, %v123
  %v140 = vmul.f32 %v124, %v124
  %v141 = vmul.f32 %v125, %v125
  %v142 = vmul.f32 %v126, %v126
  %v143 = vsel %vm45, %v127, 0.0
  %144 = vadd.xlane.f32.xlu0 %v143
  %v145 = vpop.xlane.xlu0 %144
  %v146 = vsel %vm45, %v128, 0.0
  %147 = vadd.xlane.f32.xlu0 %v146
  %v148 = vpop.xlane.xlu0 %147
  %v149 = vsel %vm45, %v129, 0.0
  %150 = vadd.xlane.f32.xlu0 %v149
  %v151 = vpop.xlane.xlu0 %150
  %v152 = vsel %vm45, %v130, 0.0
  %153 = vadd.xlane.f32.xlu0 %v152
  %v154 = vpop.xlane.xlu0 %153
  %v155 = vsel %vm45, %v131, 0.0
  %156 = vadd.xlane.f32.xlu0 %v155
  %v157 = vpop.xlane.xlu0 %156
  %v158 = vsel %vm45, %v132, 0.0
  %159 = vadd.xlane.f32.xlu0 %v158
  %v160 = vpop.xlane.xlu0 %159
  %v161 = vsel %vm45, %v133, 0.0
  %162 = vadd.xlane.f32.xlu0 %v161
  %v163 = vpop.xlane.xlu0 %162
  %v164 = vsel %vm45, %v134, 0.0
  %165 = vadd.xlane.f32.xlu0 %v164
  %v166 = vpop.xlane.xlu0 %165
  %v167 = vsel %vm45, %v135, 0.0
  %168 = vadd.xlane.f32.xlu0 %v167
  %v169 = vpop.xlane.xlu0 %168
  %v170 = vsel %vm45, %v136, 0.0
  %171 = vadd.xlane.f32.xlu0 %v170
  %v172 = vpop.xlane.xlu0 %171
  %v173 = vsel %vm45, %v137, 0.0
  %174 = vadd.xlane.f32.xlu0 %v173
  %v175 = vpop.xlane.xlu0 %174
  %v176 = vsel %vm45, %v138, 0.0
  %177 = vadd.xlane.f32.xlu0 %v176
  %v178 = vpop.xlane.xlu0 %177
  %v179 = vsel %vm45, %v139, 0.0
  %180 = vadd.xlane.f32.xlu0 %v179
  %v181 = vpop.xlane.xlu0 %180
  %v182 = vsel %vm45, %v140, 0.0
  %183 = vadd.xlane.f32.xlu0 %v182
  %v184 = vpop.xlane.xlu0 %183
  %v185 = vsel %vm45, %v141, 0.0
  %186 = vadd.xlane.f32.xlu0 %v185
  %v187 = vpop.xlane.xlu0 %186
  %v188 = vsel %vm45, %v142, 0.0
  %189 = vadd.xlane.f32.xlu0 %v188
  %v190 = vpop.xlane.xlu0 %189
  %v191 = vmul.f32 %v145, %v94
  %v192 = vmul.f32 %v148, %v94
  %v193 = vmul.f32 %v151, %v94
  %v194 = vmul.f32 %v154, %v94
  %v195 = vmul.f32 %v157, %v94
  %v196 = vmul.f32 %v160, %v94
  %v197 = vmul.f32 %v163, %v94
  %v198 = vmul.f32 %v166, %v94
  %v199 = vmul.f32 %v169, %v94
  %v200 = vmul.f32 %v172, %v94
  %v201 = vmul.f32 %v175, %v94
  %v202 = vmul.f32 %v178, %v94
  %v203 = vmul.f32 %v181, %v94
  %v204 = vmul.f32 %v184, %v94
  %v205 = vmul.f32 %v187, %v94
  %v206 = vmul.f32 %v190, %v94
  %v207 = vadd.f32 %v191, 1e-05
  %v208 = vadd.f32 %v192, 1e-05
  %v209 = vadd.f32 %v193, 1e-05
  %v210 = vadd.f32 %v194, 1e-05
  %v211 = vadd.f32 %v195, 1e-05
  %v212 = vadd.f32 %v196, 1e-05
  %v213 = vadd.f32 %v197, 1e-05
  %v214 = vadd.f32 %v198, 1e-05
  %v215 = vadd.f32 %v199, 1e-05
  %v216 = vadd.f32 %v200, 1e-05
  %v217 = vadd.f32 %v201, 1e-05
  %v218 = vadd.f32 %v202, 1e-05
  %v219 = vadd.f32 %v203, 1e-05
  %v220 = vadd.f32 %v204, 1e-05
  %v221 = vadd.f32 %v205, 1e-05
  %v222 = vadd.f32 %v206, 1e-05
  %v223 = vrsqrt.pop %v207
  %v224 = vrsqrt.pop %v208
  %v225 = vrsqrt.pop %v209
  %v226 = vrsqrt.pop %v210
  %v227 = vrsqrt.pop %v211
  %v228 = vrsqrt.pop %v212
  %v229 = vrsqrt.pop %v213
  %v230 = vrsqrt.pop %v214
  %v231 = vrsqrt.pop %v215
  %v232 = vrsqrt.pop %v216
  %v233 = vrsqrt.pop %v217
  %v234 = vrsqrt.pop %v218
  %v235 = vrsqrt.pop %v219
  %v236 = vrsqrt.pop %v220
  %v237 = vrsqrt.pop %v221
  %v238 = vrsqrt.pop %v222
  %v239 = vmul.f32 %v111, %v223
  %v240 = vmul.f32 %v112, %v224
  %v241 = vmul.f32 %v113, %v225
  %v242 = vmul.f32 %v114, %v226
  %v243 = vmul.f32 %v115, %v227
  %v244 = vmul.f32 %v116, %v228
  %v245 = vmul.f32 %v117, %v229
  %v246 = vmul.f32 %v118, %v230
  %v247 = vmul.f32 %v119, %v231
  %v248 = vmul.f32 %v120, %v232
  %v249 = vmul.f32 %v121, %v233
  %v250 = vmul.f32 %v122, %v234
  %v251 = vmul.f32 %v123, %v235
  %v252 = vmul.f32 %v124, %v236
  %v253 = vmul.f32 %v125, %v237
  %v254 = vmul.f32 %v126, %v238
  %v256 = vlaneseq
  %v257 = vshrl.u32 %v256, 7
  %v258 = vsub.s32 0, %v257
  %v259 = vrot.slane %v43, %v258
  %v261 = vmul.f32 %v239, %v259
  %v262 = vmul.f32 %v240, %v259
  %v263 = vmul.f32 %v241, %v259
  %v264 = vmul.f32 %v242, %v259
  %v265 = vmul.f32 %v243, %v259
  %v266 = vmul.f32 %v244, %v259
  %v267 = vmul.f32 %v245, %v259
  %v268 = vmul.f32 %v246, %v259
  %v269 = vmul.f32 %v247, %v259
  %v270 = vmul.f32 %v248, %v259
  %v271 = vmul.f32 %v249, %v259
  %v272 = vmul.f32 %v250, %v259
  %v273 = vmul.f32 %v251, %v259
  %v274 = vmul.f32 %v252, %v259
  %v275 = vmul.f32 %v253, %v259
  %v276 = vmul.f32 %v254, %v259
  %v278 = vlaneseq
  %v279 = vshrl.u32 %v278, 7
  %v280 = vsub.s32 0, %v279
  %v281 = vrot.slane %v44, %v280
  %v283 = vadd.f32 %v261, %v281
  %v284 = vadd.f32 %v262, %v281
  %v285 = vadd.f32 %v263, %v281
  %v286 = vadd.f32 %v264, %v281
  %v287 = vadd.f32 %v265, %v281
  %v288 = vadd.f32 %v266, %v281
  %v289 = vadd.f32 %v267, %v281
  %v290 = vadd.f32 %v268, %v281
  %v291 = vadd.f32 %v269, %v281
  %v292 = vadd.f32 %v270, %v281
  %v293 = vadd.f32 %v271, %v281
  %v294 = vadd.f32 %v272, %v281
  %v295 = vadd.f32 %v273, %v281
  %v296 = vadd.f32 %v274, %v281
  %v297 = vadd.f32 %v275, %v281
  %v298 = vadd.f32 %v276, %v281
  %v299 = vpack.c.bf16 %v284, %v283
  %v300 = vpack.c.bf16 %v286, %v285
  %v301 = vpack.c.bf16 %v288, %v287
  %v302 = vpack.c.bf16 %v290, %v289
  %v303 = vpack.c.bf16 %v292, %v291
  %v304 = vpack.c.bf16 %v294, %v293
  %v305 = vpack.c.bf16 %v296, %v295
  %v306 = vpack.c.bf16 %v298, %v297
  %v307 = vld [vmem:[%s3] sm:$0xff]
  %v308 = vld [vmem:[%s3 + $0x8] sm:$0xff]
  %v309 = vld [vmem:[%s3 + $0x10] sm:$0xff]
  %v310 = vld [vmem:[%s3 + $0x18] sm:$0xff]
  %v311 = vld [vmem:[%s4] sm:$0x3]
  %v313 = vlaneseq
  %v314 = vshrl.u32 %v313, 7
  %v315 = vsub.s32 0, %v314
  %v316 = vrot.slane %v311, %v315
  %v317 = vlaneseq
  %v318 = vshrl.u32 %v317, 7
  %v319 = vsub.s32 1, %v318
  %v320 = vrot.slane %v311, %v319
  %v327 = vunpack.c.l.b16 %v307
  %v328 = vunpack.c.h.b16 %v307
  %v329 = vunpack.c.l.b16 %v308
  %v330 = vunpack.c.h.b16 %v308
  %v331 = vunpack.c.l.b16 %v309
  %v332 = vunpack.c.h.b16 %v309
  %v333 = vunpack.c.l.b16 %v310
  %v334 = vunpack.c.h.b16 %v310
  %v335 = vpack.c.b16 %v329, %v327
  %v336 = vpack.c.b16 %v330, %v328
  %v337 = vpack.c.b16 %v333, %v331
  %v338 = vpack.c.b16 %v334, %v332
  %v344 = vsel %vm45, %v299, 0
  %v347 = vsel %vm45, %v300, 0
  %v350 = vsel %vm45, %v301, 0
  %v353 = vsel %vm45, %v302, 0
  %v356 = vsel %vm45, %v303, 0
  %v359 = vsel %vm45, %v304, 0
  %v362 = vsel %vm45, %v305, 0
  %v365 = vsel %vm45, %v306, 0
  %367 = vmatprep.subr.bf16.mxu0 %v336
  %368 = vmatpush1.bf16.msra.mxu0 %v335
  %369 = vmatprep.subr.bf16.mxu0 %v338
  %370 = vmatpush1.bf16.msra.mxu0 %v337
  %371 = vmatprep.subr.bf16.mxu0 0
  %372 = vmatpush1.bf16.msra.mxu0 0
  %373 = vmatprep.subr.bf16.mxu0 0
  %374 = vmatpush1.bf16.msra.mxu0 0
  %375 = vmatprep.subr.bf16.mxu0 0
  %376 = vmatpush1.bf16.msra.mxu0 0
  %377 = vmatprep.subr.bf16.mxu0 0
  %378 = vmatpush1.bf16.msra.mxu0 0
  %379 = vmatprep.subr.bf16.mxu0 0
  %380 = vmatpush1.bf16.msra.mxu0 0
  %381 = vmatprep.subr.bf16.mxu0 0
  %382 = vmatpush1.bf16.msra.mxu0 0
  %383 = vmatprep.subr.bf16.mxu0 0
  %384 = vmatpush1.bf16.msra.mxu0 0
  %385 = vmatprep.subr.bf16.mxu0 0
  %386 = vmatpush1.bf16.msra.mxu0 0
  %387 = vmatprep.subr.bf16.mxu0 0
  %388 = vmatpush1.bf16.msra.mxu0 0
  %389 = vmatprep.subr.bf16.mxu0 0
  %390 = vmatpush1.bf16.msra.mxu0 0
  %391 = vmatprep.subr.bf16.mxu0 0
  %392 = vmatpush1.bf16.msra.mxu0 0
  %393 = vmatprep.subr.bf16.mxu0 0
  %394 = vmatpush1.bf16.msra.mxu0 0
  %395 = vmatprep.subr.bf16.mxu0 0
  %396 = vmatpush1.bf16.msra.mxu0 0
  %397 = vmatprep.subr.bf16.mxu0 0
  %398 = vmatpush1.bf16.msra.mxu0 0
  %399 = vmatprep.mubr.bf16.mxu0 0
  %400 = vmatmul.mubr.bf16.gmra.mrb[0].mxu0 %v344
  %v401 = vpop.f32.mrb[0].mxu0
  %v402 = vadd.f32 %v316, %v401
  %v403 = vpop.f32.mrb[0].mxu0
  %v404 = vadd.f32 %v320, %v403
  %v405 = vpop.f32.mrb[0].mxu0
  %v406 = vadd.f32 %v316, %v405
  %v407 = vpop.f32.mrb[0].mxu0
  %v408 = vadd.f32 %v320, %v407
  %409 = vmatprep.mubr.bf16.mxu0 0
  %410 = vmatmul.mubr.bf16.gmra.mrb[0].mxu0 %v347
  %v411 = vpop.f32.mrb[0].mxu0
  %v412 = vadd.f32 %v316, %v411
  %v413 = vpop.f32.mrb[0].mxu0
  %v414 = vadd.f32 %v320, %v413
  %v415 = vpop.f32.mrb[0].mxu0
  %v416 = vadd.f32 %v316, %v415
  %v417 = vpop.f32.mrb[0].mxu0
  %v418 = vadd.f32 %v320, %v417
  %419 = vmatprep.mubr.bf16.mxu0 0
  %420 = vmatmul.mubr.bf16.gmra.mrb[0].mxu0 %v350
  %v421 = vpop.f32.mrb[0].mxu0
  %v422 = vadd.f32 %v316, %v421
  %v423 = vpop.f32.mrb[0].mxu0
  %v424 = vadd.f32 %v320, %v423
  %v425 = vpop.f32.mrb[0].mxu0
  %v426 = vadd.f32 %v316, %v425
  %v427 = vpop.f32.mrb[0].mxu0
  %v428 = vadd.f32 %v320, %v427
  %429 = vmatprep.mubr.bf16.mxu0 0
  %430 = vmatmul.mubr.bf16.gmra.mrb[0].mxu0 %v353
  %v431 = vpop.f32.mrb[0].mxu0
  %v432 = vadd.f32 %v316, %v431
  %v433 = vpop.f32.mrb[0].mxu0
  %v434 = vadd.f32 %v320, %v433
  %v435 = vpop.f32.mrb[0].mxu0
  %v436 = vadd.f32 %v316, %v435
  %v437 = vpop.f32.mrb[0].mxu0
  %v438 = vadd.f32 %v320, %v437
  %439 = vmatprep.mubr.bf16.mxu0 0
  %440 = vmatmul.mubr.bf16.gmra.mrb[0].mxu0 %v356
  %v441 = vpop.f32.mrb[0].mxu0
  %v442 = vadd.f32 %v316, %v441
  %v443 = vpop.f32.mrb[0].mxu0
  %v444 = vadd.f32 %v320, %v443
  %v445 = vpop.f32.mrb[0].mxu0
  %v446 = vadd.f32 %v316, %v445
  %v447 = vpop.f32.mrb[0].mxu0
  %v448 = vadd.f32 %v320, %v447
  %449 = vmatprep.mubr.bf16.mxu0 0
  %450 = vmatmul.mubr.bf16.gmra.mrb[0].mxu0 %v359
  %v451 = vpop.f32.mrb[0].mxu0
  %v452 = vadd.f32 %v316, %v451
  %v453 = vpop.f32.mrb[0].mxu0
  %v454 = vadd.f32 %v320, %v453
  %v455 = vpop.f32.mrb[0].mxu0
  %v456 = vadd.f32 %v316, %v455
  %v457 = vpop.f32.mrb[0].mxu0
  %v458 = vadd.f32 %v320, %v457
  %459 = vmatprep.mubr.bf16.mxu0 0
  %460 = vmatmul.mubr.bf16.gmra.mrb[0].mxu0 %v362
  %v461 = vpop.f32.mrb[0].mxu0
  %v462 = vadd.f32 %v316, %v461
  %v463 = vpop.f32.mrb[0].mxu0
  %v464 = vadd.f32 %v320, %v463
  %v465 = vpop.f32.mrb[0].mxu0
  %v466 = vadd.f32 %v316, %v465
  %v467 = vpop.f32.mrb[0].mxu0
  %v468 = vadd.f32 %v320, %v467
  %469 = vmatprep.mubr.bf16.mxu0 0
  %470 = vmatmul.mubr.bf16.gmra.mrb[0].mxu0 %v365
  %v471 = vpop.f32.mrb[0].mxu0
  %v472 = vadd.f32 %v316, %v471
  %v473 = vpop.f32.mrb[0].mxu0
  %v474 = vadd.f32 %v320, %v473
  %v475 = vpop.f32.mrb[0].mxu0
  %v476 = vadd.f32 %v316, %v475
  %v477 = vpop.f32.mrb[0].mxu0
  %v478 = vadd.f32 %v320, %v477
  %479 = vdwg.mxu0
  %v480 = vsub.f32 0.0, %v402
  %v481 = vsub.f32 0.0, %v406
  %v482 = vsub.f32 0.0, %v412
  %v483 = vsub.f32 0.0, %v416
  %v484 = vsub.f32 0.0, %v422
  %v485 = vsub.f32 0.0, %v426
  %v486 = vsub.f32 0.0, %v432
  %v487 = vsub.f32 0.0, %v436
  %v488 = vsub.f32 0.0, %v442
  %v489 = vsub.f32 0.0, %v446
  %v490 = vsub.f32 0.0, %v452
  %v491 = vsub.f32 0.0, %v456
  %v492 = vsub.f32 0.0, %v462
  %v493 = vsub.f32 0.0, %v466
  %v494 = vsub.f32 0.0, %v472
  %v495 = vsub.f32 0.0, %v476
  %v496 = vmul.f32 %v480, 1.442695
  %v497 = vpow.pop %v496
  %v498 = vmul.f32 %v481, 1.442695
  %v499 = vpow.pop %v498
  %v500 = vmul.f32 %v482, 1.442695
  %v501 = vpow.pop %v500
  %v502 = vmul.f32 %v483, 1.442695
  %v503 = vpow.pop %v502
  %v504 = vmul.f32 %v484, 1.442695
  %v505 = vpow.pop %v504
  %v506 = vmul.f32 %v485, 1.442695
  %v507 = vpow.pop %v506
  %v508 = vmul.f32 %v486, 1.442695
  %v509 = vpow.pop %v508
  %v510 = vmul.f32 %v487, 1.442695
  %v511 = vpow.pop %v510
  %v512 = vmul.f32 %v488, 1.442695
  %v513 = vpow.pop %v512
  %v514 = vmul.f32 %v489, 1.442695
  %v515 = vpow.pop %v514
  %v516 = vmul.f32 %v490, 1.442695
  %v517 = vpow.pop %v516
  %v518 = vmul.f32 %v491, 1.442695
  %v519 = vpow.pop %v518
  %v520 = vmul.f32 %v492, 1.442695
  %v521 = vpow.pop %v520
  %v522 = vmul.f32 %v493, 1.442695
  %v523 = vpow.pop %v522
  %v524 = vmul.f32 %v494, 1.442695
  %v525 = vpow.pop %v524
  %v526 = vmul.f32 %v495, 1.442695
  %v527 = vpow.pop %v526
  %v528 = vadd.f32 %v497, 1.0
  %v529 = vadd.f32 %v499, 1.0
  %v530 = vadd.f32 %v501, 1.0
  %v531 = vadd.f32 %v503, 1.0
  %v532 = vadd.f32 %v505, 1.0
  %v533 = vadd.f32 %v507, 1.0
  %v534 = vadd.f32 %v509, 1.0
  %v535 = vadd.f32 %v511, 1.0
  %v536 = vadd.f32 %v513, 1.0
  %v537 = vadd.f32 %v515, 1.0
  %v538 = vadd.f32 %v517, 1.0
  %v539 = vadd.f32 %v519, 1.0
  %v540 = vadd.f32 %v521, 1.0
  %v541 = vadd.f32 %v523, 1.0
  %v542 = vadd.f32 %v525, 1.0
  %v543 = vadd.f32 %v527, 1.0
  %v544 = vrcp.pop %v528
  %v545 = vmul.f32 1.0, %v544
  %v546 = vrcp.pop %v529
  %v547 = vmul.f32 1.0, %v546
  %v548 = vrcp.pop %v530
  %v549 = vmul.f32 1.0, %v548
  %v550 = vrcp.pop %v531
  %v551 = vmul.f32 1.0, %v550
  %v552 = vrcp.pop %v532
  %v553 = vmul.f32 1.0, %v552
  %v554 = vrcp.pop %v533
  %v555 = vmul.f32 1.0, %v554
  %v556 = vrcp.pop %v534
  %v557 = vmul.f32 1.0, %v556
  %v558 = vrcp.pop %v535
  %v559 = vmul.f32 1.0, %v558
  %v560 = vrcp.pop %v536
  %v561 = vmul.f32 1.0, %v560
  %v562 = vrcp.pop %v537
  %v563 = vmul.f32 1.0, %v562
  %v564 = vrcp.pop %v538
  %v565 = vmul.f32 1.0, %v564
  %v566 = vrcp.pop %v539
  %v567 = vmul.f32 1.0, %v566
  %v568 = vrcp.pop %v540
  %v569 = vmul.f32 1.0, %v568
  %v570 = vrcp.pop %v541
  %v571 = vmul.f32 1.0, %v570
  %v572 = vrcp.pop %v542
  %v573 = vmul.f32 1.0, %v572
  %v574 = vrcp.pop %v543
  %v575 = vmul.f32 1.0, %v574
  %v576 = vmul.f32 %v402, %v545
  %v577 = vmul.f32 %v406, %v547
  %v578 = vmul.f32 %v412, %v549
  %v579 = vmul.f32 %v416, %v551
  %v580 = vmul.f32 %v422, %v553
  %v581 = vmul.f32 %v426, %v555
  %v582 = vmul.f32 %v432, %v557
  %v583 = vmul.f32 %v436, %v559
  %v584 = vmul.f32 %v442, %v561
  %v585 = vmul.f32 %v446, %v563
  %v586 = vmul.f32 %v452, %v565
  %v587 = vmul.f32 %v456, %v567
  %v588 = vmul.f32 %v462, %v569
  %v589 = vmul.f32 %v466, %v571
  %v590 = vmul.f32 %v472, %v573
  %v591 = vmul.f32 %v476, %v575
  %v592 = vmul.f32 %v576, %v404
  %v593 = vmul.f32 %v577, %v408
  %v594 = vmul.f32 %v578, %v414
  %v595 = vmul.f32 %v579, %v418
  %v596 = vmul.f32 %v580, %v424
  %v597 = vmul.f32 %v581, %v428
  %v598 = vmul.f32 %v582, %v434
  %v599 = vmul.f32 %v583, %v438
  %v600 = vmul.f32 %v584, %v444
  %v601 = vmul.f32 %v585, %v448
  %v602 = vmul.f32 %v586, %v454
  %v603 = vmul.f32 %v587, %v458
  %v604 = vmul.f32 %v588, %v464
  %v605 = vmul.f32 %v589, %v468
  %v606 = vmul.f32 %v590, %v474
  %v607 = vmul.f32 %v591, %v478
  %v608 = vpack.c.bf16 %v593, %v592
  %v609 = vpack.c.bf16 %v595, %v594
  %v610 = vpack.c.bf16 %v597, %v596
  %v611 = vpack.c.bf16 %v599, %v598
  %v612 = vpack.c.bf16 %v601, %v600
  %v613 = vpack.c.bf16 %v603, %v602
  %v614 = vpack.c.bf16 %v605, %v604
  %v615 = vpack.c.bf16 %v607, %v606
  %v616 = vld [vmem:[%s5] sm:$0xf]
  %v617 = vld [vmem:[%s5 + $0x4] sm:$0xf]
  %v618 = vld [vmem:[%s5 + $0x8] sm:$0xf]
  %v619 = vld [vmem:[%s5 + $0xc] sm:$0xf]
  %v620 = vld [vmem:[%s5 + $0x10] sm:$0xf]
  %v621 = vld [vmem:[%s5 + $0x14] sm:$0xf]
  %v622 = vld [vmem:[%s5 + $0x18] sm:$0xf]
  %v623 = vld [vmem:[%s5 + $0x1c] sm:$0xf]
  %v624 = vld [vmem:[%s5 + $0x20] sm:$0xf]
  %v625 = vld [vmem:[%s5 + $0x24] sm:$0xf]
  %v626 = vld [vmem:[%s5 + $0x28] sm:$0xf]
  %v627 = vld [vmem:[%s5 + $0x2c] sm:$0xf]
  %v628 = vld [vmem:[%s5 + $0x30] sm:$0xf]
  %v629 = vld [vmem:[%s5 + $0x34] sm:$0xf]
  %v630 = vld [vmem:[%s5 + $0x38] sm:$0xf]
  %v631 = vld [vmem:[%s5 + $0x3c] sm:$0xf]
  %v632 = vld [vmem:[%s6] sm:$0x1]
  %v634 = vlaneseq
  %v635 = vshrl.u32 %v634, 7
  %v636 = vsub.s32 0, %v635
  %v637 = vrot.slane %v632, %v636
  %v655 = vunpack.c.l.b16 %v616
  %v656 = vunpack.c.l.b16 %v617
  %v657 = vunpack.c.l.b16 %v618
  %v658 = vunpack.c.l.b16 %v619
  %v659 = vunpack.c.l.b16 %v620
  %v660 = vunpack.c.l.b16 %v621
  %v661 = vunpack.c.l.b16 %v622
  %v662 = vunpack.c.l.b16 %v623
  %v663 = vunpack.c.l.b16 %v624
  %v664 = vunpack.c.l.b16 %v625
  %v665 = vunpack.c.l.b16 %v626
  %v666 = vunpack.c.l.b16 %v627
  %v667 = vunpack.c.l.b16 %v628
  %v668 = vunpack.c.l.b16 %v629
  %v669 = vunpack.c.l.b16 %v630
  %v670 = vunpack.c.l.b16 %v631
  %v671 = vpack.c.b16 %v656, %v655
  %v672 = vpack.c.b16 %v658, %v657
  %v673 = vpack.c.b16 %v660, %v659
  %v674 = vpack.c.b16 %v662, %v661
  %v675 = vpack.c.b16 %v664, %v663
  %v676 = vpack.c.b16 %v666, %v665
  %v677 = vpack.c.b16 %v668, %v667
  %v678 = vpack.c.b16 %v670, %v669
  %687 = vmatprep.subr.bf16.mxu0 0
  %688 = vmatpush1.bf16.msra.mxu0 %v671
  %689 = vmatprep.subr.bf16.mxu0 0
  %690 = vmatpush1.bf16.msra.mxu0 %v672
  %691 = vmatprep.subr.bf16.mxu0 0
  %692 = vmatpush1.bf16.msra.mxu0 %v673
  %693 = vmatprep.subr.bf16.mxu0 0
  %694 = vmatpush1.bf16.msra.mxu0 %v674
  %695 = vmatprep.subr.bf16.mxu0 0
  %696 = vmatpush1.bf16.msra.mxu0 %v675
  %697 = vmatprep.subr.bf16.mxu0 0
  %698 = vmatpush1.bf16.msra.mxu0 %v676
  %699 = vmatprep.subr.bf16.mxu0 0
  %700 = vmatpush1.bf16.msra.mxu0 %v677
  %701 = vmatprep.subr.bf16.mxu0 0
  %702 = vmatpush1.bf16.msra.mxu0 %v678
  %703 = vmatprep.subr.bf16.mxu0 0
  %704 = vmatpush1.bf16.msra.mxu0 0
  %705 = vmatprep.subr.bf16.mxu0 0
  %706 = vmatpush1.bf16.msra.mxu0 0
  %707 = vmatprep.subr.bf16.mxu0 0
  %708 = vmatpush1.bf16.msra.mxu0 0
  %709 = vmatprep.subr.bf16.mxu0 0
  %710 = vmatpush1.bf16.msra.mxu0 0
  %711 = vmatprep.subr.bf16.mxu0 0
  %712 = vmatpush1.bf16.msra.mxu0 0
  %713 = vmatprep.subr.bf16.mxu0 0
  %714 = vmatpush1.bf16.msra.mxu0 0
  %715 = vmatprep.subr.bf16.mxu0 0
  %716 = vmatpush1.bf16.msra.mxu0 0
  %717 = vmatprep.subr.bf16.mxu0 0
  %718 = vmatpush1.bf16.msra.mxu0 0
  %719 = vmatprep.mubr.bf16.mxu0 0
  %720 = vmatmul.mubr.bf16.gmra.mrb[0].mxu0 %v608
  %v721 = vpop.f32.mrb[0].mxu0
  %v722 = vadd.f32 %v637, %v721
  %v723 = vpop.f32.mrb[0].mxu0
  %v724 = vpop.f32.mrb[0].mxu0
  %v725 = vadd.f32 %v637, %v724
  %v726 = vpop.f32.mrb[0].mxu0
  %727 = vmatprep.mubr.bf16.mxu0 0
  %728 = vmatmul.mubr.bf16.gmra.mrb[0].mxu0 %v609
  %v729 = vpop.f32.mrb[0].mxu0
  %v730 = vadd.f32 %v637, %v729
  %v731 = vpop.f32.mrb[0].mxu0
  %v732 = vpop.f32.mrb[0].mxu0
  %v733 = vadd.f32 %v637, %v732
  %v734 = vpop.f32.mrb[0].mxu0
  %735 = vmatprep.mubr.bf16.mxu0 0
  %736 = vmatmul.mubr.bf16.gmra.mrb[0].mxu0 %v610
  %v737 = vpop.f32.mrb[0].mxu0
  %v738 = vadd.f32 %v637, %v737
  %v739 = vpop.f32.mrb[0].mxu0
  %v740 = vpop.f32.mrb[0].mxu0
  %v741 = vadd.f32 %v637, %v740
  %v742 = vpop.f32.mrb[0].mxu0
  %743 = vmatprep.mubr.bf16.mxu0 0
  %744 = vmatmul.mubr.bf16.gmra.mrb[0].mxu0 %v611
  %v745 = vpop.f32.mrb[0].mxu0
  %v746 = vadd.f32 %v637, %v745
  %v747 = vpop.f32.mrb[0].mxu0
  %v748 = vpop.f32.mrb[0].mxu0
  %v749 = vadd.f32 %v637, %v748
  %v750 = vpop.f32.mrb[0].mxu0
  %751 = vmatprep.mubr.bf16.mxu0 0
  %752 = vmatmul.mubr.bf16.gmra.mrb[0].mxu0 %v612
  %v753 = vpop.f32.mrb[0].mxu0
  %v754 = vadd.f32 %v637, %v753
  %v755 = vpop.f32.mrb[0].mxu0
  %v756 = vpop.f32.mrb[0].mxu0
  %v757 = vadd.f32 %v637, %v756
  %v758 = vpop.f32.mrb[0].mxu0
  %759 = vmatprep.mubr.bf16.mxu0 0
  %760 = vmatmul.mubr.bf16.gmra.mrb[0].mxu0 %v613
  %v761 = vpop.f32.mrb[0].mxu0
  %v762 = vadd.f32 %v637, %v761
  %v763 = vpop.f32.mrb[0].mxu0
  %v764 = vpop.f32.mrb[0].mxu0
  %v765 = vadd.f32 %v637, %v764
  %v766 = vpop.f32.mrb[0].mxu0
  %767 = vmatprep.mubr.bf16.mxu0 0
  %768 = vmatmul.mubr.bf16.gmra.mrb[0].mxu0 %v614
  %v769 = vpop.f32.mrb[0].mxu0
  %v770 = vadd.f32 %v637, %v769
  %v771 = vpop.f32.mrb[0].mxu0
  %v772 = vpop.f32.mrb[0].mxu0
  %v773 = vadd.f32 %v637, %v772
  %v774 = vpop.f32.mrb[0].mxu0
  %775 = vmatprep.mubr.bf16.mxu0 0
  %776 = vmatmul.mubr.bf16.gmra.mrb[0].mxu0 %v615
  %v777 = vpop.f32.mrb[0].mxu0
  %v778 = vadd.f32 %v637, %v777
  %v779 = vpop.f32.mrb[0].mxu0
  %v780 = vpop.f32.mrb[0].mxu0
  %v781 = vadd.f32 %v637, %v780
  %v782 = vpop.f32.mrb[0].mxu0
  %783 = vdwg.mxu0
  %784 = vst.msk [vmem:[%s7] sm:$0xff] %vm45, %v722
  %785 = vst.msk [vmem:[%s7 + $0x8] sm:$0xff] %vm45, %v725
  %786 = vst.msk [vmem:[%s7 + $0x10] sm:$0xff] %vm45, %v730
  %787 = vst.msk [vmem:[%s7 + $0x18] sm:$0xff] %vm45, %v733
  %788 = vst.msk [vmem:[%s7 + $0x20] sm:$0xff] %vm45, %v738
  %789 = vst.msk [vmem:[%s7 + $0x28] sm:$0xff] %vm45, %v741
  %790 = vst.msk [vmem:[%s7 + $0x30] sm:$0xff] %vm45, %v746
  %791 = vst.msk [vmem:[%s7 + $0x38] sm:$0xff] %vm45, %v749
  %792 = vst.msk [vmem:[%s7 + $0x40] sm:$0xff] %vm45, %v754
  %793 = vst.msk [vmem:[%s7 + $0x48] sm:$0xff] %vm45, %v757
  %794 = vst.msk [vmem:[%s7 + $0x50] sm:$0xff] %vm45, %v762
  %795 = vst.msk [vmem:[%s7 + $0x58] sm:$0xff] %vm45, %v765
  %796 = vst.msk [vmem:[%s7 + $0x60] sm:$0xff] %vm45, %v770
  %797 = vst.msk [vmem:[%s7 + $0x68] sm:$0xff] %vm45, %v773
  %798 = vst.msk [vmem:[%s7 + $0x70] sm:$0xff] %vm45, %v778
  %799 = vst.msk [vmem:[%s7 + $0x78] sm:$0xff] %vm45, %v781
  // Predicated region
  $region30: #{_lambda_.40} parent=0 // pred_check
    _
  $region31: #{_lambda_.40} parent=0 // pred_check_branch
    %801 = sbr.rel (0) target = $region33
  $region32: #{_lambda_.40} parent=0 // pred_region
    _
  $region33: #{_lambda_.40} parent=0 // pred_fallthru
    _
  // Predicated region
  $region34: #{_lambda_.40} parent=0 // pred_check
    _
  $region35: #{_lambda_.40} parent=0 // pred_check_branch
    %803 = sbr.rel (0) target = $region37
  $region36: #{_lambda_.40} parent=0 // pred_region
    _
  $region37: #{_lambda_.40} parent=0 // pred_fallthru
    _

// kernel: _lambda_.44
$region0: #{_lambda_.44}
  #allocation0 [shape = 'u32[]', space=smem, size = 0x4, offset = 0x4, fixed_abs, tag = 'smem constant byte address 0x4 - core index']
  #allocation1 [shape = 'u32[144,128]{1,0:T(1,128)}', space=vmem, size = 0x12000, scoped, tag = 'internal scratch']
  %s0 = inlined_call_operand.vmem [shape: f32[16,32], index: 0, kind: input, shape index: {}]
  %s1 = inlined_call_operand.vmem [shape: f32[1,32], index: 1, kind: input, shape index: {}]
  %s2 = inlined_call_operand.vmem [shape: f32[1,32], index: 2, kind: input, shape index: {}]
  %s3 = inlined_call_operand.vmem [shape: bf16[32,256], index: 3, kind: input, shape index: {}]
  %s4 = inlined_call_operand.vmem [shape: f32[1,256], index: 4, kind: input, shape index: {}]
  %s5 = inlined_call_operand.vmem [shape: bf16[128,32], index: 5, kind: input, shape index: {}]
  %s6 = inlined_call_operand.vmem [shape: f32[1,32], index: 6, kind: input, shape index: {}]
  %s7 = inlined_call_operand.vmem [shape: f32[16,32], index: 7, kind: output, shape index: {}]
  %s8 = sld [smem:[#allocation0]]
  $region38: #{_lambda_.44} parent=0
    _
  %s10 = ssub.s32 1, %s8
  %s11 = scalar_select 0, %s10, %s8
  // Predicated region
  $region2: #{_lambda_.44} parent=0 // pred_check
    _
  $region3: #{_lambda_.44} parent=0 // pred_check_branch
    %13 = sbr.rel (0) target = $region5
  $region4: #{_lambda_.44} parent=0 // pred_region
    _
  $region5: #{_lambda_.44} parent=0 // pred_fallthru
    _
  // Predicated region
  $region6: #{_lambda_.44} parent=0 // pred_check
    _
  $region7: #{_lambda_.44} parent=0 // pred_check_branch
    %15 = sbr.rel (0) target = $region9
  $region8: #{_lambda_.44} parent=0 // pred_region
    _
  $region9: #{_lambda_.44} parent=0 // pred_fallthru
    _
  // Predicated region
  $region10: #{_lambda_.44} parent=0 // pred_check
    _
  $region11: #{_lambda_.44} parent=0 // pred_check_branch
    %17 = sbr.rel (0) target = $region13
  $region12: #{_lambda_.44} parent=0 // pred_region
    _
  $region13: #{_lambda_.44} parent=0 // pred_fallthru
    _
  // Predicated region
  $region14: #{_lambda_.44} parent=0 // pred_check
    _
  $region15: #{_lambda_.44} parent=0 // pred_check_branch
    %19 = sbr.rel (0) target = $region17
  $region16: #{_lambda_.44} parent=0 // pred_region
    _
  $region17: #{_lambda_.44} parent=0 // pred_fallthru
    _
  // Predicated region
  $region18: #{_lambda_.44} parent=0 // pred_check
    _
  $region19: #{_lambda_.44} parent=0 // pred_check_branch
    %21 = sbr.rel (0) target = $region21
  $region20: #{_lambda_.44} parent=0 // pred_region
    _
  $region21: #{_lambda_.44} parent=0 // pred_fallthru
    _
  // Predicated region
  $region22: #{_lambda_.44} parent=0 // pred_check
    _
  $region23: #{_lambda_.44} parent=0 // pred_check_branch
    %23 = sbr.rel (0) target = $region25
  $region24: #{_lambda_.44} parent=0 // pred_region
    _
  $region25: #{_lambda_.44} parent=0 // pred_fallthru
    _
  // Predicated region
  $region26: #{_lambda_.44} parent=0 // pred_check
    _
  $region27: #{_lambda_.44} parent=0 // pred_check_branch
    %25 = sbr.rel (0) target = $region29
  $region28: #{_lambda_.44} parent=0 // pred_region
    _
  $region29: #{_lambda_.44} parent=0 // pred_fallthru
    _
  %v27 = vld [vmem:[%s0] sm:$0xff]
  %v28 = vld [vmem:[%s0 + $0x8] sm:$0xff]
  %v29 = vld [vmem:[%s1] sm:$0x1]
  %v30 = vld [vmem:[%s2] sm:$0x1]
  %vm31 = vcmask 261120
  %v32 = vsel %vm31, %v27, 0.0
  %33 = vadd.xlane.f32.xlu0 %v32
  %v34 = vpop.xlane.xlu0 %33
  %v35 = vsel %vm31, %v28, 0.0
  %36 = vadd.xlane.f32.xlu0 %v35
  %v37 = vpop.xlane.xlu0 %36
  %v38 = vrcp.pop 32.0
  %v39 = vmul.f32 %v34, %v38
  %v40 = vmul.f32 %v37, %v38
  %v41 = vsub.f32 %v27, %v39
  %v42 = vsub.f32 %v28, %v40
  %v43 = vmul.f32 %v41, %v41
  %v44 = vmul.f32 %v42, %v42
  %v45 = vsel %vm31, %v43, 0.0
  %46 = vadd.xlane.f32.xlu0 %v45
  %v47 = vpop.xlane.xlu0 %46
  %v48 = vsel %vm31, %v44, 0.0
  %49 = vadd.xlane.f32.xlu0 %v48
  %v50 = vpop.xlane.xlu0 %49
  %v51 = vmul.f32 %v47, %v38
  %v52 = vmul.f32 %v50, %v38
  %v53 = vadd.f32 %v51, 1e-05
  %v54 = vadd.f32 %v52, 1e-05
  %v55 = vrsqrt.pop %v53
  %v56 = vrsqrt.pop %v54
  %v57 = vmul.f32 %v41, %v55
  %v58 = vmul.f32 %v42, %v56
  %v60 = vlaneseq
  %v61 = vshrl.u32 %v60, 7
  %v62 = vsub.s32 0, %v61
  %v63 = vrot.slane %v29, %v62
  %v65 = vmul.f32 %v57, %v63
  %v66 = vmul.f32 %v58, %v63
  %v68 = vlaneseq
  %v69 = vshrl.u32 %v68, 7
  %v70 = vsub.s32 0, %v69
  %v71 = vrot.slane %v30, %v70
  %v73 = vadd.f32 %v65, %v71
  %v74 = vadd.f32 %v66, %v71
  %v75 = vpack.c.bf16 %v74, %v73
  %v76 = vld [vmem:[%s3] sm:$0xff]
  %v77 = vld [vmem:[%s3 + $0x8] sm:$0xff]
  %v78 = vld [vmem:[%s3 + $0x10] sm:$0xff]
  %v79 = vld [vmem:[%s3 + $0x18] sm:$0xff]
  %v80 = vld [vmem:[%s4] sm:$0x3]
  %v82 = vlaneseq
  %v83 = vshrl.u32 %v82, 7
  %v84 = vsub.s32 0, %v83
  %v85 = vrot.slane %v80, %v84
  %v86 = vlaneseq
  %v87 = vshrl.u32 %v86, 7
  %v88 = vsub.s32 1, %v87
  %v89 = vrot.slane %v80, %v88
  %v96 = vunpack.c.l.b16 %v76
  %v97 = vunpack.c.h.b16 %v76
  %v98 = vunpack.c.l.b16 %v77
  %v99 = vunpack.c.h.b16 %v77
  %v100 = vunpack.c.l.b16 %v78
  %v101 = vunpack.c.h.b16 %v78
  %v102 = vunpack.c.l.b16 %v79
  %v103 = vunpack.c.h.b16 %v79
  %v104 = vpack.c.b16 %v98, %v96
  %v105 = vpack.c.b16 %v99, %v97
  %v106 = vpack.c.b16 %v102, %v100
  %v107 = vpack.c.b16 %v103, %v101
  %v113 = vsel %vm31, %v75, 0
  %115 = vmatprep.subr.bf16.mxu0 %v105
  %116 = vmatpush1.bf16.msra.mxu0 %v104
  %117 = vmatprep.subr.bf16.mxu0 %v107
  %118 = vmatpush1.bf16.msra.mxu0 %v106
  %119 = vmatprep.subr.bf16.mxu0 0
  %120 = vmatpush1.bf16.msra.mxu0 0
  %121 = vmatprep.subr.bf16.mxu0 0
  %122 = vmatpush1.bf16.msra.mxu0 0
  %123 = vmatprep.subr.bf16.mxu0 0
  %124 = vmatpush1.bf16.msra.mxu0 0
  %125 = vmatprep.subr.bf16.mxu0 0
  %126 = vmatpush1.bf16.msra.mxu0 0
  %127 = vmatprep.subr.bf16.mxu0 0
  %128 = vmatpush1.bf16.msra.mxu0 0
  %129 = vmatprep.subr.bf16.mxu0 0
  %130 = vmatpush1.bf16.msra.mxu0 0
  %131 = vmatprep.subr.bf16.mxu0 0
  %132 = vmatpush1.bf16.msra.mxu0 0
  %133 = vmatprep.subr.bf16.mxu0 0
  %134 = vmatpush1.bf16.msra.mxu0 0
  %135 = vmatprep.subr.bf16.mxu0 0
  %136 = vmatpush1.bf16.msra.mxu0 0
  %137 = vmatprep.subr.bf16.mxu0 0
  %138 = vmatpush1.bf16.msra.mxu0 0
  %139 = vmatprep.subr.bf16.mxu0 0
  %140 = vmatpush1.bf16.msra.mxu0 0
  %141 = vmatprep.subr.bf16.mxu0 0
  %142 = vmatpush1.bf16.msra.mxu0 0
  %143 = vmatprep.subr.bf16.mxu0 0
  %144 = vmatpush1.bf16.msra.mxu0 0
  %145 = vmatprep.subr.bf16.mxu0 0
  %146 = vmatpush1.bf16.msra.mxu0 0
  %147 = vmatprep.mubr.bf16.mxu0 0
  %148 = vmatmul.mubr.bf16.gmra.mrb[0].mxu0 %v113
  %v149 = vpop.f32.mrb[0].mxu0
  %v150 = vadd.f32 %v85, %v149
  %v151 = vpop.f32.mrb[0].mxu0
  %v152 = vadd.f32 %v89, %v151
  %v153 = vpop.f32.mrb[0].mxu0
  %v154 = vadd.f32 %v85, %v153
  %v155 = vpop.f32.mrb[0].mxu0
  %v156 = vadd.f32 %v89, %v155
  %157 = vdwg.mxu0
  %v158 = vsub.f32 0.0, %v150
  %v159 = vsub.f32 0.0, %v154
  %v160 = vmul.f32 %v158, 1.442695
  %v161 = vpow.pop %v160
  %v162 = vmul.f32 %v159, 1.442695
  %v163 = vpow.pop %v162
  %v164 = vadd.f32 %v161, 1.0
  %v165 = vadd.f32 %v163, 1.0
  %v166 = vrcp.pop %v164
  %v167 = vmul.f32 1.0, %v166
  %v168 = vrcp.pop %v165
  %v169 = vmul.f32 1.0, %v168
  %v170 = vmul.f32 %v150, %v167
  %v171 = vmul.f32 %v154, %v169
  %v172 = vmul.f32 %v170, %v152
  %v173 = vmul.f32 %v171, %v156
  %v174 = vpack.c.bf16 %v173, %v172
  %v175 = vld [vmem:[%s5] sm:$0xf]
  %v176 = vld [vmem:[%s5 + $0x4] sm:$0xf]
  %v177 = vld [vmem:[%s5 + $0x8] sm:$0xf]
  %v178 = vld [vmem:[%s5 + $0xc] sm:$0xf]
  %v179 = vld [vmem:[%s5 + $0x10] sm:$0xf]
  %v180 = vld [vmem:[%s5 + $0x14] sm:$0xf]
  %v181 = vld [vmem:[%s5 + $0x18] sm:$0xf]
  %v182 = vld [vmem:[%s5 + $0x1c] sm:$0xf]
  %v183 = vld [vmem:[%s5 + $0x20] sm:$0xf]
  %v184 = vld [vmem:[%s5 + $0x24] sm:$0xf]
  %v185 = vld [vmem:[%s5 + $0x28] sm:$0xf]
  %v186 = vld [vmem:[%s5 + $0x2c] sm:$0xf]
  %v187 = vld [vmem:[%s5 + $0x30] sm:$0xf]
  %v188 = vld [vmem:[%s5 + $0x34] sm:$0xf]
  %v189 = vld [vmem:[%s5 + $0x38] sm:$0xf]
  %v190 = vld [vmem:[%s5 + $0x3c] sm:$0xf]
  %v191 = vld [vmem:[%s6] sm:$0x1]
  %v193 = vlaneseq
  %v194 = vshrl.u32 %v193, 7
  %v195 = vsub.s32 0, %v194
  %v196 = vrot.slane %v191, %v195
  %v214 = vunpack.c.l.b16 %v175
  %v215 = vunpack.c.l.b16 %v176
  %v216 = vunpack.c.l.b16 %v177
  %v217 = vunpack.c.l.b16 %v178
  %v218 = vunpack.c.l.b16 %v179
  %v219 = vunpack.c.l.b16 %v180
  %v220 = vunpack.c.l.b16 %v181
  %v221 = vunpack.c.l.b16 %v182
  %v222 = vunpack.c.l.b16 %v183
  %v223 = vunpack.c.l.b16 %v184
  %v224 = vunpack.c.l.b16 %v185
  %v225 = vunpack.c.l.b16 %v186
  %v226 = vunpack.c.l.b16 %v187
  %v227 = vunpack.c.l.b16 %v188
  %v228 = vunpack.c.l.b16 %v189
  %v229 = vunpack.c.l.b16 %v190
  %v230 = vpack.c.b16 %v215, %v214
  %v231 = vpack.c.b16 %v217, %v216
  %v232 = vpack.c.b16 %v219, %v218
  %v233 = vpack.c.b16 %v221, %v220
  %v234 = vpack.c.b16 %v223, %v222
  %v235 = vpack.c.b16 %v225, %v224
  %v236 = vpack.c.b16 %v227, %v226
  %v237 = vpack.c.b16 %v229, %v228
  %246 = vmatprep.subr.bf16.mxu0 0
  %247 = vmatpush1.bf16.msra.mxu0 %v230
  %248 = vmatprep.subr.bf16.mxu0 0
  %249 = vmatpush1.bf16.msra.mxu0 %v231
  %250 = vmatprep.subr.bf16.mxu0 0
  %251 = vmatpush1.bf16.msra.mxu0 %v232
  %252 = vmatprep.subr.bf16.mxu0 0
  %253 = vmatpush1.bf16.msra.mxu0 %v233
  %254 = vmatprep.subr.bf16.mxu0 0
  %255 = vmatpush1.bf16.msra.mxu0 %v234
  %256 = vmatprep.subr.bf16.mxu0 0
  %257 = vmatpush1.bf16.msra.mxu0 %v235
  %258 = vmatprep.subr.bf16.mxu0 0
  %259 = vmatpush1.bf16.msra.mxu0 %v236
  %260 = vmatprep.subr.bf16.mxu0 0
  %261 = vmatpush1.bf16.msra.mxu0 %v237
  %262 = vmatprep.subr.bf16.mxu0 0
  %263 = vmatpush1.bf16.msra.mxu0 0
  %264 = vmatprep.subr.bf16.mxu0 0
  %265 = vmatpush1.bf16.msra.mxu0 0
  %266 = vmatprep.subr.bf16.mxu0 0
  %267 = vmatpush1.bf16.msra.mxu0 0
  %268 = vmatprep.subr.bf16.mxu0 0
  %269 = vmatpush1.bf16.msra.mxu0 0
  %270 = vmatprep.subr.bf16.mxu0 0
  %271 = vmatpush1.bf16.msra.mxu0 0
  %272 = vmatprep.subr.bf16.mxu0 0
  %273 = vmatpush1.bf16.msra.mxu0 0
  %274 = vmatprep.subr.bf16.mxu0 0
  %275 = vmatpush1.bf16.msra.mxu0 0
  %276 = vmatprep.subr.bf16.mxu0 0
  %277 = vmatpush1.bf16.msra.mxu0 0
  %278 = vmatprep.mubr.bf16.mxu0 0
  %279 = vmatmul.mubr.bf16.gmra.mrb[0].mxu0 %v174
  %v280 = vpop.f32.mrb[0].mxu0
  %v281 = vadd.f32 %v196, %v280
  %v282 = vpop.f32.mrb[0].mxu0
  %v283 = vpop.f32.mrb[0].mxu0
  %v284 = vadd.f32 %v196, %v283
  %v285 = vpop.f32.mrb[0].mxu0
  %286 = vdwg.mxu0
  %287 = vst.msk [vmem:[%s7] sm:$0xff] %vm31, %v281
  %288 = vst.msk [vmem:[%s7 + $0x8] sm:$0xff] %vm31, %v284
  // Predicated region
  $region30: #{_lambda_.44} parent=0 // pred_check
    _
  $region31: #{_lambda_.44} parent=0 // pred_check_branch
    %290 = sbr.rel (0) target = $region33
  $region32: #{_lambda_.44} parent=0 // pred_region
    _
  $region33: #{_lambda_.44} parent=0 // pred_fallthru
    _
  // Predicated region
  $region34: #{_lambda_.44} parent=0 // pred_check
    _
  $region35: #{_lambda_.44} parent=0 // pred_check_branch
    %292 = sbr.rel (0) target = $region37
  $region36: #{_lambda_.44} parent=0 // pred_region
    _
  $region37: #{_lambda_.44} parent=0 // pred_fallthru
    _

// kernel: _lambda_.43
$region0: #{_lambda_.43}
  #allocation0 [shape = 'u32[]', space=smem, size = 0x4, offset = 0x4, fixed_abs, tag = 'smem constant byte address 0x4 - core index']
  #allocation1 [shape = 'u32[144,128]{1,0:T(1,128)}', space=vmem, size = 0x12000, scoped, tag = 'internal scratch']
  %s0 = inlined_call_operand.vmem [shape: bf16[2,1,8,128], index: 0, kind: input, shape index: {}]
  %s1 = inlined_call_operand.vmem [shape: f32[2,4,8,8], index: 1, kind: input, shape index: {}]
  %s2 = inlined_call_operand.vmem [shape: f32[2,1,1,8], index: 2, kind: input, shape index: {}]
  %s3 = inlined_call_operand.vmem [shape: bf16[32,32], index: 3, kind: input, shape index: {}]
  %s4 = inlined_call_operand.vmem [shape: f32[1,32], index: 4, kind: input, shape index: {}]
  %s5 = inlined_call_operand.vmem [shape: f32[2,1,8,32], index: 5, kind: output, shape index: {}]
  %s6 = sld [smem:[#allocation0]]
  $region53: #{_lambda_.43} parent=0
    _
  %s8 = ssub.s32 1, %s6
  %s9 = scalar_select 0, %s8, %s6
  loop: start=0, step=1, limit=4
  $region2: #{_lambda_.43} parent=0 // loop_pre_header
    _
  $region3: #{_lambda_.43} parent=0 // loop_header
    %s11 = sphi 0, %s15
    %p12 = scmp.ge.s32.totalorder %s11, 4
    %s18 = sphi 0, %s30
    %s19 = sphi 0, %s26
    %s20 = sphi 0, %s18
    %s21 = sphi 0, %s19
    %s22 = sphi 0, %s20
    %s23 = sphi 0, %s21
    %s35 = sphi 0, %s37
    %s38 = sphi 0, %s35
    %s39 = sphi 0, %s38
    %s55 = sphi 0, %s39
    %s61 = sphi 0, %s63
    %s64 = sphi 0, %s61
    %s65 = sphi 0, %s64
    %s81 = sphi 0, %s65
    %s89 = sphi 0, %s91
    %s92 = sphi 0, %s89
    %s93 = sphi 0, %s92
    %s109 = sphi 0, %s93
    %s113 = sphi 0, %s113
    %s115 = sphi 0, %s113
    %s116 = sphi 0, %s115
    %s130 = sphi 0, %s116
    %s134 = sphi 0, %s134
    %s136 = sphi 0, %s134
    %s137 = sphi 0, %s136
    %s151 = sphi 0, %s137
    %s159 = sphi 0, %s161
    %s162 = sphi 0, %s159
    %s163 = sphi 0, %s162
    %s179 = sphi 0, %s163
  $region4: #{_lambda_.43} parent=0 // loop_header_branch
    %14 = sbr.rel (%p12) target = $region8
  $region5: #{_lambda_.43} parent=0 // loop_body
    %s16 = ssub.s32 %s11, 1
    %s17 = ssub.s32 %s11, 2
    %s24 = sadd.s32 1, %s19
    %p25 = scmp.ge.s32.totalorder %s24, 1
    %s26 = scalar_select %p25, 0, %s24
    %s27 = sadd.s32 1, %s18
    %s28 = scalar_select %p25, %s27, %s18
    %p29 = scmp.ge.s32.totalorder %s28, 2
    %s30 = scalar_select %p29, 0, %s28
    %s31 = ssub.s32 %s18, %s30
    %s32 = ssub.s32 %s19, %s26
    %s33 = sor.u32 %s31, %s32
    %p34 = scmp.eq.s32.totalorder %s33, 0
    %s36 = sadd.s32 %s35, 1
    %s37 = scalar_select %p34, %s35, %s36
    %p40 = pneg %p34
    %p41 = scmp.eq.s32.totalorder %s11, 1
    %p42 = por %p40, %p41
    %p43 = scmp.ne.s32.totalorder %s35, %s38
    %p44 = scmp.eq.s32.totalorder %s11, 0
    %p45 = por %p43, %p44
    %p46 = scmp.ne.s32.totalorder %s35, %s38
    %p47 = scmp.eq.s32.totalorder %s16, 1
    %p48 = por %p46, %p47
    %p49 = scmp.ne.s32.totalorder %s38, %s39
    %p50 = scmp.eq.s32.totalorder %s16, 0
    %p51 = por %p49, %p50
    %p52 = scmp.ne.s32.totalorder %s38, %s39
    %p53 = scmp.eq.s32.totalorder %s17, 1
    %p54 = por %p52, %p53
    %p56 = scmp.ne.s32.totalorder %s39, %s55
    %p57 = scmp.eq.s32.totalorder %s17, 0
    %p58 = por %p56, %p57
    %s59 = ssub.s32 %s18, %s30
    %p60 = scmp.eq.s32.totalorder %s59, 0
    %s62 = sadd.s32 %s61, 1
    %s63 = scalar_select %p60, %s61, %s62
    %p66 = pneg %p60
    %p67 = scmp.eq.s32.totalorder %s11, 1
    %p68 = por %p66, %p67
    %p69 = scmp.ne.s32.totalorder %s61, %s64
    %p70 = scmp.eq.s32.totalorder %s11, 0
    %p71 = por %p69, %p70
    %p72 = scmp.ne.s32.totalorder %s61, %s64
    %p73 = scmp.eq.s32.totalorder %s16, 1
    %p74 = por %p72, %p73
    %p75 = scmp.ne.s32.totalorder %s64, %s65
    %p76 = scmp.eq.s32.totalorder %s16, 0
    %p77 = por %p75, %p76
    %p78 = scmp.ne.s32.totalorder %s64, %s65
    %p79 = scmp.eq.s32.totalorder %s17, 1
    %p80 = por %p78, %p79
    %p82 = scmp.ne.s32.totalorder %s65, %s81
    %p83 = scmp.eq.s32.totalorder %s17, 0
    %p84 = por %p82, %p83
    %s85 = ssub.s32 %s18, %s30
    %s86 = ssub.s32 %s19, %s26
    %s87 = sor.u32 %s85, %s86
    %p88 = scmp.eq.s32.totalorder %s87, 0
    %s90 = sadd.s32 %s89, 1
    %s91 = scalar_select %p88, %s89, %s90
    %p94 = pneg %p88
    %p95 = scmp.eq.s32.totalorder %s11, 1
    %p96 = por %p94, %p95
    %p97 = scmp.ne.s32.totalorder %s89, %s92
    %p98 = scmp.eq.s32.totalorder %s11, 0
    %p99 = por %p97, %p98
    %p100 = scmp.ne.s32.totalorder %s89, %s92
    %p101 = scmp.eq.s32.totalorder %s16, 1
    %p102 = por %p100, %p101
    %p103 = scmp.ne.s32.totalorder %s92, %s93
    %p104 = scmp.eq.s32.totalorder %s16, 0
    %p105 = por %p103, %p104
    %p106 = scmp.ne.s32.totalorder %s92, %s93
    %p107 = scmp.eq.s32.totalorder %s17, 1
    %p108 = por %p106, %p107
    %p110 = scmp.ne.s32.totalorder %s93, %s109
    %p111 = scmp.eq.s32.totalorder %s17, 0
    %p112 = por %p110, %p111
    %s114 = sadd.s32 %s113, 1
    %p117 = scmp.eq.s32.totalorder %s11, 1
    %p118 = scmp.ne.s32.totalorder %s113, %s115
    %p119 = scmp.eq.s32.totalorder %s11, 0
    %p120 = por %p118, %p119
    %p121 = scmp.ne.s32.totalorder %s113, %s115
    %p122 = scmp.eq.s32.totalorder %s16, 1
    %p123 = por %p121, %p122
    %p124 = scmp.ne.s32.totalorder %s115, %s116
    %p125 = scmp.eq.s32.totalorder %s16, 0
    %p126 = por %p124, %p125
    %p127 = scmp.ne.s32.totalorder %s115, %s116
    %p128 = scmp.eq.s32.totalorder %s17, 1
    %p129 = por %p127, %p128
    %p131 = scmp.ne.s32.totalorder %s116, %s130
    %p132 = scmp.eq.s32.totalorder %s17, 0
    %p133 = por %p131, %p132
    %s135 = sadd.s32 %s134, 1
    %p138 = scmp.eq.s32.totalorder %s11, 1
    %p139 = scmp.ne.s32.totalorder %s134, %s136
    %p140 = scmp.eq.s32.totalorder %s11, 0
    %p141 = por %p139, %p140
    %p142 = scmp.ne.s32.totalorder %s134, %s136
    %p143 = scmp.eq.s32.totalorder %s16, 1
    %p144 = por %p142, %p143
    %p145 = scmp.ne.s32.totalorder %s136, %s137
    %p146 = scmp.eq.s32.totalorder %s16, 0
    %p147 = por %p145, %p146
    %p148 = scmp.ne.s32.totalorder %s136, %s137
    %p149 = scmp.eq.s32.totalorder %s17, 1
    %p150 = por %p148, %p149
    %p152 = scmp.ne.s32.totalorder %s137, %s151
    %p153 = scmp.eq.s32.totalorder %s17, 0
    %p154 = por %p152, %p153
    %s155 = ssub.s32 %s18, %s30
    %s156 = ssub.s32 %s19, %s26
    %s157 = sor.u32 %s155, %s156
    %p158 = scmp.eq.s32.totalorder %s157, 0
    %s160 = sadd.s32 %s159, 1
    %s161 = scalar_select %p158, %s159, %s160
    %p164 = pneg %p158
    %p165 = scmp.eq.s32.totalorder %s11, 1
    %p166 = por %p164, %p165
    %p167 = scmp.ne.s32.totalorder %s159, %s162
    %p168 = scmp.eq.s32.totalorder %s11, 0
    %p169 = por %p167, %p168
    %p170 = scmp.ne.s32.totalorder %s159, %s162
    %p171 = scmp.eq.s32.totalorder %s16, 1
    %p172 = por %p170, %p171
    %p173 = scmp.ne.s32.totalorder %s162, %s163
    %p174 = scmp.eq.s32.totalorder %s16, 0
    %p175 = por %p173, %p174
    %p176 = scmp.ne.s32.totalorder %s162, %s163
    %p177 = scmp.eq.s32.totalorder %s17, 1
    %p178 = por %p176, %p177
    %p180 = scmp.ne.s32.totalorder %s163, %s179
    %p181 = scmp.eq.s32.totalorder %s17, 0
    %p182 = por %p180, %p181
    %p183 = scmp.le.s32.totalorder 1, %s11
    %p184 = scmp.lt.s32.totalorder %s11, 3
    %p185 = pnand %p183, %p184
    %p186 = pneg %p185
    // Predicated region
    $region9: #{_lambda_.43} parent=5 // pred_check
      _
    $region10: #{_lambda_.43} parent=5 // pred_check_branch
      %188 = sbr.rel (%p185) target = $region12
    $region11: #{_lambda_.43} parent=5 // pred_region
      %s189 = ssub.s32 %s11, 1
      // Predicated region
      $region13: #{_lambda_.43} parent=11 // pred_check
        %p190 = pneg %p126
      $region14: #{_lambda_.43} parent=11 // pred_check_branch
        %192 = sbr.rel (%p190) target = $region16
      $region15: #{_lambda_.43} parent=11 // pred_region
        _
      $region16: #{_lambda_.43} parent=11 // pred_fallthru
        _
      // Predicated region
      $region17: #{_lambda_.43} parent=11 // pred_check
        %p193 = pneg %p147
      $region18: #{_lambda_.43} parent=11 // pred_check_branch
        %195 = sbr.rel (%p193) target = $region20
      $region19: #{_lambda_.43} parent=11 // pred_region
        _
      $region20: #{_lambda_.43} parent=11 // pred_fallthru
        _
    $region12: #{_lambda_.43} parent=5 // pred_fallthru
      _
    %p196 = scmp.lt.s32.totalorder %s11, 2
    // Predicated region
    $region21: #{_lambda_.43} parent=5 // pred_check
      %p197 = pneg %p196
    $region22: #{_lambda_.43} parent=5 // pred_check_branch
      %199 = sbr.rel (%p197) target = $region24
    $region23: #{_lambda_.43} parent=5 // pred_region
      // Predicated region
      $region25: #{_lambda_.43} parent=23 // pred_check
        %p200 = pneg %p45
      $region26: #{_lambda_.43} parent=23 // pred_check_branch
        %202 = sbr.rel (%p200) target = $region28
      $region27: #{_lambda_.43} parent=23 // pred_region
        %p203 = scmp.lt.s32.totalorder %s18, 1
        %s204 = scalar_select %p203, %s18, 1
        %p205 = scmp.lt.s32.totalorder %s19, 0
        %s206 = scalar_select %p205, %s19, 0
        %s207 = sadd.s32 %s206, %s204
        %s208 = smul.addr %s207, 4
        %s209 = scalar_lea.vmem %s0, %s208
      $region28: #{_lambda_.43} parent=23 // pred_fallthru
        _
      // Predicated region
      $region29: #{_lambda_.43} parent=23 // pred_check
        %p210 = pneg %p71
      $region30: #{_lambda_.43} parent=23 // pred_check_branch
        %212 = sbr.rel (%p210) target = $region32
      $region31: #{_lambda_.43} parent=23 // pred_region
        %p213 = scmp.lt.s32.totalorder %s18, 1
        %s214 = scalar_select %p213, %s18, 1
        %s215 = smul.addr %s214, 4
        %s216 = smul.addr %s215, 8
        %s217 = scalar_lea.vmem %s1, %s216
      $region32: #{_lambda_.43} parent=23 // pred_fallthru
        _
      // Predicated region
      $region33: #{_lambda_.43} parent=23 // pred_check
        %p218 = pneg %p99
      $region34: #{_lambda_.43} parent=23 // pred_check_branch
        %220 = sbr.rel (%p218) target = $region36
      $region35: #{_lambda_.43} parent=23 // pred_region
        %p221 = scmp.lt.s32.totalorder %s18, 1
        %s222 = scalar_select %p221, %s18, 1
        %p223 = scmp.lt.s32.totalorder %s19, 0
        %s224 = scalar_select %p223, %s19, 0
        %s225 = sadd.s32 %s224, %s222
        %s226 = scalar_lea.vmem %s2, %s225
      $region36: #{_lambda_.43} parent=23 // pred_fallthru
        _
    $region24: #{_lambda_.43} parent=5 // pred_fallthru
      _
    %p227 = scmp.le.s32.totalorder 1, %s11
    %p228 = scmp.lt.s32.totalorder %s11, 3
    %p229 = pnand %p227, %p228
    %p230 = pneg %p229
    // Predicated region
    $region37: #{_lambda_.43} parent=5 // pred_check
      _
    $region38: #{_lambda_.43} parent=5 // pred_check_branch
      %232 = sbr.rel (%p229) target = $region40
    $region39: #{_lambda_.43} parent=5 // pred_region
      %s233 = ssub.s32 %s11, 1
      %p234 = scmp.lt.s32.totalorder %s20, 1
      %s235 = scalar_select %p234, %s20, 1
      %p236 = scmp.lt.s32.totalorder %s21, 0
      %s237 = scalar_select %p236, %s21, 0
      %s238 = sadd.s32 %s237, %s235
      %s239 = smul.addr %s238, 4
      %s240 = scalar_lea.vmem %s0, %s239
      %p241 = pneg %p51
      %p242 = pneg %p48
      %p243 = scmp.lt.s32.totalorder %s20, 1
      %s244 = scalar_select %p243, %s20, 1
      %s245 = smul.addr %s244, 4
      %s246 = smul.addr %s245, 8
      %s247 = scalar_lea.vmem %s1, %s246
      %p248 = pneg %p77
      %p249 = pneg %p74
      %p250 = scmp.lt.s32.totalorder %s20, 1
      %s251 = scalar_select %p250, %s20, 1
      %p252 = scmp.lt.s32.totalorder %s21, 0
      %s253 = scalar_select %p252, %s21, 0
      %s254 = sadd.s32 %s253, %s251
      %s255 = scalar_lea.vmem %s2, %s254
      %p256 = pneg %p105
      %p257 = pneg %p102
      %p258 = pneg %p126
      %p259 = pneg %p123
      %p260 = pneg %p147
      %p261 = pneg %p144
      %p262 = pneg %p175
      %p263 = pneg %p172
      %p264 = scmp.lt.s32.totalorder %s20, 1
      %s265 = scalar_select %p264, %s20, 1
      %p266 = scmp.lt.s32.totalorder %s21, 0
      %s267 = scalar_select %p266, %s21, 0
      %s268 = sadd.s32 %s267, %s265
      %s269 = smul.addr %s268, 8
      %s270 = scalar_lea.vmem %s5, %s269
      %p271 = scmp.lt.s32.totalorder %s20, 1
      %s272 = scalar_select %p271, %s20, 1
      %p273 = scmp.lt.s32.totalorder %s21, 0
      %s274 = scalar_select %p273, %s21, 0
      %s275 = sadd.s32 %s274, %s272
      %s276 = smul.addr %s275, 4
      %s277 = scalar_lea.vmem %s0, %s276
      %p278 = scmp.lt.s32.totalorder %s20, 1
      %s279 = scalar_select %p278, %s20, 1
      %s280 = smul.addr %s279, 4
      %s281 = smul.addr %s280, 8
      %s282 = scalar_lea.vmem %s1, %s281
      %p283 = scmp.lt.s32.totalorder %s20, 1
      %s284 = scalar_select %p283, %s20, 1
      %p285 = scmp.lt.s32.totalorder %s21, 0
      %s286 = scalar_select %p285, %s21, 0
      %s287 = sadd.s32 %s286, %s284
      %s288 = scalar_lea.vmem %s2, %s287
      %p289 = scmp.lt.s32.totalorder %s20, 1
      %s290 = scalar_select %p289, %s20, 1
      %p291 = scmp.lt.s32.totalorder %s21, 0
      %s292 = scalar_select %p291, %s21, 0
      %s293 = sadd.s32 %s292, %s290
      %s294 = smul.addr %s293, 8
      %s295 = scalar_lea.vmem %s5, %s294
      %v297 = vld [vmem:[%s277] sm:$0xf]
      %v298 = vunpack.c.l.bf16 %v297
      %v299 = vld [vmem:[%s282] sm:$0xff]
      %v300 = vld [vmem:[%s282 + $0x8] sm:$0xff]
      %v301 = vld [vmem:[%s282 + $0x10] sm:$0xff]
      %v302 = vld [vmem:[%s282 + $0x18] sm:$0xff]
      %v303 = vld [vmem:[%s288] sm:$0x1]
      %v304 = vpack.c.bf16 %v298, %v298
      %306 = vrot.lane.b32.xlu0 %v304, 96
      %v307 = vpop.permute.xlu0 %306
      %vm308 = vcmask 64512
      %v310 = vsel %vm308, %v304, 0
      %v313 = vsel %vm308, %v307, 0
      %315 = vmatprep.subr.bf16.mxu0 0
      %316 = vmatpush1.bf16.xpose.msra.mxu0 %v313
      %317 = vmatprep.subr.bf16.mxu0 0
      %318 = vmatpush1.bf16.xpose.msra.mxu0 0
      %319 = vmatprep.subr.bf16.mxu0 0
      %320 = vmatpush1.bf16.xpose.msra.mxu0 0
      %321 = vmatprep.subr.bf16.mxu0 0
      %322 = vmatpush1.bf16.xpose.msra.mxu0 0
      %323 = vmatprep.subr.bf16.mxu0 0
      %324 = vmatpush1.bf16.xpose.msra.mxu0 0
      %325 = vmatprep.subr.bf16.mxu0 0
      %326 = vmatpush1.bf16.xpose.msra.mxu0 0
      %327 = vmatprep.subr.bf16.mxu0 0
      %328 = vmatpush1.bf16.xpose.msra.mxu0 0
      %329 = vmatprep.subr.bf16.mxu0 0
      %330 = vmatpush1.bf16.xpose.msra.mxu0 0
      %331 = vmatprep.subr.bf16.mxu0 0
      %332 = vmatpush1.bf16.xpose.msra.mxu0 0
      %333 = vmatprep.subr.bf16.mxu0 0
      %334 = vmatpush1.bf16.xpose.msra.mxu0 0
      %335 = vmatprep.subr.bf16.mxu0 0
      %336 = vmatpush1.bf16.xpose.msra.mxu0 0
      %337 = vmatprep.subr.bf16.mxu0 0
      %338 = vmatpush1.bf16.xpose.msra.mxu0 0
      %339 = vmatprep.subr.bf16.mxu0 0
      %340 = vmatpush1.bf16.xpose.msra.mxu0 0
      %341 = vmatprep.subr.bf16.mxu0 0
      %342 = vmatpush1.bf16.xpose.msra.mxu0 0
      %343 = vmatprep.subr.bf16.mxu0 0
      %344 = vmatpush1.bf16.xpose.msra.mxu0 0
      %345 = vmatprep.subr.bf16.mxu0 0
      %346 = vmatpush1.bf16.xpose.msra.mxu0 0
      %347 = vmatprep.mubr.bf16.mxu0 0
      %348 = vmatmul.mubr.bf16.gmra.mrb[0].mxu0 %v310
      %v349 = vpop.f32.mrb[0].mxu0
      %v350 = vadd.f32 %v299, %v349
      %v351 = vpop.f32.mrb[0].mxu0
      %v352 = vpop.f32.mrb[0].mxu0
      %v353 = vpop.f32.mrb[0].mxu0
      %354 = vdwg.mxu0
      %v356 = vlaneseq
      %v357 = vshrl.u32 %v356, 7
      %v358 = vsub.s32 0, %v357
      %v359 = vrot.slane %v303, %v358
      %v361 = vadd.f32 %v350, %v359
      %v362 = vsel %vm308, %v361, -inf
      %363 = vmax.xlane.f32.xlu0 %v362
      %v364 = vpop.xlane.xlu0 %363
      %v365 = vsub.f32 %v361, %v364
      %v366 = vmul.f32 %v365, 1.442695
      %v367 = vpow.pop %v366
      %v368 = vsel %vm308, %v367, 0.0
      %369 = vadd.xlane.f32.xlu0 %v368
      %v370 = vpop.xlane.xlu0 %369
      %v371 = vrcp.pop %v370
      %v372 = vmul.f32 %v367, %v371
      %v373 = vpack.c.bf16 %v372, %v372
      %374 = vrot.lane.b32.xlu0 %v304, 64
      %v375 = vpop.permute.xlu0 %374
      %v377 = vsel %vm308, %v373, 0
      %vm379 = vcmask 1043456
      %v381 = vsel %vm379, %v375, 0
      %383 = vmatprep.subr.bf16.mxu0 0
      %384 = vmatpush1.bf16.msra.mxu0 %v381
      %385 = vmatprep.subr.bf16.mxu0 0
      %386 = vmatpush1.bf16.msra.mxu0 0
      %387 = vmatprep.subr.bf16.mxu0 0
      %388 = vmatpush1.bf16.msra.mxu0 0
      %389 = vmatprep.subr.bf16.mxu0 0
      %390 = vmatpush1.bf16.msra.mxu0 0
      %391 = vmatprep.subr.bf16.mxu0 0
      %392 = vmatpush1.bf16.msra.mxu0 0
      %393 = vmatprep.subr.bf16.mxu0 0
      %394 = vmatpush1.bf16.msra.mxu0 0
      %395 = vmatprep.subr.bf16.mxu0 0
      %396 = vmatpush1.bf16.msra.mxu0 0
      %397 = vmatprep.subr.bf16.mxu0 0
      %398 = vmatpush1.bf16.msra.mxu0 0
      %399 = vmatprep.subr.bf16.mxu0 0
      %400 = vmatpush1.bf16.msra.mxu0 0
      %401 = vmatprep.subr.bf16.mxu0 0
      %402 = vmatpush1.bf16.msra.mxu0 0
      %403 = vmatprep.subr.bf16.mxu0 0
      %404 = vmatpush1.bf16.msra.mxu0 0
      %405 = vmatprep.subr.bf16.mxu0 0
      %406 = vmatpush1.bf16.msra.mxu0 0
      %407 = vmatprep.subr.bf16.mxu0 0
      %408 = vmatpush1.bf16.msra.mxu0 0
      %409 = vmatprep.subr.bf16.mxu0 0
      %410 = vmatpush1.bf16.msra.mxu0 0
      %411 = vmatprep.subr.bf16.mxu0 0
      %412 = vmatpush1.bf16.msra.mxu0 0
      %413 = vmatprep.subr.bf16.mxu0 0
      %414 = vmatpush1.bf16.msra.mxu0 0
      %415 = vmatprep.mubr.bf16.mxu0 0
      %416 = vmatmul.mubr.bf16.gmra.mrb[0].mxu0 %v377
      %v417 = vpop.f32.mrb[0].mxu0
      %v418 = vadd.f32 0.0, %v417
      %v419 = vpop.f32.mrb[0].mxu0
      %v420 = vpop.f32.mrb[0].mxu0
      %v421 = vpop.f32.mrb[0].mxu0
      %422 = vdwg.mxu0
      %423 = vrot.lane.b32.xlu0 %v304, 120
      %v424 = vpop.permute.xlu0 %423
      %425 = vrot.lane.b32.xlu0 %v304, 88
      %v426 = vpop.permute.xlu0 %425
      %v428 = vsel %vm308, %v424, 0
      %v431 = vsel %vm308, %v426, 0
      %433 = vmatprep.subr.bf16.mxu0 0
      %434 = vmatpush1.bf16.xpose.msra.mxu0 %v431
      %435 = vmatprep.subr.bf16.mxu0 0
      %436 = vmatpush1.bf16.xpose.msra.mxu0 0
      %437 = vmatprep.subr.bf16.mxu0 0
      %438 = vmatpush1.bf16.xpose.msra.mxu0 0
      %439 = vmatprep.subr.bf16.mxu0 0
      %440 = vmatpush1.bf16.xpose.msra.mxu0 0
      %441 = vmatprep.subr.bf16.mxu0 0
      %442 = vmatpush1.bf16.xpose.msra.mxu0 0
      %443 = vmatprep.subr.bf16.mxu0 0
      %444 = vmatpush1.bf16.xpose.msra.mxu0 0
      %445 = vmatprep.subr.bf16.mxu0 0
      %446 = vmatpush1.bf16.xpose.msra.mxu0 0
      %447 = vmatprep.subr.bf16.mxu0 0
      %448 = vmatpush1.bf16.xpose.msra.mxu0 0
      %449 = vmatprep.subr.bf16.mxu0 0
      %450 = vmatpush1.bf16.xpose.msra.mxu0 0
      %451 = vmatprep.subr.bf16.mxu0 0
      %452 = vmatpush1.bf16.xpose.msra.mxu0 0
      %453 = vmatprep.subr.bf16.mxu0 0
      %454 = vmatpush1.bf16.xpose.msra.mxu0 0
      %455 = vmatprep.subr.bf16.mxu0 0
      %456 = vmatpush1.bf16.xpose.msra.mxu0 0
      %457 = vmatprep.subr.bf16.mxu0 0
      %458 = vmatpush1.bf16.xpose.msra.mxu0 0
      %459 = vmatprep.subr.bf16.mxu0 0
      %460 = vmatpush1.bf16.xpose.msra.mxu0 0
      %461 = vmatprep.subr.bf16.mxu0 0
      %462 = vmatpush1.bf16.xpose.msra.mxu0 0
      %463 = vmatprep.subr.bf16.mxu0 0
      %464 = vmatpush1.bf16.xpose.msra.mxu0 0
      %465 = vmatprep.mubr.bf16.mxu0 0
      %466 = vmatmul.mubr.bf16.gmra.mrb[0].mxu0 %v428
      %v467 = vpop.f32.mrb[0].mxu0
      %v468 = vadd.f32 %v300, %v467
      %v469 = vpop.f32.mrb[0].mxu0
      %v470 = vpop.f32.mrb[0].mxu0
      %v471 = vpop.f32.mrb[0].mxu0
      %472 = vdwg.mxu0
      %v473 = vadd.f32 %v468, %v359
      %v474 = vsel %vm308, %v473, -inf
      %475 = vmax.xlane.f32.xlu0 %v474
      %v476 = vpop.xlane.xlu0 %475
      %v477 = vsub.f32 %v473, %v476
      %v478 = vmul.f32 %v477, 1.442695
      %v479 = vpow.pop %v478
      %v480 = vsel %vm308, %v479, 0.0
      %481 = vadd.xlane.f32.xlu0 %v480
      %v482 = vpop.xlane.xlu0 %481
      %v483 = vrcp.pop %v482
      %v484 = vmul.f32 %v479, %v483
      %v485 = vpack.c.bf16 %v484, %v484
      %486 = vrot.lane.b32.xlu0 %v304, 56
      %v487 = vpop.permute.xlu0 %486
      %v489 = vsel %vm308, %v485, 0
      %v492 = vsel %vm379, %v487, 0
      %494 = vmatprep.subr.bf16.mxu0 0
      %495 = vmatpush1.bf16.msra.mxu0 %v492
      %496 = vmatprep.subr.bf16.mxu0 0
      %497 = vmatpush1.bf16.msra.mxu0 0
      %498 = vmatprep.subr.bf16.mxu0 0
      %499 = vmatpush1.bf16.msra.mxu0 0
      %500 = vmatprep.subr.bf16.mxu0 0
      %501 = vmatpush1.bf16.msra.mxu0 0
      %502 = vmatprep.subr.bf16.mxu0 0
      %503 = vmatpush1.bf16.msra.mxu0 0
      %504 = vmatprep.subr.bf16.mxu0 0
      %505 = vmatpush1.bf16.msra.mxu0 0
      %506 = vmatprep.subr.bf16.mxu0 0
      %507 = vmatpush1.bf16.msra.mxu0 0
      %508 = vmatprep.subr.bf16.mxu0 0
      %509 = vmatpush1.bf16.msra.mxu0 0
      %510 = vmatprep.subr.bf16.mxu0 0
      %511 = vmatpush1.bf16.msra.mxu0 0
      %512 = vmatprep.subr.bf16.mxu0 0
      %513 = vmatpush1.bf16.msra.mxu0 0
      %514 = vmatprep.subr.bf16.mxu0 0
      %515 = vmatpush1.bf16.msra.mxu0 0
      %516 = vmatprep.subr.bf16.mxu0 0
      %517 = vmatpush1.bf16.msra.mxu0 0
      %518 = vmatprep.subr.bf16.mxu0 0
      %519 = vmatpush1.bf16.msra.mxu0 0
      %520 = vmatprep.subr.bf16.mxu0 0
      %521 = vmatpush1.bf16.msra.mxu0 0
      %522 = vmatprep.subr.bf16.mxu0 0
      %523 = vmatpush1.bf16.msra.mxu0 0
      %524 = vmatprep.subr.bf16.mxu0 0
      %525 = vmatpush1.bf16.msra.mxu0 0
      %526 = vmatprep.mubr.bf16.mxu0 0
      %527 = vmatmul.mubr.bf16.gmra.mrb[0].mxu0 %v489
      %v528 = vpop.f32.mrb[0].mxu0
      %v529 = vadd.f32 0.0, %v528
      %v530 = vpop.f32.mrb[0].mxu0
      %v531 = vpop.f32.mrb[0].mxu0
      %v532 = vpop.f32.mrb[0].mxu0
      %533 = vdwg.mxu0
      %534 = vrot.lane.b32.xlu0 %v304, 112
      %v535 = vpop.permute.xlu0 %534
      %536 = vrot.lane.b32.xlu0 %v304, 80
      %v537 = vpop.permute.xlu0 %536
      %v539 = vsel %vm308, %v535, 0
      %v542 = vsel %vm308, %v537, 0
      %544 = vmatprep.subr.bf16.mxu0 0
      %545 = vmatpush1.bf16.xpose.msra.mxu0 %v542
      %546 = vmatprep.subr.bf16.mxu0 0
      %547 = vmatpush1.bf16.xpose.msra.mxu0 0
      %548 = vmatprep.subr.bf16.mxu0 0
      %549 = vmatpush1.bf16.xpose.msra.mxu0 0
      %550 = vmatprep.subr.bf16.mxu0 0
      %551 = vmatpush1.bf16.xpose.msra.mxu0 0
      %552 = vmatprep.subr.bf16.mxu0 0
      %553 = vmatpush1.bf16.xpose.msra.mxu0 0
      %554 = vmatprep.subr.bf16.mxu0 0
      %555 = vmatpush1.bf16.xpose.msra.mxu0 0
      %556 = vmatprep.subr.bf16.mxu0 0
      %557 = vmatpush1.bf16.xpose.msra.mxu0 0
      %558 = vmatprep.subr.bf16.mxu0 0
      %559 = vmatpush1.bf16.xpose.msra.mxu0 0
      %560 = vmatprep.subr.bf16.mxu0 0
      %561 = vmatpush1.bf16.xpose.msra.mxu0 0
      %562 = vmatprep.subr.bf16.mxu0 0
      %563 = vmatpush1.bf16.xpose.msra.mxu0 0
      %564 = vmatprep.subr.bf16.mxu0 0
      %565 = vmatpush1.bf16.xpose.msra.mxu0 0
      %566 = vmatprep.subr.bf16.mxu0 0
      %567 = vmatpush1.bf16.xpose.msra.mxu0 0
      %568 = vmatprep.subr.bf16.mxu0 0
      %569 = vmatpush1.bf16.xpose.msra.mxu0 0
      %570 = vmatprep.subr.bf16.mxu0 0
      %571 = vmatpush1.bf16.xpose.msra.mxu0 0
      %572 = vmatprep.subr.bf16.mxu0 0
      %573 = vmatpush1.bf16.xpose.msra.mxu0 0
      %574 = vmatprep.subr.bf16.mxu0 0
      %575 = vmatpush1.bf16.xpose.msra.mxu0 0
      %576 = vmatprep.mubr.bf16.mxu0 0
      %577 = vmatmul.mubr.bf16.gmra.mrb[0].mxu0 %v539
      %v578 = vpop.f32.mrb[0].mxu0
      %v579 = vadd.f32 %v301, %v578
      %v580 = vpop.f32.mrb[0].mxu0
      %v581 = vpop.f32.mrb[0].mxu0
      %v582 = vpop.f32.mrb[0].mxu0
      %583 = vdwg.mxu0
      %v584 = vadd.f32 %v579, %v359
      %v585 = vsel %vm308, %v584, -inf
      %586 = vmax.xlane.f32.xlu0 %v585
      %v587 = vpop.xlane.xlu0 %586
      %v588 = vsub.f32 %v584, %v587
      %v589 = vmul.f32 %v588, 1.442695
      %v590 = vpow.pop %v589
      %v591 = vsel %vm308, %v590, 0.0
      %592 = vadd.xlane.f32.xlu0 %v591
      %v593 = vpop.xlane.xlu0 %592
      %v594 = vrcp.pop %v593
      %v595 = vmul.f32 %v590, %v594
      %v596 = vpack.c.bf16 %v595, %v595
      %597 = vrot.lane.b32.xlu0 %v304, 48
      %v598 = vpop.permute.xlu0 %597
      %v600 = vsel %vm308, %v596, 0
      %v603 = vsel %vm379, %v598, 0
      %605 = vmatprep.subr.bf16.mxu0 0
      %606 = vmatpush1.bf16.msra.mxu0 %v603
      %607 = vmatprep.subr.bf16.mxu0 0
      %608 = vmatpush1.bf16.msra.mxu0 0
      %609 = vmatprep.subr.bf16.mxu0 0
      %610 = vmatpush1.bf16.msra.mxu0 0
      %611 = vmatprep.subr.bf16.mxu0 0
      %612 = vmatpush1.bf16.msra.mxu0 0
      %613 = vmatprep.subr.bf16.mxu0 0
      %614 = vmatpush1.bf16.msra.mxu0 0
      %615 = vmatprep.subr.bf16.mxu0 0
      %616 = vmatpush1.bf16.msra.mxu0 0
      %617 = vmatprep.subr.bf16.mxu0 0
      %618 = vmatpush1.bf16.msra.mxu0 0
      %619 = vmatprep.subr.bf16.mxu0 0
      %620 = vmatpush1.bf16.msra.mxu0 0
      %621 = vmatprep.subr.bf16.mxu0 0
      %622 = vmatpush1.bf16.msra.mxu0 0
      %623 = vmatprep.subr.bf16.mxu0 0
      %624 = vmatpush1.bf16.msra.mxu0 0
      %625 = vmatprep.subr.bf16.mxu0 0
      %626 = vmatpush1.bf16.msra.mxu0 0
      %627 = vmatprep.subr.bf16.mxu0 0
      %628 = vmatpush1.bf16.msra.mxu0 0
      %629 = vmatprep.subr.bf16.mxu0 0
      %630 = vmatpush1.bf16.msra.mxu0 0
      %631 = vmatprep.subr.bf16.mxu0 0
      %632 = vmatpush1.bf16.msra.mxu0 0
      %633 = vmatprep.subr.bf16.mxu0 0
      %634 = vmatpush1.bf16.msra.mxu0 0
      %635 = vmatprep.subr.bf16.mxu0 0
      %636 = vmatpush1.bf16.msra.mxu0 0
      %637 = vmatprep.mubr.bf16.mxu0 0
      %638 = vmatmul.mubr.bf16.gmra.mrb[0].mxu0 %v600
      %v639 = vpop.f32.mrb[0].mxu0
      %v640 = vadd.f32 0.0, %v639
      %v641 = vpop.f32.mrb[0].mxu0
      %v642 = vpop.f32.mrb[0].mxu0
      %v643 = vpop.f32.mrb[0].mxu0
      %644 = vdwg.mxu0
      %645 = vrot.lane.b32.xlu0 %v304, 104
      %v646 = vpop.permute.xlu0 %645
      %647 = vrot.lane.b32.xlu0 %v304, 72
      %v648 = vpop.permute.xlu0 %647
      %v650 = vsel %vm308, %v646, 0
      %v653 = vsel %vm308, %v648, 0
      %655 = vmatprep.subr.bf16.mxu0 0
      %656 = vmatpush1.bf16.xpose.msra.mxu0 %v653
      %657 = vmatprep.subr.bf16.mxu0 0
      %658 = vmatpush1.bf16.xpose.msra.mxu0 0
      %659 = vmatprep.subr.bf16.mxu0 0
      %660 = vmatpush1.bf16.xpose.msra.mxu0 0
      %661 = vmatprep.subr.bf16.mxu0 0
      %662 = vmatpush1.bf16.xpose.msra.mxu0 0
      %663 = vmatprep.subr.bf16.mxu0 0
      %664 = vmatpush1.bf16.xpose.msra.mxu0 0
      %665 = vmatprep.subr.bf16.mxu0 0
      %666 = vmatpush1.bf16.xpose.msra.mxu0 0
      %667 = vmatprep.subr.bf16.mxu0 0
      %668 = vmatpush1.bf16.xpose.msra.mxu0 0
      %669 = vmatprep.subr.bf16.mxu0 0
      %670 = vmatpush1.bf16.xpose.msra.mxu0 0
      %671 = vmatprep.subr.bf16.mxu0 0
      %672 = vmatpush1.bf16.xpose.msra.mxu0 0
      %673 = vmatprep.subr.bf16.mxu0 0
      %674 = vmatpush1.bf16.xpose.msra.mxu0 0
      %675 = vmatprep.subr.bf16.mxu0 0
      %676 = vmatpush1.bf16.xpose.msra.mxu0 0
      %677 = vmatprep.subr.bf16.mxu0 0
      %678 = vmatpush1.bf16.xpose.msra.mxu0 0
      %679 = vmatprep.subr.bf16.mxu0 0
      %680 = vmatpush1.bf16.xpose.msra.mxu0 0
      %681 = vmatprep.subr.bf16.mxu0 0
      %682 = vmatpush1.bf16.xpose.msra.mxu0 0
      %683 = vmatprep.subr.bf16.mxu0 0
      %684 = vmatpush1.bf16.xpose.msra.mxu0 0
      %685 = vmatprep.subr.bf16.mxu0 0
      %686 = vmatpush1.bf16.xpose.msra.mxu0 0
      %687 = vmatprep.mubr.bf16.mxu0 0
      %688 = vmatmul.mubr.bf16.gmra.mrb[0].mxu0 %v650
      %v689 = vpop.f32.mrb[0].mxu0
      %v690 = vadd.f32 %v302, %v689
      %v691 = vpop.f32.mrb[0].mxu0
      %v692 = vpop.f32.mrb[0].mxu0
      %v693 = vpop.f32.mrb[0].mxu0
      %694 = vdwg.mxu0
      %v695 = vadd.f32 %v690, %v359
      %v696 = vsel %vm308, %v695, -inf
      %697 = vmax.xlane.f32.xlu0 %v696
      %v698 = vpop.xlane.xlu0 %697
      %v699 = vsub.f32 %v695, %v698
      %v700 = vmul.f32 %v699, 1.442695
      %v701 = vpow.pop %v700
      %v702 = vsel %vm308, %v701, 0.0
      %703 = vadd.xlane.f32.xlu0 %v702
      %v704 = vpop.xlane.xlu0 %703
      %v705 = vrcp.pop %v704
      %v706 = vmul.f32 %v701, %v705
      %v707 = vpack.c.bf16 %v706, %v706
      %708 = vrot.lane.b32.xlu0 %v304, 40
      %v709 = vpop.permute.xlu0 %708
      %v711 = vsel %vm308, %v707, 0
      %v714 = vsel %vm379, %v709, 0
      %716 = vmatprep.subr.bf16.mxu0 0
      %717 = vmatpush1.bf16.msra.mxu0 %v714
      %718 = vmatprep.subr.bf16.mxu0 0
      %719 = vmatpush1.bf16.msra.mxu0 0
      %720 = vmatprep.subr.bf16.mxu0 0
      %721 = vmatpush1.bf16.msra.mxu0 0
      %722 = vmatprep.subr.bf16.mxu0 0
      %723 = vmatpush1.bf16.msra.mxu0 0
      %724 = vmatprep.subr.bf16.mxu0 0
      %725 = vmatpush1.bf16.msra.mxu0 0
      %726 = vmatprep.subr.bf16.mxu0 0
      %727 = vmatpush1.bf16.msra.mxu0 0
      %728 = vmatprep.subr.bf16.mxu0 0
      %729 = vmatpush1.bf16.msra.mxu0 0
      %730 = vmatprep.subr.bf16.mxu0 0
      %731 = vmatpush1.bf16.msra.mxu0 0
      %732 = vmatprep.subr.bf16.mxu0 0
      %733 = vmatpush1.bf16.msra.mxu0 0
      %734 = vmatprep.subr.bf16.mxu0 0
      %735 = vmatpush1.bf16.msra.mxu0 0
      %736 = vmatprep.subr.bf16.mxu0 0
      %737 = vmatpush1.bf16.msra.mxu0 0
      %738 = vmatprep.subr.bf16.mxu0 0
      %739 = vmatpush1.bf16.msra.mxu0 0
      %740 = vmatprep.subr.bf16.mxu0 0
      %741 = vmatpush1.bf16.msra.mxu0 0
      %742 = vmatprep.subr.bf16.mxu0 0
      %743 = vmatpush1.bf16.msra.mxu0 0
      %744 = vmatprep.subr.bf16.mxu0 0
      %745 = vmatpush1.bf16.msra.mxu0 0
      %746 = vmatprep.subr.bf16.mxu0 0
      %747 = vmatpush1.bf16.msra.mxu0 0
      %748 = vmatprep.mubr.bf16.mxu0 0
      %749 = vmatmul.mubr.bf16.gmra.mrb[0].mxu0 %v711
      %v750 = vpop.f32.mrb[0].mxu0
      %v751 = vadd.f32 0.0, %v750
      %v752 = vpop.f32.mrb[0].mxu0
      %v753 = vpop.f32.mrb[0].mxu0
      %v754 = vpop.f32.mrb[0].mxu0
      %755 = vdwg.mxu0
      %757 = vrot.lane.b32.xlu0 %v529, 8
      %v758 = vpop.permute.xlu0 %757
      %761 = vrot.lane.b32.xlu0 %v640, 16
      %v762 = vpop.permute.xlu0 %761
      %765 = vrot.lane.b32.xlu0 %v751, 24
      %v766 = vpop.permute.xlu0 %765
      %v768 = vsel %vm308, %v418, %v758
      %vm769 = vcmask 130048
      %v770 = vsel %vm769, %v768, %v762
      %vm771 = vcmask 195584
      %v772 = vsel %vm771, %v770, %v766
      %v773 = vsub.f32 0.0, %v298
      %v774 = vmul.f32 %v773, 1.442695
      %v775 = vpow.pop %v774
      %v776 = vadd.f32 %v775, 1.0
      %v777 = vrcp.pop %v776
      %v778 = vmul.f32 1.0, %v777
      %780 = vrot.lane.b32.xlu0 %v772, 96
      %v781 = vpop.permute.xlu0 %780
      %v783 = vmul.f32 %v778, %v781
      %v784 = vpack.c.bf16 %v783, %v783
      %v785 = vld [vmem:[%s3] sm:$0xf]
      %v786 = vld [vmem:[%s3 + $0x4] sm:$0xf]
      %v787 = vld [vmem:[%s3 + $0x8] sm:$0xf]
      %v788 = vld [vmem:[%s3 + $0xc] sm:$0xf]
      %v789 = vld [vmem:[%s4] sm:$0x1]
      %v791 = vlaneseq
      %v792 = vshrl.u32 %v791, 7
      %v793 = vsub.s32 0, %v792
      %v794 = vrot.slane %v789, %v793
      %797 = vrot.lane.b32.xlu0 %v784, 32
      %v798 = vpop.permute.xlu0 %797
      %v803 = vunpack.c.l.b16 %v785
      %v804 = vunpack.c.l.b16 %v786
      %v805 = vunpack.c.l.b16 %v787
      %v806 = vunpack.c.l.b16 %v788
      %v807 = vpack.c.b16 %v804, %v803
      %v808 = vpack.c.b16 %v806, %v805
      %vm811 = vcmask 261120
      %v813 = vsel %vm811, %v798, 0
      %815 = vmatprep.subr.bf16.mxu0 0
      %816 = vmatpush1.bf16.msra.mxu0 %v807
      %817 = vmatprep.subr.bf16.mxu0 0
      %818 = vmatpush1.bf16.msra.mxu0 %v808
      %819 = vmatprep.subr.bf16.mxu0 0
      %820 = vmatpush1.bf16.msra.mxu0 0
      %821 = vmatprep.subr.bf16.mxu0 0
      %822 = vmatpush1.bf16.msra.mxu0 0
      %823 = vmatprep.subr.bf16.mxu0 0
      %824 = vmatpush1.bf16.msra.mxu0 0
      %825 = vmatprep.subr.bf16.mxu0 0
      %826 = vmatpush1.bf16.msra.mxu0 0
      %827 = vmatprep.subr.bf16.mxu0 0
      %828 = vmatpush1.bf16.msra.mxu0 0
      %829 = vmatprep.subr.bf16.mxu0 0
      %830 = vmatpush1.bf16.msra.mxu0 0
      %831 = vmatprep.subr.bf16.mxu0 0
      %832 = vmatpush1.bf16.msra.mxu0 0
      %833 = vmatprep.subr.bf16.mxu0 0
      %834 = vmatpush1.bf16.msra.mxu0 0
      %835 = vmatprep.subr.bf16.mxu0 0
      %836 = vmatpush1.bf16.msra.mxu0 0
      %837 = vmatprep.subr.bf16.mxu0 0
      %838 = vmatpush1.bf16.msra.mxu0 0
      %839 = vmatprep.subr.bf16.mxu0 0
      %840 = vmatpush1.bf16.msra.mxu0 0
      %841 = vmatprep.subr.bf16.mxu0 0
      %842 = vmatpush1.bf16.msra.mxu0 0
      %843 = vmatprep.subr.bf16.mxu0 0
      %844 = vmatpush1.bf16.msra.mxu0 0
      %845 = vmatprep.subr.bf16.mxu0 0
      %846 = vmatpush1.bf16.msra.mxu0 0
      %847 = vmatprep.mubr.bf16.mxu0 0
      %848 = vmatmul.mubr.bf16.gmra.mrb[0].mxu0 %v813
      %v849 = vpop.f32.mrb[0].mxu0
      %v850 = vadd.f32 %v794, %v849
      %v851 = vpop.f32.mrb[0].mxu0
      %v852 = vpop.f32.mrb[0].mxu0
      %v853 = vpop.f32.mrb[0].mxu0
      %854 = vdwg.mxu0
      %855 = vst.msk [vmem:[%s295] sm:$0xff] %vm811, %v850
      %p856 = scmp.lt.s32.totalorder %s20, 1
      %s857 = scalar_select %p856, %s20, 1
      %p858 = scmp.lt.s32.totalorder %s21, 0
      %s859 = scalar_select %p858, %s21, 0
      %s860 = sadd.s32 %s859, %s857
      %s861 = smul.addr %s860, 8
      %s862 = scalar_lea.vmem %s5, %s861
      // Predicated region
      $region41: #{_lambda_.43} parent=39 // pred_check
        %p863 = pneg %p172
      $region42: #{_lambda_.43} parent=39 // pred_check_branch
        %865 = sbr.rel (%p863) target = $region44
      $region43: #{_lambda_.43} parent=39 // pred_region
        _
      $region44: #{_lambda_.43} parent=39 // pred_fallthru
        _
    $region40: #{_lambda_.43} parent=5 // pred_fallthru
      _
    %p866 = scmp.le.s32.totalorder 2, %s11
    // Predicated region
    $region45: #{_lambda_.43} parent=5 // pred_check
      %p867 = pneg %p866
    $region46: #{_lambda_.43} parent=5 // pred_check_branch
      %869 = sbr.rel (%p867) target = $region48
    $region47: #{_lambda_.43} parent=5 // pred_region
      %s870 = ssub.s32 %s11, 2
      // Predicated region
      $region49: #{_lambda_.43} parent=47 // pred_check
        %p871 = pneg %p178
      $region50: #{_lambda_.43} parent=47 // pred_check_branch
        %873 = sbr.rel (%p871) target = $region52
      $region51: #{_lambda_.43} parent=47 // pred_region
        %p874 = scmp.lt.s32.totalorder %s22, 1
        %s875 = scalar_select %p874, %s22, 1
        %p876 = scmp.lt.s32.totalorder %s23, 0
        %s877 = scalar_select %p876, %s23, 0
        %s878 = sadd.s32 %s877, %s875
        %s879 = smul.addr %s878, 8
        %s880 = scalar_lea.vmem %s5, %s879
      $region52: #{_lambda_.43} parent=47 // pred_fallthru
        _
    $region48: #{_lambda_.43} parent=5 // pred_fallthru
      _
  $region6: #{_lambda_.43} parent=0 // loop_footer
    %s15 = sadd.s32 1, %s11
  $region7: #{_lambda_.43} parent=0 // loop_footer_branch
    %10 = sbr.rel target = $region3
  $region8: #{_lambda_.43} parent=0 // loop_exit
    _

</llo_original>
